<compile_context>
chip_gen: v6e
topology: v6e:2x2x1
jax: 0.10.0
libtpu: 0.0.40
codegen_flags: <defaults>
</compile_context>

<pallas_src>
import math
import functools

import jax
import jax.numpy as jnp
from jax import lax
from jax.experimental import pallas as pl
from jax.experimental.pallas import tpu as pltpu

# ----------------------------- model hyper-params ---------------------------
CF = 32                       # FPN channel width (real model: 256)
NUM_ANCHORS = 3               # aspect ratios per location
NUM_CLASSES = 8               # incl. background (real model: 81)
REP_DIM = 128                 # box-head MLP width (real model: 1024)
TOPK = 16                     # proposals kept per image
STRIDES = (4, 8, 16, 32, 64)
ANCHOR_SIZES = (32, 64, 128, 256, 512)
RATIOS = (0.5, 1.0, 2.0)

ROW_TILE = 512                # default row tile (512 ~ 85% of HBM roofline)
LANE = 128                    # lane width: tiny head outputs get padded to this
VMEM_LIMIT = 32 * 1024 * 1024


def _round_up(x, m):
    return ((x + m - 1) // m) * m


def _choose_row_tiles(M, row_tile):
    """(n_tiles, tm, mp): prefer >=2 and an even number of tiles (v7x has two
    TensorCores to shard the 'parallel' axis across); tm is a multiple of 16
    (bf16 sublane packing).  Chosen so mp == M on the hot launches."""
    n = max(1, -(-M // row_tile))
    if M > 16 and n < 2:
        n = 2
    if n > 1 and (n % 2):
        n += 1
    tm = _round_up(-(-M // n), 16)
    mp = tm * n
    return n, tm, mp


# ----------------------------- Pallas kernel ---------------------------------
def mlp_pallas(x, layers, *, row_tile=ROW_TILE, out_dtype=jnp.bfloat16):
    """y = actL( ... act1(x @ W1 + b1) ... @ WL + bL ), one pallas_call.

    x:(M, K); layers: sequence of (w:(K_i, N_i) bf16, b:(1, N_i) f32, act)
    with act in {None, 'relu', 'sigmoid'}.  Rows are tiled over a parallel
    grid axis; weights/biases are resident (constant block index).  Matmuls
    run on the MXU in bf16 with f32 accumulation; elementwise epilogues stay
    f32; the writeback dtype is `out_dtype` (bf16 by default so activations
    never round-trip HBM in f32).
    """
    M, K = x.shape
    n_layers = len(layers)
    acts = [a for (_, _, a) in layers]
    n_out = layers[-1][0].shape[1]

    n_tiles, tm, mp = _choose_row_tiles(M, row_tile)
    xin = x if mp == M else jnp.pad(x, ((0, mp - M), (0, 0)))

    def kernel(x_ref, *refs):
        o_ref = refs[-1]
        h = x_ref[...].astype(jnp.bfloat16)          # cast on loaded vregs
        for li in range(n_layers):
            w_ref = refs[2 * li]
            b_ref = refs[2 * li + 1]
            h = jnp.dot(h, w_ref[...], preferred_element_type=jnp.float32)
            h = h + b_ref[...]                       # f32 epilogue
            a = acts[li]
            if a == 'relu':
                h = jnp.maximum(h, 0.0)
            elif a == 'sigmoid':
                # exp (EUP) + approx reciprocal (EUP) instead of a VALU divide
                h = pl.reciprocal(1.0 + jnp.exp(-h), approx=True)
            if li + 1 < n_layers:
                h = h.astype(jnp.bfloat16)           # next layer's MXU LHS
        o_ref[...] = h.astype(o_ref.dtype)

    in_specs = [pl.BlockSpec((tm, K), lambda i: (i, 0))]
    operands = [xin]
    for w, b, _ in layers:
        kw, nw = w.shape
        # TODO(synk): at real sizes (CF=256, REP_DIM=1024) add a K grid axis
        # ('arbitrary', last) with a VMEM f32 accumulator and single-buffered
        # weight blocks so fc6 (~26 MiB bf16) fits v7x's 64 MiB VMEM.
        in_specs.append(pl.BlockSpec((kw, nw), lambda i: (0, 0)))
        in_specs.append(pl.BlockSpec((1, nw), lambda i: (0, 0)))
        operands.append(w)
        operands.append(b)

    out = pl.pallas_call(
        kernel,
        out_shape=jax.ShapeDtypeStruct((mp, n_out), out_dtype),
        grid=(n_tiles,),
        in_specs=in_specs,
        out_specs=pl.BlockSpec((tm, n_out), lambda i: (i, 0)),
        compiler_params=pltpu.CompilerParams(
            dimension_semantics=("parallel",),
            vmem_limit_bytes=VMEM_LIMIT),
    )(*operands)
    return out if mp == M else out[:M]


def im2col(x, ksize, padding):
    """Fused-K im2col (bf16 features): (N,H,W,Cin) -> (N*Ho*Wo, KH*KW*Cin)."""
    N, H, W, Cin = x.shape
    KH, KW = ksize
    if padding:
        x = jnp.pad(x, ((0, 0), (padding, padding), (padding, padding), (0, 0)))
    Ho = H + 2 * padding - KH + 1
    Wo = W + 2 * padding - KW + 1
    if KH == 1 and KW == 1:
        return x.reshape(N * Ho * Wo, Cin), (Ho, Wo)
    taps = [x[:, kh:kh + Ho, kw:kw + Wo, :]
            for kh in range(KH) for kw in range(KW)]
    cols = jnp.concatenate(taps, axis=-1)            # (N, Ho, Wo, KH*KW*Cin)
    return cols.reshape(N * Ho * Wo, KH * KW * Cin), (Ho, Wo)


def conv2d_pallas(x, w2d, b2d, ksize, *, padding=None, act=None,
                  row_tile=ROW_TILE, out_dtype=jnp.bfloat16):
    """Stride-1 conv: bf16 im2col glue + ONE K-fused MXU matmul (Pallas).
    TODO(synk): at real CF=256, build the taps in-kernel from a resident
    padded tile (per-tap K=256 is MXU friendly) instead of materializing the
    9x column tensor; kept as fused-K im2col here for lowering robustness at
    these tiny/odd spatial shapes."""
    N, H, W, Cin = x.shape
    KH, KW = ksize
    Cout = w2d.shape[1]
    if padding is None:
        padding = KH // 2
    cols, (Ho, Wo) = im2col(x, (KH, KW), padding)
    out = mlp_pallas(cols, [(w2d, b2d, act)], row_tile=row_tile,
                     out_dtype=out_dtype)
    return out.reshape(N, Ho, Wo, Cout)


# ----------------------------- glue helpers ----------------------------------
def avg_pool(x, k):
    N, H, W, C = x.shape
    return x.reshape(N, H // k, k, W // k, k, C).mean(axis=(2, 4))


def clip_boxes(boxes, sizes_hw):
    h = sizes_hw[:, 0]
    w = sizes_hw[:, 1]
    x1 = jnp.clip(boxes[:, 0], 0.0, w - 1.0)
    y1 = jnp.clip(boxes[:, 1], 0.0, h - 1.0)
    x2 = jnp.clip(boxes[:, 2], 0.0, w - 1.0)
    y2 = jnp.clip(boxes[:, 3], 0.0, h - 1.0)
    return jnp.stack([x1, y1, x2, y2], axis=1)


def box_decode(anchors, deltas, weights=(1.0, 1.0, 1.0, 1.0)):
    """maskrcnn_benchmark BoxCoder.decode (TO_REMOVE=1, dw/dh upper clamp).
    Plain JAX: at R = 32 a Pallas launch is pure overhead."""
    wx, wy, ww, wh = [float(v) for v in weights]
    clamp = math.log(1000.0 / 16.0)
    a = anchors.astype(jnp.float32)
    d = deltas.astype(jnp.float32)
    widths = a[:, 2] - a[:, 0] + 1.0
    heights = a[:, 3] - a[:, 1] + 1.0
    cx = a[:, 0] + 0.5 * widths
    cy = a[:, 1] + 0.5 * heights
    dx = d[:, 0] / wx
    dy = d[:, 1] / wy
    dw = jnp.minimum(d[:, 2] / ww, clamp)
    dh = jnp.minimum(d[:, 3] / wh, clamp)
    pcx = dx * widths + cx
    pcy = dy * heights + cy
    pw = jnp.exp(dw) * widths
    ph = jnp.exp(dh) * heights
    return jnp.stack([pcx - 0.5 * pw, pcy - 0.5 * ph,
                      pcx + 0.5 * pw - 1.0, pcy + 0.5 * ph - 1.0], axis=1)


def roi_pool_nearest(feat, boxes, batch_idx, pool, stride):
    # TODO(synk): bilinear ROIAlign + FPN level assignment replaced by
    # nearest-neighbor sampling from the finest FPN level.
    grid = (jnp.arange(pool, dtype=jnp.float32) + 0.5) / pool
    x1, y1, x2, y2 = boxes[:, 0], boxes[:, 1], boxes[:, 2], boxes[:, 3]
    ys = y1[:, None] + (y2 - y1)[:, None] * grid[None, :]
    xs = x1[:, None] + (x2 - x1)[:, None] * grid[None, :]
    yi = jnp.clip(jnp.floor(ys / stride), 0, feat.shape[1] - 1).astype(jnp.int32)
    xi = jnp.clip(jnp.floor(xs / stride), 0, feat.shape[2] - 1).astype(jnp.int32)
    return feat[batch_idx[:, None, None], yi[:, :, None], xi[:, None, :], :]


def generate_anchors(feat_shapes):
    ratios = jnp.array(RATIOS, dtype=jnp.float32)
    all_anchors = []
    for (h, w), stride, size in zip(feat_shapes, STRIDES, ANCHOR_SIZES):
        ws = size * jnp.sqrt(1.0 / ratios)
        hs = size * jnp.sqrt(ratios)
        c = (stride - 1) / 2.0
        base = jnp.stack([c - 0.5 * (ws - 1), c - 0.5 * (hs - 1),
                          c + 0.5 * (ws - 1), c + 0.5 * (hs - 1)], axis=1)
        sx = jnp.arange(w, dtype=jnp.float32) * stride
        sy = jnp.arange(h, dtype=jnp.float32) * stride
        mx, my = jnp.meshgrid(sx, sy)
        shifts = jnp.stack([mx.ravel(), my.ravel(), mx.ravel(), my.ravel()], axis=1)
        anchors = (shifts[:, None, :] + base[None, :, :]).reshape(-1, 4)
        all_anchors.append(anchors)
    return jnp.concatenate(all_anchors, axis=0)


# ----------------------------- parameters ------------------------------------
def init_params(key):
    keys = iter(jax.random.split(key, 64))

    def w(shape, scale=0.05):
        return scale * jax.random.normal(next(keys), shape, dtype=jnp.float32)

    p = {}
    p['stem_w'] = w((3, 3, 3, CF)); p['stem_b'] = jnp.zeros((CF,), jnp.float32)
    for name in ['c3', 'c4', 'c5']:
        p[f'{name}_w'] = w((3, 3, CF, CF)); p[f'{name}_b'] = jnp.zeros((CF,), jnp.float32)
    p['rpn_conv_w'] = w((3, 3, CF, CF)); p['rpn_conv_b'] = jnp.zeros((CF,), jnp.float32)
    p['rpn_cls_w'] = w((1, 1, CF, NUM_ANCHORS)); p['rpn_cls_b'] = jnp.zeros((NUM_ANCHORS,), jnp.float32)
    p['rpn_bbox_w'] = w((1, 1, CF, 4 * NUM_ANCHORS)); p['rpn_bbox_b'] = jnp.zeros((4 * NUM_ANCHORS,), jnp.float32)
    p['fc6_w'] = w((7 * 7 * CF, REP_DIM)); p['fc6_b'] = jnp.zeros((REP_DIM,), jnp.float32)
    p['fc7_w'] = w((REP_DIM, REP_DIM)); p['fc7_b'] = jnp.zeros((REP_DIM,), jnp.float32)
    p['cls_score_w'] = w((REP_DIM, NUM_CLASSES)); p['cls_score_b'] = jnp.zeros((NUM_CLASSES,), jnp.float32)
    p['bbox_pred_w'] = w((REP_DIM, 4 * NUM_CLASSES)); p['bbox_pred_b'] = jnp.zeros((4 * NUM_CLASSES,), jnp.float32)
    for i in range(4):
        p[f'mask_fcn{i + 1}_w'] = w((3, 3, CF, CF)); p[f'mask_fcn{i + 1}_b'] = jnp.zeros((CF,), jnp.float32)
    p['mask_deconv_w'] = w((CF, 4 * CF)); p['mask_deconv_b'] = jnp.zeros((CF,), jnp.float32)
    p['mask_pred_w'] = w((1, 1, CF, NUM_CLASSES)); p['mask_pred_b'] = jnp.zeros((NUM_CLASSES,), jnp.float32)
    return p


def _pad_lanes(w, b, lanes=LANE):
    """Zero-pad output columns of (K,N) / (N,) up to a multiple of 128 lanes."""
    n = w.shape[1]
    if n % lanes == 0:
        return w, b
    padn = _round_up(n, lanes) - n
    return jnp.pad(w, ((0, 0), (0, padn))), jnp.pad(b, ((0, padn),))


def prepare_inference_params(p):
    """One-time conversion of the synthetic f32 'torch-style' params into
    kernel-ready operands: bf16 reshaped conv/FC weights, f32 (1,N) biases,
    lane-padded fused heads, block-diagonal fused deconv+mask_pred.  Done
    eagerly once so no per-trace cast/pad ops wrap the microsecond kernels."""
    def conv_w(w):                       # (KH,KW,Cin,Cout) -> (KH*KW*Cin,Cout) bf16
        KH, KW, Cin, Cout = w.shape
        return w.reshape(KH * KW * Cin, Cout).astype(jnp.bfloat16)

    def bias(b):
        return b.reshape(1, -1).astype(jnp.float32)

    q = {}
    for name in ('stem', 'c3', 'c4', 'c5'):
        q[name] = (conv_w(p[f'{name}_w']), bias(p[f'{name}_b']))
    for i in range(4):
        q[f'mask_fcn{i + 1}'] = (conv_w(p[f'mask_fcn{i + 1}_w']),
                                 bias(p[f'mask_fcn{i + 1}_b']))

    # RPN: shared 3x3 conv + fused (cls|bbox) 1x1 heads, lane-padded to 128.
    w2 = jnp.concatenate([p['rpn_cls_w'].reshape(CF, NUM_ANCHORS),
                          p['rpn_bbox_w'].reshape(CF, 4 * NUM_ANCHORS)], axis=1)
    b2 = jnp.concatenate([p['rpn_cls_b'], p['rpn_bbox_b']])
    w2, b2 = _pad_lanes(w2, b2)
    q['rpn_l1'] = (conv_w(p['rpn_conv_w']), bias(p['rpn_conv_b']))
    q['rpn_l2'] = (w2.astype(jnp.bfloat16), bias(b2))

    # Box head: fc6 + fc7 + fused (cls_score|bbox_pred), lane-padded to 128.
    q['fc6'] = (p['fc6_w'].astype(jnp.bfloat16), bias(p['fc6_b']))
    q['fc7'] = (p['fc7_w'].astype(jnp.bfloat16), bias(p['fc7_b']))
    wcb = jnp.concatenate([p['cls_score_w'], p['bbox_pred_w']], axis=1)
    bcb = jnp.concatenate([p['cls_score_b'], p['bbox_pred_b']])
    wcb, bcb = _pad_lanes(wcb, bcb)
    q['cls_bbox'] = (wcb.astype(jnp.bfloat16), bias(bcb))

    # Mask head: ConvTranspose2d(k=2,s=2) as per-pixel linear (CF -> 4*CF,
    # relu, bias tiled over the 2x2 shuffle) fused with the 1x1 mask
    # predictor as a block-diagonal second layer (one quadrant block per
    # (dy,dx)), sigmoid in the kernel epilogue, lane-padded to 128.
    q['mask_l1'] = (p['mask_deconv_w'].astype(jnp.bfloat16),
                    bias(jnp.tile(p['mask_deconv_b'], 4)))
    wp = p['mask_pred_w'].reshape(CF, NUM_CLASSES)
    w2m = jnp.zeros((4 * CF, LANE), jnp.float32)
    b2m = jnp.zeros((LANE,), jnp.float32)
    for qd in range(4):
        w2m = w2m.at[qd * CF:(qd + 1) * CF,
                     qd * NUM_CLASSES:(qd + 1) * NUM_CLASSES].set(wp)
        b2m = b2m.at[qd * NUM_CLASSES:(qd + 1) * NUM_CLASSES].set(p['mask_pred_b'])
    q['mask_l2'] = (w2m.astype(jnp.bfloat16), bias(b2m))
    return q


# ----------------------------- Graphable --------------------------------------
def backbone(q, x):
    # TODO(synk): ResNet-50+FPN backbone replaced by a tiny synthetic 5-level conv pyramid.
    c = avg_pool(x, 4).astype(jnp.bfloat16)                          # stride 4, bf16 hot path
    c2 = conv2d_pallas(c, *q['stem'], (3, 3), act='relu')            # (N,16,16,CF)
    c3 = conv2d_pallas(avg_pool(c2, 2), *q['c3'], (3, 3), act='relu')
    c4 = conv2d_pallas(avg_pool(c3, 2), *q['c4'], (3, 3), act='relu')
    c5 = conv2d_pallas(avg_pool(c4, 2), *q['c5'], (3, 3), act='relu')
    p6 = avg_pool(c5, 2)                                             # (N,1,1,CF)
    return (c2, c3, c4, c5, p6)


def rpn_head(q, features):
    """Shared 3x3 conv + fused cls/bbox 1x1 heads for ALL FPN levels in ONE
    Pallas call (2-layer fused matmul, lane-padded output)."""
    N = features[0].shape[0]
    cols, shapes = [], []
    for f in features:
        c, (H, W) = im2col(f, (3, 3), 1)              # bf16 (N*H*W, 9*CF)
        cols.append(c.reshape(N, H * W, -1))
        shapes.append((H, W))
    xt = jnp.concatenate(cols, axis=1)                # (N, sumP, 9*CF)
    sum_p = xt.shape[1]
    xt = xt.reshape(N * sum_p, 9 * CF)

    out = mlp_pallas(xt, [q['rpn_l1'] + ('relu',), q['rpn_l2'] + (None,)])
    nout = NUM_ANCHORS + 4 * NUM_ANCHORS
    out = out[:, :nout].reshape(N, sum_p, nout)       # drop lane padding

    objectness, box_reg = [], []
    off = 0
    for (H, W) in shapes:
        npix = H * W
        blk = out[:, off:off + npix]
        objectness.append(blk[..., :NUM_ANCHORS].reshape(N, H, W, NUM_ANCHORS))
        box_reg.append(blk[..., NUM_ANCHORS:].reshape(N, H, W, 4 * NUM_ANCHORS))
        off += npix
    return objectness, box_reg


def graphable(q, images_nhwc, image_sizes_hw):
    features = backbone(q, images_nhwc)
    objectness, rpn_box_regression = rpn_head(q, features)
    feat_shapes = [(f.shape[1], f.shape[2]) for f in features]
    anchor_boxes = generate_anchors(feat_shapes)
    anchor_visibility = jnp.ones((images_nhwc.shape[0], anchor_boxes.shape[0]), jnp.float32)
    return features, objectness, rpn_box_regression, anchor_boxes, anchor_visibility


# ----------------------------- Combined_RPN_ROI (inference) -------------------
def box_selector_test(anchors, objectness, rpn_box_regression, image_sizes_hw, topk):
    N = objectness[0].shape[0]
    obj = jnp.concatenate([o.reshape(N, -1) for o in objectness], axis=1)             # (N, A)
    reg = jnp.concatenate([r.reshape(N, -1, 4) for r in rpn_box_regression], axis=1)  # (N, A, 4)
    scores = jax.nn.sigmoid(obj.astype(jnp.float32))   # tiny: no Pallas launch
    top_scores, idx = lax.top_k(scores, topk)                                          # (N, K)
    anchors_k = anchors[idx]                                                           # (N, K, 4)
    deltas_k = jnp.take_along_axis(reg, idx[:, :, None], axis=1)                       # (N, K, 4)
    proposals = box_decode(anchors_k.reshape(-1, 4), deltas_k.reshape(-1, 4))
    batch_idx = jnp.repeat(jnp.arange(N), topk)
    proposals = clip_boxes(proposals, image_sizes_hw[batch_idx])
    # TODO(synk): per-level pre/post-NMS top-k and NMS omitted (no clean Pallas equivalent).
    return proposals, top_scores.reshape(-1), batch_idx


def roi_box_head(q, features, proposals, batch_idx, image_sizes_hw):
    R = proposals.shape[0]
    pooled = roi_pool_nearest(features[0], proposals, batch_idx, pool=7, stride=STRIDES[0])
    x = pooled.reshape(R, -1)                          # bf16 (R, 7*7*CF)
    # fc6 + fc7 + fused cls_score/bbox_pred (lane-padded) in ONE kernel; f32 out
    # because logits/deltas feed softmax/box_decode directly (tiny tensor).
    out = mlp_pallas(x, [q['fc6'] + ('relu',), q['fc7'] + ('relu',),
                         q['cls_bbox'] + (None,)], out_dtype=jnp.float32)
    class_logits = out[:, :NUM_CLASSES]
    box_regression = out[:, NUM_CLASSES:5 * NUM_CLASSES]
    probs = jax.nn.softmax(class_logits, axis=-1)
    labels = jnp.argmax(probs[:, 1:], axis=-1) + 1                     # exclude background
    scores = jnp.take_along_axis(probs, labels[:, None], axis=1)[:, 0]
    deltas = box_regression.reshape(R, NUM_CLASSES, 4)
    cls_deltas = jnp.take_along_axis(deltas, labels[:, None, None], axis=1)[:, 0, :]
    det_boxes = box_decode(proposals, cls_deltas, weights=(10.0, 10.0, 5.0, 5.0))
    det_boxes = clip_boxes(det_boxes, image_sizes_hw[batch_idx])
    # TODO(synk): score thresholding + class-wise NMS omitted.
    return det_boxes, scores, labels


def roi_mask_head(q, features, det_boxes, batch_idx, labels):
    R = det_boxes.shape[0]
    x = roi_pool_nearest(features[0], det_boxes, batch_idx, pool=14, stride=STRIDES[0])
    # TODO(synk): fuse the four 3x3 convs into one per-ROI-resident kernel with
    # in-kernel halo taps at real CF=256; kept as bf16 K-fused im2col launches here.
    for i in range(4):
        x = conv2d_pallas(x, *q[f'mask_fcn{i + 1}'], (3, 3), act='relu')
    # Deconv (relu) + block-diagonal 1x1 mask predictor + sigmoid: ONE 2-layer
    # kernel; the 2x2 pixel shuffle is XLA glue on the (already tiny) output.
    y = mlp_pallas(x.reshape(R * 14 * 14, CF),
                   [q['mask_l1'] + ('relu',), q['mask_l2'] + ('sigmoid',)])
    y = y[:, :4 * NUM_CLASSES].reshape(R, 14, 14, 2, 2, NUM_CLASSES)
    mask_probs = y.transpose(0, 1, 3, 2, 4, 5).reshape(R, 28, 28, NUM_CLASSES)
    masks = jnp.take_along_axis(mask_probs, labels[:, None, None, None], axis=3)[..., 0]
    return masks.astype(jnp.float32)


def combined_rpn_roi(q, anchor_boxes, objectness, rpn_box_regression, features, image_sizes_hw):
    proposals, prop_scores, batch_idx = box_selector_test(
        anchor_boxes, objectness, rpn_box_regression, image_sizes_hw, TOPK)
    det_boxes, det_scores, det_labels = roi_box_head(
        q, features, proposals, batch_idx, image_sizes_hw)
    masks = roi_mask_head(q, features, det_boxes, batch_idx, det_labels)
    return {'boxes': det_boxes, 'scores': det_scores, 'labels': det_labels,
            'masks': masks, 'batch_idx': batch_idx}


def generalized_rcnn_forward(q, images_nchw, image_sizes_hw):
    # TODO(synk): training branch (loss evaluators, target subsampling, CUDA streams) omitted.
    images_nhwc = jnp.transpose(images_nchw, (0, 2, 3, 1))   # NCHW -> NHWC (cfg.NHWC path)
    features, objectness, rpn_box_regression, anchor_boxes, anchor_visibility = graphable(
        q, images_nhwc, image_sizes_hw)
    del anchor_visibility  # all anchors visible in this synthetic setup
    return combined_rpn_roi(q, anchor_boxes, objectness, rpn_box_regression,
                            features, image_sizes_hw)


# ----------------------------- main -------------------------------------------
if __name__ == "__main__":
    key = jax.random.PRNGKey(0)
    pkey, ikey = jax.random.split(key)
    raw_params = init_params(pkey)
    prep = prepare_inference_params(raw_params)      # one-time bf16 / fused / padded weights
    images = jax.random.normal(ikey, (2, 3, 64, 64), dtype=jnp.float32)      # NCHW like PyTorch
    image_sizes_hw = jnp.array([[64.0, 64.0], [64.0, 64.0]], dtype=jnp.float32)

    fwd = jax.jit(functools.partial(generalized_rcnn_forward, prep))
    out = fwd(images, image_sizes_hw)
    jax.block_until_ready(out)
    print("KERNEL_OK")
</pallas_src>

<mosaic_0001>
module attributes {stable_mosaic.version = 11 : i64} {
  func.func @kernel(%arg0: i32, %arg1: memref<256x27xbf16, #tpu.memory_space<vmem>>, %arg2: memref<27x32xbf16, #tpu.memory_space<vmem>>, %arg3: memref<1x32xf32, #tpu.memory_space<vmem>>, %arg4: memref<256x32xbf16, #tpu.memory_space<vmem>>) attributes {dimension_semantics = [#tpu.dimension_semantics<parallel>], iteration_bounds = array<i64: 2>, scalar_prefetch = 0 : i64, scratch_operands = 0 : i64, tpu.core_type = #tpu.core_type<tc>, window_params = [{transform_indices = @transform_0, window_bounds = array<i64: 256, 27>}, {pipeline_mode = #tpu.pipeline_mode<synchronous>, transform_indices = @transform_1, window_bounds = array<i64: 27, 32>}, {pipeline_mode = #tpu.pipeline_mode<synchronous>, transform_indices = @transform_2, window_bounds = array<i64: 1, 32>}, {transform_indices = @transform_3, window_bounds = array<i64: 256, 32>}]} {
    %c0 = arith.constant 0 : index
    %c0_0 = arith.constant 0 : index
    %0 = vector.load %arg1[%c0, %c0_0] : memref<256x27xbf16, #tpu.memory_space<vmem>>, vector<256x27xbf16>
    %c0_1 = arith.constant 0 : index
    %c0_2 = arith.constant 0 : index
    %1 = vector.load %arg2[%c0_1, %c0_2] : memref<27x32xbf16, #tpu.memory_space<vmem>>, vector<27x32xbf16>
    %cst = arith.constant dense<0.000000e+00> : vector<256x32xf32>
    %2 = tpu.matmul %0, %1, %cst {dimension_numbers = #tpu.dot_dimension_numbers<[1], [0], [0], [1], [0, 0, 1, 1], [], []>} : vector<256x27xbf16>, vector<27x32xbf16>, vector<256x32xf32> -> vector<256x32xf32>
    %c0_3 = arith.constant 0 : index
    %c0_4 = arith.constant 0 : index
    %3 = vector.load %arg3[%c0_3, %c0_4] : memref<1x32xf32, #tpu.memory_space<vmem>>, vector<1x32xf32>
    %4 = vector.broadcast %3 : vector<1x32xf32> to vector<256x32xf32>
    %5 = arith.addf %2, %4 : vector<256x32xf32>
    %cst_5 = arith.constant 0.000000e+00 : f32
    %6 = vector.broadcast %cst_5 : f32 to vector<256x32xf32>
    %7 = arith.maximumf %5, %6 : vector<256x32xf32>
    %8 = arith.truncf %7 : vector<256x32xf32> to vector<256x32xbf16>
    %c0_6 = arith.constant 0 : index
    %c0_7 = arith.constant 0 : index
    %9 = vector.load %arg4[%c0_6, %c0_7] : memref<256x32xbf16, #tpu.memory_space<vmem>>, vector<256x32xbf16>
    tpu.vector_store %arg4[%c0_6, %c0_7], %8 {strides = array<i32>} : memref<256x32xbf16, #tpu.memory_space<vmem>>, vector<256x32xbf16>,
    return
  }
  func.func @transform_0(%arg0: i32) -> (i32, i32) {
    %c0_i32 = arith.constant 0 : i32
    %c0_i32_0 = arith.constant 0 : i32
    return %arg0, %c0_i32 : i32, i32
  }
  func.func @transform_1(%arg0: i32) -> (i32, i32) {
    %c0_i32 = arith.constant 0 : i32
    %c0_i32_0 = arith.constant 0 : i32
    %c0_i32_1 = arith.constant 0 : i32
    return %c0_i32, %c0_i32_0 : i32, i32
  }
  func.func @transform_2(%arg0: i32) -> (i32, i32) {
    %c0_i32 = arith.constant 0 : i32
    %c0_i32_0 = arith.constant 0 : i32
    %c0_i32_1 = arith.constant 0 : i32
    return %c0_i32, %c0_i32_0 : i32, i32
  }
  func.func @transform_3(%arg0: i32) -> (i32, i32) {
    %c0_i32 = arith.constant 0 : i32
    %c0_i32_0 = arith.constant 0 : i32
    return %arg0, %c0_i32 : i32, i32
  }
}

module attributes {stable_mosaic.version = 11 : i64} {
  func.func @kernel(%arg0: i32, %arg1: memref<64x288xbf16, #tpu.memory_space<vmem>>, %arg2: memref<288x32xbf16, #tpu.memory_space<vmem>>, %arg3: memref<1x32xf32, #tpu.memory_space<vmem>>, %arg4: memref<64x32xbf16, #tpu.memory_space<vmem>>) attributes {dimension_semantics = [#tpu.dimension_semantics<parallel>], iteration_bounds = array<i64: 2>, scalar_prefetch = 0 : i64, scratch_operands = 0 : i64, tpu.core_type = #tpu.core_type<tc>, window_params = [{transform_indices = @transform_0, window_bounds = array<i64: 64, 288>}, {pipeline_mode = #tpu.pipeline_mode<synchronous>, transform_indices = @transform_1, window_bounds = array<i64: 288, 32>}, {pipeline_mode = #tpu.pipeline_mode<synchronous>, transform_indices = @transform_2, window_bounds = array<i64: 1, 32>}, {transform_indices = @transform_3, window_bounds = array<i64: 64, 32>}]} {
    %c0 = arith.constant 0 : index
    %c0_0 = arith.constant 0 : index
    %0 = vector.load %arg1[%c0, %c0_0] : memref<64x288xbf16, #tpu.memory_space<vmem>>, vector<64x288xbf16>
    %c0_1 = arith.constant 0 : index
    %c0_2 = arith.constant 0 : index
    %1 = vector.load %arg2[%c0_1, %c0_2] : memref<288x32xbf16, #tpu.memory_space<vmem>>, vector<288x32xbf16>
    %cst = arith.constant dense<0.000000e+00> : vector<64x32xf32>
    %2 = tpu.matmul %0, %1, %cst {dimension_numbers = #tpu.dot_dimension_numbers<[1], [0], [0], [1], [0, 0, 1, 1], [], []>} : vector<64x288xbf16>, vector<288x32xbf16>, vector<64x32xf32> -> vector<64x32xf32>
    %c0_3 = arith.constant 0 : index
    %c0_4 = arith.constant 0 : index
    %3 = vector.load %arg3[%c0_3, %c0_4] : memref<1x32xf32, #tpu.memory_space<vmem>>, vector<1x32xf32>
    %4 = vector.broadcast %3 : vector<1x32xf32> to vector<64x32xf32>
    %5 = arith.addf %2, %4 : vector<64x32xf32>
    %cst_5 = arith.constant 0.000000e+00 : f32
    %6 = vector.broadcast %cst_5 : f32 to vector<64x32xf32>
    %7 = arith.maximumf %5, %6 : vector<64x32xf32>
    %8 = arith.truncf %7 : vector<64x32xf32> to vector<64x32xbf16>
    %c0_6 = arith.constant 0 : index
    %c0_7 = arith.constant 0 : index
    %9 = vector.load %arg4[%c0_6, %c0_7] : memref<64x32xbf16, #tpu.memory_space<vmem>>, vector<64x32xbf16>
    tpu.vector_store %arg4[%c0_6, %c0_7], %8 {strides = array<i32>} : memref<64x32xbf16, #tpu.memory_space<vmem>>, vector<64x32xbf16>,
    return
  }
  func.func @transform_0(%arg0: i32) -> (i32, i32) {
    %c0_i32 = arith.constant 0 : i32
    %c0_i32_0 = arith.constant 0 : i32
    return %arg0, %c0_i32 : i32, i32
  }
  func.func @transform_1(%arg0: i32) -> (i32, i32) {
    %c0_i32 = arith.constant 0 : i32
    %c0_i32_0 = arith.constant 0 : i32
    %c0_i32_1 = arith.constant 0 : i32
    return %c0_i32, %c0_i32_0 : i32, i32
  }
  func.func @transform_2(%arg0: i32) -> (i32, i32) {
    %c0_i32 = arith.constant 0 : i32
    %c0_i32_0 = arith.constant 0 : i32
    %c0_i32_1 = arith.constant 0 : i32
    return %c0_i32, %c0_i32_0 : i32, i32
  }
  func.func @transform_3(%arg0: i32) -> (i32, i32) {
    %c0_i32 = arith.constant 0 : i32
    %c0_i32_0 = arith.constant 0 : i32
    return %arg0, %c0_i32 : i32, i32
  }
}

module attributes {stable_mosaic.version = 11 : i64} {
  func.func @kernel(%arg0: i32, %arg1: memref<16x288xbf16, #tpu.memory_space<vmem>>, %arg2: memref<288x32xbf16, #tpu.memory_space<vmem>>, %arg3: memref<1x32xf32, #tpu.memory_space<vmem>>, %arg4: memref<16x32xbf16, #tpu.memory_space<vmem>>) attributes {dimension_semantics = [#tpu.dimension_semantics<parallel>], iteration_bounds = array<i64: 2>, scalar_prefetch = 0 : i64, scratch_operands = 0 : i64, tpu.core_type = #tpu.core_type<tc>, window_params = [{transform_indices = @transform_0, window_bounds = array<i64: 16, 288>}, {pipeline_mode = #tpu.pipeline_mode<synchronous>, transform_indices = @transform_1, window_bounds = array<i64: 288, 32>}, {pipeline_mode = #tpu.pipeline_mode<synchronous>, transform_indices = @transform_2, window_bounds = array<i64: 1, 32>}, {transform_indices = @transform_3, window_bounds = array<i64: 16, 32>}]} {
    %c0 = arith.constant 0 : index
    %c0_0 = arith.constant 0 : index
    %0 = vector.load %arg1[%c0, %c0_0] : memref<16x288xbf16, #tpu.memory_space<vmem>>, vector<16x288xbf16>
    %c0_1 = arith.constant 0 : index
    %c0_2 = arith.constant 0 : index
    %1 = vector.load %arg2[%c0_1, %c0_2] : memref<288x32xbf16, #tpu.memory_space<vmem>>, vector<288x32xbf16>
    %cst = arith.constant dense<0.000000e+00> : vector<16x32xf32>
    %2 = tpu.matmul %0, %1, %cst {dimension_numbers = #tpu.dot_dimension_numbers<[1], [0], [0], [1], [0, 0, 1, 1], [], []>} : vector<16x288xbf16>, vector<288x32xbf16>, vector<16x32xf32> -> vector<16x32xf32>
    %c0_3 = arith.constant 0 : index
    %c0_4 = arith.constant 0 : index
    %3 = vector.load %arg3[%c0_3, %c0_4] : memref<1x32xf32, #tpu.memory_space<vmem>>, vector<1x32xf32>
    %4 = vector.broadcast %3 : vector<1x32xf32> to vector<16x32xf32>
    %5 = arith.addf %2, %4 : vector<16x32xf32>
    %cst_5 = arith.constant 0.000000e+00 : f32
    %6 = vector.broadcast %cst_5 : f32 to vector<16x32xf32>
    %7 = arith.maximumf %5, %6 : vector<16x32xf32>
    %8 = arith.truncf %7 : vector<16x32xf32> to vector<16x32xbf16>
    %c0_6 = arith.constant 0 : index
    %c0_7 = arith.constant 0 : index
    %9 = vector.load %arg4[%c0_6, %c0_7] : memref<16x32xbf16, #tpu.memory_space<vmem>>, vector<16x32xbf16>
    tpu.vector_store %arg4[%c0_6, %c0_7], %8 {strides = array<i32>} : memref<16x32xbf16, #tpu.memory_space<vmem>>, vector<16x32xbf16>,
    return
  }
  func.func @transform_0(%arg0: i32) -> (i32, i32) {
    %c0_i32 = arith.constant 0 : i32
    %c0_i32_0 = arith.constant 0 : i32
    return %arg0, %c0_i32 : i32, i32
  }
  func.func @transform_1(%arg0: i32) -> (i32, i32) {
    %c0_i32 = arith.constant 0 : i32
    %c0_i32_0 = arith.constant 0 : i32
    %c0_i32_1 = arith.constant 0 : i32
    return %c0_i32, %c0_i32_0 : i32, i32
  }
  func.func @transform_2(%arg0: i32) -> (i32, i32) {
    %c0_i32 = arith.constant 0 : i32
    %c0_i32_0 = arith.constant 0 : i32
    %c0_i32_1 = arith.constant 0 : i32
    return %c0_i32, %c0_i32_0 : i32, i32
  }
  func.func @transform_3(%arg0: i32) -> (i32, i32) {
    %c0_i32 = arith.constant 0 : i32
    %c0_i32_0 = arith.constant 0 : i32
    return %arg0, %c0_i32 : i32, i32
  }
}

module attributes {stable_mosaic.version = 11 : i64} {
  func.func @kernel(%arg0: i32, %arg1: memref<16x288xbf16, #tpu.memory_space<vmem>>, %arg2: memref<288x32xbf16, #tpu.memory_space<vmem>>, %arg3: memref<1x32xf32, #tpu.memory_space<vmem>>, %arg4: memref<16x32xbf16, #tpu.memory_space<vmem>>) attributes {dimension_semantics = [#tpu.dimension_semantics<parallel>], iteration_bounds = array<i64: 1>, scalar_prefetch = 0 : i64, scratch_operands = 0 : i64, tpu.core_type = #tpu.core_type<tc>, window_params = [{transform_indices = @transform_0, window_bounds = array<i64: 16, 288>}, {pipeline_mode = #tpu.pipeline_mode<synchronous>, transform_indices = @transform_1, window_bounds = array<i64: 288, 32>}, {pipeline_mode = #tpu.pipeline_mode<synchronous>, transform_indices = @transform_2, window_bounds = array<i64: 1, 32>}, {transform_indices = @transform_3, window_bounds = array<i64: 16, 32>}]} {
    %c0 = arith.constant 0 : index
    %c0_0 = arith.constant 0 : index
    %0 = vector.load %arg1[%c0, %c0_0] : memref<16x288xbf16, #tpu.memory_space<vmem>>, vector<16x288xbf16>
    %c0_1 = arith.constant 0 : index
    %c0_2 = arith.constant 0 : index
    %1 = vector.load %arg2[%c0_1, %c0_2] : memref<288x32xbf16, #tpu.memory_space<vmem>>, vector<288x32xbf16>
    %cst = arith.constant dense<0.000000e+00> : vector<16x32xf32>
    %2 = tpu.matmul %0, %1, %cst {dimension_numbers = #tpu.dot_dimension_numbers<[1], [0], [0], [1], [0, 0, 1, 1], [], []>} : vector<16x288xbf16>, vector<288x32xbf16>, vector<16x32xf32> -> vector<16x32xf32>
    %c0_3 = arith.constant 0 : index
    %c0_4 = arith.constant 0 : index
    %3 = vector.load %arg3[%c0_3, %c0_4] : memref<1x32xf32, #tpu.memory_space<vmem>>, vector<1x32xf32>
    %4 = vector.broadcast %3 : vector<1x32xf32> to vector<16x32xf32>
    %5 = arith.addf %2, %4 : vector<16x32xf32>
    %cst_5 = arith.constant 0.000000e+00 : f32
    %6 = vector.broadcast %cst_5 : f32 to vector<16x32xf32>
    %7 = arith.maximumf %5, %6 : vector<16x32xf32>
    %8 = arith.truncf %7 : vector<16x32xf32> to vector<16x32xbf16>
    %c0_6 = arith.constant 0 : index
    %c0_7 = arith.constant 0 : index
    %9 = vector.load %arg4[%c0_6, %c0_7] : memref<16x32xbf16, #tpu.memory_space<vmem>>, vector<16x32xbf16>
    tpu.vector_store %arg4[%c0_6, %c0_7], %8 {strides = array<i32>} : memref<16x32xbf16, #tpu.memory_space<vmem>>, vector<16x32xbf16>,
    return
  }
  func.func @transform_0(%arg0: i32) -> (i32, i32) {
    %c0_i32 = arith.constant 0 : i32
    %c0_i32_0 = arith.constant 0 : i32
    return %arg0, %c0_i32 : i32, i32
  }
  func.func @transform_1(%arg0: i32) -> (i32, i32) {
    %c0_i32 = arith.constant 0 : i32
    %c0_i32_0 = arith.constant 0 : i32
    %c0_i32_1 = arith.constant 0 : i32
    return %c0_i32, %c0_i32_0 : i32, i32
  }
  func.func @transform_2(%arg0: i32) -> (i32, i32) {
    %c0_i32 = arith.constant 0 : i32
    %c0_i32_0 = arith.constant 0 : i32
    %c0_i32_1 = arith.constant 0 : i32
    return %c0_i32, %c0_i32_0 : i32, i32
  }
  func.func @transform_3(%arg0: i32) -> (i32, i32) {
    %c0_i32 = arith.constant 0 : i32
    %c0_i32_0 = arith.constant 0 : i32
    return %arg0, %c0_i32 : i32, i32
  }
}

module attributes {stable_mosaic.version = 11 : i64} {
  func.func @kernel(%arg0: i32, %arg1: memref<352x288xbf16, #tpu.memory_space<vmem>>, %arg2: memref<288x32xbf16, #tpu.memory_space<vmem>>, %arg3: memref<1x32xf32, #tpu.memory_space<vmem>>, %arg4: memref<32x128xbf16, #tpu.memory_space<vmem>>, %arg5: memref<1x128xf32, #tpu.memory_space<vmem>>, %arg6: memref<352x128xbf16, #tpu.memory_space<vmem>>) attributes {dimension_semantics = [#tpu.dimension_semantics<parallel>], iteration_bounds = array<i64: 2>, scalar_prefetch = 0 : i64, scratch_operands = 0 : i64, tpu.core_type = #tpu.core_type<tc>, window_params = [{transform_indices = @transform_0, window_bounds = array<i64: 352, 288>}, {pipeline_mode = #tpu.pipeline_mode<synchronous>, transform_indices = @transform_1, window_bounds = array<i64: 288, 32>}, {pipeline_mode = #tpu.pipeline_mode<synchronous>, transform_indices = @transform_2, window_bounds = array<i64: 1, 32>}, {pipeline_mode = #tpu.pipeline_mode<synchronous>, transform_indices = @transform_3, window_bounds = array<i64: 32, 128>}, {pipeline_mode = #tpu.pipeline_mode<synchronous>, transform_indices = @transform_4, window_bounds = array<i64: 1, 128>}, {transform_indices = @transform_5, window_bounds = array<i64: 352, 128>}]} {
    %c0 = arith.constant 0 : index
    %c0_0 = arith.constant 0 : index
    %0 = vector.load %arg1[%c0, %c0_0] : memref<352x288xbf16, #tpu.memory_space<vmem>>, vector<352x288xbf16>
    %c0_1 = arith.constant 0 : index
    %c0_2 = arith.constant 0 : index
    %1 = vector.load %arg2[%c0_1, %c0_2] : memref<288x32xbf16, #tpu.memory_space<vmem>>, vector<288x32xbf16>
    %cst = arith.constant dense<0.000000e+00> : vector<352x32xf32>
    %2 = tpu.matmul %0, %1, %cst {dimension_numbers = #tpu.dot_dimension_numbers<[1], [0], [0], [1], [0, 0, 1, 1], [], []>} : vector<352x288xbf16>, vector<288x32xbf16>, vector<352x32xf32> -> vector<352x32xf32>
    %c0_3 = arith.constant 0 : index
    %c0_4 = arith.constant 0 : index
    %3 = vector.load %arg3[%c0_3, %c0_4] : memref<1x32xf32, #tpu.memory_space<vmem>>, vector<1x32xf32>
    %4 = vector.broadcast %3 : vector<1x32xf32> to vector<352x32xf32>
    %5 = arith.addf %2, %4 : vector<352x32xf32>
    %cst_5 = arith.constant 0.000000e+00 : f32
    %6 = vector.broadcast %cst_5 : f32 to vector<352x32xf32>
    %7 = arith.maximumf %5, %6 : vector<352x32xf32>
    %8 = arith.truncf %7 : vector<352x32xf32> to vector<352x32xbf16>
    %c0_6 = arith.constant 0 : index
    %c0_7 = arith.constant 0 : index
    %9 = vector.load %arg4[%c0_6, %c0_7] : memref<32x128xbf16, #tpu.memory_space<vmem>>, vector<32x128xbf16>
    %cst_8 = arith.constant dense<0.000000e+00> : vector<352x128xf32>
    %10 = tpu.matmul %8, %9, %cst_8 {dimension_numbers = #tpu.dot_dimension_numbers<[1], [0], [0], [1], [0, 0, 1, 1], [], []>} : vector<352x32xbf16>, vector<32x128xbf16>, vector<352x128xf32> -> vector<352x128xf32>
    %c0_9 = arith.constant 0 : index
    %c0_10 = arith.constant 0 : index
    %11 = vector.load %arg5[%c0_9, %c0_10] : memref<1x128xf32, #tpu.memory_space<vmem>>, vector<1x128xf32>
    %12 = vector.broadcast %11 : vector<1x128xf32> to vector<352x128xf32>
    %13 = arith.addf %10, %12 : vector<352x128xf32>
    %14 = arith.truncf %13 : vector<352x128xf32> to vector<352x128xbf16>
    %c0_11 = arith.constant 0 : index
    %c0_12 = arith.constant 0 : index
    %15 = vector.load %arg6[%c0_11, %c0_12] : memref<352x128xbf16, #tpu.memory_space<vmem>>, vector<352x128xbf16>
    tpu.vector_store %arg6[%c0_11, %c0_12], %14 {strides = array<i32>} : memref<352x128xbf16, #tpu.memory_space<vmem>>, vector<352x128xbf16>,
    return
  }
  func.func @transform_0(%arg0: i32) -> (i32, i32) {
    %c0_i32 = arith.constant 0 : i32
    %c0_i32_0 = arith.constant 0 : i32
    return %arg0, %c0_i32 : i32, i32
  }
  func.func @transform_1(%arg0: i32) -> (i32, i32) {
    %c0_i32 = arith.constant 0 : i32
    %c0_i32_0 = arith.constant 0 : i32
    %c0_i32_1 = arith.constant 0 : i32
    return %c0_i32, %c0_i32_0 : i32, i32
  }
  func.func @transform_2(%arg0: i32) -> (i32, i32) {
    %c0_i32 = arith.constant 0 : i32
    %c0_i32_0 = arith.constant 0 : i32
    %c0_i32_1 = arith.constant 0 : i32
    return %c0_i32, %c0_i32_0 : i32, i32
  }
  func.func @transform_3(%arg0: i32) -> (i32, i32) {
    %c0_i32 = arith.constant 0 : i32
    %c0_i32_0 = arith.constant 0 : i32
    %c0_i32_1 = arith.constant 0 : i32
    return %c0_i32, %c0_i32_0 : i32, i32
  }
  func.func @transform_4(%arg0: i32) -> (i32, i32) {
    %c0_i32 = arith.constant 0 : i32
    %c0_i32_0 = arith.constant 0 : i32
    %c0_i32_1 = arith.constant 0 : i32
    return %c0_i32, %c0_i32_0 : i32, i32
  }
  func.func @transform_5(%arg0: i32) -> (i32, i32) {
    %c0_i32 = arith.constant 0 : i32
    %c0_i32_0 = arith.constant 0 : i32
    return %arg0, %c0_i32 : i32, i32
  }
}

module attributes {stable_mosaic.version = 11 : i64} {
  func.func @kernel(%arg0: i32, %arg1: memref<16x1568xbf16, #tpu.memory_space<vmem>>, %arg2: memref<1568x128xbf16, #tpu.memory_space<vmem>>, %arg3: memref<1x128xf32, #tpu.memory_space<vmem>>, %arg4: memref<128x128xbf16, #tpu.memory_space<vmem>>, %arg5: memref<1x128xf32, #tpu.memory_space<vmem>>, %arg6: memref<128x128xbf16, #tpu.memory_space<vmem>>, %arg7: memref<1x128xf32, #tpu.memory_space<vmem>>, %arg8: memref<16x128xf32, #tpu.memory_space<vmem>>) attributes {dimension_semantics = [#tpu.dimension_semantics<parallel>], iteration_bounds = array<i64: 2>, scalar_prefetch = 0 : i64, scratch_operands = 0 : i64, tpu.core_type = #tpu.core_type<tc>, window_params = [{transform_indices = @transform_0, window_bounds = array<i64: 16, 1568>}, {pipeline_mode = #tpu.pipeline_mode<synchronous>, transform_indices = @transform_1, window_bounds = array<i64: 1568, 128>}, {pipeline_mode = #tpu.pipeline_mode<synchronous>, transform_indices = @transform_2, window_bounds = array<i64: 1, 128>}, {pipeline_mode = #tpu.pipeline_mode<synchronous>, transform_indices = @transform_3, window_bounds = array<i64: 128, 128>}, {pipeline_mode = #tpu.pipeline_mode<synchronous>, transform_indices = @transform_4, window_bounds = array<i64: 1, 128>}, {pipeline_mode = #tpu.pipeline_mode<synchronous>, transform_indices = @transform_5, window_bounds = array<i64: 128, 128>}, {pipeline_mode = #tpu.pipeline_mode<synchronous>, transform_indices = @transform_6, window_bounds = array<i64: 1, 128>}, {transform_indices = @transform_7, window_bounds = array<i64: 16, 128>}]} {
    %c0 = arith.constant 0 : index
    %c0_0 = arith.constant 0 : index
    %0 = vector.load %arg1[%c0, %c0_0] : memref<16x1568xbf16, #tpu.memory_space<vmem>>, vector<16x1568xbf16>
    %c0_1 = arith.constant 0 : index
    %c0_2 = arith.constant 0 : index
    %1 = vector.load %arg2[%c0_1, %c0_2] : memref<1568x128xbf16, #tpu.memory_space<vmem>>, vector<1568x128xbf16>
    %cst = arith.constant dense<0.000000e+00> : vector<16x128xf32>
    %2 = tpu.matmul %0, %1, %cst {dimension_numbers = #tpu.dot_dimension_numbers<[1], [0], [0], [1], [0, 0, 1, 1], [], []>} : vector<16x1568xbf16>, vector<1568x128xbf16>, vector<16x128xf32> -> vector<16x128xf32>
    %c0_3 = arith.constant 0 : index
    %c0_4 = arith.constant 0 : index
    %3 = vector.load %arg3[%c0_3, %c0_4] : memref<1x128xf32, #tpu.memory_space<vmem>>, vector<1x128xf32>
    %4 = vector.broadcast %3 : vector<1x128xf32> to vector<16x128xf32>
    %5 = arith.addf %2, %4 : vector<16x128xf32>
    %cst_5 = arith.constant 0.000000e+00 : f32
    %6 = vector.broadcast %cst_5 : f32 to vector<16x128xf32>
    %7 = arith.maximumf %5, %6 : vector<16x128xf32>
    %8 = arith.truncf %7 : vector<16x128xf32> to vector<16x128xbf16>
    %c0_6 = arith.constant 0 : index
    %c0_7 = arith.constant 0 : index
    %9 = vector.load %arg4[%c0_6, %c0_7] : memref<128x128xbf16, #tpu.memory_space<vmem>>, vector<128x128xbf16>
    %cst_8 = arith.constant dense<0.000000e+00> : vector<16x128xf32>
    %10 = tpu.matmul %8, %9, %cst_8 {dimension_numbers = #tpu.dot_dimension_numbers<[1], [0], [0], [1], [0, 0, 1, 1], [], []>} : vector<16x128xbf16>, vector<128x128xbf16>, vector<16x128xf32> -> vector<16x128xf32>
    %c0_9 = arith.constant 0 : index
    %c0_10 = arith.constant 0 : index
    %11 = vector.load %arg5[%c0_9, %c0_10] : memref<1x128xf32, #tpu.memory_space<vmem>>, vector<1x128xf32>
    %12 = vector.broadcast %11 : vector<1x128xf32> to vector<16x128xf32>
    %13 = arith.addf %10, %12 : vector<16x128xf32>
    %cst_11 = arith.constant 0.000000e+00 : f32
    %14 = vector.broadcast %cst_11 : f32 to vector<16x128xf32>
    %15 = arith.maximumf %13, %14 : vector<16x128xf32>
    %16 = arith.truncf %15 : vector<16x128xf32> to vector<16x128xbf16>
    %c0_12 = arith.constant 0 : index
    %c0_13 = arith.constant 0 : index
    %17 = vector.load %arg6[%c0_12, %c0_13] : memref<128x128xbf16, #tpu.memory_space<vmem>>, vector<128x128xbf16>
    %cst_14 = arith.constant dense<0.000000e+00> : vector<16x128xf32>
    %18 = tpu.matmul %16, %17, %cst_14 {dimension_numbers = #tpu.dot_dimension_numbers<[1], [0], [0], [1], [0, 0, 1, 1], [], []>} : vector<16x128xbf16>, vector<128x128xbf16>, vector<16x128xf32> -> vector<16x128xf32>
    %c0_15 = arith.constant 0 : index
    %c0_16 = arith.constant 0 : index
    %19 = vector.load %arg7[%c0_15, %c0_16] : memref<1x128xf32, #tpu.memory_space<vmem>>, vector<1x128xf32>
    %20 = vector.broadcast %19 : vector<1x128xf32> to vector<16x128xf32>
    %21 = arith.addf %18, %20 : vector<16x128xf32>
    %c0_17 = arith.constant 0 : index
    %c0_18 = arith.constant 0 : index
    %22 = vector.load %arg8[%c0_17, %c0_18] : memref<16x128xf32, #tpu.memory_space<vmem>>, vector<16x128xf32>
    tpu.vector_store %arg8[%c0_17, %c0_18], %21 {strides = array<i32>} : memref<16x128xf32, #tpu.memory_space<vmem>>, vector<16x128xf32>,
    return
  }
  func.func @transform_0(%arg0: i32) -> (i32, i32) {
    %c0_i32 = arith.constant 0 : i32
    %c0_i32_0 = arith.constant 0 : i32
    return %arg0, %c0_i32 : i32, i32
  }
  func.func @transform_1(%arg0: i32) -> (i32, i32) {
    %c0_i32 = arith.constant 0 : i32
    %c0_i32_0 = arith.constant 0 : i32
    %c0_i32_1 = arith.constant 0 : i32
    return %c0_i32, %c0_i32_0 : i32, i32
  }
  func.func @transform_2(%arg0: i32) -> (i32, i32) {
    %c0_i32 = arith.constant 0 : i32
    %c0_i32_0 = arith.constant 0 : i32
    %c0_i32_1 = arith.constant 0 : i32
    return %c0_i32, %c0_i32_0 : i32, i32
  }
  func.func @transform_3(%arg0: i32) -> (i32, i32) {
    %c0_i32 = arith.constant 0 : i32
    %c0_i32_0 = arith.constant 0 : i32
    %c0_i32_1 = arith.constant 0 : i32
    return %c0_i32, %c0_i32_0 : i32, i32
  }
  func.func @transform_4(%arg0: i32) -> (i32, i32) {
    %c0_i32 = arith.constant 0 : i32
    %c0_i32_0 = arith.constant 0 : i32
    %c0_i32_1 = arith.constant 0 : i32
    return %c0_i32, %c0_i32_0 : i32, i32
  }
  func.func @transform_5(%arg0: i32) -> (i32, i32) {
    %c0_i32 = arith.constant 0 : i32
    %c0_i32_0 = arith.constant 0 : i32
    %c0_i32_1 = arith.constant 0 : i32
    return %c0_i32, %c0_i32_0 : i32, i32
  }
  func.func @transform_6(%arg0: i32) -> (i32, i32) {
    %c0_i32 = arith.constant 0 : i32
    %c0_i32_0 = arith.constant 0 : i32
    %c0_i32_1 = arith.constant 0 : i32
    return %c0_i32, %c0_i32_0 : i32, i32
  }
  func.func @transform_7(%arg0: i32) -> (i32, i32) {
    %c0_i32 = arith.constant 0 : i32
    %c0_i32_0 = arith.constant 0 : i32
    return %arg0, %c0_i32 : i32, i32
  }
}

module attributes {stable_mosaic.version = 11 : i64} {
  func.func @kernel(%arg0: i32, %arg1: memref<448x288xbf16, #tpu.memory_space<vmem>>, %arg2: memref<288x32xbf16, #tpu.memory_space<vmem>>, %arg3: memref<1x32xf32, #tpu.memory_space<vmem>>, %arg4: memref<448x32xbf16, #tpu.memory_space<vmem>>) attributes {dimension_semantics = [#tpu.dimension_semantics<parallel>], iteration_bounds = array<i64: 14>, scalar_prefetch = 0 : i64, scratch_operands = 0 : i64, tpu.core_type = #tpu.core_type<tc>, window_params = [{transform_indices = @transform_0, window_bounds = array<i64: 448, 288>}, {pipeline_mode = #tpu.pipeline_mode<synchronous>, transform_indices = @transform_1, window_bounds = array<i64: 288, 32>}, {pipeline_mode = #tpu.pipeline_mode<synchronous>, transform_indices = @transform_2, window_bounds = array<i64: 1, 32>}, {transform_indices = @transform_3, window_bounds = array<i64: 448, 32>}]} {
    %c0 = arith.constant 0 : index
    %c0_0 = arith.constant 0 : index
    %0 = vector.load %arg1[%c0, %c0_0] : memref<448x288xbf16, #tpu.memory_space<vmem>>, vector<448x288xbf16>
    %c0_1 = arith.constant 0 : index
    %c0_2 = arith.constant 0 : index
    %1 = vector.load %arg2[%c0_1, %c0_2] : memref<288x32xbf16, #tpu.memory_space<vmem>>, vector<288x32xbf16>
    %cst = arith.constant dense<0.000000e+00> : vector<448x32xf32>
    %2 = tpu.matmul %0, %1, %cst {dimension_numbers = #tpu.dot_dimension_numbers<[1], [0], [0], [1], [0, 0, 1, 1], [], []>} : vector<448x288xbf16>, vector<288x32xbf16>, vector<448x32xf32> -> vector<448x32xf32>
    %c0_3 = arith.constant 0 : index
    %c0_4 = arith.constant 0 : index
    %3 = vector.load %arg3[%c0_3, %c0_4] : memref<1x32xf32, #tpu.memory_space<vmem>>, vector<1x32xf32>
    %4 = vector.broadcast %3 : vector<1x32xf32> to vector<448x32xf32>
    %5 = arith.addf %2, %4 : vector<448x32xf32>
    %cst_5 = arith.constant 0.000000e+00 : f32
    %6 = vector.broadcast %cst_5 : f32 to vector<448x32xf32>
    %7 = arith.maximumf %5, %6 : vector<448x32xf32>
    %8 = arith.truncf %7 : vector<448x32xf32> to vector<448x32xbf16>
    %c0_6 = arith.constant 0 : index
    %c0_7 = arith.constant 0 : index
    %9 = vector.load %arg4[%c0_6, %c0_7] : memref<448x32xbf16, #tpu.memory_space<vmem>>, vector<448x32xbf16>
    tpu.vector_store %arg4[%c0_6, %c0_7], %8 {strides = array<i32>} : memref<448x32xbf16, #tpu.memory_space<vmem>>, vector<448x32xbf16>,
    return
  }
  func.func @transform_0(%arg0: i32) -> (i32, i32) {
    %c0_i32 = arith.constant 0 : i32
    %c0_i32_0 = arith.constant 0 : i32
    return %arg0, %c0_i32 : i32, i32
  }
  func.func @transform_1(%arg0: i32) -> (i32, i32) {
    %c0_i32 = arith.constant 0 : i32
    %c0_i32_0 = arith.constant 0 : i32
    %c0_i32_1 = arith.constant 0 : i32
    return %c0_i32, %c0_i32_0 : i32, i32
  }
  func.func @transform_2(%arg0: i32) -> (i32, i32) {
    %c0_i32 = arith.constant 0 : i32
    %c0_i32_0 = arith.constant 0 : i32
    %c0_i32_1 = arith.constant 0 : i32
    return %c0_i32, %c0_i32_0 : i32, i32
  }
  func.func @transform_3(%arg0: i32) -> (i32, i32) {
    %c0_i32 = arith.constant 0 : i32
    %c0_i32_0 = arith.constant 0 : i32
    return %arg0, %c0_i32 : i32, i32
  }
}

module attributes {stable_mosaic.version = 11 : i64} {
  func.func @kernel(%arg0: i32, %arg1: memref<448x32xbf16, #tpu.memory_space<vmem>>, %arg2: memref<32x128xbf16, #tpu.memory_space<vmem>>, %arg3: memref<1x128xf32, #tpu.memory_space<vmem>>, %arg4: memref<128x128xbf16, #tpu.memory_space<vmem>>, %arg5: memref<1x128xf32, #tpu.memory_space<vmem>>, %arg6: memref<448x128xbf16, #tpu.memory_space<vmem>>) attributes {dimension_semantics = [#tpu.dimension_semantics<parallel>], iteration_bounds = array<i64: 14>, scalar_prefetch = 0 : i64, scratch_operands = 0 : i64, tpu.core_type = #tpu.core_type<tc>, window_params = [{transform_indices = @transform_0, window_bounds = array<i64: 448, 32>}, {pipeline_mode = #tpu.pipeline_mode<synchronous>, transform_indices = @transform_1, window_bounds = array<i64: 32, 128>}, {pipeline_mode = #tpu.pipeline_mode<synchronous>, transform_indices = @transform_2, window_bounds = array<i64: 1, 128>}, {pipeline_mode = #tpu.pipeline_mode<synchronous>, transform_indices = @transform_3, window_bounds = array<i64: 128, 128>}, {pipeline_mode = #tpu.pipeline_mode<synchronous>, transform_indices = @transform_4, window_bounds = array<i64: 1, 128>}, {transform_indices = @transform_5, window_bounds = array<i64: 448, 128>}]} {
    %c0 = arith.constant 0 : index
    %c0_0 = arith.constant 0 : index
    %0 = vector.load %arg1[%c0, %c0_0] : memref<448x32xbf16, #tpu.memory_space<vmem>>, vector<448x32xbf16>
    %c0_1 = arith.constant 0 : index
    %c0_2 = arith.constant 0 : index
    %1 = vector.load %arg2[%c0_1, %c0_2] : memref<32x128xbf16, #tpu.memory_space<vmem>>, vector<32x128xbf16>
    %cst = arith.constant dense<0.000000e+00> : vector<448x128xf32>
    %2 = tpu.matmul %0, %1, %cst {dimension_numbers = #tpu.dot_dimension_numbers<[1], [0], [0], [1], [0, 0, 1, 1], [], []>} : vector<448x32xbf16>, vector<32x128xbf16>, vector<448x128xf32> -> vector<448x128xf32>
    %c0_3 = arith.constant 0 : index
    %c0_4 = arith.constant 0 : index
    %3 = vector.load %arg3[%c0_3, %c0_4] : memref<1x128xf32, #tpu.memory_space<vmem>>, vector<1x128xf32>
    %4 = vector.broadcast %3 : vector<1x128xf32> to vector<448x128xf32>
    %5 = arith.addf %2, %4 : vector<448x128xf32>
    %cst_5 = arith.constant 0.000000e+00 : f32
    %6 = vector.broadcast %cst_5 : f32 to vector<448x128xf32>
    %7 = arith.maximumf %5, %6 : vector<448x128xf32>
    %8 = arith.truncf %7 : vector<448x128xf32> to vector<448x128xbf16>
    %c0_6 = arith.constant 0 : index
    %c0_7 = arith.constant 0 : index
    %9 = vector.load %arg4[%c0_6, %c0_7] : memref<128x128xbf16, #tpu.memory_space<vmem>>, vector<128x128xbf16>
    %cst_8 = arith.constant dense<0.000000e+00> : vector<448x128xf32>
    %10 = tpu.matmul %8, %9, %cst_8 {dimension_numbers = #tpu.dot_dimension_numbers<[1], [0], [0], [1], [0, 0, 1, 1], [], []>} : vector<448x128xbf16>, vector<128x128xbf16>, vector<448x128xf32> -> vector<448x128xf32>
    %c0_9 = arith.constant 0 : index
    %c0_10 = arith.constant 0 : index
    %11 = vector.load %arg5[%c0_9, %c0_10] : memref<1x128xf32, #tpu.memory_space<vmem>>, vector<1x128xf32>
    %12 = vector.broadcast %11 : vector<1x128xf32> to vector<448x128xf32>
    %13 = arith.addf %10, %12 : vector<448x128xf32>
    %cst_11 = arith.constant 0.000000e+00 : f32
    %14 = vector.broadcast %cst_11 : f32 to vector<448x128xf32>
    %15 = arith.subf %14, %13 : vector<448x128xf32>
    %16 = math.exp %15 : vector<448x128xf32>
    %cst_12 = arith.constant 1.000000e+00 : f32
    %17 = vector.broadcast %cst_12 : f32 to vector<448x128xf32>
    %18 = arith.addf %17, %16 : vector<448x128xf32>
    %19 = tpu.reciprocal %18 {approx = true} : vector<448x128xf32> -> vector<448x128xf32>
    %20 = arith.truncf %19 : vector<448x128xf32> to vector<448x128xbf16>
    %c0_13 = arith.constant 0 : index
    %c0_14 = arith.constant 0 : index
    %21 = vector.load %arg6[%c0_13, %c0_14] : memref<448x128xbf16, #tpu.memory_space<vmem>>, vector<448x128xbf16>
    tpu.vector_store %arg6[%c0_13, %c0_14], %20 {strides = array<i32>} : memref<448x128xbf16, #tpu.memory_space<vmem>>, vector<448x128xbf16>,
    return
  }
  func.func @transform_0(%arg0: i32) -> (i32, i32) {
    %c0_i32 = arith.constant 0 : i32
    %c0_i32_0 = arith.constant 0 : i32
    return %arg0, %c0_i32 : i32, i32
  }
  func.func @transform_1(%arg0: i32) -> (i32, i32) {
    %c0_i32 = arith.constant 0 : i32
    %c0_i32_0 = arith.constant 0 : i32
    %c0_i32_1 = arith.constant 0 : i32
    return %c0_i32, %c0_i32_0 : i32, i32
  }
  func.func @transform_2(%arg0: i32) -> (i32, i32) {
    %c0_i32 = arith.constant 0 : i32
    %c0_i32_0 = arith.constant 0 : i32
    %c0_i32_1 = arith.constant 0 : i32
    return %c0_i32, %c0_i32_0 : i32, i32
  }
  func.func @transform_3(%arg0: i32) -> (i32, i32) {
    %c0_i32 = arith.constant 0 : i32
    %c0_i32_0 = arith.constant 0 : i32
    %c0_i32_1 = arith.constant 0 : i32
    return %c0_i32, %c0_i32_0 : i32, i32
  }
  func.func @transform_4(%arg0: i32) -> (i32, i32) {
    %c0_i32 = arith.constant 0 : i32
    %c0_i32_0 = arith.constant 0 : i32
    %c0_i32_1 = arith.constant 0 : i32
    return %c0_i32, %c0_i32_0 : i32, i32
  }
  func.func @transform_5(%arg0: i32) -> (i32, i32) {
    %c0_i32 = arith.constant 0 : i32
    %c0_i32_0 = arith.constant 0 : i32
    return %arg0, %c0_i32 : i32, i32
  }
}

</mosaic_0001>

<llo_original>
// kernel: generalized_rcnn_forward.11
$region0: #{generalized_rcnn_forward.11}
  #allocation0 [shape = 'u32[]', space=smem, size = 0x4, offset = 0x4, fixed_abs, tag = 'smem constant byte address 0x4 - core index']
  #allocation1 [shape = 'u32[144,128]{1,0:T(1,128)}', space=vmem, size = 0x12000, scoped, tag = 'internal scratch']
  %s0 = inlined_call_operand.vmem [shape: bf16[512,27], index: 0, kind: input, shape index: {}]
  %s1 = inlined_call_operand.vmem [shape: bf16[27,32], index: 1, kind: input, shape index: {}]
  %s2 = inlined_call_operand.vmem [shape: f32[1,32], index: 2, kind: input, shape index: {}]
  %s3 = inlined_call_operand.vmem [shape: bf16[512,32], index: 3, kind: output, shape index: {}]
  %s4 = sld [smem:[#allocation0]]
  $region45: #{generalized_rcnn_forward.11} parent=0
    _
  %s6 = ssub.s32 1, %s4
  %s7 = scalar_select 0, %s6, %s4
  loop: start=0, step=1, limit=4
  $region2: #{generalized_rcnn_forward.11} parent=0 // loop_pre_header
    _
  $region3: #{generalized_rcnn_forward.11} parent=0 // loop_header
    %s9 = sphi 0, %s13
    %p10 = scmp.ge.s32.totalorder %s9, 4
    %s19 = sphi 0, %s21
    %s22 = sphi 0, %s19
    %s23 = sphi 0, %s22
    %s39 = sphi 0, %s23
    %s43 = sphi 0, %s43
    %s45 = sphi 0, %s43
    %s46 = sphi 0, %s45
    %s60 = sphi 0, %s46
    %s64 = sphi 0, %s64
    %s66 = sphi 0, %s64
    %s67 = sphi 0, %s66
    %s81 = sphi 0, %s67
    %s87 = sphi 0, %s89
    %s90 = sphi 0, %s87
    %s91 = sphi 0, %s90
    %s107 = sphi 0, %s91
  $region4: #{generalized_rcnn_forward.11} parent=0 // loop_header_branch
    %12 = sbr.rel (%p10) target = $region8
  $region5: #{generalized_rcnn_forward.11} parent=0 // loop_body
    %s14 = ssub.s32 %s9, 1
    %s15 = ssub.s32 %s9, 2
    %s16 = sadd.s32 %s9, 1
    %s17 = ssub.s32 %s9, %s16
    %p18 = scmp.eq.s32.totalorder %s17, 0
    %s20 = sadd.s32 %s19, 1
    %s21 = scalar_select %p18, %s19, %s20
    %p24 = pneg %p18
    %p25 = scmp.eq.s32.totalorder %s9, 1
    %p26 = por %p24, %p25
    %p27 = scmp.ne.s32.totalorder %s19, %s22
    %p28 = scmp.eq.s32.totalorder %s9, 0
    %p29 = por %p27, %p28
    %p30 = scmp.ne.s32.totalorder %s19, %s22
    %p31 = scmp.eq.s32.totalorder %s14, 1
    %p32 = por %p30, %p31
    %p33 = scmp.ne.s32.totalorder %s22, %s23
    %p34 = scmp.eq.s32.totalorder %s14, 0
    %p35 = por %p33, %p34
    %p36 = scmp.ne.s32.totalorder %s22, %s23
    %p37 = scmp.eq.s32.totalorder %s15, 1
    %p38 = por %p36, %p37
    %p40 = scmp.ne.s32.totalorder %s23, %s39
    %p41 = scmp.eq.s32.totalorder %s15, 0
    %p42 = por %p40, %p41
    %s44 = sadd.s32 %s43, 1
    %p47 = scmp.eq.s32.totalorder %s9, 1
    %p48 = scmp.ne.s32.totalorder %s43, %s45
    %p49 = scmp.eq.s32.totalorder %s9, 0
    %p50 = por %p48, %p49
    %p51 = scmp.ne.s32.totalorder %s43, %s45
    %p52 = scmp.eq.s32.totalorder %s14, 1
    %p53 = por %p51, %p52
    %p54 = scmp.ne.s32.totalorder %s45, %s46
    %p55 = scmp.eq.s32.totalorder %s14, 0
    %p56 = por %p54, %p55
    %p57 = scmp.ne.s32.totalorder %s45, %s46
    %p58 = scmp.eq.s32.totalorder %s15, 1
    %p59 = por %p57, %p58
    %p61 = scmp.ne.s32.totalorder %s46, %s60
    %p62 = scmp.eq.s32.totalorder %s15, 0
    %p63 = por %p61, %p62
    %s65 = sadd.s32 %s64, 1
    %p68 = scmp.eq.s32.totalorder %s9, 1
    %p69 = scmp.ne.s32.totalorder %s64, %s66
    %p70 = scmp.eq.s32.totalorder %s9, 0
    %p71 = por %p69, %p70
    %p72 = scmp.ne.s32.totalorder %s64, %s66
    %p73 = scmp.eq.s32.totalorder %s14, 1
    %p74 = por %p72, %p73
    %p75 = scmp.ne.s32.totalorder %s66, %s67
    %p76 = scmp.eq.s32.totalorder %s14, 0
    %p77 = por %p75, %p76
    %p78 = scmp.ne.s32.totalorder %s66, %s67
    %p79 = scmp.eq.s32.totalorder %s15, 1
    %p80 = por %p78, %p79
    %p82 = scmp.ne.s32.totalorder %s67, %s81
    %p83 = scmp.eq.s32.totalorder %s15, 0
    %p84 = por %p82, %p83
    %s85 = ssub.s32 %s9, %s16
    %p86 = scmp.eq.s32.totalorder %s85, 0
    %s88 = sadd.s32 %s87, 1
    %s89 = scalar_select %p86, %s87, %s88
    %p92 = pneg %p86
    %p93 = scmp.eq.s32.totalorder %s9, 1
    %p94 = por %p92, %p93
    %p95 = scmp.ne.s32.totalorder %s87, %s90
    %p96 = scmp.eq.s32.totalorder %s9, 0
    %p97 = por %p95, %p96
    %p98 = scmp.ne.s32.totalorder %s87, %s90
    %p99 = scmp.eq.s32.totalorder %s14, 1
    %p100 = por %p98, %p99
    %p101 = scmp.ne.s32.totalorder %s90, %s91
    %p102 = scmp.eq.s32.totalorder %s14, 0
    %p103 = por %p101, %p102
    %p104 = scmp.ne.s32.totalorder %s90, %s91
    %p105 = scmp.eq.s32.totalorder %s15, 1
    %p106 = por %p104, %p105
    %p108 = scmp.ne.s32.totalorder %s91, %s107
    %p109 = scmp.eq.s32.totalorder %s15, 0
    %p110 = por %p108, %p109
    %p111 = scmp.le.s32.totalorder 1, %s9
    %p112 = scmp.lt.s32.totalorder %s9, 3
    %p113 = pnand %p111, %p112
    %p114 = pneg %p113
    // Predicated region
    $region9: #{generalized_rcnn_forward.11} parent=5 // pred_check
      _
    $region10: #{generalized_rcnn_forward.11} parent=5 // pred_check_branch
      %116 = sbr.rel (%p113) target = $region12
    $region11: #{generalized_rcnn_forward.11} parent=5 // pred_region
      %s117 = ssub.s32 %s9, 1
      // Predicated region
      $region13: #{generalized_rcnn_forward.11} parent=11 // pred_check
        %p118 = pneg %p56
      $region14: #{generalized_rcnn_forward.11} parent=11 // pred_check_branch
        %120 = sbr.rel (%p118) target = $region16
      $region15: #{generalized_rcnn_forward.11} parent=11 // pred_region
        _
      $region16: #{generalized_rcnn_forward.11} parent=11 // pred_fallthru
        _
      // Predicated region
      $region17: #{generalized_rcnn_forward.11} parent=11 // pred_check
        %p121 = pneg %p77
      $region18: #{generalized_rcnn_forward.11} parent=11 // pred_check_branch
        %123 = sbr.rel (%p121) target = $region20
      $region19: #{generalized_rcnn_forward.11} parent=11 // pred_region
        _
      $region20: #{generalized_rcnn_forward.11} parent=11 // pred_fallthru
        _
    $region12: #{generalized_rcnn_forward.11} parent=5 // pred_fallthru
      _
    %p124 = scmp.lt.s32.totalorder %s9, 2
    // Predicated region
    $region21: #{generalized_rcnn_forward.11} parent=5 // pred_check
      %p125 = pneg %p124
    $region22: #{generalized_rcnn_forward.11} parent=5 // pred_check_branch
      %127 = sbr.rel (%p125) target = $region24
    $region23: #{generalized_rcnn_forward.11} parent=5 // pred_region
      // Predicated region
      $region25: #{generalized_rcnn_forward.11} parent=23 // pred_check
        %p128 = pneg %p29
      $region26: #{generalized_rcnn_forward.11} parent=23 // pred_check_branch
        %130 = sbr.rel (%p128) target = $region28
      $region27: #{generalized_rcnn_forward.11} parent=23 // pred_region
        %s131 = smul.u32 32, %s9
        %p132 = scmp.lt.s32.totalorder %s131, 63
        %s133 = scalar_select %p132, %s131, 63
        %s134 = smul.addr %s133, 4
        %s135 = scalar_lea.vmem %s0, %s134
        %s136 = smul.u32 32, %s9
      $region28: #{generalized_rcnn_forward.11} parent=23 // pred_fallthru
        _
    $region24: #{generalized_rcnn_forward.11} parent=5 // pred_fallthru
      _
    %p137 = scmp.le.s32.totalorder 1, %s9
    %p138 = scmp.lt.s32.totalorder %s9, 3
    %p139 = pnand %p137, %p138
    %p140 = pneg %p139
    // Predicated region
    $region29: #{generalized_rcnn_forward.11} parent=5 // pred_check
      _
    $region30: #{generalized_rcnn_forward.11} parent=5 // pred_check_branch
      %142 = sbr.rel (%p139) target = $region32
    $region31: #{generalized_rcnn_forward.11} parent=5 // pred_region
      %s143 = ssub.s32 %s9, 1
      %s144 = smul.u32 32, %s14
      %p145 = scmp.lt.s32.totalorder %s144, 63
      %s146 = scalar_select %p145, %s144, 63
      %s147 = smul.addr %s146, 4
      %s148 = scalar_lea.vmem %s0, %s147
      %p149 = pneg %p35
      %p150 = pneg %p32
      %p151 = pneg %p56
      %p152 = pneg %p53
      %p153 = pneg %p77
      %p154 = pneg %p74
      %p155 = pneg %p103
      %p156 = pneg %p100
      %s157 = smul.u32 32, %s14
      %p158 = scmp.lt.s32.totalorder %s157, 63
      %s159 = scalar_select %p158, %s157, 63
      %s160 = smul.addr %s159, 4
      %s161 = scalar_lea.vmem %s3, %s160
      %s162 = smul.u32 32, %s14
      %p163 = scmp.lt.s32.totalorder %s162, 63
      %s164 = scalar_select %p163, %s162, 63
      %s165 = smul.addr %s164, 4
      %s166 = scalar_lea.vmem %s0, %s165
      %s167 = smul.u32 32, %s14
      %s168 = smul.u32 32, %s14
      %p169 = scmp.lt.s32.totalorder %s168, 63
      %s170 = scalar_select %p169, %s168, 63
      %s171 = smul.addr %s170, 4
      %s172 = scalar_lea.vmem %s3, %s171
      %s173 = smul.u32 32, %s14
      %v175 = vld [vmem:[%s166] sm:$0xf]
      %v176 = vld [vmem:[%s166 + $0x4] sm:$0xf]
      %v177 = vld [vmem:[%s166 + $0x8] sm:$0xf]
      %v178 = vld [vmem:[%s166 + $0xc] sm:$0xf]
      %v179 = vld [vmem:[%s166 + $0x10] sm:$0xf]
      %v180 = vld [vmem:[%s166 + $0x14] sm:$0xf]
      %v181 = vld [vmem:[%s166 + $0x18] sm:$0xf]
      %v182 = vld [vmem:[%s166 + $0x1c] sm:$0xf]
      %v183 = vld [vmem:[%s166 + $0x20] sm:$0xf]
      %v184 = vld [vmem:[%s166 + $0x24] sm:$0xf]
      %v185 = vld [vmem:[%s166 + $0x28] sm:$0xf]
      %v186 = vld [vmem:[%s166 + $0x2c] sm:$0xf]
      %v187 = vld [vmem:[%s166 + $0x30] sm:$0xf]
      %v188 = vld [vmem:[%s166 + $0x34] sm:$0xf]
      %v189 = vld [vmem:[%s166 + $0x38] sm:$0xf]
      %v190 = vld [vmem:[%s166 + $0x3c] sm:$0xf]
      %v191 = vld [vmem:[%s166 + $0x40] sm:$0xf]
      %v192 = vld [vmem:[%s166 + $0x44] sm:$0xf]
      %v193 = vld [vmem:[%s166 + $0x48] sm:$0xf]
      %v194 = vld [vmem:[%s166 + $0x4c] sm:$0xf]
      %v195 = vld [vmem:[%s166 + $0x50] sm:$0xf]
      %v196 = vld [vmem:[%s166 + $0x54] sm:$0xf]
      %v197 = vld [vmem:[%s166 + $0x58] sm:$0xf]
      %v198 = vld [vmem:[%s166 + $0x5c] sm:$0xf]
      %v199 = vld [vmem:[%s166 + $0x60] sm:$0xf]
      %v200 = vld [vmem:[%s166 + $0x64] sm:$0xf]
      %v201 = vld [vmem:[%s166 + $0x68] sm:$0xf]
      %v202 = vld [vmem:[%s166 + $0x6c] sm:$0xf]
      %v203 = vld [vmem:[%s166 + $0x70] sm:$0xf]
      %v204 = vld [vmem:[%s166 + $0x74] sm:$0xf]
      %v205 = vld [vmem:[%s166 + $0x78] sm:$0xf]
      %v206 = vld [vmem:[%s166 + $0x7c] sm:$0xf]
      %v207 = vld [vmem:[%s1] sm:$0xf]
      %v208 = vld [vmem:[%s1 + $0x4] sm:$0xf]
      %v209 = vld [vmem:[%s1 + $0x8] sm:$0xf]
      %v210 = vld [vmem:[%s1 + $0xc] sm:$0x3]
      %v211 = vld [vmem:[%s2] sm:$0x1]
      %v213 = vlaneseq
      %v214 = vshrl.u32 %v213, 7
      %v215 = vsub.s32 0, %v214
      %v216 = vrot.slane %v211, %v215
      %v250 = vunpack.c.l.b16 %v175
      %v251 = vunpack.c.l.b16 %v176
      %v252 = vunpack.c.l.b16 %v177
      %v253 = vunpack.c.l.b16 %v178
      %v254 = vunpack.c.l.b16 %v179
      %v255 = vunpack.c.l.b16 %v180
      %v256 = vunpack.c.l.b16 %v181
      %v257 = vunpack.c.l.b16 %v182
      %v258 = vunpack.c.l.b16 %v183
      %v259 = vunpack.c.l.b16 %v184
      %v260 = vunpack.c.l.b16 %v185
      %v261 = vunpack.c.l.b16 %v186
      %v262 = vunpack.c.l.b16 %v187
      %v263 = vunpack.c.l.b16 %v188
      %v264 = vunpack.c.l.b16 %v189
      %v265 = vunpack.c.l.b16 %v190
      %v266 = vunpack.c.l.b16 %v191
      %v267 = vunpack.c.l.b16 %v192
      %v268 = vunpack.c.l.b16 %v193
      %v269 = vunpack.c.l.b16 %v194
      %v270 = vunpack.c.l.b16 %v195
      %v271 = vunpack.c.l.b16 %v196
      %v272 = vunpack.c.l.b16 %v197
      %v273 = vunpack.c.l.b16 %v198
      %v274 = vunpack.c.l.b16 %v199
      %v275 = vunpack.c.l.b16 %v200
      %v276 = vunpack.c.l.b16 %v201
      %v277 = vunpack.c.l.b16 %v202
      %v278 = vunpack.c.l.b16 %v203
      %v279 = vunpack.c.l.b16 %v204
      %v280 = vunpack.c.l.b16 %v205
      %v281 = vunpack.c.l.b16 %v206
      %v282 = vpack.c.b16 %v251, %v250
      %v283 = vpack.c.b16 %v253, %v252
      %v284 = vpack.c.b16 %v255, %v254
      %v285 = vpack.c.b16 %v257, %v256
      %v286 = vpack.c.b16 %v259, %v258
      %v287 = vpack.c.b16 %v261, %v260
      %v288 = vpack.c.b16 %v263, %v262
      %v289 = vpack.c.b16 %v265, %v264
      %v290 = vpack.c.b16 %v267, %v266
      %v291 = vpack.c.b16 %v269, %v268
      %v292 = vpack.c.b16 %v271, %v270
      %v293 = vpack.c.b16 %v273, %v272
      %v294 = vpack.c.b16 %v275, %v274
      %v295 = vpack.c.b16 %v277, %v276
      %v296 = vpack.c.b16 %v279, %v278
      %v297 = vpack.c.b16 %v281, %v280
      %v302 = vunpack.c.l.b16 %v207
      %v303 = vunpack.c.l.b16 %v208
      %v304 = vunpack.c.l.b16 %v209
      %v305 = vunpack.c.l.b16 %v210
      %v306 = vpack.c.b16 %v303, %v302
      %v307 = vpack.c.b16 %v305, %v304
      %vm309 = vcmask 220160
      %v311 = vsel %vm309, %v282, 0
      %v314 = vsel %vm309, %v283, 0
      %v317 = vsel %vm309, %v284, 0
      %v320 = vsel %vm309, %v285, 0
      %v323 = vsel %vm309, %v286, 0
      %v326 = vsel %vm309, %v287, 0
      %v329 = vsel %vm309, %v288, 0
      %v332 = vsel %vm309, %v289, 0
      %v335 = vsel %vm309, %v290, 0
      %v338 = vsel %vm309, %v291, 0
      %v341 = vsel %vm309, %v292, 0
      %v344 = vsel %vm309, %v293, 0
      %v347 = vsel %vm309, %v294, 0
      %v350 = vsel %vm309, %v295, 0
      %v353 = vsel %vm309, %v296, 0
      %v356 = vsel %vm309, %v297, 0
      %vm358 = vcmask 1044480
      %vm359 = vcmask 1045504
      %v360 = vsel %vm358, 4294967295, 65535
      %v361 = vsel %vm359, %v360, 0
      %v363 = vand.u32 %v307, %v361
      %365 = vmatprep.subr.bf16.mxu0 0
      %366 = vmatpush1.bf16.msra.mxu0 0
      %367 = vmatprep.subr.bf16.mxu0 0
      %368 = vmatpush1.bf16.msra.mxu0 0
      %369 = vmatprep.subr.bf16.mxu0 0
      %370 = vmatpush1.bf16.msra.mxu0 0
      %371 = vmatprep.subr.bf16.mxu0 0
      %372 = vmatpush1.bf16.msra.mxu0 0
      %373 = vmatprep.subr.bf16.mxu0 0
      %374 = vmatpush1.bf16.msra.mxu0 0
      %375 = vmatprep.subr.bf16.mxu0 0
      %376 = vmatpush1.bf16.msra.mxu0 0
      %377 = vmatprep.subr.bf16.mxu0 0
      %378 = vmatpush1.bf16.msra.mxu0 %v363
      %379 = vmatprep.subr.bf16.mxu0 0
      %380 = vmatpush1.bf16.msra.mxu0 %v306
      %381 = vmatprep.subr.bf16.mxu0 0
      %382 = vmatpush2.bf16.msra.mxu0 0
      %383 = vmatprep.subr.bf16.mxu0 0
      %384 = vmatpush2.bf16.msra.mxu0 0
      %385 = vmatprep.subr.bf16.mxu0 0
      %386 = vmatpush2.bf16.msra.mxu0 0
      %387 = vmatprep.subr.bf16.mxu0 0
      %388 = vmatpush2.bf16.msra.mxu0 0
      %389 = vmatprep.subr.bf16.mxu0 0
      %390 = vmatpush2.bf16.msra.mxu0 0
      %391 = vmatprep.subr.bf16.mxu0 0
      %392 = vmatpush2.bf16.msra.mxu0 0
      %393 = vmatprep.subr.bf16.mxu0 0
      %394 = vmatpush2.bf16.msra.mxu0 0
      %395 = vmatprep.subr.bf16.mxu0 0
      %396 = vmatpush2.bf16.msra.mxu0 0
      %397 = vmatprep.mubr.bf16.mxu0 0
      %398 = vmatmul.mubr.bf16.gmra.mxu0 %v311
      %v399 = vpop.f32.mrf.mxu0
      %v400 = vadd.f32 %v216, %v399
      %v401 = vpop.f32.mrf.mxu0
      %v402 = vpop.f32.mrf.mxu0
      %v403 = vadd.f32 %v216, %v402
      %v404 = vpop.f32.mrf.mxu0
      %405 = vmatprep.mubr.bf16.mxu0 0
      %406 = vmatmul.mubr.bf16.gmra.mxu0 %v314
      %v407 = vpop.f32.mrf.mxu0
      %v408 = vadd.f32 %v216, %v407
      %v409 = vpop.f32.mrf.mxu0
      %v410 = vpop.f32.mrf.mxu0
      %v411 = vadd.f32 %v216, %v410
      %v412 = vpop.f32.mrf.mxu0
      %413 = vmatprep.mubr.bf16.mxu0 0
      %414 = vmatmul.mubr.bf16.gmra.mxu0 %v317
      %v415 = vpop.f32.mrf.mxu0
      %v416 = vadd.f32 %v216, %v415
      %v417 = vpop.f32.mrf.mxu0
      %v418 = vpop.f32.mrf.mxu0
      %v419 = vadd.f32 %v216, %v418
      %v420 = vpop.f32.mrf.mxu0
      %421 = vmatprep.mubr.bf16.mxu0 0
      %422 = vmatmul.mubr.bf16.gmra.mxu0 %v320
      %v423 = vpop.f32.mrf.mxu0
      %v424 = vadd.f32 %v216, %v423
      %v425 = vpop.f32.mrf.mxu0
      %v426 = vpop.f32.mrf.mxu0
      %v427 = vadd.f32 %v216, %v426
      %v428 = vpop.f32.mrf.mxu0
      %429 = vmatprep.mubr.bf16.mxu0 0
      %430 = vmatmul.mubr.bf16.gmra.mxu0 %v323
      %v431 = vpop.f32.mrf.mxu0
      %v432 = vadd.f32 %v216, %v431
      %v433 = vpop.f32.mrf.mxu0
      %v434 = vpop.f32.mrf.mxu0
      %v435 = vadd.f32 %v216, %v434
      %v436 = vpop.f32.mrf.mxu0
      %437 = vmatprep.mubr.bf16.mxu0 0
      %438 = vmatmul.mubr.bf16.gmra.mxu0 %v326
      %v439 = vpop.f32.mrf.mxu0
      %v440 = vadd.f32 %v216, %v439
      %v441 = vpop.f32.mrf.mxu0
      %v442 = vpop.f32.mrf.mxu0
      %v443 = vadd.f32 %v216, %v442
      %v444 = vpop.f32.mrf.mxu0
      %445 = vmatprep.mubr.bf16.mxu0 0
      %446 = vmatmul.mubr.bf16.gmra.mxu0 %v329
      %v447 = vpop.f32.mrf.mxu0
      %v448 = vadd.f32 %v216, %v447
      %v449 = vpop.f32.mrf.mxu0
      %v450 = vpop.f32.mrf.mxu0
      %v451 = vadd.f32 %v216, %v450
      %v452 = vpop.f32.mrf.mxu0
      %453 = vmatprep.mubr.bf16.mxu0 0
      %454 = vmatmul.mubr.bf16.gmra.mxu0 %v332
      %v455 = vpop.f32.mrf.mxu0
      %v456 = vadd.f32 %v216, %v455
      %v457 = vpop.f32.mrf.mxu0
      %v458 = vpop.f32.mrf.mxu0
      %v459 = vadd.f32 %v216, %v458
      %v460 = vpop.f32.mrf.mxu0
      %461 = vmatprep.mubr.bf16.mxu0 0
      %462 = vmatmul.mubr.bf16.gmra.mxu0 %v335
      %v463 = vpop.f32.mrf.mxu0
      %v464 = vadd.f32 %v216, %v463
      %v465 = vpop.f32.mrf.mxu0
      %v466 = vpop.f32.mrf.mxu0
      %v467 = vadd.f32 %v216, %v466
      %v468 = vpop.f32.mrf.mxu0
      %469 = vmatprep.mubr.bf16.mxu0 0
      %470 = vmatmul.mubr.bf16.gmra.mxu0 %v338
      %v471 = vpop.f32.mrf.mxu0
      %v472 = vadd.f32 %v216, %v471
      %v473 = vpop.f32.mrf.mxu0
      %v474 = vpop.f32.mrf.mxu0
      %v475 = vadd.f32 %v216, %v474
      %v476 = vpop.f32.mrf.mxu0
      %477 = vmatprep.mubr.bf16.mxu0 0
      %478 = vmatmul.mubr.bf16.gmra.mxu0 %v341
      %v479 = vpop.f32.mrf.mxu0
      %v480 = vadd.f32 %v216, %v479
      %v481 = vpop.f32.mrf.mxu0
      %v482 = vpop.f32.mrf.mxu0
      %v483 = vadd.f32 %v216, %v482
      %v484 = vpop.f32.mrf.mxu0
      %485 = vmatprep.mubr.bf16.mxu0 0
      %486 = vmatmul.mubr.bf16.gmra.mxu0 %v344
      %v487 = vpop.f32.mrf.mxu0
      %v488 = vadd.f32 %v216, %v487
      %v489 = vpop.f32.mrf.mxu0
      %v490 = vpop.f32.mrf.mxu0
      %v491 = vadd.f32 %v216, %v490
      %v492 = vpop.f32.mrf.mxu0
      %493 = vmatprep.mubr.bf16.mxu0 0
      %494 = vmatmul.mubr.bf16.gmra.mxu0 %v347
      %v495 = vpop.f32.mrf.mxu0
      %v496 = vadd.f32 %v216, %v495
      %v497 = vpop.f32.mrf.mxu0
      %v498 = vpop.f32.mrf.mxu0
      %v499 = vadd.f32 %v216, %v498
      %v500 = vpop.f32.mrf.mxu0
      %501 = vmatprep.mubr.bf16.mxu0 0
      %502 = vmatmul.mubr.bf16.gmra.mxu0 %v350
      %v503 = vpop.f32.mrf.mxu0
      %v504 = vadd.f32 %v216, %v503
      %v505 = vpop.f32.mrf.mxu0
      %v506 = vpop.f32.mrf.mxu0
      %v507 = vadd.f32 %v216, %v506
      %v508 = vpop.f32.mrf.mxu0
      %509 = vmatprep.mubr.bf16.mxu0 0
      %510 = vmatmul.mubr.bf16.gmra.mxu0 %v353
      %v511 = vpop.f32.mrf.mxu0
      %v512 = vadd.f32 %v216, %v511
      %v513 = vpop.f32.mrf.mxu0
      %v514 = vpop.f32.mrf.mxu0
      %v515 = vadd.f32 %v216, %v514
      %v516 = vpop.f32.mrf.mxu0
      %517 = vmatprep.mubr.bf16.mxu0 0
      %518 = vmatmul.mubr.bf16.gmra.mxu0 %v356
      %v519 = vpop.f32.mrf.mxu0
      %v520 = vadd.f32 %v216, %v519
      %v521 = vpop.f32.mrf.mxu0
      %v522 = vpop.f32.mrf.mxu0
      %v523 = vadd.f32 %v216, %v522
      %v524 = vpop.f32.mrf.mxu0
      %525 = vdwg.mxu0
      %v526 = vmax.f32 %v400, 0.0
      %v527 = vmax.f32 %v403, 0.0
      %v528 = vmax.f32 %v408, 0.0
      %v529 = vmax.f32 %v411, 0.0
      %v530 = vmax.f32 %v416, 0.0
      %v531 = vmax.f32 %v419, 0.0
      %v532 = vmax.f32 %v424, 0.0
      %v533 = vmax.f32 %v427, 0.0
      %v534 = vmax.f32 %v432, 0.0
      %v535 = vmax.f32 %v435, 0.0
      %v536 = vmax.f32 %v440, 0.0
      %v537 = vmax.f32 %v443, 0.0
      %v538 = vmax.f32 %v448, 0.0
      %v539 = vmax.f32 %v451, 0.0
      %v540 = vmax.f32 %v456, 0.0
      %v541 = vmax.f32 %v459, 0.0
      %v542 = vmax.f32 %v464, 0.0
      %v543 = vmax.f32 %v467, 0.0
      %v544 = vmax.f32 %v472, 0.0
      %v545 = vmax.f32 %v475, 0.0
      %v546 = vmax.f32 %v480, 0.0
      %v547 = vmax.f32 %v483, 0.0
      %v548 = vmax.f32 %v488, 0.0
      %v549 = vmax.f32 %v491, 0.0
      %v550 = vmax.f32 %v496, 0.0
      %v551 = vmax.f32 %v499, 0.0
      %v552 = vmax.f32 %v504, 0.0
      %v553 = vmax.f32 %v507, 0.0
      %v554 = vmax.f32 %v512, 0.0
      %v555 = vmax.f32 %v515, 0.0
      %v556 = vmax.f32 %v520, 0.0
      %v557 = vmax.f32 %v523, 0.0
      %v558 = vpack.c.bf16 %v527, %v526
      %v559 = vpack.c.bf16 %v529, %v528
      %v560 = vpack.c.bf16 %v531, %v530
      %v561 = vpack.c.bf16 %v533, %v532
      %v562 = vpack.c.bf16 %v535, %v534
      %v563 = vpack.c.bf16 %v537, %v536
      %v564 = vpack.c.bf16 %v539, %v538
      %v565 = vpack.c.bf16 %v541, %v540
      %v566 = vpack.c.bf16 %v543, %v542
      %v567 = vpack.c.bf16 %v545, %v544
      %v568 = vpack.c.bf16 %v547, %v546
      %v569 = vpack.c.bf16 %v549, %v548
      %v570 = vpack.c.bf16 %v551, %v550
      %v571 = vpack.c.bf16 %v553, %v552
      %v572 = vpack.c.bf16 %v555, %v554
      %v573 = vpack.c.bf16 %v557, %v556
      %v590 = vunpack.c.l.b16 %v558
      %v591 = vunpack.c.h.b16 %v558
      %v592 = vunpack.c.l.b16 %v559
      %v593 = vunpack.c.h.b16 %v559
      %v594 = vunpack.c.l.b16 %v560
      %v595 = vunpack.c.h.b16 %v560
      %v596 = vunpack.c.l.b16 %v561
      %v597 = vunpack.c.h.b16 %v561
      %v598 = vunpack.c.l.b16 %v562
      %v599 = vunpack.c.h.b16 %v562
      %v600 = vunpack.c.l.b16 %v563
      %v601 = vunpack.c.h.b16 %v563
      %v602 = vunpack.c.l.b16 %v564
      %v603 = vunpack.c.h.b16 %v564
      %v604 = vunpack.c.l.b16 %v565
      %v605 = vunpack.c.h.b16 %v565
      %v606 = vunpack.c.l.b16 %v566
      %v607 = vunpack.c.h.b16 %v566
      %v608 = vunpack.c.l.b16 %v567
      %v609 = vunpack.c.h.b16 %v567
      %v610 = vunpack.c.l.b16 %v568
      %v611 = vunpack.c.h.b16 %v568
      %v612 = vunpack.c.l.b16 %v569
      %v613 = vunpack.c.h.b16 %v569
      %v614 = vunpack.c.l.b16 %v570
      %v615 = vunpack.c.h.b16 %v570
      %v616 = vunpack.c.l.b16 %v571
      %v617 = vunpack.c.h.b16 %v571
      %v618 = vunpack.c.l.b16 %v572
      %v619 = vunpack.c.h.b16 %v572
      %v620 = vunpack.c.l.b16 %v573
      %v621 = vunpack.c.h.b16 %v573
      %v622 = vpack.c.b16 %v590, %v590
      %v623 = vpack.c.b16 %v591, %v591
      %v624 = vpack.c.b16 %v592, %v592
      %v625 = vpack.c.b16 %v593, %v593
      %v626 = vpack.c.b16 %v594, %v594
      %v627 = vpack.c.b16 %v595, %v595
      %v628 = vpack.c.b16 %v596, %v596
      %v629 = vpack.c.b16 %v597, %v597
      %v630 = vpack.c.b16 %v598, %v598
      %v631 = vpack.c.b16 %v599, %v599
      %v632 = vpack.c.b16 %v600, %v600
      %v633 = vpack.c.b16 %v601, %v601
      %v634 = vpack.c.b16 %v602, %v602
      %v635 = vpack.c.b16 %v603, %v603
      %v636 = vpack.c.b16 %v604, %v604
      %v637 = vpack.c.b16 %v605, %v605
      %v638 = vpack.c.b16 %v606, %v606
      %v639 = vpack.c.b16 %v607, %v607
      %v640 = vpack.c.b16 %v608, %v608
      %v641 = vpack.c.b16 %v609, %v609
      %v642 = vpack.c.b16 %v610, %v610
      %v643 = vpack.c.b16 %v611, %v611
      %v644 = vpack.c.b16 %v612, %v612
      %v645 = vpack.c.b16 %v613, %v613
      %v646 = vpack.c.b16 %v614, %v614
      %v647 = vpack.c.b16 %v615, %v615
      %v648 = vpack.c.b16 %v616, %v616
      %v649 = vpack.c.b16 %v617, %v617
      %v650 = vpack.c.b16 %v618, %v618
      %v651 = vpack.c.b16 %v619, %v619
      %v652 = vpack.c.b16 %v620, %v620
      %v653 = vpack.c.b16 %v621, %v621
      %vm686 = vcmask 257024
      %687 = vst.msk [vmem:[%s172] sm:$0xf] %vm686, %v622
      %688 = vst.msk [vmem:[%s172 + $0x4] sm:$0xf] %vm686, %v623
      %689 = vst.msk [vmem:[%s172 + $0x8] sm:$0xf] %vm686, %v624
      %690 = vst.msk [vmem:[%s172 + $0xc] sm:$0xf] %vm686, %v625
      %691 = vst.msk [vmem:[%s172 + $0x10] sm:$0xf] %vm686, %v626
      %692 = vst.msk [vmem:[%s172 + $0x14] sm:$0xf] %vm686, %v627
      %693 = vst.msk [vmem:[%s172 + $0x18] sm:$0xf] %vm686, %v628
      %694 = vst.msk [vmem:[%s172 + $0x1c] sm:$0xf] %vm686, %v629
      %695 = vst.msk [vmem:[%s172 + $0x20] sm:$0xf] %vm686, %v630
      %696 = vst.msk [vmem:[%s172 + $0x24] sm:$0xf] %vm686, %v631
      %697 = vst.msk [vmem:[%s172 + $0x28] sm:$0xf] %vm686, %v632
      %698 = vst.msk [vmem:[%s172 + $0x2c] sm:$0xf] %vm686, %v633
      %699 = vst.msk [vmem:[%s172 + $0x30] sm:$0xf] %vm686, %v634
      %700 = vst.msk [vmem:[%s172 + $0x34] sm:$0xf] %vm686, %v635
      %701 = vst.msk [vmem:[%s172 + $0x38] sm:$0xf] %vm686, %v636
      %702 = vst.msk [vmem:[%s172 + $0x3c] sm:$0xf] %vm686, %v637
      %703 = vst.msk [vmem:[%s172 + $0x40] sm:$0xf] %vm686, %v638
      %704 = vst.msk [vmem:[%s172 + $0x44] sm:$0xf] %vm686, %v639
      %705 = vst.msk [vmem:[%s172 + $0x48] sm:$0xf] %vm686, %v640
      %706 = vst.msk [vmem:[%s172 + $0x4c] sm:$0xf] %vm686, %v641
      %707 = vst.msk [vmem:[%s172 + $0x50] sm:$0xf] %vm686, %v642
      %708 = vst.msk [vmem:[%s172 + $0x54] sm:$0xf] %vm686, %v643
      %709 = vst.msk [vmem:[%s172 + $0x58] sm:$0xf] %vm686, %v644
      %710 = vst.msk [vmem:[%s172 + $0x5c] sm:$0xf] %vm686, %v645
      %711 = vst.msk [vmem:[%s172 + $0x60] sm:$0xf] %vm686, %v646
      %712 = vst.msk [vmem:[%s172 + $0x64] sm:$0xf] %vm686, %v647
      %713 = vst.msk [vmem:[%s172 + $0x68] sm:$0xf] %vm686, %v648
      %714 = vst.msk [vmem:[%s172 + $0x6c] sm:$0xf] %vm686, %v649
      %715 = vst.msk [vmem:[%s172 + $0x70] sm:$0xf] %vm686, %v650
      %716 = vst.msk [vmem:[%s172 + $0x74] sm:$0xf] %vm686, %v651
      %717 = vst.msk [vmem:[%s172 + $0x78] sm:$0xf] %vm686, %v652
      %718 = vst.msk [vmem:[%s172 + $0x7c] sm:$0xf] %vm686, %v653
      %s719 = smul.u32 32, %s14
      %p720 = scmp.lt.s32.totalorder %s719, 63
      %s721 = scalar_select %p720, %s719, 63
      %s722 = smul.addr %s721, 4
      %s723 = scalar_lea.vmem %s3, %s722
      // Predicated region
      $region33: #{generalized_rcnn_forward.11} parent=31 // pred_check
        %p724 = pneg %p100
      $region34: #{generalized_rcnn_forward.11} parent=31 // pred_check_branch
        %726 = sbr.rel (%p724) target = $region36
      $region35: #{generalized_rcnn_forward.11} parent=31 // pred_region
        %s727 = smul.u32 32, %s14
      $region36: #{generalized_rcnn_forward.11} parent=31 // pred_fallthru
        _
    $region32: #{generalized_rcnn_forward.11} parent=5 // pred_fallthru
      _
    %p728 = scmp.le.s32.totalorder 2, %s9
    // Predicated region
    $region37: #{generalized_rcnn_forward.11} parent=5 // pred_check
      %p729 = pneg %p728
    $region38: #{generalized_rcnn_forward.11} parent=5 // pred_check_branch
      %731 = sbr.rel (%p729) target = $region40
    $region39: #{generalized_rcnn_forward.11} parent=5 // pred_region
      %s732 = ssub.s32 %s9, 2
      // Predicated region
      $region41: #{generalized_rcnn_forward.11} parent=39 // pred_check
        %p733 = pneg %p106
      $region42: #{generalized_rcnn_forward.11} parent=39 // pred_check_branch
        %735 = sbr.rel (%p733) target = $region44
      $region43: #{generalized_rcnn_forward.11} parent=39 // pred_region
        %s736 = smul.u32 32, %s15
        %p737 = scmp.lt.s32.totalorder %s736, 63
        %s738 = scalar_select %p737, %s736, 63
        %s739 = smul.addr %s738, 4
        %s740 = scalar_lea.vmem %s3, %s739
      $region44: #{generalized_rcnn_forward.11} parent=39 // pred_fallthru
        _
    $region40: #{generalized_rcnn_forward.11} parent=5 // pred_fallthru
      _
  $region6: #{generalized_rcnn_forward.11} parent=0 // loop_footer
    %s13 = sadd.s32 1, %s9
  $region7: #{generalized_rcnn_forward.11} parent=0 // loop_footer_branch
    %8 = sbr.rel target = $region3
  $region8: #{generalized_rcnn_forward.11} parent=0 // loop_exit
    _

// kernel: generalized_rcnn_forward.12
$region0: #{generalized_rcnn_forward.12}
  #allocation0 [shape = 'u32[]', space=smem, size = 0x4, offset = 0x4, fixed_abs, tag = 'smem constant byte address 0x4 - core index']
  #allocation1 [shape = 'u32[144,128]{1,0:T(1,128)}', space=vmem, size = 0x12000, scoped, tag = 'internal scratch']
  %s0 = inlined_call_operand.vmem [shape: bf16[128,288], index: 0, kind: input, shape index: {}]
  %s1 = inlined_call_operand.vmem [shape: bf16[288,32], index: 1, kind: input, shape index: {}]
  %s2 = inlined_call_operand.vmem [shape: f32[1,32], index: 2, kind: input, shape index: {}]
  %s3 = inlined_call_operand.vmem [shape: bf16[128,32], index: 3, kind: output, shape index: {}]
  %s4 = sld [smem:[#allocation0]]
  $region45: #{generalized_rcnn_forward.12} parent=0
    _
  %s6 = ssub.s32 1, %s4
  %s7 = scalar_select 0, %s6, %s4
  loop: start=0, step=1, limit=4
  $region2: #{generalized_rcnn_forward.12} parent=0 // loop_pre_header
    _
  $region3: #{generalized_rcnn_forward.12} parent=0 // loop_header
    %s9 = sphi 0, %s13
    %p10 = scmp.ge.s32.totalorder %s9, 4
    %s19 = sphi 0, %s21
    %s22 = sphi 0, %s19
    %s23 = sphi 0, %s22
    %s39 = sphi 0, %s23
    %s43 = sphi 0, %s43
    %s45 = sphi 0, %s43
    %s46 = sphi 0, %s45
    %s60 = sphi 0, %s46
    %s64 = sphi 0, %s64
    %s66 = sphi 0, %s64
    %s67 = sphi 0, %s66
    %s81 = sphi 0, %s67
    %s87 = sphi 0, %s89
    %s90 = sphi 0, %s87
    %s91 = sphi 0, %s90
    %s107 = sphi 0, %s91
  $region4: #{generalized_rcnn_forward.12} parent=0 // loop_header_branch
    %12 = sbr.rel (%p10) target = $region8
  $region5: #{generalized_rcnn_forward.12} parent=0 // loop_body
    %s14 = ssub.s32 %s9, 1
    %s15 = ssub.s32 %s9, 2
    %s16 = sadd.s32 %s9, 1
    %s17 = ssub.s32 %s9, %s16
    %p18 = scmp.eq.s32.totalorder %s17, 0
    %s20 = sadd.s32 %s19, 1
    %s21 = scalar_select %p18, %s19, %s20
    %p24 = pneg %p18
    %p25 = scmp.eq.s32.totalorder %s9, 1
    %p26 = por %p24, %p25
    %p27 = scmp.ne.s32.totalorder %s19, %s22
    %p28 = scmp.eq.s32.totalorder %s9, 0
    %p29 = por %p27, %p28
    %p30 = scmp.ne.s32.totalorder %s19, %s22
    %p31 = scmp.eq.s32.totalorder %s14, 1
    %p32 = por %p30, %p31
    %p33 = scmp.ne.s32.totalorder %s22, %s23
    %p34 = scmp.eq.s32.totalorder %s14, 0
    %p35 = por %p33, %p34
    %p36 = scmp.ne.s32.totalorder %s22, %s23
    %p37 = scmp.eq.s32.totalorder %s15, 1
    %p38 = por %p36, %p37
    %p40 = scmp.ne.s32.totalorder %s23, %s39
    %p41 = scmp.eq.s32.totalorder %s15, 0
    %p42 = por %p40, %p41
    %s44 = sadd.s32 %s43, 1
    %p47 = scmp.eq.s32.totalorder %s9, 1
    %p48 = scmp.ne.s32.totalorder %s43, %s45
    %p49 = scmp.eq.s32.totalorder %s9, 0
    %p50 = por %p48, %p49
    %p51 = scmp.ne.s32.totalorder %s43, %s45
    %p52 = scmp.eq.s32.totalorder %s14, 1
    %p53 = por %p51, %p52
    %p54 = scmp.ne.s32.totalorder %s45, %s46
    %p55 = scmp.eq.s32.totalorder %s14, 0
    %p56 = por %p54, %p55
    %p57 = scmp.ne.s32.totalorder %s45, %s46
    %p58 = scmp.eq.s32.totalorder %s15, 1
    %p59 = por %p57, %p58
    %p61 = scmp.ne.s32.totalorder %s46, %s60
    %p62 = scmp.eq.s32.totalorder %s15, 0
    %p63 = por %p61, %p62
    %s65 = sadd.s32 %s64, 1
    %p68 = scmp.eq.s32.totalorder %s9, 1
    %p69 = scmp.ne.s32.totalorder %s64, %s66
    %p70 = scmp.eq.s32.totalorder %s9, 0
    %p71 = por %p69, %p70
    %p72 = scmp.ne.s32.totalorder %s64, %s66
    %p73 = scmp.eq.s32.totalorder %s14, 1
    %p74 = por %p72, %p73
    %p75 = scmp.ne.s32.totalorder %s66, %s67
    %p76 = scmp.eq.s32.totalorder %s14, 0
    %p77 = por %p75, %p76
    %p78 = scmp.ne.s32.totalorder %s66, %s67
    %p79 = scmp.eq.s32.totalorder %s15, 1
    %p80 = por %p78, %p79
    %p82 = scmp.ne.s32.totalorder %s67, %s81
    %p83 = scmp.eq.s32.totalorder %s15, 0
    %p84 = por %p82, %p83
    %s85 = ssub.s32 %s9, %s16
    %p86 = scmp.eq.s32.totalorder %s85, 0
    %s88 = sadd.s32 %s87, 1
    %s89 = scalar_select %p86, %s87, %s88
    %p92 = pneg %p86
    %p93 = scmp.eq.s32.totalorder %s9, 1
    %p94 = por %p92, %p93
    %p95 = scmp.ne.s32.totalorder %s87, %s90
    %p96 = scmp.eq.s32.totalorder %s9, 0
    %p97 = por %p95, %p96
    %p98 = scmp.ne.s32.totalorder %s87, %s90
    %p99 = scmp.eq.s32.totalorder %s14, 1
    %p100 = por %p98, %p99
    %p101 = scmp.ne.s32.totalorder %s90, %s91
    %p102 = scmp.eq.s32.totalorder %s14, 0
    %p103 = por %p101, %p102
    %p104 = scmp.ne.s32.totalorder %s90, %s91
    %p105 = scmp.eq.s32.totalorder %s15, 1
    %p106 = por %p104, %p105
    %p108 = scmp.ne.s32.totalorder %s91, %s107
    %p109 = scmp.eq.s32.totalorder %s15, 0
    %p110 = por %p108, %p109
    %p111 = scmp.le.s32.totalorder 1, %s9
    %p112 = scmp.lt.s32.totalorder %s9, 3
    %p113 = pnand %p111, %p112
    %p114 = pneg %p113
    // Predicated region
    $region9: #{generalized_rcnn_forward.12} parent=5 // pred_check
      _
    $region10: #{generalized_rcnn_forward.12} parent=5 // pred_check_branch
      %116 = sbr.rel (%p113) target = $region12
    $region11: #{generalized_rcnn_forward.12} parent=5 // pred_region
      %s117 = ssub.s32 %s9, 1
      // Predicated region
      $region13: #{generalized_rcnn_forward.12} parent=11 // pred_check
        %p118 = pneg %p56
      $region14: #{generalized_rcnn_forward.12} parent=11 // pred_check_branch
        %120 = sbr.rel (%p118) target = $region16
      $region15: #{generalized_rcnn_forward.12} parent=11 // pred_region
        _
      $region16: #{generalized_rcnn_forward.12} parent=11 // pred_fallthru
        _
      // Predicated region
      $region17: #{generalized_rcnn_forward.12} parent=11 // pred_check
        %p121 = pneg %p77
      $region18: #{generalized_rcnn_forward.12} parent=11 // pred_check_branch
        %123 = sbr.rel (%p121) target = $region20
      $region19: #{generalized_rcnn_forward.12} parent=11 // pred_region
        _
      $region20: #{generalized_rcnn_forward.12} parent=11 // pred_fallthru
        _
    $region12: #{generalized_rcnn_forward.12} parent=5 // pred_fallthru
      _
    %p124 = scmp.lt.s32.totalorder %s9, 2
    // Predicated region
    $region21: #{generalized_rcnn_forward.12} parent=5 // pred_check
      %p125 = pneg %p124
    $region22: #{generalized_rcnn_forward.12} parent=5 // pred_check_branch
      %127 = sbr.rel (%p125) target = $region24
    $region23: #{generalized_rcnn_forward.12} parent=5 // pred_region
      // Predicated region
      $region25: #{generalized_rcnn_forward.12} parent=23 // pred_check
        %p128 = pneg %p29
      $region26: #{generalized_rcnn_forward.12} parent=23 // pred_check_branch
        %130 = sbr.rel (%p128) target = $region28
      $region27: #{generalized_rcnn_forward.12} parent=23 // pred_region
        %s131 = smul.u32 8, %s9
        %p132 = scmp.lt.s32.totalorder %s131, 15
        %s133 = scalar_select %p132, %s131, 15
        %s134 = smul.addr %s133, 3
        %s135 = smul.addr %s134, 4
        %s136 = scalar_lea.vmem %s0, %s135
        %s137 = smul.u32 8, %s9
      $region28: #{generalized_rcnn_forward.12} parent=23 // pred_fallthru
        _
    $region24: #{generalized_rcnn_forward.12} parent=5 // pred_fallthru
      _
    %p138 = scmp.le.s32.totalorder 1, %s9
    %p139 = scmp.lt.s32.totalorder %s9, 3
    %p140 = pnand %p138, %p139
    %p141 = pneg %p140
    // Predicated region
    $region29: #{generalized_rcnn_forward.12} parent=5 // pred_check
      _
    $region30: #{generalized_rcnn_forward.12} parent=5 // pred_check_branch
      %143 = sbr.rel (%p140) target = $region32
    $region31: #{generalized_rcnn_forward.12} parent=5 // pred_region
      %s144 = ssub.s32 %s9, 1
      %s145 = smul.u32 8, %s14
      %p146 = scmp.lt.s32.totalorder %s145, 15
      %s147 = scalar_select %p146, %s145, 15
      %s148 = smul.addr %s147, 3
      %s149 = smul.addr %s148, 4
      %s150 = scalar_lea.vmem %s0, %s149
      %p151 = pneg %p35
      %p152 = pneg %p32
      %p153 = pneg %p56
      %p154 = pneg %p53
      %p155 = pneg %p77
      %p156 = pneg %p74
      %p157 = pneg %p103
      %p158 = pneg %p100
      %s159 = smul.u32 8, %s14
      %p160 = scmp.lt.s32.totalorder %s159, 15
      %s161 = scalar_select %p160, %s159, 15
      %s162 = smul.addr %s161, 4
      %s163 = scalar_lea.vmem %s3, %s162
      %s164 = smul.u32 8, %s14
      %p165 = scmp.lt.s32.totalorder %s164, 15
      %s166 = scalar_select %p165, %s164, 15
      %s167 = smul.addr %s166, 3
      %s168 = smul.addr %s167, 4
      %s169 = scalar_lea.vmem %s0, %s168
      %s170 = smul.u32 8, %s14
      %s171 = smul.u32 8, %s14
      %p172 = scmp.lt.s32.totalorder %s171, 15
      %s173 = scalar_select %p172, %s171, 15
      %s174 = smul.addr %s173, 4
      %s175 = scalar_lea.vmem %s3, %s174
      %s176 = smul.u32 8, %s14
      %v178 = vld [vmem:[%s169] sm:$0xff]
      %v179 = vld [vmem:[%s169 + $0x8] sm:$0xf]
      %v180 = vld [vmem:[%s169 + $0xc] sm:$0xff]
      %v181 = vld [vmem:[%s169 + $0x14] sm:$0xf]
      %v182 = vld [vmem:[%s169 + $0x18] sm:$0xff]
      %v183 = vld [vmem:[%s169 + $0x20] sm:$0xf]
      %v184 = vld [vmem:[%s169 + $0x24] sm:$0xff]
      %v185 = vld [vmem:[%s169 + $0x2c] sm:$0xf]
      %v186 = vld [vmem:[%s169 + $0x30] sm:$0xff]
      %v187 = vld [vmem:[%s169 + $0x38] sm:$0xf]
      %v188 = vld [vmem:[%s169 + $0x3c] sm:$0xff]
      %v189 = vld [vmem:[%s169 + $0x44] sm:$0xf]
      %v190 = vld [vmem:[%s169 + $0x48] sm:$0xff]
      %v191 = vld [vmem:[%s169 + $0x50] sm:$0xf]
      %v192 = vld [vmem:[%s169 + $0x54] sm:$0xff]
      %v193 = vld [vmem:[%s169 + $0x5c] sm:$0xf]
      %v194 = vld [vmem:[%s1] sm:$0xf]
      %v195 = vld [vmem:[%s1 + $0x4] sm:$0xf]
      %v196 = vld [vmem:[%s1 + $0x8] sm:$0xf]
      %v197 = vld [vmem:[%s1 + $0xc] sm:$0xf]
      %v198 = vld [vmem:[%s1 + $0x10] sm:$0xf]
      %v199 = vld [vmem:[%s1 + $0x14] sm:$0xf]
      %v200 = vld [vmem:[%s1 + $0x18] sm:$0xf]
      %v201 = vld [vmem:[%s1 + $0x1c] sm:$0xf]
      %v202 = vld [vmem:[%s1 + $0x20] sm:$0xf]
      %v203 = vld [vmem:[%s1 + $0x24] sm:$0xf]
      %v204 = vld [vmem:[%s1 + $0x28] sm:$0xf]
      %v205 = vld [vmem:[%s1 + $0x2c] sm:$0xf]
      %v206 = vld [vmem:[%s1 + $0x30] sm:$0xf]
      %v207 = vld [vmem:[%s1 + $0x34] sm:$0xf]
      %v208 = vld [vmem:[%s1 + $0x38] sm:$0xf]
      %v209 = vld [vmem:[%s1 + $0x3c] sm:$0xf]
      %v210 = vld [vmem:[%s1 + $0x40] sm:$0xf]
      %v211 = vld [vmem:[%s1 + $0x44] sm:$0xf]
      %v212 = vld [vmem:[%s1 + $0x48] sm:$0xf]
      %v213 = vld [vmem:[%s1 + $0x4c] sm:$0xf]
      %v214 = vld [vmem:[%s1 + $0x50] sm:$0xf]
      %v215 = vld [vmem:[%s1 + $0x54] sm:$0xf]
      %v216 = vld [vmem:[%s1 + $0x58] sm:$0xf]
      %v217 = vld [vmem:[%s1 + $0x5c] sm:$0xf]
      %v218 = vld [vmem:[%s1 + $0x60] sm:$0xf]
      %v219 = vld [vmem:[%s1 + $0x64] sm:$0xf]
      %v220 = vld [vmem:[%s1 + $0x68] sm:$0xf]
      %v221 = vld [vmem:[%s1 + $0x6c] sm:$0xf]
      %v222 = vld [vmem:[%s1 + $0x70] sm:$0xf]
      %v223 = vld [vmem:[%s1 + $0x74] sm:$0xf]
      %v224 = vld [vmem:[%s1 + $0x78] sm:$0xf]
      %v225 = vld [vmem:[%s1 + $0x7c] sm:$0xf]
      %v226 = vld [vmem:[%s1 + $0x80] sm:$0xf]
      %v227 = vld [vmem:[%s1 + $0x84] sm:$0xf]
      %v228 = vld [vmem:[%s1 + $0x88] sm:$0xf]
      %v229 = vld [vmem:[%s1 + $0x8c] sm:$0xf]
      %v230 = vld [vmem:[%s2] sm:$0x1]
      %v232 = vlaneseq
      %v233 = vshrl.u32 %v232, 7
      %v234 = vsub.s32 0, %v233
      %v235 = vrot.slane %v230, %v234
      %v253 = vunpack.c.l.b16 %v178
      %v254 = vunpack.c.h.b16 %v178
      %v255 = vunpack.c.l.b16 %v179
      %v256 = vunpack.c.l.b16 %v180
      %v257 = vunpack.c.h.b16 %v180
      %v258 = vunpack.c.l.b16 %v181
      %v259 = vunpack.c.l.b16 %v182
      %v260 = vunpack.c.h.b16 %v182
      %v261 = vunpack.c.l.b16 %v183
      %v262 = vunpack.c.l.b16 %v184
      %v263 = vunpack.c.h.b16 %v184
      %v264 = vunpack.c.l.b16 %v185
      %v265 = vunpack.c.l.b16 %v186
      %v266 = vunpack.c.h.b16 %v186
      %v267 = vunpack.c.l.b16 %v187
      %v268 = vunpack.c.l.b16 %v188
      %v269 = vunpack.c.h.b16 %v188
      %v270 = vunpack.c.l.b16 %v189
      %v271 = vunpack.c.l.b16 %v190
      %v272 = vunpack.c.h.b16 %v190
      %v273 = vunpack.c.l.b16 %v191
      %v274 = vunpack.c.l.b16 %v192
      %v275 = vunpack.c.h.b16 %v192
      %v276 = vunpack.c.l.b16 %v193
      %v277 = vpack.c.b16 %v256, %v253
      %v278 = vpack.c.b16 %v257, %v254
      %v279 = vpack.c.b16 %v258, %v255
      %v280 = vpack.c.b16 %v262, %v259
      %v281 = vpack.c.b16 %v263, %v260
      %v282 = vpack.c.b16 %v264, %v261
      %v283 = vpack.c.b16 %v268, %v265
      %v284 = vpack.c.b16 %v269, %v266
      %v285 = vpack.c.b16 %v270, %v267
      %v286 = vpack.c.b16 %v274, %v271
      %v287 = vpack.c.b16 %v275, %v272
      %v288 = vpack.c.b16 %v276, %v273
      %v333 = vunpack.c.l.b16 %v194
      %v334 = vunpack.c.l.b16 %v195
      %v335 = vunpack.c.l.b16 %v196
      %v336 = vunpack.c.l.b16 %v197
      %v337 = vunpack.c.l.b16 %v198
      %v338 = vunpack.c.l.b16 %v199
      %v339 = vunpack.c.l.b16 %v200
      %v340 = vunpack.c.l.b16 %v201
      %v341 = vunpack.c.l.b16 %v202
      %v342 = vunpack.c.l.b16 %v203
      %v343 = vunpack.c.l.b16 %v204
      %v344 = vunpack.c.l.b16 %v205
      %v345 = vunpack.c.l.b16 %v206
      %v346 = vunpack.c.l.b16 %v207
      %v347 = vunpack.c.l.b16 %v208
      %v348 = vunpack.c.l.b16 %v209
      %v349 = vunpack.c.l.b16 %v210
      %v350 = vunpack.c.l.b16 %v211
      %v351 = vunpack.c.l.b16 %v212
      %v352 = vunpack.c.l.b16 %v213
      %v353 = vunpack.c.l.b16 %v214
      %v354 = vunpack.c.l.b16 %v215
      %v355 = vunpack.c.l.b16 %v216
      %v356 = vunpack.c.l.b16 %v217
      %v357 = vunpack.c.l.b16 %v218
      %v358 = vunpack.c.l.b16 %v219
      %v359 = vunpack.c.l.b16 %v220
      %v360 = vunpack.c.l.b16 %v221
      %v361 = vunpack.c.l.b16 %v222
      %v362 = vunpack.c.l.b16 %v223
      %v363 = vunpack.c.l.b16 %v224
      %v364 = vunpack.c.l.b16 %v225
      %v365 = vunpack.c.l.b16 %v226
      %v366 = vunpack.c.l.b16 %v227
      %v367 = vunpack.c.l.b16 %v228
      %v368 = vunpack.c.l.b16 %v229
      %v369 = vpack.c.b16 %v334, %v333
      %v370 = vpack.c.b16 %v336, %v335
      %v371 = vpack.c.b16 %v338, %v337
      %v372 = vpack.c.b16 %v340, %v339
      %v373 = vpack.c.b16 %v342, %v341
      %v374 = vpack.c.b16 %v344, %v343
      %v375 = vpack.c.b16 %v346, %v345
      %v376 = vpack.c.b16 %v348, %v347
      %v377 = vpack.c.b16 %v350, %v349
      %v378 = vpack.c.b16 %v352, %v351
      %v379 = vpack.c.b16 %v354, %v353
      %v380 = vpack.c.b16 %v356, %v355
      %v381 = vpack.c.b16 %v358, %v357
      %v382 = vpack.c.b16 %v360, %v359
      %v383 = vpack.c.b16 %v362, %v361
      %v384 = vpack.c.b16 %v364, %v363
      %v385 = vpack.c.b16 %v366, %v365
      %v386 = vpack.c.b16 %v368, %v367
      %vm405 = vcmask 261120
      %v407 = vsel %vm405, %v279, 0
      %v410 = vsel %vm405, %v282, 0
      %v413 = vsel %vm405, %v285, 0
      %v416 = vsel %vm405, %v288, 0
      %418 = vmatprep.subr.bf16.mxu0 0
      %419 = vmatpush1.bf16.msra.mxu0 %v376
      %420 = vmatprep.subr.bf16.mxu0 0
      %421 = vmatpush1.bf16.msra.mxu0 %v375
      %422 = vmatprep.subr.bf16.mxu0 0
      %423 = vmatpush1.bf16.msra.mxu0 %v374
      %424 = vmatprep.subr.bf16.mxu0 0
      %425 = vmatpush1.bf16.msra.mxu0 %v373
      %426 = vmatprep.subr.bf16.mxu0 0
      %427 = vmatpush1.bf16.msra.mxu0 %v372
      %428 = vmatprep.subr.bf16.mxu0 0
      %429 = vmatpush1.bf16.msra.mxu0 %v371
      %430 = vmatprep.subr.bf16.mxu0 0
      %431 = vmatpush1.bf16.msra.mxu0 %v370
      %432 = vmatprep.subr.bf16.mxu0 0
      %433 = vmatpush1.bf16.msra.mxu0 %v369
      %434 = vmatprep.subr.bf16.mxu0 0
      %435 = vmatpush2.bf16.msra.mxu0 %v384
      %436 = vmatprep.subr.bf16.mxu0 0
      %437 = vmatpush2.bf16.msra.mxu0 %v383
      %438 = vmatprep.subr.bf16.mxu0 0
      %439 = vmatpush2.bf16.msra.mxu0 %v382
      %440 = vmatprep.subr.bf16.mxu0 0
      %441 = vmatpush2.bf16.msra.mxu0 %v381
      %442 = vmatprep.subr.bf16.mxu0 0
      %443 = vmatpush2.bf16.msra.mxu0 %v380
      %444 = vmatprep.subr.bf16.mxu0 0
      %445 = vmatpush2.bf16.msra.mxu0 %v379
      %446 = vmatprep.subr.bf16.mxu0 0
      %447 = vmatpush2.bf16.msra.mxu0 %v378
      %448 = vmatprep.subr.bf16.mxu0 0
      %449 = vmatpush2.bf16.msra.mxu0 %v377
      %450 = vmatprep.mubr.bf16.mxu0 %v278
      %451 = vmatmul.mubr.bf16.gmra.mxu0 %v277
      %v452 = vpop.f32.mrf.mxu0
      %v453 = vadd.f32 %v235, %v452
      %v454 = vpop.f32.mrf.mxu0
      %v455 = vpop.f32.mrf.mxu0
      %v456 = vadd.f32 %v235, %v455
      %v457 = vpop.f32.mrf.mxu0
      %458 = vmatprep.mubr.bf16.mxu0 %v281
      %459 = vmatmul.mubr.bf16.gmra.mxu0 %v280
      %v460 = vpop.f32.mrf.mxu0
      %v461 = vadd.f32 %v235, %v460
      %v462 = vpop.f32.mrf.mxu0
      %v463 = vpop.f32.mrf.mxu0
      %v464 = vadd.f32 %v235, %v463
      %v465 = vpop.f32.mrf.mxu0
      %466 = vmatprep.mubr.bf16.mxu0 %v284
      %467 = vmatmul.mubr.bf16.gmra.mxu0 %v283
      %v468 = vpop.f32.mrf.mxu0
      %v469 = vadd.f32 %v235, %v468
      %v470 = vpop.f32.mrf.mxu0
      %v471 = vpop.f32.mrf.mxu0
      %v472 = vadd.f32 %v235, %v471
      %v473 = vpop.f32.mrf.mxu0
      %474 = vmatprep.mubr.bf16.mxu0 %v287
      %475 = vmatmul.mubr.bf16.gmra.mxu0 %v286
      %v476 = vpop.f32.mrf.mxu0
      %v477 = vadd.f32 %v235, %v476
      %v478 = vpop.f32.mrf.mxu0
      %v479 = vpop.f32.mrf.mxu0
      %v480 = vadd.f32 %v235, %v479
      %v481 = vpop.f32.mrf.mxu0
      %482 = vdwg.mxu0
      %483 = vmatprep.subr.bf16.mxu0 0
      %484 = vmatpush1.bf16.msra.mxu0 0
      %485 = vmatprep.subr.bf16.mxu0 0
      %486 = vmatpush1.bf16.msra.mxu0 0
      %487 = vmatprep.subr.bf16.mxu0 0
      %488 = vmatpush1.bf16.msra.mxu0 0
      %489 = vmatprep.subr.bf16.mxu0 0
      %490 = vmatpush1.bf16.msra.mxu0 0
      %491 = vmatprep.subr.bf16.mxu0 0
      %492 = vmatpush1.bf16.msra.mxu0 0
      %493 = vmatprep.subr.bf16.mxu0 0
      %494 = vmatpush1.bf16.msra.mxu0 0
      %495 = vmatprep.subr.bf16.mxu0 0
      %496 = vmatpush1.bf16.msra.mxu0 %v386
      %497 = vmatprep.subr.bf16.mxu0 0
      %498 = vmatpush1.bf16.msra.mxu0 %v385
      %499 = vmatprep.subr.bf16.mxu0 0
      %500 = vmatpush2.bf16.msra.mxu0 0
      %501 = vmatprep.subr.bf16.mxu0 0
      %502 = vmatpush2.bf16.msra.mxu0 0
      %503 = vmatprep.subr.bf16.mxu0 0
      %504 = vmatpush2.bf16.msra.mxu0 0
      %505 = vmatprep.subr.bf16.mxu0 0
      %506 = vmatpush2.bf16.msra.mxu0 0
      %507 = vmatprep.subr.bf16.mxu0 0
      %508 = vmatpush2.bf16.msra.mxu0 0
      %509 = vmatprep.subr.bf16.mxu0 0
      %510 = vmatpush2.bf16.msra.mxu0 0
      %511 = vmatprep.subr.bf16.mxu0 0
      %512 = vmatpush2.bf16.msra.mxu0 0
      %513 = vmatprep.subr.bf16.mxu0 0
      %514 = vmatpush2.bf16.msra.mxu0 0
      %515 = vmatprep.mubr.bf16.mxu0 0
      %516 = vmatmul.mubr.bf16.gmra.mxu0 %v407
      %v517 = vpop.f32.mrf.mxu0
      %v518 = vadd.f32 %v453, %v517
      %v519 = vpop.f32.mrf.mxu0
      %v520 = vpop.f32.mrf.mxu0
      %v521 = vadd.f32 %v456, %v520
      %v522 = vpop.f32.mrf.mxu0
      %523 = vmatprep.mubr.bf16.mxu0 0
      %524 = vmatmul.mubr.bf16.gmra.mxu0 %v410
      %v525 = vpop.f32.mrf.mxu0
      %v526 = vadd.f32 %v461, %v525
      %v527 = vpop.f32.mrf.mxu0
      %v528 = vpop.f32.mrf.mxu0
      %v529 = vadd.f32 %v464, %v528
      %v530 = vpop.f32.mrf.mxu0
      %531 = vmatprep.mubr.bf16.mxu0 0
      %532 = vmatmul.mubr.bf16.gmra.mxu0 %v413
      %v533 = vpop.f32.mrf.mxu0
      %v534 = vadd.f32 %v469, %v533
      %v535 = vpop.f32.mrf.mxu0
      %v536 = vpop.f32.mrf.mxu0
      %v537 = vadd.f32 %v472, %v536
      %v538 = vpop.f32.mrf.mxu0
      %539 = vmatprep.mubr.bf16.mxu0 0
      %540 = vmatmul.mubr.bf16.gmra.mxu0 %v416
      %v541 = vpop.f32.mrf.mxu0
      %v542 = vadd.f32 %v477, %v541
      %v543 = vpop.f32.mrf.mxu0
      %v544 = vpop.f32.mrf.mxu0
      %v545 = vadd.f32 %v480, %v544
      %v546 = vpop.f32.mrf.mxu0
      %547 = vdwg.mxu0
      %v548 = vmax.f32 %v518, 0.0
      %v549 = vmax.f32 %v521, 0.0
      %v550 = vmax.f32 %v526, 0.0
      %v551 = vmax.f32 %v529, 0.0
      %v552 = vmax.f32 %v534, 0.0
      %v553 = vmax.f32 %v537, 0.0
      %v554 = vmax.f32 %v542, 0.0
      %v555 = vmax.f32 %v545, 0.0
      %v556 = vpack.c.bf16 %v549, %v548
      %v557 = vpack.c.bf16 %v551, %v550
      %v558 = vpack.c.bf16 %v553, %v552
      %v559 = vpack.c.bf16 %v555, %v554
      %v564 = vunpack.c.l.b16 %v556
      %v565 = vunpack.c.h.b16 %v556
      %v566 = vunpack.c.l.b16 %v557
      %v567 = vunpack.c.h.b16 %v557
      %v568 = vunpack.c.l.b16 %v558
      %v569 = vunpack.c.h.b16 %v558
      %v570 = vunpack.c.l.b16 %v559
      %v571 = vunpack.c.h.b16 %v559
      %v572 = vpack.c.b16 %v564, %v564
      %v573 = vpack.c.b16 %v565, %v565
      %v574 = vpack.c.b16 %v566, %v566
      %v575 = vpack.c.b16 %v567, %v567
      %v576 = vpack.c.b16 %v568, %v568
      %v577 = vpack.c.b16 %v569, %v569
      %v578 = vpack.c.b16 %v570, %v570
      %v579 = vpack.c.b16 %v571, %v571
      %vm588 = vcmask 257024
      %589 = vst.msk [vmem:[%s175] sm:$0xf] %vm588, %v572
      %590 = vst.msk [vmem:[%s175 + $0x4] sm:$0xf] %vm588, %v573
      %591 = vst.msk [vmem:[%s175 + $0x8] sm:$0xf] %vm588, %v574
      %592 = vst.msk [vmem:[%s175 + $0xc] sm:$0xf] %vm588, %v575
      %593 = vst.msk [vmem:[%s175 + $0x10] sm:$0xf] %vm588, %v576
      %594 = vst.msk [vmem:[%s175 + $0x14] sm:$0xf] %vm588, %v577
      %595 = vst.msk [vmem:[%s175 + $0x18] sm:$0xf] %vm588, %v578
      %596 = vst.msk [vmem:[%s175 + $0x1c] sm:$0xf] %vm588, %v579
      %s597 = smul.u32 8, %s14
      %p598 = scmp.lt.s32.totalorder %s597, 15
      %s599 = scalar_select %p598, %s597, 15
      %s600 = smul.addr %s599, 4
      %s601 = scalar_lea.vmem %s3, %s600
      // Predicated region
      $region33: #{generalized_rcnn_forward.12} parent=31 // pred_check
        %p602 = pneg %p100
      $region34: #{generalized_rcnn_forward.12} parent=31 // pred_check_branch
        %604 = sbr.rel (%p602) target = $region36
      $region35: #{generalized_rcnn_forward.12} parent=31 // pred_region
        %s605 = smul.u32 8, %s14
      $region36: #{generalized_rcnn_forward.12} parent=31 // pred_fallthru
        _
    $region32: #{generalized_rcnn_forward.12} parent=5 // pred_fallthru
      _
    %p606 = scmp.le.s32.totalorder 2, %s9
    // Predicated region
    $region37: #{generalized_rcnn_forward.12} parent=5 // pred_check
      %p607 = pneg %p606
    $region38: #{generalized_rcnn_forward.12} parent=5 // pred_check_branch
      %609 = sbr.rel (%p607) target = $region40
    $region39: #{generalized_rcnn_forward.12} parent=5 // pred_region
      %s610 = ssub.s32 %s9, 2
      // Predicated region
      $region41: #{generalized_rcnn_forward.12} parent=39 // pred_check
        %p611 = pneg %p106
      $region42: #{generalized_rcnn_forward.12} parent=39 // pred_check_branch
        %613 = sbr.rel (%p611) target = $region44
      $region43: #{generalized_rcnn_forward.12} parent=39 // pred_region
        %s614 = smul.u32 8, %s15
        %p615 = scmp.lt.s32.totalorder %s614, 15
        %s616 = scalar_select %p615, %s614, 15
        %s617 = smul.addr %s616, 4
        %s618 = scalar_lea.vmem %s3, %s617
      $region44: #{generalized_rcnn_forward.12} parent=39 // pred_fallthru
        _
    $region40: #{generalized_rcnn_forward.12} parent=5 // pred_fallthru
      _
  $region6: #{generalized_rcnn_forward.12} parent=0 // loop_footer
    %s13 = sadd.s32 1, %s9
  $region7: #{generalized_rcnn_forward.12} parent=0 // loop_footer_branch
    %8 = sbr.rel target = $region3
  $region8: #{generalized_rcnn_forward.12} parent=0 // loop_exit
    _

// kernel: generalized_rcnn_forward.13
$region0: #{generalized_rcnn_forward.13}
  #allocation0 [shape = 'u32[]', space=smem, size = 0x4, offset = 0x4, fixed_abs, tag = 'smem constant byte address 0x4 - core index']
  #allocation1 [shape = 'u32[144,128]{1,0:T(1,128)}', space=vmem, size = 0x12000, scoped, tag = 'internal scratch']
  %s0 = inlined_call_operand.vmem [shape: bf16[32,288], index: 0, kind: input, shape index: {}]
  %s1 = inlined_call_operand.vmem [shape: bf16[288,32], index: 1, kind: input, shape index: {}]
  %s2 = inlined_call_operand.vmem [shape: f32[1,32], index: 2, kind: input, shape index: {}]
  %s3 = inlined_call_operand.vmem [shape: bf16[32,32], index: 3, kind: output, shape index: {}]
  %s4 = sld [smem:[#allocation0]]
  $region45: #{generalized_rcnn_forward.13} parent=0
    _
  %s6 = ssub.s32 1, %s4
  %s7 = scalar_select 0, %s6, %s4
  loop: start=0, step=1, limit=4
  $region2: #{generalized_rcnn_forward.13} parent=0 // loop_pre_header
    _
  $region3: #{generalized_rcnn_forward.13} parent=0 // loop_header
    %s9 = sphi 0, %s13
    %p10 = scmp.ge.s32.totalorder %s9, 4
    %s19 = sphi 0, %s21
    %s22 = sphi 0, %s19
    %s23 = sphi 0, %s22
    %s39 = sphi 0, %s23
    %s43 = sphi 0, %s43
    %s45 = sphi 0, %s43
    %s46 = sphi 0, %s45
    %s60 = sphi 0, %s46
    %s64 = sphi 0, %s64
    %s66 = sphi 0, %s64
    %s67 = sphi 0, %s66
    %s81 = sphi 0, %s67
    %s87 = sphi 0, %s89
    %s90 = sphi 0, %s87
    %s91 = sphi 0, %s90
    %s107 = sphi 0, %s91
  $region4: #{generalized_rcnn_forward.13} parent=0 // loop_header_branch
    %12 = sbr.rel (%p10) target = $region8
  $region5: #{generalized_rcnn_forward.13} parent=0 // loop_body
    %s14 = ssub.s32 %s9, 1
    %s15 = ssub.s32 %s9, 2
    %s16 = sadd.s32 %s9, 1
    %s17 = ssub.s32 %s9, %s16
    %p18 = scmp.eq.s32.totalorder %s17, 0
    %s20 = sadd.s32 %s19, 1
    %s21 = scalar_select %p18, %s19, %s20
    %p24 = pneg %p18
    %p25 = scmp.eq.s32.totalorder %s9, 1
    %p26 = por %p24, %p25
    %p27 = scmp.ne.s32.totalorder %s19, %s22
    %p28 = scmp.eq.s32.totalorder %s9, 0
    %p29 = por %p27, %p28
    %p30 = scmp.ne.s32.totalorder %s19, %s22
    %p31 = scmp.eq.s32.totalorder %s14, 1
    %p32 = por %p30, %p31
    %p33 = scmp.ne.s32.totalorder %s22, %s23
    %p34 = scmp.eq.s32.totalorder %s14, 0
    %p35 = por %p33, %p34
    %p36 = scmp.ne.s32.totalorder %s22, %s23
    %p37 = scmp.eq.s32.totalorder %s15, 1
    %p38 = por %p36, %p37
    %p40 = scmp.ne.s32.totalorder %s23, %s39
    %p41 = scmp.eq.s32.totalorder %s15, 0
    %p42 = por %p40, %p41
    %s44 = sadd.s32 %s43, 1
    %p47 = scmp.eq.s32.totalorder %s9, 1
    %p48 = scmp.ne.s32.totalorder %s43, %s45
    %p49 = scmp.eq.s32.totalorder %s9, 0
    %p50 = por %p48, %p49
    %p51 = scmp.ne.s32.totalorder %s43, %s45
    %p52 = scmp.eq.s32.totalorder %s14, 1
    %p53 = por %p51, %p52
    %p54 = scmp.ne.s32.totalorder %s45, %s46
    %p55 = scmp.eq.s32.totalorder %s14, 0
    %p56 = por %p54, %p55
    %p57 = scmp.ne.s32.totalorder %s45, %s46
    %p58 = scmp.eq.s32.totalorder %s15, 1
    %p59 = por %p57, %p58
    %p61 = scmp.ne.s32.totalorder %s46, %s60
    %p62 = scmp.eq.s32.totalorder %s15, 0
    %p63 = por %p61, %p62
    %s65 = sadd.s32 %s64, 1
    %p68 = scmp.eq.s32.totalorder %s9, 1
    %p69 = scmp.ne.s32.totalorder %s64, %s66
    %p70 = scmp.eq.s32.totalorder %s9, 0
    %p71 = por %p69, %p70
    %p72 = scmp.ne.s32.totalorder %s64, %s66
    %p73 = scmp.eq.s32.totalorder %s14, 1
    %p74 = por %p72, %p73
    %p75 = scmp.ne.s32.totalorder %s66, %s67
    %p76 = scmp.eq.s32.totalorder %s14, 0
    %p77 = por %p75, %p76
    %p78 = scmp.ne.s32.totalorder %s66, %s67
    %p79 = scmp.eq.s32.totalorder %s15, 1
    %p80 = por %p78, %p79
    %p82 = scmp.ne.s32.totalorder %s67, %s81
    %p83 = scmp.eq.s32.totalorder %s15, 0
    %p84 = por %p82, %p83
    %s85 = ssub.s32 %s9, %s16
    %p86 = scmp.eq.s32.totalorder %s85, 0
    %s88 = sadd.s32 %s87, 1
    %s89 = scalar_select %p86, %s87, %s88
    %p92 = pneg %p86
    %p93 = scmp.eq.s32.totalorder %s9, 1
    %p94 = por %p92, %p93
    %p95 = scmp.ne.s32.totalorder %s87, %s90
    %p96 = scmp.eq.s32.totalorder %s9, 0
    %p97 = por %p95, %p96
    %p98 = scmp.ne.s32.totalorder %s87, %s90
    %p99 = scmp.eq.s32.totalorder %s14, 1
    %p100 = por %p98, %p99
    %p101 = scmp.ne.s32.totalorder %s90, %s91
    %p102 = scmp.eq.s32.totalorder %s14, 0
    %p103 = por %p101, %p102
    %p104 = scmp.ne.s32.totalorder %s90, %s91
    %p105 = scmp.eq.s32.totalorder %s15, 1
    %p106 = por %p104, %p105
    %p108 = scmp.ne.s32.totalorder %s91, %s107
    %p109 = scmp.eq.s32.totalorder %s15, 0
    %p110 = por %p108, %p109
    %p111 = scmp.le.s32.totalorder 1, %s9
    %p112 = scmp.lt.s32.totalorder %s9, 3
    %p113 = pnand %p111, %p112
    %p114 = pneg %p113
    // Predicated region
    $region9: #{generalized_rcnn_forward.13} parent=5 // pred_check
      _
    $region10: #{generalized_rcnn_forward.13} parent=5 // pred_check_branch
      %116 = sbr.rel (%p113) target = $region12
    $region11: #{generalized_rcnn_forward.13} parent=5 // pred_region
      %s117 = ssub.s32 %s9, 1
      // Predicated region
      $region13: #{generalized_rcnn_forward.13} parent=11 // pred_check
        %p118 = pneg %p56
      $region14: #{generalized_rcnn_forward.13} parent=11 // pred_check_branch
        %120 = sbr.rel (%p118) target = $region16
      $region15: #{generalized_rcnn_forward.13} parent=11 // pred_region
        _
      $region16: #{generalized_rcnn_forward.13} parent=11 // pred_fallthru
        _
      // Predicated region
      $region17: #{generalized_rcnn_forward.13} parent=11 // pred_check
        %p121 = pneg %p77
      $region18: #{generalized_rcnn_forward.13} parent=11 // pred_check_branch
        %123 = sbr.rel (%p121) target = $region20
      $region19: #{generalized_rcnn_forward.13} parent=11 // pred_region
        _
      $region20: #{generalized_rcnn_forward.13} parent=11 // pred_fallthru
        _
    $region12: #{generalized_rcnn_forward.13} parent=5 // pred_fallthru
      _
    %p124 = scmp.lt.s32.totalorder %s9, 2
    // Predicated region
    $region21: #{generalized_rcnn_forward.13} parent=5 // pred_check
      %p125 = pneg %p124
    $region22: #{generalized_rcnn_forward.13} parent=5 // pred_check_branch
      %127 = sbr.rel (%p125) target = $region24
    $region23: #{generalized_rcnn_forward.13} parent=5 // pred_region
      // Predicated region
      $region25: #{generalized_rcnn_forward.13} parent=23 // pred_check
        %p128 = pneg %p29
      $region26: #{generalized_rcnn_forward.13} parent=23 // pred_check_branch
        %130 = sbr.rel (%p128) target = $region28
      $region27: #{generalized_rcnn_forward.13} parent=23 // pred_region
        %s131 = smul.u32 2, %s9
        %p132 = scmp.lt.s32.totalorder %s131, 3
        %s133 = scalar_select %p132, %s131, 3
        %s134 = smul.addr %s133, 3
        %s135 = smul.addr %s134, 4
        %s136 = scalar_lea.vmem %s0, %s135
        %s137 = smul.u32 2, %s9
      $region28: #{generalized_rcnn_forward.13} parent=23 // pred_fallthru
        _
    $region24: #{generalized_rcnn_forward.13} parent=5 // pred_fallthru
      _
    %p138 = scmp.le.s32.totalorder 1, %s9
    %p139 = scmp.lt.s32.totalorder %s9, 3
    %p140 = pnand %p138, %p139
    %p141 = pneg %p140
    // Predicated region
    $region29: #{generalized_rcnn_forward.13} parent=5 // pred_check
      _
    $region30: #{generalized_rcnn_forward.13} parent=5 // pred_check_branch
      %143 = sbr.rel (%p140) target = $region32
    $region31: #{generalized_rcnn_forward.13} parent=5 // pred_region
      %s144 = ssub.s32 %s9, 1
      %s145 = smul.u32 2, %s14
      %p146 = scmp.lt.s32.totalorder %s145, 3
      %s147 = scalar_select %p146, %s145, 3
      %s148 = smul.addr %s147, 3
      %s149 = smul.addr %s148, 4
      %s150 = scalar_lea.vmem %s0, %s149
      %p151 = pneg %p35
      %p152 = pneg %p32
      %p153 = pneg %p56
      %p154 = pneg %p53
      %p155 = pneg %p77
      %p156 = pneg %p74
      %p157 = pneg %p103
      %p158 = pneg %p100
      %s159 = smul.u32 2, %s14
      %p160 = scmp.lt.s32.totalorder %s159, 3
      %s161 = scalar_select %p160, %s159, 3
      %s162 = smul.addr %s161, 4
      %s163 = scalar_lea.vmem %s3, %s162
      %s164 = smul.u32 2, %s14
      %p165 = scmp.lt.s32.totalorder %s164, 3
      %s166 = scalar_select %p165, %s164, 3
      %s167 = smul.addr %s166, 3
      %s168 = smul.addr %s167, 4
      %s169 = scalar_lea.vmem %s0, %s168
      %s170 = smul.u32 2, %s14
      %s171 = smul.u32 2, %s14
      %p172 = scmp.lt.s32.totalorder %s171, 3
      %s173 = scalar_select %p172, %s171, 3
      %s174 = smul.addr %s173, 4
      %s175 = scalar_lea.vmem %s3, %s174
      %s176 = smul.u32 2, %s14
      %v178 = vld [vmem:[%s169] sm:$0xff]
      %v179 = vld [vmem:[%s169 + $0x8] sm:$0xf]
      %v180 = vld [vmem:[%s169 + $0xc] sm:$0xff]
      %v181 = vld [vmem:[%s169 + $0x14] sm:$0xf]
      %v182 = vld [vmem:[%s1] sm:$0xf]
      %v183 = vld [vmem:[%s1 + $0x4] sm:$0xf]
      %v184 = vld [vmem:[%s1 + $0x8] sm:$0xf]
      %v185 = vld [vmem:[%s1 + $0xc] sm:$0xf]
      %v186 = vld [vmem:[%s1 + $0x10] sm:$0xf]
      %v187 = vld [vmem:[%s1 + $0x14] sm:$0xf]
      %v188 = vld [vmem:[%s1 + $0x18] sm:$0xf]
      %v189 = vld [vmem:[%s1 + $0x1c] sm:$0xf]
      %v190 = vld [vmem:[%s1 + $0x20] sm:$0xf]
      %v191 = vld [vmem:[%s1 + $0x24] sm:$0xf]
      %v192 = vld [vmem:[%s1 + $0x28] sm:$0xf]
      %v193 = vld [vmem:[%s1 + $0x2c] sm:$0xf]
      %v194 = vld [vmem:[%s1 + $0x30] sm:$0xf]
      %v195 = vld [vmem:[%s1 + $0x34] sm:$0xf]
      %v196 = vld [vmem:[%s1 + $0x38] sm:$0xf]
      %v197 = vld [vmem:[%s1 + $0x3c] sm:$0xf]
      %v198 = vld [vmem:[%s1 + $0x40] sm:$0xf]
      %v199 = vld [vmem:[%s1 + $0x44] sm:$0xf]
      %v200 = vld [vmem:[%s1 + $0x48] sm:$0xf]
      %v201 = vld [vmem:[%s1 + $0x4c] sm:$0xf]
      %v202 = vld [vmem:[%s1 + $0x50] sm:$0xf]
      %v203 = vld [vmem:[%s1 + $0x54] sm:$0xf]
      %v204 = vld [vmem:[%s1 + $0x58] sm:$0xf]
      %v205 = vld [vmem:[%s1 + $0x5c] sm:$0xf]
      %v206 = vld [vmem:[%s1 + $0x60] sm:$0xf]
      %v207 = vld [vmem:[%s1 + $0x64] sm:$0xf]
      %v208 = vld [vmem:[%s1 + $0x68] sm:$0xf]
      %v209 = vld [vmem:[%s1 + $0x6c] sm:$0xf]
      %v210 = vld [vmem:[%s1 + $0x70] sm:$0xf]
      %v211 = vld [vmem:[%s1 + $0x74] sm:$0xf]
      %v212 = vld [vmem:[%s1 + $0x78] sm:$0xf]
      %v213 = vld [vmem:[%s1 + $0x7c] sm:$0xf]
      %v214 = vld [vmem:[%s1 + $0x80] sm:$0xf]
      %v215 = vld [vmem:[%s1 + $0x84] sm:$0xf]
      %v216 = vld [vmem:[%s1 + $0x88] sm:$0xf]
      %v217 = vld [vmem:[%s1 + $0x8c] sm:$0xf]
      %v218 = vld [vmem:[%s2] sm:$0x1]
      %v220 = vlaneseq
      %v221 = vshrl.u32 %v220, 7
      %v222 = vsub.s32 0, %v221
      %v223 = vrot.slane %v218, %v222
      %v229 = vunpack.c.l.b16 %v178
      %v230 = vunpack.c.h.b16 %v178
      %v231 = vunpack.c.l.b16 %v179
      %v232 = vunpack.c.l.b16 %v180
      %v233 = vunpack.c.h.b16 %v180
      %v234 = vunpack.c.l.b16 %v181
      %v235 = vpack.c.b16 %v232, %v229
      %v236 = vpack.c.b16 %v233, %v230
      %v237 = vpack.c.b16 %v234, %v231
      %v276 = vunpack.c.l.b16 %v182
      %v277 = vunpack.c.l.b16 %v183
      %v278 = vunpack.c.l.b16 %v184
      %v279 = vunpack.c.l.b16 %v185
      %v280 = vunpack.c.l.b16 %v186
      %v281 = vunpack.c.l.b16 %v187
      %v282 = vunpack.c.l.b16 %v188
      %v283 = vunpack.c.l.b16 %v189
      %v284 = vunpack.c.l.b16 %v190
      %v285 = vunpack.c.l.b16 %v191
      %v286 = vunpack.c.l.b16 %v192
      %v287 = vunpack.c.l.b16 %v193
      %v288 = vunpack.c.l.b16 %v194
      %v289 = vunpack.c.l.b16 %v195
      %v290 = vunpack.c.l.b16 %v196
      %v291 = vunpack.c.l.b16 %v197
      %v292 = vunpack.c.l.b16 %v198
      %v293 = vunpack.c.l.b16 %v199
      %v294 = vunpack.c.l.b16 %v200
      %v295 = vunpack.c.l.b16 %v201
      %v296 = vunpack.c.l.b16 %v202
      %v297 = vunpack.c.l.b16 %v203
      %v298 = vunpack.c.l.b16 %v204
      %v299 = vunpack.c.l.b16 %v205
      %v300 = vunpack.c.l.b16 %v206
      %v301 = vunpack.c.l.b16 %v207
      %v302 = vunpack.c.l.b16 %v208
      %v303 = vunpack.c.l.b16 %v209
      %v304 = vunpack.c.l.b16 %v210
      %v305 = vunpack.c.l.b16 %v211
      %v306 = vunpack.c.l.b16 %v212
      %v307 = vunpack.c.l.b16 %v213
      %v308 = vunpack.c.l.b16 %v214
      %v309 = vunpack.c.l.b16 %v215
      %v310 = vunpack.c.l.b16 %v216
      %v311 = vunpack.c.l.b16 %v217
      %v312 = vpack.c.b16 %v277, %v276
      %v313 = vpack.c.b16 %v279, %v278
      %v314 = vpack.c.b16 %v281, %v280
      %v315 = vpack.c.b16 %v283, %v282
      %v316 = vpack.c.b16 %v285, %v284
      %v317 = vpack.c.b16 %v287, %v286
      %v318 = vpack.c.b16 %v289, %v288
      %v319 = vpack.c.b16 %v291, %v290
      %v320 = vpack.c.b16 %v293, %v292
      %v321 = vpack.c.b16 %v295, %v294
      %v322 = vpack.c.b16 %v297, %v296
      %v323 = vpack.c.b16 %v299, %v298
      %v324 = vpack.c.b16 %v301, %v300
      %v325 = vpack.c.b16 %v303, %v302
      %v326 = vpack.c.b16 %v305, %v304
      %v327 = vpack.c.b16 %v307, %v306
      %v328 = vpack.c.b16 %v309, %v308
      %v329 = vpack.c.b16 %v311, %v310
      %vm348 = vcmask 261120
      %v350 = vsel %vm348, %v237, 0
      %352 = vmatprep.subr.bf16.mxu0 0
      %353 = vmatpush1.bf16.msra.mxu0 %v319
      %354 = vmatprep.subr.bf16.mxu0 0
      %355 = vmatpush1.bf16.msra.mxu0 %v318
      %356 = vmatprep.subr.bf16.mxu0 0
      %357 = vmatpush1.bf16.msra.mxu0 %v317
      %358 = vmatprep.subr.bf16.mxu0 0
      %359 = vmatpush1.bf16.msra.mxu0 %v316
      %360 = vmatprep.subr.bf16.mxu0 0
      %361 = vmatpush1.bf16.msra.mxu0 %v315
      %362 = vmatprep.subr.bf16.mxu0 0
      %363 = vmatpush1.bf16.msra.mxu0 %v314
      %364 = vmatprep.subr.bf16.mxu0 0
      %365 = vmatpush1.bf16.msra.mxu0 %v313
      %366 = vmatprep.subr.bf16.mxu0 0
      %367 = vmatpush1.bf16.msra.mxu0 %v312
      %368 = vmatprep.subr.bf16.mxu0 0
      %369 = vmatpush2.bf16.msra.mxu0 %v327
      %370 = vmatprep.subr.bf16.mxu0 0
      %371 = vmatpush2.bf16.msra.mxu0 %v326
      %372 = vmatprep.subr.bf16.mxu0 0
      %373 = vmatpush2.bf16.msra.mxu0 %v325
      %374 = vmatprep.subr.bf16.mxu0 0
      %375 = vmatpush2.bf16.msra.mxu0 %v324
      %376 = vmatprep.subr.bf16.mxu0 0
      %377 = vmatpush2.bf16.msra.mxu0 %v323
      %378 = vmatprep.subr.bf16.mxu0 0
      %379 = vmatpush2.bf16.msra.mxu0 %v322
      %380 = vmatprep.subr.bf16.mxu0 0
      %381 = vmatpush2.bf16.msra.mxu0 %v321
      %382 = vmatprep.subr.bf16.mxu0 0
      %383 = vmatpush2.bf16.msra.mxu0 %v320
      %384 = vmatprep.mubr.bf16.mxu0 %v236
      %385 = vmatmul.mubr.bf16.gmra.mxu0 %v235
      %v386 = vpop.f32.mrf.mxu0
      %v387 = vadd.f32 %v223, %v386
      %v388 = vpop.f32.mrf.mxu0
      %v389 = vpop.f32.mrf.mxu0
      %v390 = vadd.f32 %v223, %v389
      %v391 = vpop.f32.mrf.mxu0
      %392 = vdwg.mxu0
      %393 = vmatprep.subr.bf16.mxu0 0
      %394 = vmatpush1.bf16.msra.mxu0 0
      %395 = vmatprep.subr.bf16.mxu0 0
      %396 = vmatpush1.bf16.msra.mxu0 0
      %397 = vmatprep.subr.bf16.mxu0 0
      %398 = vmatpush1.bf16.msra.mxu0 0
      %399 = vmatprep.subr.bf16.mxu0 0
      %400 = vmatpush1.bf16.msra.mxu0 0
      %401 = vmatprep.subr.bf16.mxu0 0
      %402 = vmatpush1.bf16.msra.mxu0 0
      %403 = vmatprep.subr.bf16.mxu0 0
      %404 = vmatpush1.bf16.msra.mxu0 0
      %405 = vmatprep.subr.bf16.mxu0 0
      %406 = vmatpush1.bf16.msra.mxu0 %v329
      %407 = vmatprep.subr.bf16.mxu0 0
      %408 = vmatpush1.bf16.msra.mxu0 %v328
      %409 = vmatprep.subr.bf16.mxu0 0
      %410 = vmatpush2.bf16.msra.mxu0 0
      %411 = vmatprep.subr.bf16.mxu0 0
      %412 = vmatpush2.bf16.msra.mxu0 0
      %413 = vmatprep.subr.bf16.mxu0 0
      %414 = vmatpush2.bf16.msra.mxu0 0
      %415 = vmatprep.subr.bf16.mxu0 0
      %416 = vmatpush2.bf16.msra.mxu0 0
      %417 = vmatprep.subr.bf16.mxu0 0
      %418 = vmatpush2.bf16.msra.mxu0 0
      %419 = vmatprep.subr.bf16.mxu0 0
      %420 = vmatpush2.bf16.msra.mxu0 0
      %421 = vmatprep.subr.bf16.mxu0 0
      %422 = vmatpush2.bf16.msra.mxu0 0
      %423 = vmatprep.subr.bf16.mxu0 0
      %424 = vmatpush2.bf16.msra.mxu0 0
      %425 = vmatprep.mubr.bf16.mxu0 0
      %426 = vmatmul.mubr.bf16.gmra.mxu0 %v350
      %v427 = vpop.f32.mrf.mxu0
      %v428 = vadd.f32 %v387, %v427
      %v429 = vpop.f32.mrf.mxu0
      %v430 = vpop.f32.mrf.mxu0
      %v431 = vadd.f32 %v390, %v430
      %v432 = vpop.f32.mrf.mxu0
      %433 = vdwg.mxu0
      %v434 = vmax.f32 %v428, 0.0
      %v435 = vmax.f32 %v431, 0.0
      %v436 = vpack.c.bf16 %v435, %v434
      %v438 = vunpack.c.l.b16 %v436
      %v439 = vunpack.c.h.b16 %v436
      %v440 = vpack.c.b16 %v438, %v438
      %v441 = vpack.c.b16 %v439, %v439
      %vm444 = vcmask 257024
      %445 = vst.msk [vmem:[%s175] sm:$0xf] %vm444, %v440
      %446 = vst.msk [vmem:[%s175 + $0x4] sm:$0xf] %vm444, %v441
      %s447 = smul.u32 2, %s14
      %p448 = scmp.lt.s32.totalorder %s447, 3
      %s449 = scalar_select %p448, %s447, 3
      %s450 = smul.addr %s449, 4
      %s451 = scalar_lea.vmem %s3, %s450
      // Predicated region
      $region33: #{generalized_rcnn_forward.13} parent=31 // pred_check
        %p452 = pneg %p100
      $region34: #{generalized_rcnn_forward.13} parent=31 // pred_check_branch
        %454 = sbr.rel (%p452) target = $region36
      $region35: #{generalized_rcnn_forward.13} parent=31 // pred_region
        %s455 = smul.u32 2, %s14
      $region36: #{generalized_rcnn_forward.13} parent=31 // pred_fallthru
        _
    $region32: #{generalized_rcnn_forward.13} parent=5 // pred_fallthru
      _
    %p456 = scmp.le.s32.totalorder 2, %s9
    // Predicated region
    $region37: #{generalized_rcnn_forward.13} parent=5 // pred_check
      %p457 = pneg %p456
    $region38: #{generalized_rcnn_forward.13} parent=5 // pred_check_branch
      %459 = sbr.rel (%p457) target = $region40
    $region39: #{generalized_rcnn_forward.13} parent=5 // pred_region
      %s460 = ssub.s32 %s9, 2
      // Predicated region
      $region41: #{generalized_rcnn_forward.13} parent=39 // pred_check
        %p461 = pneg %p106
      $region42: #{generalized_rcnn_forward.13} parent=39 // pred_check_branch
        %463 = sbr.rel (%p461) target = $region44
      $region43: #{generalized_rcnn_forward.13} parent=39 // pred_region
        %s464 = smul.u32 2, %s15
        %p465 = scmp.lt.s32.totalorder %s464, 3
        %s466 = scalar_select %p465, %s464, 3
        %s467 = smul.addr %s466, 4
        %s468 = scalar_lea.vmem %s3, %s467
      $region44: #{generalized_rcnn_forward.13} parent=39 // pred_fallthru
        _
    $region40: #{generalized_rcnn_forward.13} parent=5 // pred_fallthru
      _
  $region6: #{generalized_rcnn_forward.13} parent=0 // loop_footer
    %s13 = sadd.s32 1, %s9
  $region7: #{generalized_rcnn_forward.13} parent=0 // loop_footer_branch
    %8 = sbr.rel target = $region3
  $region8: #{generalized_rcnn_forward.13} parent=0 // loop_exit
    _

// kernel: generalized_rcnn_forward.14
$region0: #{generalized_rcnn_forward.14}
  #allocation0 [shape = 'u32[]', space=smem, size = 0x4, offset = 0x4, fixed_abs, tag = 'smem constant byte address 0x4 - core index']
  #allocation1 [shape = 'u32[144,128]{1,0:T(1,128)}', space=vmem, size = 0x12000, scoped, tag = 'internal scratch']
  %s0 = inlined_call_operand.vmem [shape: bf16[16,288], index: 0, kind: input, shape index: {}]
  %s1 = inlined_call_operand.vmem [shape: bf16[288,32], index: 1, kind: input, shape index: {}]
  %s2 = inlined_call_operand.vmem [shape: f32[1,32], index: 2, kind: input, shape index: {}]
  %s3 = inlined_call_operand.vmem [shape: bf16[16,32], index: 3, kind: output, shape index: {}]
  %s4 = sld [smem:[#allocation0]]
  $region22: #{generalized_rcnn_forward.14} parent=0
    _
  %s6 = ssub.s32 1, %s4
  %s7 = scalar_select 0, %s6, %s4
  // Predicated region
  $region2: #{generalized_rcnn_forward.14} parent=0 // pred_check
    _
  $region3: #{generalized_rcnn_forward.14} parent=0 // pred_check_branch
    %9 = sbr.rel (0) target = $region5
  $region4: #{generalized_rcnn_forward.14} parent=0 // pred_region
    _
  $region5: #{generalized_rcnn_forward.14} parent=0 // pred_fallthru
    _
  // Predicated region
  $region6: #{generalized_rcnn_forward.14} parent=0 // pred_check
    _
  $region7: #{generalized_rcnn_forward.14} parent=0 // pred_check_branch
    %11 = sbr.rel (0) target = $region9
  $region8: #{generalized_rcnn_forward.14} parent=0 // pred_region
    _
  $region9: #{generalized_rcnn_forward.14} parent=0 // pred_fallthru
    _
  // Predicated region
  $region10: #{generalized_rcnn_forward.14} parent=0 // pred_check
    _
  $region11: #{generalized_rcnn_forward.14} parent=0 // pred_check_branch
    %13 = sbr.rel (0) target = $region13
  $region12: #{generalized_rcnn_forward.14} parent=0 // pred_region
    _
  $region13: #{generalized_rcnn_forward.14} parent=0 // pred_fallthru
    _
  %v15 = vld [vmem:[%s0] sm:$0xff]
  %v16 = vld [vmem:[%s0 + $0x8] sm:$0xf]
  %v17 = vld [vmem:[%s0 + $0xc] sm:$0xff]
  %v18 = vld [vmem:[%s0 + $0x14] sm:$0xf]
  %v19 = vld [vmem:[%s1] sm:$0xf]
  %v20 = vld [vmem:[%s1 + $0x4] sm:$0xf]
  %v21 = vld [vmem:[%s1 + $0x8] sm:$0xf]
  %v22 = vld [vmem:[%s1 + $0xc] sm:$0xf]
  %v23 = vld [vmem:[%s1 + $0x10] sm:$0xf]
  %v24 = vld [vmem:[%s1 + $0x14] sm:$0xf]
  %v25 = vld [vmem:[%s1 + $0x18] sm:$0xf]
  %v26 = vld [vmem:[%s1 + $0x1c] sm:$0xf]
  %v27 = vld [vmem:[%s1 + $0x20] sm:$0xf]
  %v28 = vld [vmem:[%s1 + $0x24] sm:$0xf]
  %v29 = vld [vmem:[%s1 + $0x28] sm:$0xf]
  %v30 = vld [vmem:[%s1 + $0x2c] sm:$0xf]
  %v31 = vld [vmem:[%s1 + $0x30] sm:$0xf]
  %v32 = vld [vmem:[%s1 + $0x34] sm:$0xf]
  %v33 = vld [vmem:[%s1 + $0x38] sm:$0xf]
  %v34 = vld [vmem:[%s1 + $0x3c] sm:$0xf]
  %v35 = vld [vmem:[%s1 + $0x40] sm:$0xf]
  %v36 = vld [vmem:[%s1 + $0x44] sm:$0xf]
  %v37 = vld [vmem:[%s1 + $0x48] sm:$0xf]
  %v38 = vld [vmem:[%s1 + $0x4c] sm:$0xf]
  %v39 = vld [vmem:[%s1 + $0x50] sm:$0xf]
  %v40 = vld [vmem:[%s1 + $0x54] sm:$0xf]
  %v41 = vld [vmem:[%s1 + $0x58] sm:$0xf]
  %v42 = vld [vmem:[%s1 + $0x5c] sm:$0xf]
  %v43 = vld [vmem:[%s1 + $0x60] sm:$0xf]
  %v44 = vld [vmem:[%s1 + $0x64] sm:$0xf]
  %v45 = vld [vmem:[%s1 + $0x68] sm:$0xf]
  %v46 = vld [vmem:[%s1 + $0x6c] sm:$0xf]
  %v47 = vld [vmem:[%s1 + $0x70] sm:$0xf]
  %v48 = vld [vmem:[%s1 + $0x74] sm:$0xf]
  %v49 = vld [vmem:[%s1 + $0x78] sm:$0xf]
  %v50 = vld [vmem:[%s1 + $0x7c] sm:$0xf]
  %v51 = vld [vmem:[%s1 + $0x80] sm:$0xf]
  %v52 = vld [vmem:[%s1 + $0x84] sm:$0xf]
  %v53 = vld [vmem:[%s1 + $0x88] sm:$0xf]
  %v54 = vld [vmem:[%s1 + $0x8c] sm:$0xf]
  %v55 = vld [vmem:[%s2] sm:$0x1]
  %v57 = vlaneseq
  %v58 = vshrl.u32 %v57, 7
  %v59 = vsub.s32 0, %v58
  %v60 = vrot.slane %v55, %v59
  %v66 = vunpack.c.l.b16 %v15
  %v67 = vunpack.c.h.b16 %v15
  %v68 = vunpack.c.l.b16 %v16
  %v69 = vunpack.c.l.b16 %v17
  %v70 = vunpack.c.h.b16 %v17
  %v71 = vunpack.c.l.b16 %v18
  %v72 = vpack.c.b16 %v69, %v66
  %v73 = vpack.c.b16 %v70, %v67
  %v74 = vpack.c.b16 %v71, %v68
  %v113 = vunpack.c.l.b16 %v19
  %v114 = vunpack.c.l.b16 %v20
  %v115 = vunpack.c.l.b16 %v21
  %v116 = vunpack.c.l.b16 %v22
  %v117 = vunpack.c.l.b16 %v23
  %v118 = vunpack.c.l.b16 %v24
  %v119 = vunpack.c.l.b16 %v25
  %v120 = vunpack.c.l.b16 %v26
  %v121 = vunpack.c.l.b16 %v27
  %v122 = vunpack.c.l.b16 %v28
  %v123 = vunpack.c.l.b16 %v29
  %v124 = vunpack.c.l.b16 %v30
  %v125 = vunpack.c.l.b16 %v31
  %v126 = vunpack.c.l.b16 %v32
  %v127 = vunpack.c.l.b16 %v33
  %v128 = vunpack.c.l.b16 %v34
  %v129 = vunpack.c.l.b16 %v35
  %v130 = vunpack.c.l.b16 %v36
  %v131 = vunpack.c.l.b16 %v37
  %v132 = vunpack.c.l.b16 %v38
  %v133 = vunpack.c.l.b16 %v39
  %v134 = vunpack.c.l.b16 %v40
  %v135 = vunpack.c.l.b16 %v41
  %v136 = vunpack.c.l.b16 %v42
  %v137 = vunpack.c.l.b16 %v43
  %v138 = vunpack.c.l.b16 %v44
  %v139 = vunpack.c.l.b16 %v45
  %v140 = vunpack.c.l.b16 %v46
  %v141 = vunpack.c.l.b16 %v47
  %v142 = vunpack.c.l.b16 %v48
  %v143 = vunpack.c.l.b16 %v49
  %v144 = vunpack.c.l.b16 %v50
  %v145 = vunpack.c.l.b16 %v51
  %v146 = vunpack.c.l.b16 %v52
  %v147 = vunpack.c.l.b16 %v53
  %v148 = vunpack.c.l.b16 %v54
  %v149 = vpack.c.b16 %v114, %v113
  %v150 = vpack.c.b16 %v116, %v115
  %v151 = vpack.c.b16 %v118, %v117
  %v152 = vpack.c.b16 %v120, %v119
  %v153 = vpack.c.b16 %v122, %v121
  %v154 = vpack.c.b16 %v124, %v123
  %v155 = vpack.c.b16 %v126, %v125
  %v156 = vpack.c.b16 %v128, %v127
  %v157 = vpack.c.b16 %v130, %v129
  %v158 = vpack.c.b16 %v132, %v131
  %v159 = vpack.c.b16 %v134, %v133
  %v160 = vpack.c.b16 %v136, %v135
  %v161 = vpack.c.b16 %v138, %v137
  %v162 = vpack.c.b16 %v140, %v139
  %v163 = vpack.c.b16 %v142, %v141
  %v164 = vpack.c.b16 %v144, %v143
  %v165 = vpack.c.b16 %v146, %v145
  %v166 = vpack.c.b16 %v148, %v147
  %vm185 = vcmask 261120
  %v187 = vsel %vm185, %v74, 0
  %189 = vmatprep.subr.bf16.mxu0 0
  %190 = vmatpush1.bf16.msra.mxu0 %v156
  %191 = vmatprep.subr.bf16.mxu0 0
  %192 = vmatpush1.bf16.msra.mxu0 %v155
  %193 = vmatprep.subr.bf16.mxu0 0
  %194 = vmatpush1.bf16.msra.mxu0 %v154
  %195 = vmatprep.subr.bf16.mxu0 0
  %196 = vmatpush1.bf16.msra.mxu0 %v153
  %197 = vmatprep.subr.bf16.mxu0 0
  %198 = vmatpush1.bf16.msra.mxu0 %v152
  %199 = vmatprep.subr.bf16.mxu0 0
  %200 = vmatpush1.bf16.msra.mxu0 %v151
  %201 = vmatprep.subr.bf16.mxu0 0
  %202 = vmatpush1.bf16.msra.mxu0 %v150
  %203 = vmatprep.subr.bf16.mxu0 0
  %204 = vmatpush1.bf16.msra.mxu0 %v149
  %205 = vmatprep.subr.bf16.mxu0 0
  %206 = vmatpush2.bf16.msra.mxu0 %v164
  %207 = vmatprep.subr.bf16.mxu0 0
  %208 = vmatpush2.bf16.msra.mxu0 %v163
  %209 = vmatprep.subr.bf16.mxu0 0
  %210 = vmatpush2.bf16.msra.mxu0 %v162
  %211 = vmatprep.subr.bf16.mxu0 0
  %212 = vmatpush2.bf16.msra.mxu0 %v161
  %213 = vmatprep.subr.bf16.mxu0 0
  %214 = vmatpush2.bf16.msra.mxu0 %v160
  %215 = vmatprep.subr.bf16.mxu0 0
  %216 = vmatpush2.bf16.msra.mxu0 %v159
  %217 = vmatprep.subr.bf16.mxu0 0
  %218 = vmatpush2.bf16.msra.mxu0 %v158
  %219 = vmatprep.subr.bf16.mxu0 0
  %220 = vmatpush2.bf16.msra.mxu0 %v157
  %221 = vmatprep.mubr.bf16.mxu0 %v73
  %222 = vmatmul.mubr.bf16.gmra.mxu0 %v72
  %v223 = vpop.f32.mrf.mxu0
  %v224 = vadd.f32 %v60, %v223
  %v225 = vpop.f32.mrf.mxu0
  %v226 = vpop.f32.mrf.mxu0
  %v227 = vadd.f32 %v60, %v226
  %v228 = vpop.f32.mrf.mxu0
  %229 = vdwg.mxu0
  %230 = vmatprep.subr.bf16.mxu0 0
  %231 = vmatpush1.bf16.msra.mxu0 0
  %232 = vmatprep.subr.bf16.mxu0 0
  %233 = vmatpush1.bf16.msra.mxu0 0
  %234 = vmatprep.subr.bf16.mxu0 0
  %235 = vmatpush1.bf16.msra.mxu0 0
  %236 = vmatprep.subr.bf16.mxu0 0
  %237 = vmatpush1.bf16.msra.mxu0 0
  %238 = vmatprep.subr.bf16.mxu0 0
  %239 = vmatpush1.bf16.msra.mxu0 0
  %240 = vmatprep.subr.bf16.mxu0 0
  %241 = vmatpush1.bf16.msra.mxu0 0
  %242 = vmatprep.subr.bf16.mxu0 0
  %243 = vmatpush1.bf16.msra.mxu0 %v166
  %244 = vmatprep.subr.bf16.mxu0 0
  %245 = vmatpush1.bf16.msra.mxu0 %v165
  %246 = vmatprep.subr.bf16.mxu0 0
  %247 = vmatpush2.bf16.msra.mxu0 0
  %248 = vmatprep.subr.bf16.mxu0 0
  %249 = vmatpush2.bf16.msra.mxu0 0
  %250 = vmatprep.subr.bf16.mxu0 0
  %251 = vmatpush2.bf16.msra.mxu0 0
  %252 = vmatprep.subr.bf16.mxu0 0
  %253 = vmatpush2.bf16.msra.mxu0 0
  %254 = vmatprep.subr.bf16.mxu0 0
  %255 = vmatpush2.bf16.msra.mxu0 0
  %256 = vmatprep.subr.bf16.mxu0 0
  %257 = vmatpush2.bf16.msra.mxu0 0
  %258 = vmatprep.subr.bf16.mxu0 0
  %259 = vmatpush2.bf16.msra.mxu0 0
  %260 = vmatprep.subr.bf16.mxu0 0
  %261 = vmatpush2.bf16.msra.mxu0 0
  %262 = vmatprep.mubr.bf16.mxu0 0
  %263 = vmatmul.mubr.bf16.gmra.mxu0 %v187
  %v264 = vpop.f32.mrf.mxu0
  %v265 = vadd.f32 %v224, %v264
  %v266 = vpop.f32.mrf.mxu0
  %v267 = vpop.f32.mrf.mxu0
  %v268 = vadd.f32 %v227, %v267
  %v269 = vpop.f32.mrf.mxu0
  %270 = vdwg.mxu0
  %v271 = vmax.f32 %v265, 0.0
  %v272 = vmax.f32 %v268, 0.0
  %v273 = vpack.c.bf16 %v272, %v271
  %v275 = vunpack.c.l.b16 %v273
  %v276 = vunpack.c.h.b16 %v273
  %v277 = vpack.c.b16 %v275, %v275
  %v278 = vpack.c.b16 %v276, %v276
  %vm281 = vcmask 257024
  %282 = vst.msk [vmem:[%s3] sm:$0xf] %vm281, %v277
  %283 = vst.msk [vmem:[%s3 + $0x4] sm:$0xf] %vm281, %v278
  // Predicated region
  $region14: #{generalized_rcnn_forward.14} parent=0 // pred_check
    _
  $region15: #{generalized_rcnn_forward.14} parent=0 // pred_check_branch
    %285 = sbr.rel (0) target = $region17
  $region16: #{generalized_rcnn_forward.14} parent=0 // pred_region
    _
  $region17: #{generalized_rcnn_forward.14} parent=0 // pred_fallthru
    _
  // Predicated region
  $region18: #{generalized_rcnn_forward.14} parent=0 // pred_check
    _
  $region19: #{generalized_rcnn_forward.14} parent=0 // pred_check_branch
    %287 = sbr.rel (0) target = $region21
  $region20: #{generalized_rcnn_forward.14} parent=0 // pred_region
    _
  $region21: #{generalized_rcnn_forward.14} parent=0 // pred_fallthru
    _

// kernel: generalized_rcnn_forward.15
$region0: #{generalized_rcnn_forward.15}
  #allocation0 [shape = 'u32[]', space=smem, size = 0x4, offset = 0x4, fixed_abs, tag = 'smem constant byte address 0x4 - core index']
  #allocation1 [shape = 'u32[144,128]{1,0:T(1,128)}', space=vmem, size = 0x12000, scoped, tag = 'internal scratch']
  %s0 = inlined_call_operand.vmem [shape: bf16[704,288], index: 0, kind: input, shape index: {}]
  %s1 = inlined_call_operand.vmem [shape: bf16[288,32], index: 1, kind: input, shape index: {}]
  %s2 = inlined_call_operand.vmem [shape: f32[1,32], index: 2, kind: input, shape index: {}]
  %s3 = inlined_call_operand.vmem [shape: bf16[32,128], index: 3, kind: input, shape index: {}]
  %s4 = inlined_call_operand.vmem [shape: f32[1,128], index: 4, kind: input, shape index: {}]
  %s5 = inlined_call_operand.vmem [shape: bf16[704,128], index: 5, kind: output, shape index: {}]
  %s6 = sld [smem:[#allocation0]]
  $region53: #{generalized_rcnn_forward.15} parent=0
    _
  %s8 = ssub.s32 1, %s6
  %s9 = scalar_select 0, %s8, %s6
  loop: start=0, step=1, limit=4
  $region2: #{generalized_rcnn_forward.15} parent=0 // loop_pre_header
    _
  $region3: #{generalized_rcnn_forward.15} parent=0 // loop_header
    %s11 = sphi 0, %s15
    %p12 = scmp.ge.s32.totalorder %s11, 4
    %s21 = sphi 0, %s23
    %s24 = sphi 0, %s21
    %s25 = sphi 0, %s24
    %s41 = sphi 0, %s25
    %s45 = sphi 0, %s45
    %s47 = sphi 0, %s45
    %s48 = sphi 0, %s47
    %s62 = sphi 0, %s48
    %s66 = sphi 0, %s66
    %s68 = sphi 0, %s66
    %s69 = sphi 0, %s68
    %s83 = sphi 0, %s69
    %s87 = sphi 0, %s87
    %s89 = sphi 0, %s87
    %s90 = sphi 0, %s89
    %s104 = sphi 0, %s90
    %s108 = sphi 0, %s108
    %s110 = sphi 0, %s108
    %s111 = sphi 0, %s110
    %s125 = sphi 0, %s111
    %s131 = sphi 0, %s133
    %s134 = sphi 0, %s131
    %s135 = sphi 0, %s134
    %s151 = sphi 0, %s135
  $region4: #{generalized_rcnn_forward.15} parent=0 // loop_header_branch
    %14 = sbr.rel (%p12) target = $region8
  $region5: #{generalized_rcnn_forward.15} parent=0 // loop_body
    %s16 = ssub.s32 %s11, 1
    %s17 = ssub.s32 %s11, 2
    %s18 = sadd.s32 %s11, 1
    %s19 = ssub.s32 %s11, %s18
    %p20 = scmp.eq.s32.totalorder %s19, 0
    %s22 = sadd.s32 %s21, 1
    %s23 = scalar_select %p20, %s21, %s22
    %p26 = pneg %p20
    %p27 = scmp.eq.s32.totalorder %s11, 1
    %p28 = por %p26, %p27
    %p29 = scmp.ne.s32.totalorder %s21, %s24
    %p30 = scmp.eq.s32.totalorder %s11, 0
    %p31 = por %p29, %p30
    %p32 = scmp.ne.s32.totalorder %s21, %s24
    %p33 = scmp.eq.s32.totalorder %s16, 1
    %p34 = por %p32, %p33
    %p35 = scmp.ne.s32.totalorder %s24, %s25
    %p36 = scmp.eq.s32.totalorder %s16, 0
    %p37 = por %p35, %p36
    %p38 = scmp.ne.s32.totalorder %s24, %s25
    %p39 = scmp.eq.s32.totalorder %s17, 1
    %p40 = por %p38, %p39
    %p42 = scmp.ne.s32.totalorder %s25, %s41
    %p43 = scmp.eq.s32.totalorder %s17, 0
    %p44 = por %p42, %p43
    %s46 = sadd.s32 %s45, 1
    %p49 = scmp.eq.s32.totalorder %s11, 1
    %p50 = scmp.ne.s32.totalorder %s45, %s47
    %p51 = scmp.eq.s32.totalorder %s11, 0
    %p52 = por %p50, %p51
    %p53 = scmp.ne.s32.totalorder %s45, %s47
    %p54 = scmp.eq.s32.totalorder %s16, 1
    %p55 = por %p53, %p54
    %p56 = scmp.ne.s32.totalorder %s47, %s48
    %p57 = scmp.eq.s32.totalorder %s16, 0
    %p58 = por %p56, %p57
    %p59 = scmp.ne.s32.totalorder %s47, %s48
    %p60 = scmp.eq.s32.totalorder %s17, 1
    %p61 = por %p59, %p60
    %p63 = scmp.ne.s32.totalorder %s48, %s62
    %p64 = scmp.eq.s32.totalorder %s17, 0
    %p65 = por %p63, %p64
    %s67 = sadd.s32 %s66, 1
    %p70 = scmp.eq.s32.totalorder %s11, 1
    %p71 = scmp.ne.s32.totalorder %s66, %s68
    %p72 = scmp.eq.s32.totalorder %s11, 0
    %p73 = por %p71, %p72
    %p74 = scmp.ne.s32.totalorder %s66, %s68
    %p75 = scmp.eq.s32.totalorder %s16, 1
    %p76 = por %p74, %p75
    %p77 = scmp.ne.s32.totalorder %s68, %s69
    %p78 = scmp.eq.s32.totalorder %s16, 0
    %p79 = por %p77, %p78
    %p80 = scmp.ne.s32.totalorder %s68, %s69
    %p81 = scmp.eq.s32.totalorder %s17, 1
    %p82 = por %p80, %p81
    %p84 = scmp.ne.s32.totalorder %s69, %s83
    %p85 = scmp.eq.s32.totalorder %s17, 0
    %p86 = por %p84, %p85
    %s88 = sadd.s32 %s87, 1
    %p91 = scmp.eq.s32.totalorder %s11, 1
    %p92 = scmp.ne.s32.totalorder %s87, %s89
    %p93 = scmp.eq.s32.totalorder %s11, 0
    %p94 = por %p92, %p93
    %p95 = scmp.ne.s32.totalorder %s87, %s89
    %p96 = scmp.eq.s32.totalorder %s16, 1
    %p97 = por %p95, %p96
    %p98 = scmp.ne.s32.totalorder %s89, %s90
    %p99 = scmp.eq.s32.totalorder %s16, 0
    %p100 = por %p98, %p99
    %p101 = scmp.ne.s32.totalorder %s89, %s90
    %p102 = scmp.eq.s32.totalorder %s17, 1
    %p103 = por %p101, %p102
    %p105 = scmp.ne.s32.totalorder %s90, %s104
    %p106 = scmp.eq.s32.totalorder %s17, 0
    %p107 = por %p105, %p106
    %s109 = sadd.s32 %s108, 1
    %p112 = scmp.eq.s32.totalorder %s11, 1
    %p113 = scmp.ne.s32.totalorder %s108, %s110
    %p114 = scmp.eq.s32.totalorder %s11, 0
    %p115 = por %p113, %p114
    %p116 = scmp.ne.s32.totalorder %s108, %s110
    %p117 = scmp.eq.s32.totalorder %s16, 1
    %p118 = por %p116, %p117
    %p119 = scmp.ne.s32.totalorder %s110, %s111
    %p120 = scmp.eq.s32.totalorder %s16, 0
    %p121 = por %p119, %p120
    %p122 = scmp.ne.s32.totalorder %s110, %s111
    %p123 = scmp.eq.s32.totalorder %s17, 1
    %p124 = por %p122, %p123
    %p126 = scmp.ne.s32.totalorder %s111, %s125
    %p127 = scmp.eq.s32.totalorder %s17, 0
    %p128 = por %p126, %p127
    %s129 = ssub.s32 %s11, %s18
    %p130 = scmp.eq.s32.totalorder %s129, 0
    %s132 = sadd.s32 %s131, 1
    %s133 = scalar_select %p130, %s131, %s132
    %p136 = pneg %p130
    %p137 = scmp.eq.s32.totalorder %s11, 1
    %p138 = por %p136, %p137
    %p139 = scmp.ne.s32.totalorder %s131, %s134
    %p140 = scmp.eq.s32.totalorder %s11, 0
    %p141 = por %p139, %p140
    %p142 = scmp.ne.s32.totalorder %s131, %s134
    %p143 = scmp.eq.s32.totalorder %s16, 1
    %p144 = por %p142, %p143
    %p145 = scmp.ne.s32.totalorder %s134, %s135
    %p146 = scmp.eq.s32.totalorder %s16, 0
    %p147 = por %p145, %p146
    %p148 = scmp.ne.s32.totalorder %s134, %s135
    %p149 = scmp.eq.s32.totalorder %s17, 1
    %p150 = por %p148, %p149
    %p152 = scmp.ne.s32.totalorder %s135, %s151
    %p153 = scmp.eq.s32.totalorder %s17, 0
    %p154 = por %p152, %p153
    %p155 = scmp.le.s32.totalorder 1, %s11
    %p156 = scmp.lt.s32.totalorder %s11, 3
    %p157 = pnand %p155, %p156
    %p158 = pneg %p157
    // Predicated region
    $region9: #{generalized_rcnn_forward.15} parent=5 // pred_check
      _
    $region10: #{generalized_rcnn_forward.15} parent=5 // pred_check_branch
      %160 = sbr.rel (%p157) target = $region12
    $region11: #{generalized_rcnn_forward.15} parent=5 // pred_region
      %s161 = ssub.s32 %s11, 1
      // Predicated region
      $region13: #{generalized_rcnn_forward.15} parent=11 // pred_check
        %p162 = pneg %p58
      $region14: #{generalized_rcnn_forward.15} parent=11 // pred_check_branch
        %164 = sbr.rel (%p162) target = $region16
      $region15: #{generalized_rcnn_forward.15} parent=11 // pred_region
        _
      $region16: #{generalized_rcnn_forward.15} parent=11 // pred_fallthru
        _
      // Predicated region
      $region17: #{generalized_rcnn_forward.15} parent=11 // pred_check
        %p165 = pneg %p79
      $region18: #{generalized_rcnn_forward.15} parent=11 // pred_check_branch
        %167 = sbr.rel (%p165) target = $region20
      $region19: #{generalized_rcnn_forward.15} parent=11 // pred_region
        _
      $region20: #{generalized_rcnn_forward.15} parent=11 // pred_fallthru
        _
      // Predicated region
      $region21: #{generalized_rcnn_forward.15} parent=11 // pred_check
        %p168 = pneg %p100
      $region22: #{generalized_rcnn_forward.15} parent=11 // pred_check_branch
        %170 = sbr.rel (%p168) target = $region24
      $region23: #{generalized_rcnn_forward.15} parent=11 // pred_region
        _
      $region24: #{generalized_rcnn_forward.15} parent=11 // pred_fallthru
        _
      // Predicated region
      $region25: #{generalized_rcnn_forward.15} parent=11 // pred_check
        %p171 = pneg %p121
      $region26: #{generalized_rcnn_forward.15} parent=11 // pred_check_branch
        %173 = sbr.rel (%p171) target = $region28
      $region27: #{generalized_rcnn_forward.15} parent=11 // pred_region
        _
      $region28: #{generalized_rcnn_forward.15} parent=11 // pred_fallthru
        _
    $region12: #{generalized_rcnn_forward.15} parent=5 // pred_fallthru
      _
    %p174 = scmp.lt.s32.totalorder %s11, 2
    // Predicated region
    $region29: #{generalized_rcnn_forward.15} parent=5 // pred_check
      %p175 = pneg %p174
    $region30: #{generalized_rcnn_forward.15} parent=5 // pred_check_branch
      %177 = sbr.rel (%p175) target = $region32
    $region31: #{generalized_rcnn_forward.15} parent=5 // pred_region
      // Predicated region
      $region33: #{generalized_rcnn_forward.15} parent=31 // pred_check
        %p178 = pneg %p31
      $region34: #{generalized_rcnn_forward.15} parent=31 // pred_check_branch
        %180 = sbr.rel (%p178) target = $region36
      $region35: #{generalized_rcnn_forward.15} parent=31 // pred_region
        %s181 = smul.u32 44, %s11
        %p182 = scmp.lt.s32.totalorder %s181, 87
        %s183 = scalar_select %p182, %s181, 87
        %s184 = smul.addr %s183, 3
        %s185 = smul.addr %s184, 4
        %s186 = scalar_lea.vmem %s0, %s185
        %s187 = smul.u32 44, %s11
      $region36: #{generalized_rcnn_forward.15} parent=31 // pred_fallthru
        _
    $region32: #{generalized_rcnn_forward.15} parent=5 // pred_fallthru
      _
    %p188 = scmp.le.s32.totalorder 1, %s11
    %p189 = scmp.lt.s32.totalorder %s11, 3
    %p190 = pnand %p188, %p189
    %p191 = pneg %p190
    // Predicated region
    $region37: #{generalized_rcnn_forward.15} parent=5 // pred_check
      _
    $region38: #{generalized_rcnn_forward.15} parent=5 // pred_check_branch
      %193 = sbr.rel (%p190) target = $region40
    $region39: #{generalized_rcnn_forward.15} parent=5 // pred_region
      %s194 = ssub.s32 %s11, 1
      %s195 = smul.u32 44, %s16
      %p196 = scmp.lt.s32.totalorder %s195, 87
      %s197 = scalar_select %p196, %s195, 87
      %s198 = smul.addr %s197, 3
      %s199 = smul.addr %s198, 4
      %s200 = scalar_lea.vmem %s0, %s199
      %p201 = pneg %p37
      %p202 = pneg %p34
      %p203 = pneg %p58
      %p204 = pneg %p55
      %p205 = pneg %p79
      %p206 = pneg %p76
      %p207 = pneg %p100
      %p208 = pneg %p97
      %p209 = pneg %p121
      %p210 = pneg %p118
      %p211 = pneg %p147
      %p212 = pneg %p144
      %s213 = smul.u32 44, %s16
      %p214 = scmp.lt.s32.totalorder %s213, 87
      %s215 = scalar_select %p214, %s213, 87
      %s216 = smul.addr %s215, 4
      %s217 = scalar_lea.vmem %s5, %s216
      %s218 = smul.u32 44, %s16
      %p219 = scmp.lt.s32.totalorder %s218, 87
      %s220 = scalar_select %p219, %s218, 87
      %s221 = smul.addr %s220, 3
      %s222 = smul.addr %s221, 4
      %s223 = scalar_lea.vmem %s0, %s222
      %s224 = smul.u32 44, %s16
      %s225 = smul.u32 44, %s16
      %p226 = scmp.lt.s32.totalorder %s225, 87
      %s227 = scalar_select %p226, %s225, 87
      %s228 = smul.addr %s227, 4
      %s229 = scalar_lea.vmem %s5, %s228
      %s230 = smul.u32 44, %s16
      %v232 = vld [vmem:[%s223] sm:$0xff]
      %v233 = vld [vmem:[%s223 + $0x8] sm:$0xf]
      %v234 = vld [vmem:[%s223 + $0xc] sm:$0xff]
      %v235 = vld [vmem:[%s223 + $0x14] sm:$0xf]
      %v236 = vld [vmem:[%s223 + $0x18] sm:$0xff]
      %v237 = vld [vmem:[%s223 + $0x20] sm:$0xf]
      %v238 = vld [vmem:[%s223 + $0x24] sm:$0xff]
      %v239 = vld [vmem:[%s223 + $0x2c] sm:$0xf]
      %v240 = vld [vmem:[%s223 + $0x30] sm:$0xff]
      %v241 = vld [vmem:[%s223 + $0x38] sm:$0xf]
      %v242 = vld [vmem:[%s223 + $0x3c] sm:$0xff]
      %v243 = vld [vmem:[%s223 + $0x44] sm:$0xf]
      %v244 = vld [vmem:[%s223 + $0x48] sm:$0xff]
      %v245 = vld [vmem:[%s223 + $0x50] sm:$0xf]
      %v246 = vld [vmem:[%s223 + $0x54] sm:$0xff]
      %v247 = vld [vmem:[%s223 + $0x5c] sm:$0xf]
      %v248 = vld [vmem:[%s223 + $0x60] sm:$0xff]
      %v249 = vld [vmem:[%s223 + $0x68] sm:$0xf]
      %v250 = vld [vmem:[%s223 + $0x6c] sm:$0xff]
      %v251 = vld [vmem:[%s223 + $0x74] sm:$0xf]
      %v252 = vld [vmem:[%s223 + $0x78] sm:$0xff]
      %v253 = vld [vmem:[%s223 + $0x80] sm:$0xf]
      %v254 = vld [vmem:[%s223 + $0x84] sm:$0xff]
      %v255 = vld [vmem:[%s223 + $0x8c] sm:$0xf]
      %v256 = vld [vmem:[%s223 + $0x90] sm:$0xff]
      %v257 = vld [vmem:[%s223 + $0x98] sm:$0xf]
      %v258 = vld [vmem:[%s223 + $0x9c] sm:$0xff]
      %v259 = vld [vmem:[%s223 + $0xa4] sm:$0xf]
      %v260 = vld [vmem:[%s223 + $0xa8] sm:$0xff]
      %v261 = vld [vmem:[%s223 + $0xb0] sm:$0xf]
      %v262 = vld [vmem:[%s223 + $0xb4] sm:$0xff]
      %v263 = vld [vmem:[%s223 + $0xbc] sm:$0xf]
      %v264 = vld [vmem:[%s223 + $0xc0] sm:$0xff]
      %v265 = vld [vmem:[%s223 + $0xc8] sm:$0xf]
      %v266 = vld [vmem:[%s223 + $0xcc] sm:$0xff]
      %v267 = vld [vmem:[%s223 + $0xd4] sm:$0xf]
      %v268 = vld [vmem:[%s223 + $0xd8] sm:$0xff]
      %v269 = vld [vmem:[%s223 + $0xe0] sm:$0xf]
      %v270 = vld [vmem:[%s223 + $0xe4] sm:$0xff]
      %v271 = vld [vmem:[%s223 + $0xec] sm:$0xf]
      %v272 = vld [vmem:[%s223 + $0xf0] sm:$0xff]
      %v273 = vld [vmem:[%s223 + $0xf8] sm:$0xf]
      %v274 = vld [vmem:[%s223 + $0xfc] sm:$0xff]
      %v275 = vld [vmem:[%s223 + $0x104] sm:$0xf]
      %v276 = vld [vmem:[%s223 + $0x108] sm:$0xff]
      %v277 = vld [vmem:[%s223 + $0x110] sm:$0xf]
      %v278 = vld [vmem:[%s223 + $0x114] sm:$0xff]
      %v279 = vld [vmem:[%s223 + $0x11c] sm:$0xf]
      %v280 = vld [vmem:[%s223 + $0x120] sm:$0xff]
      %v281 = vld [vmem:[%s223 + $0x128] sm:$0xf]
      %v282 = vld [vmem:[%s223 + $0x12c] sm:$0xff]
      %v283 = vld [vmem:[%s223 + $0x134] sm:$0xf]
      %v284 = vld [vmem:[%s223 + $0x138] sm:$0xff]
      %v285 = vld [vmem:[%s223 + $0x140] sm:$0xf]
      %v286 = vld [vmem:[%s223 + $0x144] sm:$0xff]
      %v287 = vld [vmem:[%s223 + $0x14c] sm:$0xf]
      %v288 = vld [vmem:[%s223 + $0x150] sm:$0xff]
      %v289 = vld [vmem:[%s223 + $0x158] sm:$0xf]
      %v290 = vld [vmem:[%s223 + $0x15c] sm:$0xff]
      %v291 = vld [vmem:[%s223 + $0x164] sm:$0xf]
      %v292 = vld [vmem:[%s223 + $0x168] sm:$0xff]
      %v293 = vld [vmem:[%s223 + $0x170] sm:$0xf]
      %v294 = vld [vmem:[%s223 + $0x174] sm:$0xff]
      %v295 = vld [vmem:[%s223 + $0x17c] sm:$0xf]
      %v296 = vld [vmem:[%s223 + $0x180] sm:$0xff]
      %v297 = vld [vmem:[%s223 + $0x188] sm:$0xf]
      %v298 = vld [vmem:[%s223 + $0x18c] sm:$0xff]
      %v299 = vld [vmem:[%s223 + $0x194] sm:$0xf]
      %v300 = vld [vmem:[%s223 + $0x198] sm:$0xff]
      %v301 = vld [vmem:[%s223 + $0x1a0] sm:$0xf]
      %v302 = vld [vmem:[%s223 + $0x1a4] sm:$0xff]
      %v303 = vld [vmem:[%s223 + $0x1ac] sm:$0xf]
      %v304 = vld [vmem:[%s223 + $0x1b0] sm:$0xff]
      %v305 = vld [vmem:[%s223 + $0x1b8] sm:$0xf]
      %v306 = vld [vmem:[%s223 + $0x1bc] sm:$0xff]
      %v307 = vld [vmem:[%s223 + $0x1c4] sm:$0xf]
      %v308 = vld [vmem:[%s223 + $0x1c8] sm:$0xff]
      %v309 = vld [vmem:[%s223 + $0x1d0] sm:$0xf]
      %v310 = vld [vmem:[%s223 + $0x1d4] sm:$0xff]
      %v311 = vld [vmem:[%s223 + $0x1dc] sm:$0xf]
      %v312 = vld [vmem:[%s223 + $0x1e0] sm:$0xff]
      %v313 = vld [vmem:[%s223 + $0x1e8] sm:$0xf]
      %v314 = vld [vmem:[%s223 + $0x1ec] sm:$0xff]
      %v315 = vld [vmem:[%s223 + $0x1f4] sm:$0xf]
      %v316 = vld [vmem:[%s223 + $0x1f8] sm:$0xff]
      %v317 = vld [vmem:[%s223 + $0x200] sm:$0xf]
      %v318 = vld [vmem:[%s223 + $0x204] sm:$0xff]
      %v319 = vld [vmem:[%s223 + $0x20c] sm:$0xf]
      %v320 = vld [vmem:[%s1] sm:$0xf]
      %v321 = vld [vmem:[%s1 + $0x4] sm:$0xf]
      %v322 = vld [vmem:[%s1 + $0x8] sm:$0xf]
      %v323 = vld [vmem:[%s1 + $0xc] sm:$0xf]
      %v324 = vld [vmem:[%s1 + $0x10] sm:$0xf]
      %v325 = vld [vmem:[%s1 + $0x14] sm:$0xf]
      %v326 = vld [vmem:[%s1 + $0x18] sm:$0xf]
      %v327 = vld [vmem:[%s1 + $0x1c] sm:$0xf]
      %v328 = vld [vmem:[%s1 + $0x20] sm:$0xf]
      %v329 = vld [vmem:[%s1 + $0x24] sm:$0xf]
      %v330 = vld [vmem:[%s1 + $0x28] sm:$0xf]
      %v331 = vld [vmem:[%s1 + $0x2c] sm:$0xf]
      %v332 = vld [vmem:[%s1 + $0x30] sm:$0xf]
      %v333 = vld [vmem:[%s1 + $0x34] sm:$0xf]
      %v334 = vld [vmem:[%s1 + $0x38] sm:$0xf]
      %v335 = vld [vmem:[%s1 + $0x3c] sm:$0xf]
      %v336 = vld [vmem:[%s1 + $0x40] sm:$0xf]
      %v337 = vld [vmem:[%s1 + $0x44] sm:$0xf]
      %v338 = vld [vmem:[%s1 + $0x48] sm:$0xf]
      %v339 = vld [vmem:[%s1 + $0x4c] sm:$0xf]
      %v340 = vld [vmem:[%s1 + $0x50] sm:$0xf]
      %v341 = vld [vmem:[%s1 + $0x54] sm:$0xf]
      %v342 = vld [vmem:[%s1 + $0x58] sm:$0xf]
      %v343 = vld [vmem:[%s1 + $0x5c] sm:$0xf]
      %v344 = vld [vmem:[%s1 + $0x60] sm:$0xf]
      %v345 = vld [vmem:[%s1 + $0x64] sm:$0xf]
      %v346 = vld [vmem:[%s1 + $0x68] sm:$0xf]
      %v347 = vld [vmem:[%s1 + $0x6c] sm:$0xf]
      %v348 = vld [vmem:[%s1 + $0x70] sm:$0xf]
      %v349 = vld [vmem:[%s1 + $0x74] sm:$0xf]
      %v350 = vld [vmem:[%s1 + $0x78] sm:$0xf]
      %v351 = vld [vmem:[%s1 + $0x7c] sm:$0xf]
      %v352 = vld [vmem:[%s1 + $0x80] sm:$0xf]
      %v353 = vld [vmem:[%s1 + $0x84] sm:$0xf]
      %v354 = vld [vmem:[%s1 + $0x88] sm:$0xf]
      %v355 = vld [vmem:[%s1 + $0x8c] sm:$0xf]
      %v356 = vld [vmem:[%s2] sm:$0x1]
      %v358 = vlaneseq
      %v359 = vshrl.u32 %v358, 7
      %v360 = vsub.s32 0, %v359
      %v361 = vrot.slane %v356, %v360
      %v451 = vunpack.c.l.b16 %v232
      %v452 = vunpack.c.h.b16 %v232
      %v453 = vunpack.c.l.b16 %v233
      %v454 = vunpack.c.l.b16 %v234
      %v455 = vunpack.c.h.b16 %v234
      %v456 = vunpack.c.l.b16 %v235
      %v457 = vunpack.c.l.b16 %v236
      %v458 = vunpack.c.h.b16 %v236
      %v459 = vunpack.c.l.b16 %v237
      %v460 = vunpack.c.l.b16 %v238
      %v461 = vunpack.c.h.b16 %v238
      %v462 = vunpack.c.l.b16 %v239
      %v463 = vunpack.c.l.b16 %v240
      %v464 = vunpack.c.h.b16 %v240
      %v465 = vunpack.c.l.b16 %v241
      %v466 = vunpack.c.l.b16 %v242
      %v467 = vunpack.c.h.b16 %v242
      %v468 = vunpack.c.l.b16 %v243
      %v469 = vunpack.c.l.b16 %v244
      %v470 = vunpack.c.h.b16 %v244
      %v471 = vunpack.c.l.b16 %v245
      %v472 = vunpack.c.l.b16 %v246
      %v473 = vunpack.c.h.b16 %v246
      %v474 = vunpack.c.l.b16 %v247
      %v475 = vunpack.c.l.b16 %v248
      %v476 = vunpack.c.h.b16 %v248
      %v477 = vunpack.c.l.b16 %v249
      %v478 = vunpack.c.l.b16 %v250
      %v479 = vunpack.c.h.b16 %v250
      %v480 = vunpack.c.l.b16 %v251
      %v481 = vunpack.c.l.b16 %v252
      %v482 = vunpack.c.h.b16 %v252
      %v483 = vunpack.c.l.b16 %v253
      %v484 = vunpack.c.l.b16 %v254
      %v485 = vunpack.c.h.b16 %v254
      %v486 = vunpack.c.l.b16 %v255
      %v487 = vunpack.c.l.b16 %v256
      %v488 = vunpack.c.h.b16 %v256
      %v489 = vunpack.c.l.b16 %v257
      %v490 = vunpack.c.l.b16 %v258
      %v491 = vunpack.c.h.b16 %v258
      %v492 = vunpack.c.l.b16 %v259
      %v493 = vunpack.c.l.b16 %v260
      %v494 = vunpack.c.h.b16 %v260
      %v495 = vunpack.c.l.b16 %v261
      %v496 = vunpack.c.l.b16 %v262
      %v497 = vunpack.c.h.b16 %v262
      %v498 = vunpack.c.l.b16 %v263
      %v499 = vunpack.c.l.b16 %v264
      %v500 = vunpack.c.h.b16 %v264
      %v501 = vunpack.c.l.b16 %v265
      %v502 = vunpack.c.l.b16 %v266
      %v503 = vunpack.c.h.b16 %v266
      %v504 = vunpack.c.l.b16 %v267
      %v505 = vunpack.c.l.b16 %v268
      %v506 = vunpack.c.h.b16 %v268
      %v507 = vunpack.c.l.b16 %v269
      %v508 = vunpack.c.l.b16 %v270
      %v509 = vunpack.c.h.b16 %v270
      %v510 = vunpack.c.l.b16 %v271
      %v511 = vunpack.c.l.b16 %v272
      %v512 = vunpack.c.h.b16 %v272
      %v513 = vunpack.c.l.b16 %v273
      %v514 = vunpack.c.l.b16 %v274
      %v515 = vunpack.c.h.b16 %v274
      %v516 = vunpack.c.l.b16 %v275
      %v517 = vunpack.c.l.b16 %v276
      %v518 = vunpack.c.h.b16 %v276
      %v519 = vunpack.c.l.b16 %v277
      %v520 = vunpack.c.l.b16 %v278
      %v521 = vunpack.c.h.b16 %v278
      %v522 = vunpack.c.l.b16 %v279
      %v523 = vunpack.c.l.b16 %v280
      %v524 = vunpack.c.h.b16 %v280
      %v525 = vunpack.c.l.b16 %v281
      %v526 = vunpack.c.l.b16 %v282
      %v527 = vunpack.c.h.b16 %v282
      %v528 = vunpack.c.l.b16 %v283
      %v529 = vunpack.c.l.b16 %v284
      %v530 = vunpack.c.h.b16 %v284
      %v531 = vunpack.c.l.b16 %v285
      %v532 = vunpack.c.l.b16 %v286
      %v533 = vunpack.c.h.b16 %v286
      %v534 = vunpack.c.l.b16 %v287
      %v535 = vunpack.c.l.b16 %v288
      %v536 = vunpack.c.h.b16 %v288
      %v537 = vunpack.c.l.b16 %v289
      %v538 = vunpack.c.l.b16 %v290
      %v539 = vunpack.c.h.b16 %v290
      %v540 = vunpack.c.l.b16 %v291
      %v541 = vunpack.c.l.b16 %v292
      %v542 = vunpack.c.h.b16 %v292
      %v543 = vunpack.c.l.b16 %v293
      %v544 = vunpack.c.l.b16 %v294
      %v545 = vunpack.c.h.b16 %v294
      %v546 = vunpack.c.l.b16 %v295
      %v547 = vunpack.c.l.b16 %v296
      %v548 = vunpack.c.h.b16 %v296
      %v549 = vunpack.c.l.b16 %v297
      %v550 = vunpack.c.l.b16 %v298
      %v551 = vunpack.c.h.b16 %v298
      %v552 = vunpack.c.l.b16 %v299
      %v553 = vunpack.c.l.b16 %v300
      %v554 = vunpack.c.h.b16 %v300
      %v555 = vunpack.c.l.b16 %v301
      %v556 = vunpack.c.l.b16 %v302
      %v557 = vunpack.c.h.b16 %v302
      %v558 = vunpack.c.l.b16 %v303
      %v559 = vunpack.c.l.b16 %v304
      %v560 = vunpack.c.h.b16 %v304
      %v561 = vunpack.c.l.b16 %v305
      %v562 = vunpack.c.l.b16 %v306
      %v563 = vunpack.c.h.b16 %v306
      %v564 = vunpack.c.l.b16 %v307
      %v565 = vunpack.c.l.b16 %v308
      %v566 = vunpack.c.h.b16 %v308
      %v567 = vunpack.c.l.b16 %v309
      %v568 = vunpack.c.l.b16 %v310
      %v569 = vunpack.c.h.b16 %v310
      %v570 = vunpack.c.l.b16 %v311
      %v571 = vunpack.c.l.b16 %v312
      %v572 = vunpack.c.h.b16 %v312
      %v573 = vunpack.c.l.b16 %v313
      %v574 = vunpack.c.l.b16 %v314
      %v575 = vunpack.c.h.b16 %v314
      %v576 = vunpack.c.l.b16 %v315
      %v577 = vunpack.c.l.b16 %v316
      %v578 = vunpack.c.h.b16 %v316
      %v579 = vunpack.c.l.b16 %v317
      %v580 = vunpack.c.l.b16 %v318
      %v581 = vunpack.c.h.b16 %v318
      %v582 = vunpack.c.l.b16 %v319
      %v583 = vpack.c.b16 %v454, %v451
      %v584 = vpack.c.b16 %v455, %v452
      %v585 = vpack.c.b16 %v456, %v453
      %v586 = vpack.c.b16 %v460, %v457
      %v587 = vpack.c.b16 %v461, %v458
      %v588 = vpack.c.b16 %v462, %v459
      %v589 = vpack.c.b16 %v466, %v463
      %v590 = vpack.c.b16 %v467, %v464
      %v591 = vpack.c.b16 %v468, %v465
      %v592 = vpack.c.b16 %v472, %v469
      %v593 = vpack.c.b16 %v473, %v470
      %v594 = vpack.c.b16 %v474, %v471
      %v595 = vpack.c.b16 %v478, %v475
      %v596 = vpack.c.b16 %v479, %v476
      %v597 = vpack.c.b16 %v480, %v477
      %v598 = vpack.c.b16 %v484, %v481
      %v599 = vpack.c.b16 %v485, %v482
      %v600 = vpack.c.b16 %v486, %v483
      %v601 = vpack.c.b16 %v490, %v487
      %v602 = vpack.c.b16 %v491, %v488
      %v603 = vpack.c.b16 %v492, %v489
      %v604 = vpack.c.b16 %v496, %v493
      %v605 = vpack.c.b16 %v497, %v494
      %v606 = vpack.c.b16 %v498, %v495
      %v607 = vpack.c.b16 %v502, %v499
      %v608 = vpack.c.b16 %v503, %v500
      %v609 = vpack.c.b16 %v504, %v501
      %v610 = vpack.c.b16 %v508, %v505
      %v611 = vpack.c.b16 %v509, %v506
      %v612 = vpack.c.b16 %v510, %v507
      %v613 = vpack.c.b16 %v514, %v511
      %v614 = vpack.c.b16 %v515, %v512
      %v615 = vpack.c.b16 %v516, %v513
      %v616 = vpack.c.b16 %v520, %v517
      %v617 = vpack.c.b16 %v521, %v518
      %v618 = vpack.c.b16 %v522, %v519
      %v619 = vpack.c.b16 %v526, %v523
      %v620 = vpack.c.b16 %v527, %v524
      %v621 = vpack.c.b16 %v528, %v525
      %v622 = vpack.c.b16 %v532, %v529
      %v623 = vpack.c.b16 %v533, %v530
      %v624 = vpack.c.b16 %v534, %v531
      %v625 = vpack.c.b16 %v538, %v535
      %v626 = vpack.c.b16 %v539, %v536
      %v627 = vpack.c.b16 %v540, %v537
      %v628 = vpack.c.b16 %v544, %v541
      %v629 = vpack.c.b16 %v545, %v542
      %v630 = vpack.c.b16 %v546, %v543
      %v631 = vpack.c.b16 %v550, %v547
      %v632 = vpack.c.b16 %v551, %v548
      %v633 = vpack.c.b16 %v552, %v549
      %v634 = vpack.c.b16 %v556, %v553
      %v635 = vpack.c.b16 %v557, %v554
      %v636 = vpack.c.b16 %v558, %v555
      %v637 = vpack.c.b16 %v562, %v559
      %v638 = vpack.c.b16 %v563, %v560
      %v639 = vpack.c.b16 %v564, %v561
      %v640 = vpack.c.b16 %v568, %v565
      %v641 = vpack.c.b16 %v569, %v566
      %v642 = vpack.c.b16 %v570, %v567
      %v643 = vpack.c.b16 %v574, %v571
      %v644 = vpack.c.b16 %v575, %v572
      %v645 = vpack.c.b16 %v576, %v573
      %v646 = vpack.c.b16 %v580, %v577
      %v647 = vpack.c.b16 %v581, %v578
      %v648 = vpack.c.b16 %v582, %v579
      %v729 = vunpack.c.l.b16 %v320
      %v730 = vunpack.c.l.b16 %v321
      %v731 = vunpack.c.l.b16 %v322
      %v732 = vunpack.c.l.b16 %v323
      %v733 = vunpack.c.l.b16 %v324
      %v734 = vunpack.c.l.b16 %v325
      %v735 = vunpack.c.l.b16 %v326
      %v736 = vunpack.c.l.b16 %v327
      %v737 = vunpack.c.l.b16 %v328
      %v738 = vunpack.c.l.b16 %v329
      %v739 = vunpack.c.l.b16 %v330
      %v740 = vunpack.c.l.b16 %v331
      %v741 = vunpack.c.l.b16 %v332
      %v742 = vunpack.c.l.b16 %v333
      %v743 = vunpack.c.l.b16 %v334
      %v744 = vunpack.c.l.b16 %v335
      %v745 = vunpack.c.l.b16 %v336
      %v746 = vunpack.c.l.b16 %v337
      %v747 = vunpack.c.l.b16 %v338
      %v748 = vunpack.c.l.b16 %v339
      %v749 = vunpack.c.l.b16 %v340
      %v750 = vunpack.c.l.b16 %v341
      %v751 = vunpack.c.l.b16 %v342
      %v752 = vunpack.c.l.b16 %v343
      %v753 = vunpack.c.l.b16 %v344
      %v754 = vunpack.c.l.b16 %v345
      %v755 = vunpack.c.l.b16 %v346
      %v756 = vunpack.c.l.b16 %v347
      %v757 = vunpack.c.l.b16 %v348
      %v758 = vunpack.c.l.b16 %v349
      %v759 = vunpack.c.l.b16 %v350
      %v760 = vunpack.c.l.b16 %v351
      %v761 = vunpack.c.l.b16 %v352
      %v762 = vunpack.c.l.b16 %v353
      %v763 = vunpack.c.l.b16 %v354
      %v764 = vunpack.c.l.b16 %v355
      %v765 = vpack.c.b16 %v730, %v729
      %v766 = vpack.c.b16 %v732, %v731
      %v767 = vpack.c.b16 %v734, %v733
      %v768 = vpack.c.b16 %v736, %v735
      %v769 = vpack.c.b16 %v738, %v737
      %v770 = vpack.c.b16 %v740, %v739
      %v771 = vpack.c.b16 %v742, %v741
      %v772 = vpack.c.b16 %v744, %v743
      %v773 = vpack.c.b16 %v746, %v745
      %v774 = vpack.c.b16 %v748, %v747
      %v775 = vpack.c.b16 %v750, %v749
      %v776 = vpack.c.b16 %v752, %v751
      %v777 = vpack.c.b16 %v754, %v753
      %v778 = vpack.c.b16 %v756, %v755
      %v779 = vpack.c.b16 %v758, %v757
      %v780 = vpack.c.b16 %v760, %v759
      %v781 = vpack.c.b16 %v762, %v761
      %v782 = vpack.c.b16 %v764, %v763
      %vm801 = vcmask 261120
      %v803 = vsel %vm801, %v585, 0
      %v806 = vsel %vm801, %v588, 0
      %v809 = vsel %vm801, %v591, 0
      %v812 = vsel %vm801, %v594, 0
      %v815 = vsel %vm801, %v597, 0
      %v818 = vsel %vm801, %v600, 0
      %v821 = vsel %vm801, %v603, 0
      %v824 = vsel %vm801, %v606, 0
      %v827 = vsel %vm801, %v609, 0
      %v830 = vsel %vm801, %v612, 0
      %v833 = vsel %vm801, %v615, 0
      %v836 = vsel %vm801, %v618, 0
      %v839 = vsel %vm801, %v621, 0
      %v842 = vsel %vm801, %v624, 0
      %v845 = vsel %vm801, %v627, 0
      %v848 = vsel %vm801, %v630, 0
      %v851 = vsel %vm801, %v633, 0
      %v854 = vsel %vm801, %v636, 0
      %v857 = vsel %vm801, %v639, 0
      %v860 = vsel %vm801, %v642, 0
      %v863 = vsel %vm801, %v645, 0
      %v866 = vsel %vm801, %v648, 0
      %868 = vmatprep.subr.bf16.mxu0 0
      %869 = vmatpush1.bf16.msra.mxu0 %v772
      %870 = vmatprep.subr.bf16.mxu0 0
      %871 = vmatpush1.bf16.msra.mxu0 %v771
      %872 = vmatprep.subr.bf16.mxu0 0
      %873 = vmatpush1.bf16.msra.mxu0 %v770
      %874 = vmatprep.subr.bf16.mxu0 0
      %875 = vmatpush1.bf16.msra.mxu0 %v769
      %876 = vmatprep.subr.bf16.mxu0 0
      %877 = vmatpush1.bf16.msra.mxu0 %v768
      %878 = vmatprep.subr.bf16.mxu0 0
      %879 = vmatpush1.bf16.msra.mxu0 %v767
      %880 = vmatprep.subr.bf16.mxu0 0
      %881 = vmatpush1.bf16.msra.mxu0 %v766
      %882 = vmatprep.subr.bf16.mxu0 0
      %883 = vmatpush1.bf16.msra.mxu0 %v765
      %884 = vmatprep.subr.bf16.mxu0 0
      %885 = vmatpush2.bf16.msra.mxu0 %v780
      %886 = vmatprep.subr.bf16.mxu0 0
      %887 = vmatpush2.bf16.msra.mxu0 %v779
      %888 = vmatprep.subr.bf16.mxu0 0
      %889 = vmatpush2.bf16.msra.mxu0 %v778
      %890 = vmatprep.subr.bf16.mxu0 0
      %891 = vmatpush2.bf16.msra.mxu0 %v777
      %892 = vmatprep.subr.bf16.mxu0 0
      %893 = vmatpush2.bf16.msra.mxu0 %v776
      %894 = vmatprep.subr.bf16.mxu0 0
      %895 = vmatpush2.bf16.msra.mxu0 %v775
      %896 = vmatprep.subr.bf16.mxu0 0
      %897 = vmatpush2.bf16.msra.mxu0 %v774
      %898 = vmatprep.subr.bf16.mxu0 0
      %899 = vmatpush2.bf16.msra.mxu0 %v773
      %900 = vmatprep.mubr.bf16.mxu0 %v584
      %901 = vmatmul.mubr.bf16.gmra.mxu0 %v583
      %v902 = vpop.f32.mrf.mxu0
      %v903 = vadd.f32 %v361, %v902
      %v904 = vpop.f32.mrf.mxu0
      %v905 = vpop.f32.mrf.mxu0
      %v906 = vadd.f32 %v361, %v905
      %v907 = vpop.f32.mrf.mxu0
      %908 = vmatprep.mubr.bf16.mxu0 %v587
      %909 = vmatmul.mubr.bf16.gmra.mxu0 %v586
      %v910 = vpop.f32.mrf.mxu0
      %v911 = vadd.f32 %v361, %v910
      %v912 = vpop.f32.mrf.mxu0
      %v913 = vpop.f32.mrf.mxu0
      %v914 = vadd.f32 %v361, %v913
      %v915 = vpop.f32.mrf.mxu0
      %916 = vmatprep.mubr.bf16.mxu0 %v590
      %917 = vmatmul.mubr.bf16.gmra.mxu0 %v589
      %v918 = vpop.f32.mrf.mxu0
      %v919 = vadd.f32 %v361, %v918
      %v920 = vpop.f32.mrf.mxu0
      %v921 = vpop.f32.mrf.mxu0
      %v922 = vadd.f32 %v361, %v921
      %v923 = vpop.f32.mrf.mxu0
      %924 = vmatprep.mubr.bf16.mxu0 %v593
      %925 = vmatmul.mubr.bf16.gmra.mxu0 %v592
      %v926 = vpop.f32.mrf.mxu0
      %v927 = vadd.f32 %v361, %v926
      %v928 = vpop.f32.mrf.mxu0
      %v929 = vpop.f32.mrf.mxu0
      %v930 = vadd.f32 %v361, %v929
      %v931 = vpop.f32.mrf.mxu0
      %932 = vmatprep.mubr.bf16.mxu0 %v596
      %933 = vmatmul.mubr.bf16.gmra.mxu0 %v595
      %v934 = vpop.f32.mrf.mxu0
      %v935 = vadd.f32 %v361, %v934
      %v936 = vpop.f32.mrf.mxu0
      %v937 = vpop.f32.mrf.mxu0
      %v938 = vadd.f32 %v361, %v937
      %v939 = vpop.f32.mrf.mxu0
      %940 = vmatprep.mubr.bf16.mxu0 %v599
      %941 = vmatmul.mubr.bf16.gmra.mxu0 %v598
      %v942 = vpop.f32.mrf.mxu0
      %v943 = vadd.f32 %v361, %v942
      %v944 = vpop.f32.mrf.mxu0
      %v945 = vpop.f32.mrf.mxu0
      %v946 = vadd.f32 %v361, %v945
      %v947 = vpop.f32.mrf.mxu0
      %948 = vmatprep.mubr.bf16.mxu0 %v602
      %949 = vmatmul.mubr.bf16.gmra.mxu0 %v601
      %v950 = vpop.f32.mrf.mxu0
      %v951 = vadd.f32 %v361, %v950
      %v952 = vpop.f32.mrf.mxu0
      %v953 = vpop.f32.mrf.mxu0
      %v954 = vadd.f32 %v361, %v953
      %v955 = vpop.f32.mrf.mxu0
      %956 = vmatprep.mubr.bf16.mxu0 %v605
      %957 = vmatmul.mubr.bf16.gmra.mxu0 %v604
      %v958 = vpop.f32.mrf.mxu0
      %v959 = vadd.f32 %v361, %v958
      %v960 = vpop.f32.mrf.mxu0
      %v961 = vpop.f32.mrf.mxu0
      %v962 = vadd.f32 %v361, %v961
      %v963 = vpop.f32.mrf.mxu0
      %964 = vmatprep.mubr.bf16.mxu0 %v608
      %965 = vmatmul.mubr.bf16.gmra.mxu0 %v607
      %v966 = vpop.f32.mrf.mxu0
      %v967 = vadd.f32 %v361, %v966
      %v968 = vpop.f32.mrf.mxu0
      %v969 = vpop.f32.mrf.mxu0
      %v970 = vadd.f32 %v361, %v969
      %v971 = vpop.f32.mrf.mxu0
      %972 = vmatprep.mubr.bf16.mxu0 %v611
      %973 = vmatmul.mubr.bf16.gmra.mxu0 %v610
      %v974 = vpop.f32.mrf.mxu0
      %v975 = vadd.f32 %v361, %v974
      %v976 = vpop.f32.mrf.mxu0
      %v977 = vpop.f32.mrf.mxu0
      %v978 = vadd.f32 %v361, %v977
      %v979 = vpop.f32.mrf.mxu0
      %980 = vmatprep.mubr.bf16.mxu0 %v614
      %981 = vmatmul.mubr.bf16.gmra.mxu0 %v613
      %v982 = vpop.f32.mrf.mxu0
      %v983 = vadd.f32 %v361, %v982
      %v984 = vpop.f32.mrf.mxu0
      %v985 = vpop.f32.mrf.mxu0
      %v986 = vadd.f32 %v361, %v985
      %v987 = vpop.f32.mrf.mxu0
      %988 = vmatprep.mubr.bf16.mxu0 %v617
      %989 = vmatmul.mubr.bf16.gmra.mxu0 %v616
      %v990 = vpop.f32.mrf.mxu0
      %v991 = vadd.f32 %v361, %v990
      %v992 = vpop.f32.mrf.mxu0
      %v993 = vpop.f32.mrf.mxu0
      %v994 = vadd.f32 %v361, %v993
      %v995 = vpop.f32.mrf.mxu0
      %996 = vmatprep.mubr.bf16.mxu0 %v620
      %997 = vmatmul.mubr.bf16.gmra.mxu0 %v619
      %v998 = vpop.f32.mrf.mxu0
      %v999 = vadd.f32 %v361, %v998
      %v1000 = vpop.f32.mrf.mxu0
      %v1001 = vpop.f32.mrf.mxu0
      %v1002 = vadd.f32 %v361, %v1001
      %v1003 = vpop.f32.mrf.mxu0
      %1004 = vmatprep.mubr.bf16.mxu0 %v623
      %1005 = vmatmul.mubr.bf16.gmra.mxu0 %v622
      %v1006 = vpop.f32.mrf.mxu0
      %v1007 = vadd.f32 %v361, %v1006
      %v1008 = vpop.f32.mrf.mxu0
      %v1009 = vpop.f32.mrf.mxu0
      %v1010 = vadd.f32 %v361, %v1009
      %v1011 = vpop.f32.mrf.mxu0
      %1012 = vmatprep.mubr.bf16.mxu0 %v626
      %1013 = vmatmul.mubr.bf16.gmra.mxu0 %v625
      %v1014 = vpop.f32.mrf.mxu0
      %v1015 = vadd.f32 %v361, %v1014
      %v1016 = vpop.f32.mrf.mxu0
      %v1017 = vpop.f32.mrf.mxu0
      %v1018 = vadd.f32 %v361, %v1017
      %v1019 = vpop.f32.mrf.mxu0
      %1020 = vmatprep.mubr.bf16.mxu0 %v629
      %1021 = vmatmul.mubr.bf16.gmra.mxu0 %v628
      %v1022 = vpop.f32.mrf.mxu0
      %v1023 = vadd.f32 %v361, %v1022
      %v1024 = vpop.f32.mrf.mxu0
      %v1025 = vpop.f32.mrf.mxu0
      %v1026 = vadd.f32 %v361, %v1025
      %v1027 = vpop.f32.mrf.mxu0
      %1028 = vmatprep.mubr.bf16.mxu0 %v632
      %1029 = vmatmul.mubr.bf16.gmra.mxu0 %v631
      %v1030 = vpop.f32.mrf.mxu0
      %v1031 = vadd.f32 %v361, %v1030
      %v1032 = vpop.f32.mrf.mxu0
      %v1033 = vpop.f32.mrf.mxu0
      %v1034 = vadd.f32 %v361, %v1033
      %v1035 = vpop.f32.mrf.mxu0
      %1036 = vmatprep.mubr.bf16.mxu0 %v635
      %1037 = vmatmul.mubr.bf16.gmra.mxu0 %v634
      %v1038 = vpop.f32.mrf.mxu0
      %v1039 = vadd.f32 %v361, %v1038
      %v1040 = vpop.f32.mrf.mxu0
      %v1041 = vpop.f32.mrf.mxu0
      %v1042 = vadd.f32 %v361, %v1041
      %v1043 = vpop.f32.mrf.mxu0
      %1044 = vmatprep.mubr.bf16.mxu0 %v638
      %1045 = vmatmul.mubr.bf16.gmra.mxu0 %v637
      %v1046 = vpop.f32.mrf.mxu0
      %v1047 = vadd.f32 %v361, %v1046
      %v1048 = vpop.f32.mrf.mxu0
      %v1049 = vpop.f32.mrf.mxu0
      %v1050 = vadd.f32 %v361, %v1049
      %v1051 = vpop.f32.mrf.mxu0
      %1052 = vmatprep.mubr.bf16.mxu0 %v641
      %1053 = vmatmul.mubr.bf16.gmra.mxu0 %v640
      %v1054 = vpop.f32.mrf.mxu0
      %v1055 = vadd.f32 %v361, %v1054
      %v1056 = vpop.f32.mrf.mxu0
      %v1057 = vpop.f32.mrf.mxu0
      %v1058 = vadd.f32 %v361, %v1057
      %v1059 = vpop.f32.mrf.mxu0
      %1060 = vmatprep.mubr.bf16.mxu0 %v644
      %1061 = vmatmul.mubr.bf16.gmra.mxu0 %v643
      %v1062 = vpop.f32.mrf.mxu0
      %v1063 = vadd.f32 %v361, %v1062
      %v1064 = vpop.f32.mrf.mxu0
      %v1065 = vpop.f32.mrf.mxu0
      %v1066 = vadd.f32 %v361, %v1065
      %v1067 = vpop.f32.mrf.mxu0
      %1068 = vmatprep.mubr.bf16.mxu0 %v647
      %1069 = vmatmul.mubr.bf16.gmra.mxu0 %v646
      %v1070 = vpop.f32.mrf.mxu0
      %v1071 = vadd.f32 %v361, %v1070
      %v1072 = vpop.f32.mrf.mxu0
      %v1073 = vpop.f32.mrf.mxu0
      %v1074 = vadd.f32 %v361, %v1073
      %v1075 = vpop.f32.mrf.mxu0
      %1076 = vdwg.mxu0
      %1077 = vmatprep.subr.bf16.mxu0 0
      %1078 = vmatpush1.bf16.msra.mxu0 0
      %1079 = vmatprep.subr.bf16.mxu0 0
      %1080 = vmatpush1.bf16.msra.mxu0 0
      %1081 = vmatprep.subr.bf16.mxu0 0
      %1082 = vmatpush1.bf16.msra.mxu0 0
      %1083 = vmatprep.subr.bf16.mxu0 0
      %1084 = vmatpush1.bf16.msra.mxu0 0
      %1085 = vmatprep.subr.bf16.mxu0 0
      %1086 = vmatpush1.bf16.msra.mxu0 0
      %1087 = vmatprep.subr.bf16.mxu0 0
      %1088 = vmatpush1.bf16.msra.mxu0 0
      %1089 = vmatprep.subr.bf16.mxu0 0
      %1090 = vmatpush1.bf16.msra.mxu0 %v782
      %1091 = vmatprep.subr.bf16.mxu0 0
      %1092 = vmatpush1.bf16.msra.mxu0 %v781
      %1093 = vmatprep.subr.bf16.mxu0 0
      %1094 = vmatpush2.bf16.msra.mxu0 0
      %1095 = vmatprep.subr.bf16.mxu0 0
      %1096 = vmatpush2.bf16.msra.mxu0 0
      %1097 = vmatprep.subr.bf16.mxu0 0
      %1098 = vmatpush2.bf16.msra.mxu0 0
      %1099 = vmatprep.subr.bf16.mxu0 0
      %1100 = vmatpush2.bf16.msra.mxu0 0
      %1101 = vmatprep.subr.bf16.mxu0 0
      %1102 = vmatpush2.bf16.msra.mxu0 0
      %1103 = vmatprep.subr.bf16.mxu0 0
      %1104 = vmatpush2.bf16.msra.mxu0 0
      %1105 = vmatprep.subr.bf16.mxu0 0
      %1106 = vmatpush2.bf16.msra.mxu0 0
      %1107 = vmatprep.subr.bf16.mxu0 0
      %1108 = vmatpush2.bf16.msra.mxu0 0
      %1109 = vmatprep.mubr.bf16.mxu0 0
      %1110 = vmatmul.mubr.bf16.gmra.mxu0 %v803
      %v1111 = vpop.f32.mrf.mxu0
      %v1112 = vadd.f32 %v903, %v1111
      %v1113 = vpop.f32.mrf.mxu0
      %v1114 = vpop.f32.mrf.mxu0
      %v1115 = vadd.f32 %v906, %v1114
      %v1116 = vpop.f32.mrf.mxu0
      %1117 = vmatprep.mubr.bf16.mxu0 0
      %1118 = vmatmul.mubr.bf16.gmra.mxu0 %v806
      %v1119 = vpop.f32.mrf.mxu0
      %v1120 = vadd.f32 %v911, %v1119
      %v1121 = vpop.f32.mrf.mxu0
      %v1122 = vpop.f32.mrf.mxu0
      %v1123 = vadd.f32 %v914, %v1122
      %v1124 = vpop.f32.mrf.mxu0
      %1125 = vmatprep.mubr.bf16.mxu0 0
      %1126 = vmatmul.mubr.bf16.gmra.mxu0 %v809
      %v1127 = vpop.f32.mrf.mxu0
      %v1128 = vadd.f32 %v919, %v1127
      %v1129 = vpop.f32.mrf.mxu0
      %v1130 = vpop.f32.mrf.mxu0
      %v1131 = vadd.f32 %v922, %v1130
      %v1132 = vpop.f32.mrf.mxu0
      %1133 = vmatprep.mubr.bf16.mxu0 0
      %1134 = vmatmul.mubr.bf16.gmra.mxu0 %v812
      %v1135 = vpop.f32.mrf.mxu0
      %v1136 = vadd.f32 %v927, %v1135
      %v1137 = vpop.f32.mrf.mxu0
      %v1138 = vpop.f32.mrf.mxu0
      %v1139 = vadd.f32 %v930, %v1138
      %v1140 = vpop.f32.mrf.mxu0
      %1141 = vmatprep.mubr.bf16.mxu0 0
      %1142 = vmatmul.mubr.bf16.gmra.mxu0 %v815
      %v1143 = vpop.f32.mrf.mxu0
      %v1144 = vadd.f32 %v935, %v1143
      %v1145 = vpop.f32.mrf.mxu0
      %v1146 = vpop.f32.mrf.mxu0
      %v1147 = vadd.f32 %v938, %v1146
      %v1148 = vpop.f32.mrf.mxu0
      %1149 = vmatprep.mubr.bf16.mxu0 0
      %1150 = vmatmul.mubr.bf16.gmra.mxu0 %v818
      %v1151 = vpop.f32.mrf.mxu0
      %v1152 = vadd.f32 %v943, %v1151
      %v1153 = vpop.f32.mrf.mxu0
      %v1154 = vpop.f32.mrf.mxu0
      %v1155 = vadd.f32 %v946, %v1154
      %v1156 = vpop.f32.mrf.mxu0
      %1157 = vmatprep.mubr.bf16.mxu0 0
      %1158 = vmatmul.mubr.bf16.gmra.mxu0 %v821
      %v1159 = vpop.f32.mrf.mxu0
      %v1160 = vadd.f32 %v951, %v1159
      %v1161 = vpop.f32.mrf.mxu0
      %v1162 = vpop.f32.mrf.mxu0
      %v1163 = vadd.f32 %v954, %v1162
      %v1164 = vpop.f32.mrf.mxu0
      %1165 = vmatprep.mubr.bf16.mxu0 0
      %1166 = vmatmul.mubr.bf16.gmra.mxu0 %v824
      %v1167 = vpop.f32.mrf.mxu0
      %v1168 = vadd.f32 %v959, %v1167
      %v1169 = vpop.f32.mrf.mxu0
      %v1170 = vpop.f32.mrf.mxu0
      %v1171 = vadd.f32 %v962, %v1170
      %v1172 = vpop.f32.mrf.mxu0
      %1173 = vmatprep.mubr.bf16.mxu0 0
      %1174 = vmatmul.mubr.bf16.gmra.mxu0 %v827
      %v1175 = vpop.f32.mrf.mxu0
      %v1176 = vadd.f32 %v967, %v1175
      %v1177 = vpop.f32.mrf.mxu0
      %v1178 = vpop.f32.mrf.mxu0
      %v1179 = vadd.f32 %v970, %v1178
      %v1180 = vpop.f32.mrf.mxu0
      %1181 = vmatprep.mubr.bf16.mxu0 0
      %1182 = vmatmul.mubr.bf16.gmra.mxu0 %v830
      %v1183 = vpop.f32.mrf.mxu0
      %v1184 = vadd.f32 %v975, %v1183
      %v1185 = vpop.f32.mrf.mxu0
      %v1186 = vpop.f32.mrf.mxu0
      %v1187 = vadd.f32 %v978, %v1186
      %v1188 = vpop.f32.mrf.mxu0
      %1189 = vmatprep.mubr.bf16.mxu0 0
      %1190 = vmatmul.mubr.bf16.gmra.mxu0 %v833
      %v1191 = vpop.f32.mrf.mxu0
      %v1192 = vadd.f32 %v983, %v1191
      %v1193 = vpop.f32.mrf.mxu0
      %v1194 = vpop.f32.mrf.mxu0
      %v1195 = vadd.f32 %v986, %v1194
      %v1196 = vpop.f32.mrf.mxu0
      %1197 = vmatprep.mubr.bf16.mxu0 0
      %1198 = vmatmul.mubr.bf16.gmra.mxu0 %v836
      %v1199 = vpop.f32.mrf.mxu0
      %v1200 = vadd.f32 %v991, %v1199
      %v1201 = vpop.f32.mrf.mxu0
      %v1202 = vpop.f32.mrf.mxu0
      %v1203 = vadd.f32 %v994, %v1202
      %v1204 = vpop.f32.mrf.mxu0
      %1205 = vmatprep.mubr.bf16.mxu0 0
      %1206 = vmatmul.mubr.bf16.gmra.mxu0 %v839
      %v1207 = vpop.f32.mrf.mxu0
      %v1208 = vadd.f32 %v999, %v1207
      %v1209 = vpop.f32.mrf.mxu0
      %v1210 = vpop.f32.mrf.mxu0
      %v1211 = vadd.f32 %v1002, %v1210
      %v1212 = vpop.f32.mrf.mxu0
      %1213 = vmatprep.mubr.bf16.mxu0 0
      %1214 = vmatmul.mubr.bf16.gmra.mxu0 %v842
      %v1215 = vpop.f32.mrf.mxu0
      %v1216 = vadd.f32 %v1007, %v1215
      %v1217 = vpop.f32.mrf.mxu0
      %v1218 = vpop.f32.mrf.mxu0
      %v1219 = vadd.f32 %v1010, %v1218
      %v1220 = vpop.f32.mrf.mxu0
      %1221 = vmatprep.mubr.bf16.mxu0 0
      %1222 = vmatmul.mubr.bf16.gmra.mxu0 %v845
      %v1223 = vpop.f32.mrf.mxu0
      %v1224 = vadd.f32 %v1015, %v1223
      %v1225 = vpop.f32.mrf.mxu0
      %v1226 = vpop.f32.mrf.mxu0
      %v1227 = vadd.f32 %v1018, %v1226
      %v1228 = vpop.f32.mrf.mxu0
      %1229 = vmatprep.mubr.bf16.mxu0 0
      %1230 = vmatmul.mubr.bf16.gmra.mxu0 %v848
      %v1231 = vpop.f32.mrf.mxu0
      %v1232 = vadd.f32 %v1023, %v1231
      %v1233 = vpop.f32.mrf.mxu0
      %v1234 = vpop.f32.mrf.mxu0
      %v1235 = vadd.f32 %v1026, %v1234
      %v1236 = vpop.f32.mrf.mxu0
      %1237 = vmatprep.mubr.bf16.mxu0 0
      %1238 = vmatmul.mubr.bf16.gmra.mxu0 %v851
      %v1239 = vpop.f32.mrf.mxu0
      %v1240 = vadd.f32 %v1031, %v1239
      %v1241 = vpop.f32.mrf.mxu0
      %v1242 = vpop.f32.mrf.mxu0
      %v1243 = vadd.f32 %v1034, %v1242
      %v1244 = vpop.f32.mrf.mxu0
      %1245 = vmatprep.mubr.bf16.mxu0 0
      %1246 = vmatmul.mubr.bf16.gmra.mxu0 %v854
      %v1247 = vpop.f32.mrf.mxu0
      %v1248 = vadd.f32 %v1039, %v1247
      %v1249 = vpop.f32.mrf.mxu0
      %v1250 = vpop.f32.mrf.mxu0
      %v1251 = vadd.f32 %v1042, %v1250
      %v1252 = vpop.f32.mrf.mxu0
      %1253 = vmatprep.mubr.bf16.mxu0 0
      %1254 = vmatmul.mubr.bf16.gmra.mxu0 %v857
      %v1255 = vpop.f32.mrf.mxu0
      %v1256 = vadd.f32 %v1047, %v1255
      %v1257 = vpop.f32.mrf.mxu0
      %v1258 = vpop.f32.mrf.mxu0
      %v1259 = vadd.f32 %v1050, %v1258
      %v1260 = vpop.f32.mrf.mxu0
      %1261 = vmatprep.mubr.bf16.mxu0 0
      %1262 = vmatmul.mubr.bf16.gmra.mxu0 %v860
      %v1263 = vpop.f32.mrf.mxu0
      %v1264 = vadd.f32 %v1055, %v1263
      %v1265 = vpop.f32.mrf.mxu0
      %v1266 = vpop.f32.mrf.mxu0
      %v1267 = vadd.f32 %v1058, %v1266
      %v1268 = vpop.f32.mrf.mxu0
      %1269 = vmatprep.mubr.bf16.mxu0 0
      %1270 = vmatmul.mubr.bf16.gmra.mxu0 %v863
      %v1271 = vpop.f32.mrf.mxu0
      %v1272 = vadd.f32 %v1063, %v1271
      %v1273 = vpop.f32.mrf.mxu0
      %v1274 = vpop.f32.mrf.mxu0
      %v1275 = vadd.f32 %v1066, %v1274
      %v1276 = vpop.f32.mrf.mxu0
      %1277 = vmatprep.mubr.bf16.mxu0 0
      %1278 = vmatmul.mubr.bf16.gmra.mxu0 %v866
      %v1279 = vpop.f32.mrf.mxu0
      %v1280 = vadd.f32 %v1071, %v1279
      %v1281 = vpop.f32.mrf.mxu0
      %v1282 = vpop.f32.mrf.mxu0
      %v1283 = vadd.f32 %v1074, %v1282
      %v1284 = vpop.f32.mrf.mxu0
      %1285 = vdwg.mxu0
      %v1286 = vmax.f32 %v1112, 0.0
      %v1287 = vmax.f32 %v1115, 0.0
      %v1288 = vmax.f32 %v1120, 0.0
      %v1289 = vmax.f32 %v1123, 0.0
      %v1290 = vmax.f32 %v1128, 0.0
      %v1291 = vmax.f32 %v1131, 0.0
      %v1292 = vmax.f32 %v1136, 0.0
      %v1293 = vmax.f32 %v1139, 0.0
      %v1294 = vmax.f32 %v1144, 0.0
      %v1295 = vmax.f32 %v1147, 0.0
      %v1296 = vmax.f32 %v1152, 0.0
      %v1297 = vmax.f32 %v1155, 0.0
      %v1298 = vmax.f32 %v1160, 0.0
      %v1299 = vmax.f32 %v1163, 0.0
      %v1300 = vmax.f32 %v1168, 0.0
      %v1301 = vmax.f32 %v1171, 0.0
      %v1302 = vmax.f32 %v1176, 0.0
      %v1303 = vmax.f32 %v1179, 0.0
      %v1304 = vmax.f32 %v1184, 0.0
      %v1305 = vmax.f32 %v1187, 0.0
      %v1306 = vmax.f32 %v1192, 0.0
      %v1307 = vmax.f32 %v1195, 0.0
      %v1308 = vmax.f32 %v1200, 0.0
      %v1309 = vmax.f32 %v1203, 0.0
      %v1310 = vmax.f32 %v1208, 0.0
      %v1311 = vmax.f32 %v1211, 0.0
      %v1312 = vmax.f32 %v1216, 0.0
      %v1313 = vmax.f32 %v1219, 0.0
      %v1314 = vmax.f32 %v1224, 0.0
      %v1315 = vmax.f32 %v1227, 0.0
      %v1316 = vmax.f32 %v1232, 0.0
      %v1317 = vmax.f32 %v1235, 0.0
      %v1318 = vmax.f32 %v1240, 0.0
      %v1319 = vmax.f32 %v1243, 0.0
      %v1320 = vmax.f32 %v1248, 0.0
      %v1321 = vmax.f32 %v1251, 0.0
      %v1322 = vmax.f32 %v1256, 0.0
      %v1323 = vmax.f32 %v1259, 0.0
      %v1324 = vmax.f32 %v1264, 0.0
      %v1325 = vmax.f32 %v1267, 0.0
      %v1326 = vmax.f32 %v1272, 0.0
      %v1327 = vmax.f32 %v1275, 0.0
      %v1328 = vmax.f32 %v1280, 0.0
      %v1329 = vmax.f32 %v1283, 0.0
      %v1330 = vpack.c.bf16 %v1287, %v1286
      %v1331 = vpack.c.bf16 %v1289, %v1288
      %v1332 = vpack.c.bf16 %v1291, %v1290
      %v1333 = vpack.c.bf16 %v1293, %v1292
      %v1334 = vpack.c.bf16 %v1295, %v1294
      %v1335 = vpack.c.bf16 %v1297, %v1296
      %v1336 = vpack.c.bf16 %v1299, %v1298
      %v1337 = vpack.c.bf16 %v1301, %v1300
      %v1338 = vpack.c.bf16 %v1303, %v1302
      %v1339 = vpack.c.bf16 %v1305, %v1304
      %v1340 = vpack.c.bf16 %v1307, %v1306
      %v1341 = vpack.c.bf16 %v1309, %v1308
      %v1342 = vpack.c.bf16 %v1311, %v1310
      %v1343 = vpack.c.bf16 %v1313, %v1312
      %v1344 = vpack.c.bf16 %v1315, %v1314
      %v1345 = vpack.c.bf16 %v1317, %v1316
      %v1346 = vpack.c.bf16 %v1319, %v1318
      %v1347 = vpack.c.bf16 %v1321, %v1320
      %v1348 = vpack.c.bf16 %v1323, %v1322
      %v1349 = vpack.c.bf16 %v1325, %v1324
      %v1350 = vpack.c.bf16 %v1327, %v1326
      %v1351 = vpack.c.bf16 %v1329, %v1328
      %v1352 = vld [vmem:[%s3] sm:$0xf]
      %v1353 = vld [vmem:[%s3 + $0x4] sm:$0xf]
      %v1354 = vld [vmem:[%s3 + $0x8] sm:$0xf]
      %v1355 = vld [vmem:[%s3 + $0xc] sm:$0xf]
      %v1356 = vld [vmem:[%s4] sm:$0x1]
      %v1358 = vlaneseq
      %v1359 = vshrl.u32 %v1358, 7
      %v1360 = vsub.s32 0, %v1359
      %v1361 = vrot.slane %v1356, %v1360
      %v1367 = vunpack.c.l.b16 %v1352
      %v1368 = vunpack.c.l.b16 %v1353
      %v1369 = vunpack.c.l.b16 %v1354
      %v1370 = vunpack.c.l.b16 %v1355
      %v1371 = vpack.c.b16 %v1368, %v1367
      %v1372 = vpack.c.b16 %v1370, %v1369
      %v1376 = vsel %vm801, %v1330, 0
      %v1379 = vsel %vm801, %v1331, 0
      %v1382 = vsel %vm801, %v1332, 0
      %v1385 = vsel %vm801, %v1333, 0
      %v1388 = vsel %vm801, %v1334, 0
      %v1391 = vsel %vm801, %v1335, 0
      %v1394 = vsel %vm801, %v1336, 0
      %v1397 = vsel %vm801, %v1337, 0
      %v1400 = vsel %vm801, %v1338, 0
      %v1403 = vsel %vm801, %v1339, 0
      %v1406 = vsel %vm801, %v1340, 0
      %v1409 = vsel %vm801, %v1341, 0
      %v1412 = vsel %vm801, %v1342, 0
      %v1415 = vsel %vm801, %v1343, 0
      %v1418 = vsel %vm801, %v1344, 0
      %v1421 = vsel %vm801, %v1345, 0
      %v1424 = vsel %vm801, %v1346, 0
      %v1427 = vsel %vm801, %v1347, 0
      %v1430 = vsel %vm801, %v1348, 0
      %v1433 = vsel %vm801, %v1349, 0
      %v1436 = vsel %vm801, %v1350, 0
      %v1439 = vsel %vm801, %v1351, 0
      %1441 = vmatprep.subr.bf16.mxu0 0
      %1442 = vmatpush1.bf16.msra.mxu0 0
      %1443 = vmatprep.subr.bf16.mxu0 0
      %1444 = vmatpush1.bf16.msra.mxu0 0
      %1445 = vmatprep.subr.bf16.mxu0 0
      %1446 = vmatpush1.bf16.msra.mxu0 0
      %1447 = vmatprep.subr.bf16.mxu0 0
      %1448 = vmatpush1.bf16.msra.mxu0 0
      %1449 = vmatprep.subr.bf16.mxu0 0
      %1450 = vmatpush1.bf16.msra.mxu0 0
      %1451 = vmatprep.subr.bf16.mxu0 0
      %1452 = vmatpush1.bf16.msra.mxu0 0
      %1453 = vmatprep.subr.bf16.mxu0 0
      %1454 = vmatpush1.bf16.msra.mxu0 %v1372
      %1455 = vmatprep.subr.bf16.mxu0 0
      %1456 = vmatpush1.bf16.msra.mxu0 %v1371
      %1457 = vmatprep.subr.bf16.mxu0 0
      %1458 = vmatpush2.bf16.msra.mxu0 0
      %1459 = vmatprep.subr.bf16.mxu0 0
      %1460 = vmatpush2.bf16.msra.mxu0 0
      %1461 = vmatprep.subr.bf16.mxu0 0
      %1462 = vmatpush2.bf16.msra.mxu0 0
      %1463 = vmatprep.subr.bf16.mxu0 0
      %1464 = vmatpush2.bf16.msra.mxu0 0
      %1465 = vmatprep.subr.bf16.mxu0 0
      %1466 = vmatpush2.bf16.msra.mxu0 0
      %1467 = vmatprep.subr.bf16.mxu0 0
      %1468 = vmatpush2.bf16.msra.mxu0 0
      %1469 = vmatprep.subr.bf16.mxu0 0
      %1470 = vmatpush2.bf16.msra.mxu0 0
      %1471 = vmatprep.subr.bf16.mxu0 0
      %1472 = vmatpush2.bf16.msra.mxu0 0
      %1473 = vmatprep.mubr.bf16.mxu0 0
      %1474 = vmatmul.mubr.bf16.gmra.mxu0 %v1376
      %v1475 = vpop.f32.mrf.mxu0
      %v1476 = vadd.f32 %v1361, %v1475
      %v1477 = vpop.f32.mrf.mxu0
      %v1478 = vpop.f32.mrf.mxu0
      %v1479 = vadd.f32 %v1361, %v1478
      %v1480 = vpop.f32.mrf.mxu0
      %1481 = vmatprep.mubr.bf16.mxu0 0
      %1482 = vmatmul.mubr.bf16.gmra.mxu0 %v1379
      %v1483 = vpop.f32.mrf.mxu0
      %v1484 = vadd.f32 %v1361, %v1483
      %v1485 = vpop.f32.mrf.mxu0
      %v1486 = vpop.f32.mrf.mxu0
      %v1487 = vadd.f32 %v1361, %v1486
      %v1488 = vpop.f32.mrf.mxu0
      %1489 = vmatprep.mubr.bf16.mxu0 0
      %1490 = vmatmul.mubr.bf16.gmra.mxu0 %v1382
      %v1491 = vpop.f32.mrf.mxu0
      %v1492 = vadd.f32 %v1361, %v1491
      %v1493 = vpop.f32.mrf.mxu0
      %v1494 = vpop.f32.mrf.mxu0
      %v1495 = vadd.f32 %v1361, %v1494
      %v1496 = vpop.f32.mrf.mxu0
      %1497 = vmatprep.mubr.bf16.mxu0 0
      %1498 = vmatmul.mubr.bf16.gmra.mxu0 %v1385
      %v1499 = vpop.f32.mrf.mxu0
      %v1500 = vadd.f32 %v1361, %v1499
      %v1501 = vpop.f32.mrf.mxu0
      %v1502 = vpop.f32.mrf.mxu0
      %v1503 = vadd.f32 %v1361, %v1502
      %v1504 = vpop.f32.mrf.mxu0
      %1505 = vmatprep.mubr.bf16.mxu0 0
      %1506 = vmatmul.mubr.bf16.gmra.mxu0 %v1388
      %v1507 = vpop.f32.mrf.mxu0
      %v1508 = vadd.f32 %v1361, %v1507
      %v1509 = vpop.f32.mrf.mxu0
      %v1510 = vpop.f32.mrf.mxu0
      %v1511 = vadd.f32 %v1361, %v1510
      %v1512 = vpop.f32.mrf.mxu0
      %1513 = vmatprep.mubr.bf16.mxu0 0
      %1514 = vmatmul.mubr.bf16.gmra.mxu0 %v1391
      %v1515 = vpop.f32.mrf.mxu0
      %v1516 = vadd.f32 %v1361, %v1515
      %v1517 = vpop.f32.mrf.mxu0
      %v1518 = vpop.f32.mrf.mxu0
      %v1519 = vadd.f32 %v1361, %v1518
      %v1520 = vpop.f32.mrf.mxu0
      %1521 = vmatprep.mubr.bf16.mxu0 0
      %1522 = vmatmul.mubr.bf16.gmra.mxu0 %v1394
      %v1523 = vpop.f32.mrf.mxu0
      %v1524 = vadd.f32 %v1361, %v1523
      %v1525 = vpop.f32.mrf.mxu0
      %v1526 = vpop.f32.mrf.mxu0
      %v1527 = vadd.f32 %v1361, %v1526
      %v1528 = vpop.f32.mrf.mxu0
      %1529 = vmatprep.mubr.bf16.mxu0 0
      %1530 = vmatmul.mubr.bf16.gmra.mxu0 %v1397
      %v1531 = vpop.f32.mrf.mxu0
      %v1532 = vadd.f32 %v1361, %v1531
      %v1533 = vpop.f32.mrf.mxu0
      %v1534 = vpop.f32.mrf.mxu0
      %v1535 = vadd.f32 %v1361, %v1534
      %v1536 = vpop.f32.mrf.mxu0
      %1537 = vmatprep.mubr.bf16.mxu0 0
      %1538 = vmatmul.mubr.bf16.gmra.mxu0 %v1400
      %v1539 = vpop.f32.mrf.mxu0
      %v1540 = vadd.f32 %v1361, %v1539
      %v1541 = vpop.f32.mrf.mxu0
      %v1542 = vpop.f32.mrf.mxu0
      %v1543 = vadd.f32 %v1361, %v1542
      %v1544 = vpop.f32.mrf.mxu0
      %1545 = vmatprep.mubr.bf16.mxu0 0
      %1546 = vmatmul.mubr.bf16.gmra.mxu0 %v1403
      %v1547 = vpop.f32.mrf.mxu0
      %v1548 = vadd.f32 %v1361, %v1547
      %v1549 = vpop.f32.mrf.mxu0
      %v1550 = vpop.f32.mrf.mxu0
      %v1551 = vadd.f32 %v1361, %v1550
      %v1552 = vpop.f32.mrf.mxu0
      %1553 = vmatprep.mubr.bf16.mxu0 0
      %1554 = vmatmul.mubr.bf16.gmra.mxu0 %v1406
      %v1555 = vpop.f32.mrf.mxu0
      %v1556 = vadd.f32 %v1361, %v1555
      %v1557 = vpop.f32.mrf.mxu0
      %v1558 = vpop.f32.mrf.mxu0
      %v1559 = vadd.f32 %v1361, %v1558
      %v1560 = vpop.f32.mrf.mxu0
      %1561 = vmatprep.mubr.bf16.mxu0 0
      %1562 = vmatmul.mubr.bf16.gmra.mxu0 %v1409
      %v1563 = vpop.f32.mrf.mxu0
      %v1564 = vadd.f32 %v1361, %v1563
      %v1565 = vpop.f32.mrf.mxu0
      %v1566 = vpop.f32.mrf.mxu0
      %v1567 = vadd.f32 %v1361, %v1566
      %v1568 = vpop.f32.mrf.mxu0
      %1569 = vmatprep.mubr.bf16.mxu0 0
      %1570 = vmatmul.mubr.bf16.gmra.mxu0 %v1412
      %v1571 = vpop.f32.mrf.mxu0
      %v1572 = vadd.f32 %v1361, %v1571
      %v1573 = vpop.f32.mrf.mxu0
      %v1574 = vpop.f32.mrf.mxu0
      %v1575 = vadd.f32 %v1361, %v1574
      %v1576 = vpop.f32.mrf.mxu0
      %1577 = vmatprep.mubr.bf16.mxu0 0
      %1578 = vmatmul.mubr.bf16.gmra.mxu0 %v1415
      %v1579 = vpop.f32.mrf.mxu0
      %v1580 = vadd.f32 %v1361, %v1579
      %v1581 = vpop.f32.mrf.mxu0
      %v1582 = vpop.f32.mrf.mxu0
      %v1583 = vadd.f32 %v1361, %v1582
      %v1584 = vpop.f32.mrf.mxu0
      %1585 = vmatprep.mubr.bf16.mxu0 0
      %1586 = vmatmul.mubr.bf16.gmra.mxu0 %v1418
      %v1587 = vpop.f32.mrf.mxu0
      %v1588 = vadd.f32 %v1361, %v1587
      %v1589 = vpop.f32.mrf.mxu0
      %v1590 = vpop.f32.mrf.mxu0
      %v1591 = vadd.f32 %v1361, %v1590
      %v1592 = vpop.f32.mrf.mxu0
      %1593 = vmatprep.mubr.bf16.mxu0 0
      %1594 = vmatmul.mubr.bf16.gmra.mxu0 %v1421
      %v1595 = vpop.f32.mrf.mxu0
      %v1596 = vadd.f32 %v1361, %v1595
      %v1597 = vpop.f32.mrf.mxu0
      %v1598 = vpop.f32.mrf.mxu0
      %v1599 = vadd.f32 %v1361, %v1598
      %v1600 = vpop.f32.mrf.mxu0
      %1601 = vmatprep.mubr.bf16.mxu0 0
      %1602 = vmatmul.mubr.bf16.gmra.mxu0 %v1424
      %v1603 = vpop.f32.mrf.mxu0
      %v1604 = vadd.f32 %v1361, %v1603
      %v1605 = vpop.f32.mrf.mxu0
      %v1606 = vpop.f32.mrf.mxu0
      %v1607 = vadd.f32 %v1361, %v1606
      %v1608 = vpop.f32.mrf.mxu0
      %1609 = vmatprep.mubr.bf16.mxu0 0
      %1610 = vmatmul.mubr.bf16.gmra.mxu0 %v1427
      %v1611 = vpop.f32.mrf.mxu0
      %v1612 = vadd.f32 %v1361, %v1611
      %v1613 = vpop.f32.mrf.mxu0
      %v1614 = vpop.f32.mrf.mxu0
      %v1615 = vadd.f32 %v1361, %v1614
      %v1616 = vpop.f32.mrf.mxu0
      %1617 = vmatprep.mubr.bf16.mxu0 0
      %1618 = vmatmul.mubr.bf16.gmra.mxu0 %v1430
      %v1619 = vpop.f32.mrf.mxu0
      %v1620 = vadd.f32 %v1361, %v1619
      %v1621 = vpop.f32.mrf.mxu0
      %v1622 = vpop.f32.mrf.mxu0
      %v1623 = vadd.f32 %v1361, %v1622
      %v1624 = vpop.f32.mrf.mxu0
      %1625 = vmatprep.mubr.bf16.mxu0 0
      %1626 = vmatmul.mubr.bf16.gmra.mxu0 %v1433
      %v1627 = vpop.f32.mrf.mxu0
      %v1628 = vadd.f32 %v1361, %v1627
      %v1629 = vpop.f32.mrf.mxu0
      %v1630 = vpop.f32.mrf.mxu0
      %v1631 = vadd.f32 %v1361, %v1630
      %v1632 = vpop.f32.mrf.mxu0
      %1633 = vmatprep.mubr.bf16.mxu0 0
      %1634 = vmatmul.mubr.bf16.gmra.mxu0 %v1436
      %v1635 = vpop.f32.mrf.mxu0
      %v1636 = vadd.f32 %v1361, %v1635
      %v1637 = vpop.f32.mrf.mxu0
      %v1638 = vpop.f32.mrf.mxu0
      %v1639 = vadd.f32 %v1361, %v1638
      %v1640 = vpop.f32.mrf.mxu0
      %1641 = vmatprep.mubr.bf16.mxu0 0
      %1642 = vmatmul.mubr.bf16.gmra.mxu0 %v1439
      %v1643 = vpop.f32.mrf.mxu0
      %v1644 = vadd.f32 %v1361, %v1643
      %v1645 = vpop.f32.mrf.mxu0
      %v1646 = vpop.f32.mrf.mxu0
      %v1647 = vadd.f32 %v1361, %v1646
      %v1648 = vpop.f32.mrf.mxu0
      %1649 = vdwg.mxu0
      %v1650 = vpack.c.bf16 %v1479, %v1476
      %v1651 = vpack.c.bf16 %v1487, %v1484
      %v1652 = vpack.c.bf16 %v1495, %v1492
      %v1653 = vpack.c.bf16 %v1503, %v1500
      %v1654 = vpack.c.bf16 %v1511, %v1508
      %v1655 = vpack.c.bf16 %v1519, %v1516
      %v1656 = vpack.c.bf16 %v1527, %v1524
      %v1657 = vpack.c.bf16 %v1535, %v1532
      %v1658 = vpack.c.bf16 %v1543, %v1540
      %v1659 = vpack.c.bf16 %v1551, %v1548
      %v1660 = vpack.c.bf16 %v1559, %v1556
      %v1661 = vpack.c.bf16 %v1567, %v1564
      %v1662 = vpack.c.bf16 %v1575, %v1572
      %v1663 = vpack.c.bf16 %v1583, %v1580
      %v1664 = vpack.c.bf16 %v1591, %v1588
      %v1665 = vpack.c.bf16 %v1599, %v1596
      %v1666 = vpack.c.bf16 %v1607, %v1604
      %v1667 = vpack.c.bf16 %v1615, %v1612
      %v1668 = vpack.c.bf16 %v1623, %v1620
      %v1669 = vpack.c.bf16 %v1631, %v1628
      %v1670 = vpack.c.bf16 %v1639, %v1636
      %v1671 = vpack.c.bf16 %v1647, %v1644
      %v1694 = vunpack.c.l.b16 %v1650
      %v1695 = vunpack.c.h.b16 %v1650
      %v1696 = vunpack.c.l.b16 %v1651
      %v1697 = vunpack.c.h.b16 %v1651
      %v1698 = vunpack.c.l.b16 %v1652
      %v1699 = vunpack.c.h.b16 %v1652
      %v1700 = vunpack.c.l.b16 %v1653
      %v1701 = vunpack.c.h.b16 %v1653
      %v1702 = vunpack.c.l.b16 %v1654
      %v1703 = vunpack.c.h.b16 %v1654
      %v1704 = vunpack.c.l.b16 %v1655
      %v1705 = vunpack.c.h.b16 %v1655
      %v1706 = vunpack.c.l.b16 %v1656
      %v1707 = vunpack.c.h.b16 %v1656
      %v1708 = vunpack.c.l.b16 %v1657
      %v1709 = vunpack.c.h.b16 %v1657
      %v1710 = vunpack.c.l.b16 %v1658
      %v1711 = vunpack.c.h.b16 %v1658
      %v1712 = vunpack.c.l.b16 %v1659
      %v1713 = vunpack.c.h.b16 %v1659
      %v1714 = vunpack.c.l.b16 %v1660
      %v1715 = vunpack.c.h.b16 %v1660
      %v1716 = vunpack.c.l.b16 %v1661
      %v1717 = vunpack.c.h.b16 %v1661
      %v1718 = vunpack.c.l.b16 %v1662
      %v1719 = vunpack.c.h.b16 %v1662
      %v1720 = vunpack.c.l.b16 %v1663
      %v1721 = vunpack.c.h.b16 %v1663
      %v1722 = vunpack.c.l.b16 %v1664
      %v1723 = vunpack.c.h.b16 %v1664
      %v1724 = vunpack.c.l.b16 %v1665
      %v1725 = vunpack.c.h.b16 %v1665
      %v1726 = vunpack.c.l.b16 %v1666
      %v1727 = vunpack.c.h.b16 %v1666
      %v1728 = vunpack.c.l.b16 %v1667
      %v1729 = vunpack.c.h.b16 %v1667
      %v1730 = vunpack.c.l.b16 %v1668
      %v1731 = vunpack.c.h.b16 %v1668
      %v1732 = vunpack.c.l.b16 %v1669
      %v1733 = vunpack.c.h.b16 %v1669
      %v1734 = vunpack.c.l.b16 %v1670
      %v1735 = vunpack.c.h.b16 %v1670
      %v1736 = vunpack.c.l.b16 %v1671
      %v1737 = vunpack.c.h.b16 %v1671
      %v1738 = vpack.c.b16 %v1694, %v1694
      %v1739 = vpack.c.b16 %v1695, %v1695
      %v1740 = vpack.c.b16 %v1696, %v1696
      %v1741 = vpack.c.b16 %v1697, %v1697
      %v1742 = vpack.c.b16 %v1698, %v1698
      %v1743 = vpack.c.b16 %v1699, %v1699
      %v1744 = vpack.c.b16 %v1700, %v1700
      %v1745 = vpack.c.b16 %v1701, %v1701
      %v1746 = vpack.c.b16 %v1702, %v1702
      %v1747 = vpack.c.b16 %v1703, %v1703
      %v1748 = vpack.c.b16 %v1704, %v1704
      %v1749 = vpack.c.b16 %v1705, %v1705
      %v1750 = vpack.c.b16 %v1706, %v1706
      %v1751 = vpack.c.b16 %v1707, %v1707
      %v1752 = vpack.c.b16 %v1708, %v1708
      %v1753 = vpack.c.b16 %v1709, %v1709
      %v1754 = vpack.c.b16 %v1710, %v1710
      %v1755 = vpack.c.b16 %v1711, %v1711
      %v1756 = vpack.c.b16 %v1712, %v1712
      %v1757 = vpack.c.b16 %v1713, %v1713
      %v1758 = vpack.c.b16 %v1714, %v1714
      %v1759 = vpack.c.b16 %v1715, %v1715
      %v1760 = vpack.c.b16 %v1716, %v1716
      %v1761 = vpack.c.b16 %v1717, %v1717
      %v1762 = vpack.c.b16 %v1718, %v1718
      %v1763 = vpack.c.b16 %v1719, %v1719
      %v1764 = vpack.c.b16 %v1720, %v1720
      %v1765 = vpack.c.b16 %v1721, %v1721
      %v1766 = vpack.c.b16 %v1722, %v1722
      %v1767 = vpack.c.b16 %v1723, %v1723
      %v1768 = vpack.c.b16 %v1724, %v1724
      %v1769 = vpack.c.b16 %v1725, %v1725
      %v1770 = vpack.c.b16 %v1726, %v1726
      %v1771 = vpack.c.b16 %v1727, %v1727
      %v1772 = vpack.c.b16 %v1728, %v1728
      %v1773 = vpack.c.b16 %v1729, %v1729
      %v1774 = vpack.c.b16 %v1730, %v1730
      %v1775 = vpack.c.b16 %v1731, %v1731
      %v1776 = vpack.c.b16 %v1732, %v1732
      %v1777 = vpack.c.b16 %v1733, %v1733
      %v1778 = vpack.c.b16 %v1734, %v1734
      %v1779 = vpack.c.b16 %v1735, %v1735
      %v1780 = vpack.c.b16 %v1736, %v1736
      %v1781 = vpack.c.b16 %v1737, %v1737
      %1826 = vst [vmem:[%s229] sm:$0xf] %v1738
      %1827 = vst [vmem:[%s229 + $0x4] sm:$0xf] %v1739
      %1828 = vst [vmem:[%s229 + $0x8] sm:$0xf] %v1740
      %1829 = vst [vmem:[%s229 + $0xc] sm:$0xf] %v1741
      %1830 = vst [vmem:[%s229 + $0x10] sm:$0xf] %v1742
      %1831 = vst [vmem:[%s229 + $0x14] sm:$0xf] %v1743
      %1832 = vst [vmem:[%s229 + $0x18] sm:$0xf] %v1744
      %1833 = vst [vmem:[%s229 + $0x1c] sm:$0xf] %v1745
      %1834 = vst [vmem:[%s229 + $0x20] sm:$0xf] %v1746
      %1835 = vst [vmem:[%s229 + $0x24] sm:$0xf] %v1747
      %1836 = vst [vmem:[%s229 + $0x28] sm:$0xf] %v1748
      %1837 = vst [vmem:[%s229 + $0x2c] sm:$0xf] %v1749
      %1838 = vst [vmem:[%s229 + $0x30] sm:$0xf] %v1750
      %1839 = vst [vmem:[%s229 + $0x34] sm:$0xf] %v1751
      %1840 = vst [vmem:[%s229 + $0x38] sm:$0xf] %v1752
      %1841 = vst [vmem:[%s229 + $0x3c] sm:$0xf] %v1753
      %1842 = vst [vmem:[%s229 + $0x40] sm:$0xf] %v1754
      %1843 = vst [vmem:[%s229 + $0x44] sm:$0xf] %v1755
      %1844 = vst [vmem:[%s229 + $0x48] sm:$0xf] %v1756
      %1845 = vst [vmem:[%s229 + $0x4c] sm:$0xf] %v1757
      %1846 = vst [vmem:[%s229 + $0x50] sm:$0xf] %v1758
      %1847 = vst [vmem:[%s229 + $0x54] sm:$0xf] %v1759
      %1848 = vst [vmem:[%s229 + $0x58] sm:$0xf] %v1760
      %1849 = vst [vmem:[%s229 + $0x5c] sm:$0xf] %v1761
      %1850 = vst [vmem:[%s229 + $0x60] sm:$0xf] %v1762
      %1851 = vst [vmem:[%s229 + $0x64] sm:$0xf] %v1763
      %1852 = vst [vmem:[%s229 + $0x68] sm:$0xf] %v1764
      %1853 = vst [vmem:[%s229 + $0x6c] sm:$0xf] %v1765
      %1854 = vst [vmem:[%s229 + $0x70] sm:$0xf] %v1766
      %1855 = vst [vmem:[%s229 + $0x74] sm:$0xf] %v1767
      %1856 = vst [vmem:[%s229 + $0x78] sm:$0xf] %v1768
      %1857 = vst [vmem:[%s229 + $0x7c] sm:$0xf] %v1769
      %1858 = vst [vmem:[%s229 + $0x80] sm:$0xf] %v1770
      %1859 = vst [vmem:[%s229 + $0x84] sm:$0xf] %v1771
      %1860 = vst [vmem:[%s229 + $0x88] sm:$0xf] %v1772
      %1861 = vst [vmem:[%s229 + $0x8c] sm:$0xf] %v1773
      %1862 = vst [vmem:[%s229 + $0x90] sm:$0xf] %v1774
      %1863 = vst [vmem:[%s229 + $0x94] sm:$0xf] %v1775
      %1864 = vst [vmem:[%s229 + $0x98] sm:$0xf] %v1776
      %1865 = vst [vmem:[%s229 + $0x9c] sm:$0xf] %v1777
      %1866 = vst [vmem:[%s229 + $0xa0] sm:$0xf] %v1778
      %1867 = vst [vmem:[%s229 + $0xa4] sm:$0xf] %v1779
      %1868 = vst [vmem:[%s229 + $0xa8] sm:$0xf] %v1780
      %1869 = vst [vmem:[%s229 + $0xac] sm:$0xf] %v1781
      %s1870 = smul.u32 44, %s16
      %p1871 = scmp.lt.s32.totalorder %s1870, 87
      %s1872 = scalar_select %p1871, %s1870, 87
      %s1873 = smul.addr %s1872, 4
      %s1874 = scalar_lea.vmem %s5, %s1873
      // Predicated region
      $region41: #{generalized_rcnn_forward.15} parent=39 // pred_check
        %p1875 = pneg %p144
      $region42: #{generalized_rcnn_forward.15} parent=39 // pred_check_branch
        %1877 = sbr.rel (%p1875) target = $region44
      $region43: #{generalized_rcnn_forward.15} parent=39 // pred_region
        %s1878 = smul.u32 44, %s16
      $region44: #{generalized_rcnn_forward.15} parent=39 // pred_fallthru
        _
    $region40: #{generalized_rcnn_forward.15} parent=5 // pred_fallthru
      _
    %p1879 = scmp.le.s32.totalorder 2, %s11
    // Predicated region
    $region45: #{generalized_rcnn_forward.15} parent=5 // pred_check
      %p1880 = pneg %p1879
    $region46: #{generalized_rcnn_forward.15} parent=5 // pred_check_branch
      %1882 = sbr.rel (%p1880) target = $region48
    $region47: #{generalized_rcnn_forward.15} parent=5 // pred_region
      %s1883 = ssub.s32 %s11, 2
      // Predicated region
      $region49: #{generalized_rcnn_forward.15} parent=47 // pred_check
        %p1884 = pneg %p150
      $region50: #{generalized_rcnn_forward.15} parent=47 // pred_check_branch
        %1886 = sbr.rel (%p1884) target = $region52
      $region51: #{generalized_rcnn_forward.15} parent=47 // pred_region
        %s1887 = smul.u32 44, %s17
        %p1888 = scmp.lt.s32.totalorder %s1887, 87
        %s1889 = scalar_select %p1888, %s1887, 87
        %s1890 = smul.addr %s1889, 4
        %s1891 = scalar_lea.vmem %s5, %s1890
      $region52: #{generalized_rcnn_forward.15} parent=47 // pred_fallthru
        _
    $region48: #{generalized_rcnn_forward.15} parent=5 // pred_fallthru
      _
  $region6: #{generalized_rcnn_forward.15} parent=0 // loop_footer
    %s15 = sadd.s32 1, %s11
  $region7: #{generalized_rcnn_forward.15} parent=0 // loop_footer_branch
    %10 = sbr.rel target = $region3
  $region8: #{generalized_rcnn_forward.15} parent=0 // loop_exit
    _

// kernel: generalized_rcnn_forward.16
$region0: #{generalized_rcnn_forward.16}
  #allocation0 [shape = 'u32[]', space=smem, size = 0x4, offset = 0x4, fixed_abs, tag = 'smem constant byte address 0x4 - core index']
  #allocation1 [shape = 'u32[144,128]{1,0:T(1,128)}', space=vmem, size = 0x12000, scoped, tag = 'internal scratch']
  %s0 = inlined_call_operand.vmem [shape: bf16[32,1568], index: 0, kind: input, shape index: {}]
  %s1 = inlined_call_operand.vmem [shape: bf16[1568,128], index: 1, kind: input, shape index: {}]
  %s2 = inlined_call_operand.vmem [shape: f32[1,128], index: 2, kind: input, shape index: {}, may-alias: {2,4,6}]
  %s3 = inlined_call_operand.vmem [shape: bf16[128,128], index: 3, kind: input, shape index: {}]
  %s4 = inlined_call_operand.vmem [shape: f32[1,128], index: 4, kind: input, shape index: {}, may-alias: {2,4,6}]
  %s5 = inlined_call_operand.vmem [shape: bf16[128,128], index: 5, kind: input, shape index: {}]
  %s6 = inlined_call_operand.vmem [shape: f32[1,128], index: 6, kind: input, shape index: {}, may-alias: {2,4,6}]
  %s7 = inlined_call_operand.vmem [shape: f32[32,128], index: 7, kind: output, shape index: {}]
  %s8 = sld [smem:[#allocation0]]
  $region61: #{generalized_rcnn_forward.16} parent=0
    _
  %s10 = ssub.s32 1, %s8
  %s11 = scalar_select 0, %s10, %s8
  loop: start=0, step=1, limit=4
  $region2: #{generalized_rcnn_forward.16} parent=0 // loop_pre_header
    _
  $region3: #{generalized_rcnn_forward.16} parent=0 // loop_header
    %s13 = sphi 0, %s17
    %p14 = scmp.ge.s32.totalorder %s13, 4
    %s23 = sphi 0, %s25
    %s26 = sphi 0, %s23
    %s27 = sphi 0, %s26
    %s43 = sphi 0, %s27
    %s47 = sphi 0, %s47
    %s49 = sphi 0, %s47
    %s50 = sphi 0, %s49
    %s64 = sphi 0, %s50
    %s68 = sphi 0, %s68
    %s70 = sphi 0, %s68
    %s71 = sphi 0, %s70
    %s85 = sphi 0, %s71
    %s89 = sphi 0, %s89
    %s91 = sphi 0, %s89
    %s92 = sphi 0, %s91
    %s106 = sphi 0, %s92
    %s110 = sphi 0, %s110
    %s112 = sphi 0, %s110
    %s113 = sphi 0, %s112
    %s127 = sphi 0, %s113
    %s131 = sphi 0, %s131
    %s133 = sphi 0, %s131
    %s134 = sphi 0, %s133
    %s148 = sphi 0, %s134
    %s152 = sphi 0, %s152
    %s154 = sphi 0, %s152
    %s155 = sphi 0, %s154
    %s169 = sphi 0, %s155
    %s175 = sphi 0, %s177
    %s178 = sphi 0, %s175
    %s179 = sphi 0, %s178
    %s195 = sphi 0, %s179
  $region4: #{generalized_rcnn_forward.16} parent=0 // loop_header_branch
    %16 = sbr.rel (%p14) target = $region8
  $region5: #{generalized_rcnn_forward.16} parent=0 // loop_body
    %s18 = ssub.s32 %s13, 1
    %s19 = ssub.s32 %s13, 2
    %s20 = sadd.s32 %s13, 1
    %s21 = ssub.s32 %s13, %s20
    %p22 = scmp.eq.s32.totalorder %s21, 0
    %s24 = sadd.s32 %s23, 1
    %s25 = scalar_select %p22, %s23, %s24
    %p28 = pneg %p22
    %p29 = scmp.eq.s32.totalorder %s13, 1
    %p30 = por %p28, %p29
    %p31 = scmp.ne.s32.totalorder %s23, %s26
    %p32 = scmp.eq.s32.totalorder %s13, 0
    %p33 = por %p31, %p32
    %p34 = scmp.ne.s32.totalorder %s23, %s26
    %p35 = scmp.eq.s32.totalorder %s18, 1
    %p36 = por %p34, %p35
    %p37 = scmp.ne.s32.totalorder %s26, %s27
    %p38 = scmp.eq.s32.totalorder %s18, 0
    %p39 = por %p37, %p38
    %p40 = scmp.ne.s32.totalorder %s26, %s27
    %p41 = scmp.eq.s32.totalorder %s19, 1
    %p42 = por %p40, %p41
    %p44 = scmp.ne.s32.totalorder %s27, %s43
    %p45 = scmp.eq.s32.totalorder %s19, 0
    %p46 = por %p44, %p45
    %s48 = sadd.s32 %s47, 1
    %p51 = scmp.eq.s32.totalorder %s13, 1
    %p52 = scmp.ne.s32.totalorder %s47, %s49
    %p53 = scmp.eq.s32.totalorder %s13, 0
    %p54 = por %p52, %p53
    %p55 = scmp.ne.s32.totalorder %s47, %s49
    %p56 = scmp.eq.s32.totalorder %s18, 1
    %p57 = por %p55, %p56
    %p58 = scmp.ne.s32.totalorder %s49, %s50
    %p59 = scmp.eq.s32.totalorder %s18, 0
    %p60 = por %p58, %p59
    %p61 = scmp.ne.s32.totalorder %s49, %s50
    %p62 = scmp.eq.s32.totalorder %s19, 1
    %p63 = por %p61, %p62
    %p65 = scmp.ne.s32.totalorder %s50, %s64
    %p66 = scmp.eq.s32.totalorder %s19, 0
    %p67 = por %p65, %p66
    %s69 = sadd.s32 %s68, 1
    %p72 = scmp.eq.s32.totalorder %s13, 1
    %p73 = scmp.ne.s32.totalorder %s68, %s70
    %p74 = scmp.eq.s32.totalorder %s13, 0
    %p75 = por %p73, %p74
    %p76 = scmp.ne.s32.totalorder %s68, %s70
    %p77 = scmp.eq.s32.totalorder %s18, 1
    %p78 = por %p76, %p77
    %p79 = scmp.ne.s32.totalorder %s70, %s71
    %p80 = scmp.eq.s32.totalorder %s18, 0
    %p81 = por %p79, %p80
    %p82 = scmp.ne.s32.totalorder %s70, %s71
    %p83 = scmp.eq.s32.totalorder %s19, 1
    %p84 = por %p82, %p83
    %p86 = scmp.ne.s32.totalorder %s71, %s85
    %p87 = scmp.eq.s32.totalorder %s19, 0
    %p88 = por %p86, %p87
    %s90 = sadd.s32 %s89, 1
    %p93 = scmp.eq.s32.totalorder %s13, 1
    %p94 = scmp.ne.s32.totalorder %s89, %s91
    %p95 = scmp.eq.s32.totalorder %s13, 0
    %p96 = por %p94, %p95
    %p97 = scmp.ne.s32.totalorder %s89, %s91
    %p98 = scmp.eq.s32.totalorder %s18, 1
    %p99 = por %p97, %p98
    %p100 = scmp.ne.s32.totalorder %s91, %s92
    %p101 = scmp.eq.s32.totalorder %s18, 0
    %p102 = por %p100, %p101
    %p103 = scmp.ne.s32.totalorder %s91, %s92
    %p104 = scmp.eq.s32.totalorder %s19, 1
    %p105 = por %p103, %p104
    %p107 = scmp.ne.s32.totalorder %s92, %s106
    %p108 = scmp.eq.s32.totalorder %s19, 0
    %p109 = por %p107, %p108
    %s111 = sadd.s32 %s110, 1
    %p114 = scmp.eq.s32.totalorder %s13, 1
    %p115 = scmp.ne.s32.totalorder %s110, %s112
    %p116 = scmp.eq.s32.totalorder %s13, 0
    %p117 = por %p115, %p116
    %p118 = scmp.ne.s32.totalorder %s110, %s112
    %p119 = scmp.eq.s32.totalorder %s18, 1
    %p120 = por %p118, %p119
    %p121 = scmp.ne.s32.totalorder %s112, %s113
    %p122 = scmp.eq.s32.totalorder %s18, 0
    %p123 = por %p121, %p122
    %p124 = scmp.ne.s32.totalorder %s112, %s113
    %p125 = scmp.eq.s32.totalorder %s19, 1
    %p126 = por %p124, %p125
    %p128 = scmp.ne.s32.totalorder %s113, %s127
    %p129 = scmp.eq.s32.totalorder %s19, 0
    %p130 = por %p128, %p129
    %s132 = sadd.s32 %s131, 1
    %p135 = scmp.eq.s32.totalorder %s13, 1
    %p136 = scmp.ne.s32.totalorder %s131, %s133
    %p137 = scmp.eq.s32.totalorder %s13, 0
    %p138 = por %p136, %p137
    %p139 = scmp.ne.s32.totalorder %s131, %s133
    %p140 = scmp.eq.s32.totalorder %s18, 1
    %p141 = por %p139, %p140
    %p142 = scmp.ne.s32.totalorder %s133, %s134
    %p143 = scmp.eq.s32.totalorder %s18, 0
    %p144 = por %p142, %p143
    %p145 = scmp.ne.s32.totalorder %s133, %s134
    %p146 = scmp.eq.s32.totalorder %s19, 1
    %p147 = por %p145, %p146
    %p149 = scmp.ne.s32.totalorder %s134, %s148
    %p150 = scmp.eq.s32.totalorder %s19, 0
    %p151 = por %p149, %p150
    %s153 = sadd.s32 %s152, 1
    %p156 = scmp.eq.s32.totalorder %s13, 1
    %p157 = scmp.ne.s32.totalorder %s152, %s154
    %p158 = scmp.eq.s32.totalorder %s13, 0
    %p159 = por %p157, %p158
    %p160 = scmp.ne.s32.totalorder %s152, %s154
    %p161 = scmp.eq.s32.totalorder %s18, 1
    %p162 = por %p160, %p161
    %p163 = scmp.ne.s32.totalorder %s154, %s155
    %p164 = scmp.eq.s32.totalorder %s18, 0
    %p165 = por %p163, %p164
    %p166 = scmp.ne.s32.totalorder %s154, %s155
    %p167 = scmp.eq.s32.totalorder %s19, 1
    %p168 = por %p166, %p167
    %p170 = scmp.ne.s32.totalorder %s155, %s169
    %p171 = scmp.eq.s32.totalorder %s19, 0
    %p172 = por %p170, %p171
    %s173 = ssub.s32 %s13, %s20
    %p174 = scmp.eq.s32.totalorder %s173, 0
    %s176 = sadd.s32 %s175, 1
    %s177 = scalar_select %p174, %s175, %s176
    %p180 = pneg %p174
    %p181 = scmp.eq.s32.totalorder %s13, 1
    %p182 = por %p180, %p181
    %p183 = scmp.ne.s32.totalorder %s175, %s178
    %p184 = scmp.eq.s32.totalorder %s13, 0
    %p185 = por %p183, %p184
    %p186 = scmp.ne.s32.totalorder %s175, %s178
    %p187 = scmp.eq.s32.totalorder %s18, 1
    %p188 = por %p186, %p187
    %p189 = scmp.ne.s32.totalorder %s178, %s179
    %p190 = scmp.eq.s32.totalorder %s18, 0
    %p191 = por %p189, %p190
    %p192 = scmp.ne.s32.totalorder %s178, %s179
    %p193 = scmp.eq.s32.totalorder %s19, 1
    %p194 = por %p192, %p193
    %p196 = scmp.ne.s32.totalorder %s179, %s195
    %p197 = scmp.eq.s32.totalorder %s19, 0
    %p198 = por %p196, %p197
    %p199 = scmp.le.s32.totalorder 1, %s13
    %p200 = scmp.lt.s32.totalorder %s13, 3
    %p201 = pnand %p199, %p200
    %p202 = pneg %p201
    // Predicated region
    $region9: #{generalized_rcnn_forward.16} parent=5 // pred_check
      _
    $region10: #{generalized_rcnn_forward.16} parent=5 // pred_check_branch
      %204 = sbr.rel (%p201) target = $region12
    $region11: #{generalized_rcnn_forward.16} parent=5 // pred_region
      %s205 = ssub.s32 %s13, 1
      // Predicated region
      $region13: #{generalized_rcnn_forward.16} parent=11 // pred_check
        %p206 = pneg %p60
      $region14: #{generalized_rcnn_forward.16} parent=11 // pred_check_branch
        %208 = sbr.rel (%p206) target = $region16
      $region15: #{generalized_rcnn_forward.16} parent=11 // pred_region
        _
      $region16: #{generalized_rcnn_forward.16} parent=11 // pred_fallthru
        _
      // Predicated region
      $region17: #{generalized_rcnn_forward.16} parent=11 // pred_check
        %p209 = pneg %p81
      $region18: #{generalized_rcnn_forward.16} parent=11 // pred_check_branch
        %211 = sbr.rel (%p209) target = $region20
      $region19: #{generalized_rcnn_forward.16} parent=11 // pred_region
        _
      $region20: #{generalized_rcnn_forward.16} parent=11 // pred_fallthru
        _
      // Predicated region
      $region21: #{generalized_rcnn_forward.16} parent=11 // pred_check
        %p212 = pneg %p102
      $region22: #{generalized_rcnn_forward.16} parent=11 // pred_check_branch
        %214 = sbr.rel (%p212) target = $region24
      $region23: #{generalized_rcnn_forward.16} parent=11 // pred_region
        _
      $region24: #{generalized_rcnn_forward.16} parent=11 // pred_fallthru
        _
      // Predicated region
      $region25: #{generalized_rcnn_forward.16} parent=11 // pred_check
        %p215 = pneg %p123
      $region26: #{generalized_rcnn_forward.16} parent=11 // pred_check_branch
        %217 = sbr.rel (%p215) target = $region28
      $region27: #{generalized_rcnn_forward.16} parent=11 // pred_region
        _
      $region28: #{generalized_rcnn_forward.16} parent=11 // pred_fallthru
        _
      // Predicated region
      $region29: #{generalized_rcnn_forward.16} parent=11 // pred_check
        %p218 = pneg %p144
      $region30: #{generalized_rcnn_forward.16} parent=11 // pred_check_branch
        %220 = sbr.rel (%p218) target = $region32
      $region31: #{generalized_rcnn_forward.16} parent=11 // pred_region
        _
      $region32: #{generalized_rcnn_forward.16} parent=11 // pred_fallthru
        _
      // Predicated region
      $region33: #{generalized_rcnn_forward.16} parent=11 // pred_check
        %p221 = pneg %p165
      $region34: #{generalized_rcnn_forward.16} parent=11 // pred_check_branch
        %223 = sbr.rel (%p221) target = $region36
      $region35: #{generalized_rcnn_forward.16} parent=11 // pred_region
        _
      $region36: #{generalized_rcnn_forward.16} parent=11 // pred_fallthru
        _
    $region12: #{generalized_rcnn_forward.16} parent=5 // pred_fallthru
      _
    %p224 = scmp.lt.s32.totalorder %s13, 2
    // Predicated region
    $region37: #{generalized_rcnn_forward.16} parent=5 // pred_check
      %p225 = pneg %p224
    $region38: #{generalized_rcnn_forward.16} parent=5 // pred_check_branch
      %227 = sbr.rel (%p225) target = $region40
    $region39: #{generalized_rcnn_forward.16} parent=5 // pred_region
      // Predicated region
      $region41: #{generalized_rcnn_forward.16} parent=39 // pred_check
        %p228 = pneg %p33
      $region42: #{generalized_rcnn_forward.16} parent=39 // pred_check_branch
        %230 = sbr.rel (%p228) target = $region44
      $region43: #{generalized_rcnn_forward.16} parent=39 // pred_region
        %s231 = smul.u32 2, %s13
        %p232 = scmp.lt.s32.totalorder %s231, 3
        %s233 = scalar_select %p232, %s231, 3
        %s234 = smul.addr %s233, 13
        %s235 = smul.addr %s234, 4
        %s236 = scalar_lea.vmem %s0, %s235
        %s237 = smul.u32 2, %s13
      $region44: #{generalized_rcnn_forward.16} parent=39 // pred_fallthru
        _
    $region40: #{generalized_rcnn_forward.16} parent=5 // pred_fallthru
      _
    %p238 = scmp.le.s32.totalorder 1, %s13
    %p239 = scmp.lt.s32.totalorder %s13, 3
    %p240 = pnand %p238, %p239
    %p241 = pneg %p240
    // Predicated region
    $region45: #{generalized_rcnn_forward.16} parent=5 // pred_check
      _
    $region46: #{generalized_rcnn_forward.16} parent=5 // pred_check_branch
      %243 = sbr.rel (%p240) target = $region48
    $region47: #{generalized_rcnn_forward.16} parent=5 // pred_region
      %s244 = ssub.s32 %s13, 1
      %s245 = smul.u32 2, %s18
      %p246 = scmp.lt.s32.totalorder %s245, 3
      %s247 = scalar_select %p246, %s245, 3
      %s248 = smul.addr %s247, 13
      %s249 = smul.addr %s248, 4
      %s250 = scalar_lea.vmem %s0, %s249
      %p251 = pneg %p39
      %p252 = pneg %p36
      %p253 = pneg %p60
      %p254 = pneg %p57
      %p255 = pneg %p81
      %p256 = pneg %p78
      %p257 = pneg %p102
      %p258 = pneg %p99
      %p259 = pneg %p123
      %p260 = pneg %p120
      %p261 = pneg %p144
      %p262 = pneg %p141
      %p263 = pneg %p165
      %p264 = pneg %p162
      %p265 = pneg %p191
      %p266 = pneg %p188
      %s267 = smul.u32 2, %s18
      %p268 = scmp.lt.s32.totalorder %s267, 3
      %s269 = scalar_select %p268, %s267, 3
      %s270 = smul.addr %s269, 8
      %s271 = scalar_lea.vmem %s7, %s270
      %s272 = smul.u32 2, %s18
      %p273 = scmp.lt.s32.totalorder %s272, 3
      %s274 = scalar_select %p273, %s272, 3
      %s275 = smul.addr %s274, 13
      %s276 = smul.addr %s275, 4
      %s277 = scalar_lea.vmem %s0, %s276
      %s278 = smul.u32 2, %s18
      %s279 = smul.u32 2, %s18
      %p280 = scmp.lt.s32.totalorder %s279, 3
      %s281 = scalar_select %p280, %s279, 3
      %s282 = smul.addr %s281, 8
      %s283 = scalar_lea.vmem %s7, %s282
      %s284 = smul.u32 2, %s18
      %v286 = vld [vmem:[%s277] sm:$0xff]
      %v287 = vld [vmem:[%s277 + $0x8] sm:$0xff]
      %v288 = vld [vmem:[%s277 + $0x10] sm:$0xff]
      %v289 = vld [vmem:[%s277 + $0x18] sm:$0xff]
      %v290 = vld [vmem:[%s277 + $0x20] sm:$0xff]
      %v291 = vld [vmem:[%s277 + $0x28] sm:$0xff]
      %v292 = vld [vmem:[%s277 + $0x30] sm:$0xf]
      %v293 = vld [vmem:[%s277 + $0x34] sm:$0xff]
      %v294 = vld [vmem:[%s277 + $0x3c] sm:$0xff]
      %v295 = vld [vmem:[%s277 + $0x44] sm:$0xff]
      %v296 = vld [vmem:[%s277 + $0x4c] sm:$0xff]
      %v297 = vld [vmem:[%s277 + $0x54] sm:$0xff]
      %v298 = vld [vmem:[%s277 + $0x5c] sm:$0xff]
      %v299 = vld [vmem:[%s277 + $0x64] sm:$0xf]
      %v300 = vld [vmem:[%s1] sm:$0xf]
      %v301 = vld [vmem:[%s1 + $0x4] sm:$0xf]
      %v302 = vld [vmem:[%s1 + $0x8] sm:$0xf]
      %v303 = vld [vmem:[%s1 + $0xc] sm:$0xf]
      %v304 = vld [vmem:[%s1 + $0x10] sm:$0xf]
      %v305 = vld [vmem:[%s1 + $0x14] sm:$0xf]
      %v306 = vld [vmem:[%s1 + $0x18] sm:$0xf]
      %v307 = vld [vmem:[%s1 + $0x1c] sm:$0xf]
      %v308 = vld [vmem:[%s1 + $0x20] sm:$0xf]
      %v309 = vld [vmem:[%s1 + $0x24] sm:$0xf]
      %v310 = vld [vmem:[%s1 + $0x28] sm:$0xf]
      %v311 = vld [vmem:[%s1 + $0x2c] sm:$0xf]
      %v312 = vld [vmem:[%s1 + $0x30] sm:$0xf]
      %v313 = vld [vmem:[%s1 + $0x34] sm:$0xf]
      %v314 = vld [vmem:[%s1 + $0x38] sm:$0xf]
      %v315 = vld [vmem:[%s1 + $0x3c] sm:$0xf]
      %v316 = vld [vmem:[%s1 + $0x40] sm:$0xf]
      %v317 = vld [vmem:[%s1 + $0x44] sm:$0xf]
      %v318 = vld [vmem:[%s1 + $0x48] sm:$0xf]
      %v319 = vld [vmem:[%s1 + $0x4c] sm:$0xf]
      %v320 = vld [vmem:[%s1 + $0x50] sm:$0xf]
      %v321 = vld [vmem:[%s1 + $0x54] sm:$0xf]
      %v322 = vld [vmem:[%s1 + $0x58] sm:$0xf]
      %v323 = vld [vmem:[%s1 + $0x5c] sm:$0xf]
      %v324 = vld [vmem:[%s1 + $0x60] sm:$0xf]
      %v325 = vld [vmem:[%s1 + $0x64] sm:$0xf]
      %v326 = vld [vmem:[%s1 + $0x68] sm:$0xf]
      %v327 = vld [vmem:[%s1 + $0x6c] sm:$0xf]
      %v328 = vld [vmem:[%s1 + $0x70] sm:$0xf]
      %v329 = vld [vmem:[%s1 + $0x74] sm:$0xf]
      %v330 = vld [vmem:[%s1 + $0x78] sm:$0xf]
      %v331 = vld [vmem:[%s1 + $0x7c] sm:$0xf]
      %v332 = vld [vmem:[%s1 + $0x80] sm:$0xf]
      %v333 = vld [vmem:[%s1 + $0x84] sm:$0xf]
      %v334 = vld [vmem:[%s1 + $0x88] sm:$0xf]
      %v335 = vld [vmem:[%s1 + $0x8c] sm:$0xf]
      %v336 = vld [vmem:[%s1 + $0x90] sm:$0xf]
      %v337 = vld [vmem:[%s1 + $0x94] sm:$0xf]
      %v338 = vld [vmem:[%s1 + $0x98] sm:$0xf]
      %v339 = vld [vmem:[%s1 + $0x9c] sm:$0xf]
      %v340 = vld [vmem:[%s1 + $0xa0] sm:$0xf]
      %v341 = vld [vmem:[%s1 + $0xa4] sm:$0xf]
      %v342 = vld [vmem:[%s1 + $0xa8] sm:$0xf]
      %v343 = vld [vmem:[%s1 + $0xac] sm:$0xf]
      %v344 = vld [vmem:[%s1 + $0xb0] sm:$0xf]
      %v345 = vld [vmem:[%s1 + $0xb4] sm:$0xf]
      %v346 = vld [vmem:[%s1 + $0xb8] sm:$0xf]
      %v347 = vld [vmem:[%s1 + $0xbc] sm:$0xf]
      %v348 = vld [vmem:[%s1 + $0xc0] sm:$0xf]
      %v349 = vld [vmem:[%s1 + $0xc4] sm:$0xf]
      %v350 = vld [vmem:[%s1 + $0xc8] sm:$0xf]
      %v351 = vld [vmem:[%s1 + $0xcc] sm:$0xf]
      %v352 = vld [vmem:[%s1 + $0xd0] sm:$0xf]
      %v353 = vld [vmem:[%s1 + $0xd4] sm:$0xf]
      %v354 = vld [vmem:[%s1 + $0xd8] sm:$0xf]
      %v355 = vld [vmem:[%s1 + $0xdc] sm:$0xf]
      %v356 = vld [vmem:[%s1 + $0xe0] sm:$0xf]
      %v357 = vld [vmem:[%s1 + $0xe4] sm:$0xf]
      %v358 = vld [vmem:[%s1 + $0xe8] sm:$0xf]
      %v359 = vld [vmem:[%s1 + $0xec] sm:$0xf]
      %v360 = vld [vmem:[%s1 + $0xf0] sm:$0xf]
      %v361 = vld [vmem:[%s1 + $0xf4] sm:$0xf]
      %v362 = vld [vmem:[%s1 + $0xf8] sm:$0xf]
      %v363 = vld [vmem:[%s1 + $0xfc] sm:$0xf]
      %v364 = vld [vmem:[%s1 + $0x100] sm:$0xf]
      %v365 = vld [vmem:[%s1 + $0x104] sm:$0xf]
      %v366 = vld [vmem:[%s1 + $0x108] sm:$0xf]
      %v367 = vld [vmem:[%s1 + $0x10c] sm:$0xf]
      %v368 = vld [vmem:[%s1 + $0x110] sm:$0xf]
      %v369 = vld [vmem:[%s1 + $0x114] sm:$0xf]
      %v370 = vld [vmem:[%s1 + $0x118] sm:$0xf]
      %v371 = vld [vmem:[%s1 + $0x11c] sm:$0xf]
      %v372 = vld [vmem:[%s1 + $0x120] sm:$0xf]
      %v373 = vld [vmem:[%s1 + $0x124] sm:$0xf]
      %v374 = vld [vmem:[%s1 + $0x128] sm:$0xf]
      %v375 = vld [vmem:[%s1 + $0x12c] sm:$0xf]
      %v376 = vld [vmem:[%s1 + $0x130] sm:$0xf]
      %v377 = vld [vmem:[%s1 + $0x134] sm:$0xf]
      %v378 = vld [vmem:[%s1 + $0x138] sm:$0xf]
      %v379 = vld [vmem:[%s1 + $0x13c] sm:$0xf]
      %v380 = vld [vmem:[%s1 + $0x140] sm:$0xf]
      %v381 = vld [vmem:[%s1 + $0x144] sm:$0xf]
      %v382 = vld [vmem:[%s1 + $0x148] sm:$0xf]
      %v383 = vld [vmem:[%s1 + $0x14c] sm:$0xf]
      %v384 = vld [vmem:[%s1 + $0x150] sm:$0xf]
      %v385 = vld [vmem:[%s1 + $0x154] sm:$0xf]
      %v386 = vld [vmem:[%s1 + $0x158] sm:$0xf]
      %v387 = vld [vmem:[%s1 + $0x15c] sm:$0xf]
      %v388 = vld [vmem:[%s1 + $0x160] sm:$0xf]
      %v389 = vld [vmem:[%s1 + $0x164] sm:$0xf]
      %v390 = vld [vmem:[%s1 + $0x168] sm:$0xf]
      %v391 = vld [vmem:[%s1 + $0x16c] sm:$0xf]
      %v392 = vld [vmem:[%s1 + $0x170] sm:$0xf]
      %v393 = vld [vmem:[%s1 + $0x174] sm:$0xf]
      %v394 = vld [vmem:[%s1 + $0x178] sm:$0xf]
      %v395 = vld [vmem:[%s1 + $0x17c] sm:$0xf]
      %v396 = vld [vmem:[%s1 + $0x180] sm:$0xf]
      %v397 = vld [vmem:[%s1 + $0x184] sm:$0xf]
      %v398 = vld [vmem:[%s1 + $0x188] sm:$0xf]
      %v399 = vld [vmem:[%s1 + $0x18c] sm:$0xf]
      %v400 = vld [vmem:[%s1 + $0x190] sm:$0xf]
      %v401 = vld [vmem:[%s1 + $0x194] sm:$0xf]
      %v402 = vld [vmem:[%s1 + $0x198] sm:$0xf]
      %v403 = vld [vmem:[%s1 + $0x19c] sm:$0xf]
      %v404 = vld [vmem:[%s1 + $0x1a0] sm:$0xf]
      %v405 = vld [vmem:[%s1 + $0x1a4] sm:$0xf]
      %v406 = vld [vmem:[%s1 + $0x1a8] sm:$0xf]
      %v407 = vld [vmem:[%s1 + $0x1ac] sm:$0xf]
      %v408 = vld [vmem:[%s1 + $0x1b0] sm:$0xf]
      %v409 = vld [vmem:[%s1 + $0x1b4] sm:$0xf]
      %v410 = vld [vmem:[%s1 + $0x1b8] sm:$0xf]
      %v411 = vld [vmem:[%s1 + $0x1bc] sm:$0xf]
      %v412 = vld [vmem:[%s1 + $0x1c0] sm:$0xf]
      %v413 = vld [vmem:[%s1 + $0x1c4] sm:$0xf]
      %v414 = vld [vmem:[%s1 + $0x1c8] sm:$0xf]
      %v415 = vld [vmem:[%s1 + $0x1cc] sm:$0xf]
      %v416 = vld [vmem:[%s1 + $0x1d0] sm:$0xf]
      %v417 = vld [vmem:[%s1 + $0x1d4] sm:$0xf]
      %v418 = vld [vmem:[%s1 + $0x1d8] sm:$0xf]
      %v419 = vld [vmem:[%s1 + $0x1dc] sm:$0xf]
      %v420 = vld [vmem:[%s1 + $0x1e0] sm:$0xf]
      %v421 = vld [vmem:[%s1 + $0x1e4] sm:$0xf]
      %v422 = vld [vmem:[%s1 + $0x1e8] sm:$0xf]
      %v423 = vld [vmem:[%s1 + $0x1ec] sm:$0xf]
      %v424 = vld [vmem:[%s1 + $0x1f0] sm:$0xf]
      %v425 = vld [vmem:[%s1 + $0x1f4] sm:$0xf]
      %v426 = vld [vmem:[%s1 + $0x1f8] sm:$0xf]
      %v427 = vld [vmem:[%s1 + $0x1fc] sm:$0xf]
      %v428 = vld [vmem:[%s1 + $0x200] sm:$0xf]
      %v429 = vld [vmem:[%s1 + $0x204] sm:$0xf]
      %v430 = vld [vmem:[%s1 + $0x208] sm:$0xf]
      %v431 = vld [vmem:[%s1 + $0x20c] sm:$0xf]
      %v432 = vld [vmem:[%s1 + $0x210] sm:$0xf]
      %v433 = vld [vmem:[%s1 + $0x214] sm:$0xf]
      %v434 = vld [vmem:[%s1 + $0x218] sm:$0xf]
      %v435 = vld [vmem:[%s1 + $0x21c] sm:$0xf]
      %v436 = vld [vmem:[%s1 + $0x220] sm:$0xf]
      %v437 = vld [vmem:[%s1 + $0x224] sm:$0xf]
      %v438 = vld [vmem:[%s1 + $0x228] sm:$0xf]
      %v439 = vld [vmem:[%s1 + $0x22c] sm:$0xf]
      %v440 = vld [vmem:[%s1 + $0x230] sm:$0xf]
      %v441 = vld [vmem:[%s1 + $0x234] sm:$0xf]
      %v442 = vld [vmem:[%s1 + $0x238] sm:$0xf]
      %v443 = vld [vmem:[%s1 + $0x23c] sm:$0xf]
      %v444 = vld [vmem:[%s1 + $0x240] sm:$0xf]
      %v445 = vld [vmem:[%s1 + $0x244] sm:$0xf]
      %v446 = vld [vmem:[%s1 + $0x248] sm:$0xf]
      %v447 = vld [vmem:[%s1 + $0x24c] sm:$0xf]
      %v448 = vld [vmem:[%s1 + $0x250] sm:$0xf]
      %v449 = vld [vmem:[%s1 + $0x254] sm:$0xf]
      %v450 = vld [vmem:[%s1 + $0x258] sm:$0xf]
      %v451 = vld [vmem:[%s1 + $0x25c] sm:$0xf]
      %v452 = vld [vmem:[%s1 + $0x260] sm:$0xf]
      %v453 = vld [vmem:[%s1 + $0x264] sm:$0xf]
      %v454 = vld [vmem:[%s1 + $0x268] sm:$0xf]
      %v455 = vld [vmem:[%s1 + $0x26c] sm:$0xf]
      %v456 = vld [vmem:[%s1 + $0x270] sm:$0xf]
      %v457 = vld [vmem:[%s1 + $0x274] sm:$0xf]
      %v458 = vld [vmem:[%s1 + $0x278] sm:$0xf]
      %v459 = vld [vmem:[%s1 + $0x27c] sm:$0xf]
      %v460 = vld [vmem:[%s1 + $0x280] sm:$0xf]
      %v461 = vld [vmem:[%s1 + $0x284] sm:$0xf]
      %v462 = vld [vmem:[%s1 + $0x288] sm:$0xf]
      %v463 = vld [vmem:[%s1 + $0x28c] sm:$0xf]
      %v464 = vld [vmem:[%s1 + $0x290] sm:$0xf]
      %v465 = vld [vmem:[%s1 + $0x294] sm:$0xf]
      %v466 = vld [vmem:[%s1 + $0x298] sm:$0xf]
      %v467 = vld [vmem:[%s1 + $0x29c] sm:$0xf]
      %v468 = vld [vmem:[%s1 + $0x2a0] sm:$0xf]
      %v469 = vld [vmem:[%s1 + $0x2a4] sm:$0xf]
      %v470 = vld [vmem:[%s1 + $0x2a8] sm:$0xf]
      %v471 = vld [vmem:[%s1 + $0x2ac] sm:$0xf]
      %v472 = vld [vmem:[%s1 + $0x2b0] sm:$0xf]
      %v473 = vld [vmem:[%s1 + $0x2b4] sm:$0xf]
      %v474 = vld [vmem:[%s1 + $0x2b8] sm:$0xf]
      %v475 = vld [vmem:[%s1 + $0x2bc] sm:$0xf]
      %v476 = vld [vmem:[%s1 + $0x2c0] sm:$0xf]
      %v477 = vld [vmem:[%s1 + $0x2c4] sm:$0xf]
      %v478 = vld [vmem:[%s1 + $0x2c8] sm:$0xf]
      %v479 = vld [vmem:[%s1 + $0x2cc] sm:$0xf]
      %v480 = vld [vmem:[%s1 + $0x2d0] sm:$0xf]
      %v481 = vld [vmem:[%s1 + $0x2d4] sm:$0xf]
      %v482 = vld [vmem:[%s1 + $0x2d8] sm:$0xf]
      %v483 = vld [vmem:[%s1 + $0x2dc] sm:$0xf]
      %v484 = vld [vmem:[%s1 + $0x2e0] sm:$0xf]
      %v485 = vld [vmem:[%s1 + $0x2e4] sm:$0xf]
      %v486 = vld [vmem:[%s1 + $0x2e8] sm:$0xf]
      %v487 = vld [vmem:[%s1 + $0x2ec] sm:$0xf]
      %v488 = vld [vmem:[%s1 + $0x2f0] sm:$0xf]
      %v489 = vld [vmem:[%s1 + $0x2f4] sm:$0xf]
      %v490 = vld [vmem:[%s1 + $0x2f8] sm:$0xf]
      %v491 = vld [vmem:[%s1 + $0x2fc] sm:$0xf]
      %v492 = vld [vmem:[%s1 + $0x300] sm:$0xf]
      %v493 = vld [vmem:[%s1 + $0x304] sm:$0xf]
      %v494 = vld [vmem:[%s1 + $0x308] sm:$0xf]
      %v495 = vld [vmem:[%s1 + $0x30c] sm:$0xf]
      %v496 = vld [vmem:[%s2] sm:$0x1]
      %v498 = vlaneseq
      %v499 = vshrl.u32 %v498, 7
      %v500 = vsub.s32 0, %v499
      %v501 = vrot.slane %v496, %v500
      %v517 = vunpack.c.l.b16 %v286
      %v518 = vunpack.c.h.b16 %v286
      %v519 = vunpack.c.l.b16 %v287
      %v520 = vunpack.c.h.b16 %v287
      %v521 = vunpack.c.l.b16 %v288
      %v522 = vunpack.c.h.b16 %v288
      %v523 = vunpack.c.l.b16 %v289
      %v524 = vunpack.c.h.b16 %v289
      %v525 = vunpack.c.l.b16 %v290
      %v526 = vunpack.c.h.b16 %v290
      %v527 = vunpack.c.l.b16 %v291
      %v528 = vunpack.c.h.b16 %v291
      %v529 = vunpack.c.l.b16 %v292
      %v530 = vunpack.c.l.b16 %v293
      %v531 = vunpack.c.h.b16 %v293
      %v532 = vunpack.c.l.b16 %v294
      %v533 = vunpack.c.h.b16 %v294
      %v534 = vunpack.c.l.b16 %v295
      %v535 = vunpack.c.h.b16 %v295
      %v536 = vunpack.c.l.b16 %v296
      %v537 = vunpack.c.h.b16 %v296
      %v538 = vunpack.c.l.b16 %v297
      %v539 = vunpack.c.h.b16 %v297
      %v540 = vunpack.c.l.b16 %v298
      %v541 = vunpack.c.h.b16 %v298
      %v542 = vunpack.c.l.b16 %v299
      %v543 = vpack.c.b16 %v530, %v517
      %v544 = vpack.c.b16 %v531, %v518
      %v545 = vpack.c.b16 %v532, %v519
      %v546 = vpack.c.b16 %v533, %v520
      %v547 = vpack.c.b16 %v534, %v521
      %v548 = vpack.c.b16 %v535, %v522
      %v549 = vpack.c.b16 %v536, %v523
      %v550 = vpack.c.b16 %v537, %v524
      %v551 = vpack.c.b16 %v538, %v525
      %v552 = vpack.c.b16 %v539, %v526
      %v553 = vpack.c.b16 %v540, %v527
      %v554 = vpack.c.b16 %v541, %v528
      %v555 = vpack.c.b16 %v542, %v529
      %v764 = vunpack.c.l.b16 %v300
      %v765 = vunpack.c.l.b16 %v301
      %v766 = vunpack.c.l.b16 %v302
      %v767 = vunpack.c.l.b16 %v303
      %v768 = vunpack.c.l.b16 %v304
      %v769 = vunpack.c.l.b16 %v305
      %v770 = vunpack.c.l.b16 %v306
      %v771 = vunpack.c.l.b16 %v307
      %v772 = vunpack.c.l.b16 %v308
      %v773 = vunpack.c.l.b16 %v309
      %v774 = vunpack.c.l.b16 %v310
      %v775 = vunpack.c.l.b16 %v311
      %v776 = vunpack.c.l.b16 %v312
      %v777 = vunpack.c.l.b16 %v313
      %v778 = vunpack.c.l.b16 %v314
      %v779 = vunpack.c.l.b16 %v315
      %v780 = vunpack.c.l.b16 %v316
      %v781 = vunpack.c.l.b16 %v317
      %v782 = vunpack.c.l.b16 %v318
      %v783 = vunpack.c.l.b16 %v319
      %v784 = vunpack.c.l.b16 %v320
      %v785 = vunpack.c.l.b16 %v321
      %v786 = vunpack.c.l.b16 %v322
      %v787 = vunpack.c.l.b16 %v323
      %v788 = vunpack.c.l.b16 %v324
      %v789 = vunpack.c.l.b16 %v325
      %v790 = vunpack.c.l.b16 %v326
      %v791 = vunpack.c.l.b16 %v327
      %v792 = vunpack.c.l.b16 %v328
      %v793 = vunpack.c.l.b16 %v329
      %v794 = vunpack.c.l.b16 %v330
      %v795 = vunpack.c.l.b16 %v331
      %v796 = vunpack.c.l.b16 %v332
      %v797 = vunpack.c.l.b16 %v333
      %v798 = vunpack.c.l.b16 %v334
      %v799 = vunpack.c.l.b16 %v335
      %v800 = vunpack.c.l.b16 %v336
      %v801 = vunpack.c.l.b16 %v337
      %v802 = vunpack.c.l.b16 %v338
      %v803 = vunpack.c.l.b16 %v339
      %v804 = vunpack.c.l.b16 %v340
      %v805 = vunpack.c.l.b16 %v341
      %v806 = vunpack.c.l.b16 %v342
      %v807 = vunpack.c.l.b16 %v343
      %v808 = vunpack.c.l.b16 %v344
      %v809 = vunpack.c.l.b16 %v345
      %v810 = vunpack.c.l.b16 %v346
      %v811 = vunpack.c.l.b16 %v347
      %v812 = vunpack.c.l.b16 %v348
      %v813 = vunpack.c.l.b16 %v349
      %v814 = vunpack.c.l.b16 %v350
      %v815 = vunpack.c.l.b16 %v351
      %v816 = vunpack.c.l.b16 %v352
      %v817 = vunpack.c.l.b16 %v353
      %v818 = vunpack.c.l.b16 %v354
      %v819 = vunpack.c.l.b16 %v355
      %v820 = vunpack.c.l.b16 %v356
      %v821 = vunpack.c.l.b16 %v357
      %v822 = vunpack.c.l.b16 %v358
      %v823 = vunpack.c.l.b16 %v359
      %v824 = vunpack.c.l.b16 %v360
      %v825 = vunpack.c.l.b16 %v361
      %v826 = vunpack.c.l.b16 %v362
      %v827 = vunpack.c.l.b16 %v363
      %v828 = vunpack.c.l.b16 %v364
      %v829 = vunpack.c.l.b16 %v365
      %v830 = vunpack.c.l.b16 %v366
      %v831 = vunpack.c.l.b16 %v367
      %v832 = vunpack.c.l.b16 %v368
      %v833 = vunpack.c.l.b16 %v369
      %v834 = vunpack.c.l.b16 %v370
      %v835 = vunpack.c.l.b16 %v371
      %v836 = vunpack.c.l.b16 %v372
      %v837 = vunpack.c.l.b16 %v373
      %v838 = vunpack.c.l.b16 %v374
      %v839 = vunpack.c.l.b16 %v375
      %v840 = vunpack.c.l.b16 %v376
      %v841 = vunpack.c.l.b16 %v377
      %v842 = vunpack.c.l.b16 %v378
      %v843 = vunpack.c.l.b16 %v379
      %v844 = vunpack.c.l.b16 %v380
      %v845 = vunpack.c.l.b16 %v381
      %v846 = vunpack.c.l.b16 %v382
      %v847 = vunpack.c.l.b16 %v383
      %v848 = vunpack.c.l.b16 %v384
      %v849 = vunpack.c.l.b16 %v385
      %v850 = vunpack.c.l.b16 %v386
      %v851 = vunpack.c.l.b16 %v387
      %v852 = vunpack.c.l.b16 %v388
      %v853 = vunpack.c.l.b16 %v389
      %v854 = vunpack.c.l.b16 %v390
      %v855 = vunpack.c.l.b16 %v391
      %v856 = vunpack.c.l.b16 %v392
      %v857 = vunpack.c.l.b16 %v393
      %v858 = vunpack.c.l.b16 %v394
      %v859 = vunpack.c.l.b16 %v395
      %v860 = vunpack.c.l.b16 %v396
      %v861 = vunpack.c.l.b16 %v397
      %v862 = vunpack.c.l.b16 %v398
      %v863 = vunpack.c.l.b16 %v399
      %v864 = vunpack.c.l.b16 %v400
      %v865 = vunpack.c.l.b16 %v401
      %v866 = vunpack.c.l.b16 %v402
      %v867 = vunpack.c.l.b16 %v403
      %v868 = vunpack.c.l.b16 %v404
      %v869 = vunpack.c.l.b16 %v405
      %v870 = vunpack.c.l.b16 %v406
      %v871 = vunpack.c.l.b16 %v407
      %v872 = vunpack.c.l.b16 %v408
      %v873 = vunpack.c.l.b16 %v409
      %v874 = vunpack.c.l.b16 %v410
      %v875 = vunpack.c.l.b16 %v411
      %v876 = vunpack.c.l.b16 %v412
      %v877 = vunpack.c.l.b16 %v413
      %v878 = vunpack.c.l.b16 %v414
      %v879 = vunpack.c.l.b16 %v415
      %v880 = vunpack.c.l.b16 %v416
      %v881 = vunpack.c.l.b16 %v417
      %v882 = vunpack.c.l.b16 %v418
      %v883 = vunpack.c.l.b16 %v419
      %v884 = vunpack.c.l.b16 %v420
      %v885 = vunpack.c.l.b16 %v421
      %v886 = vunpack.c.l.b16 %v422
      %v887 = vunpack.c.l.b16 %v423
      %v888 = vunpack.c.l.b16 %v424
      %v889 = vunpack.c.l.b16 %v425
      %v890 = vunpack.c.l.b16 %v426
      %v891 = vunpack.c.l.b16 %v427
      %v892 = vunpack.c.l.b16 %v428
      %v893 = vunpack.c.l.b16 %v429
      %v894 = vunpack.c.l.b16 %v430
      %v895 = vunpack.c.l.b16 %v431
      %v896 = vunpack.c.l.b16 %v432
      %v897 = vunpack.c.l.b16 %v433
      %v898 = vunpack.c.l.b16 %v434
      %v899 = vunpack.c.l.b16 %v435
      %v900 = vunpack.c.l.b16 %v436
      %v901 = vunpack.c.l.b16 %v437
      %v902 = vunpack.c.l.b16 %v438
      %v903 = vunpack.c.l.b16 %v439
      %v904 = vunpack.c.l.b16 %v440
      %v905 = vunpack.c.l.b16 %v441
      %v906 = vunpack.c.l.b16 %v442
      %v907 = vunpack.c.l.b16 %v443
      %v908 = vunpack.c.l.b16 %v444
      %v909 = vunpack.c.l.b16 %v445
      %v910 = vunpack.c.l.b16 %v446
      %v911 = vunpack.c.l.b16 %v447
      %v912 = vunpack.c.l.b16 %v448
      %v913 = vunpack.c.l.b16 %v449
      %v914 = vunpack.c.l.b16 %v450
      %v915 = vunpack.c.l.b16 %v451
      %v916 = vunpack.c.l.b16 %v452
      %v917 = vunpack.c.l.b16 %v453
      %v918 = vunpack.c.l.b16 %v454
      %v919 = vunpack.c.l.b16 %v455
      %v920 = vunpack.c.l.b16 %v456
      %v921 = vunpack.c.l.b16 %v457
      %v922 = vunpack.c.l.b16 %v458
      %v923 = vunpack.c.l.b16 %v459
      %v924 = vunpack.c.l.b16 %v460
      %v925 = vunpack.c.l.b16 %v461
      %v926 = vunpack.c.l.b16 %v462
      %v927 = vunpack.c.l.b16 %v463
      %v928 = vunpack.c.l.b16 %v464
      %v929 = vunpack.c.l.b16 %v465
      %v930 = vunpack.c.l.b16 %v466
      %v931 = vunpack.c.l.b16 %v467
      %v932 = vunpack.c.l.b16 %v468
      %v933 = vunpack.c.l.b16 %v469
      %v934 = vunpack.c.l.b16 %v470
      %v935 = vunpack.c.l.b16 %v471
      %v936 = vunpack.c.l.b16 %v472
      %v937 = vunpack.c.l.b16 %v473
      %v938 = vunpack.c.l.b16 %v474
      %v939 = vunpack.c.l.b16 %v475
      %v940 = vunpack.c.l.b16 %v476
      %v941 = vunpack.c.l.b16 %v477
      %v942 = vunpack.c.l.b16 %v478
      %v943 = vunpack.c.l.b16 %v479
      %v944 = vunpack.c.l.b16 %v480
      %v945 = vunpack.c.l.b16 %v481
      %v946 = vunpack.c.l.b16 %v482
      %v947 = vunpack.c.l.b16 %v483
      %v948 = vunpack.c.l.b16 %v484
      %v949 = vunpack.c.l.b16 %v485
      %v950 = vunpack.c.l.b16 %v486
      %v951 = vunpack.c.l.b16 %v487
      %v952 = vunpack.c.l.b16 %v488
      %v953 = vunpack.c.l.b16 %v489
      %v954 = vunpack.c.l.b16 %v490
      %v955 = vunpack.c.l.b16 %v491
      %v956 = vunpack.c.l.b16 %v492
      %v957 = vunpack.c.l.b16 %v493
      %v958 = vunpack.c.l.b16 %v494
      %v959 = vunpack.c.l.b16 %v495
      %v960 = vpack.c.b16 %v765, %v764
      %v961 = vpack.c.b16 %v767, %v766
      %v962 = vpack.c.b16 %v769, %v768
      %v963 = vpack.c.b16 %v771, %v770
      %v964 = vpack.c.b16 %v773, %v772
      %v965 = vpack.c.b16 %v775, %v774
      %v966 = vpack.c.b16 %v777, %v776
      %v967 = vpack.c.b16 %v779, %v778
      %v968 = vpack.c.b16 %v781, %v780
      %v969 = vpack.c.b16 %v783, %v782
      %v970 = vpack.c.b16 %v785, %v784
      %v971 = vpack.c.b16 %v787, %v786
      %v972 = vpack.c.b16 %v789, %v788
      %v973 = vpack.c.b16 %v791, %v790
      %v974 = vpack.c.b16 %v793, %v792
      %v975 = vpack.c.b16 %v795, %v794
      %v976 = vpack.c.b16 %v797, %v796
      %v977 = vpack.c.b16 %v799, %v798
      %v978 = vpack.c.b16 %v801, %v800
      %v979 = vpack.c.b16 %v803, %v802
      %v980 = vpack.c.b16 %v805, %v804
      %v981 = vpack.c.b16 %v807, %v806
      %v982 = vpack.c.b16 %v809, %v808
      %v983 = vpack.c.b16 %v811, %v810
      %v984 = vpack.c.b16 %v813, %v812
      %v985 = vpack.c.b16 %v815, %v814
      %v986 = vpack.c.b16 %v817, %v816
      %v987 = vpack.c.b16 %v819, %v818
      %v988 = vpack.c.b16 %v821, %v820
      %v989 = vpack.c.b16 %v823, %v822
      %v990 = vpack.c.b16 %v825, %v824
      %v991 = vpack.c.b16 %v827, %v826
      %v992 = vpack.c.b16 %v829, %v828
      %v993 = vpack.c.b16 %v831, %v830
      %v994 = vpack.c.b16 %v833, %v832
      %v995 = vpack.c.b16 %v835, %v834
      %v996 = vpack.c.b16 %v837, %v836
      %v997 = vpack.c.b16 %v839, %v838
      %v998 = vpack.c.b16 %v841, %v840
      %v999 = vpack.c.b16 %v843, %v842
      %v1000 = vpack.c.b16 %v845, %v844
      %v1001 = vpack.c.b16 %v847, %v846
      %v1002 = vpack.c.b16 %v849, %v848
      %v1003 = vpack.c.b16 %v851, %v850
      %v1004 = vpack.c.b16 %v853, %v852
      %v1005 = vpack.c.b16 %v855, %v854
      %v1006 = vpack.c.b16 %v857, %v856
      %v1007 = vpack.c.b16 %v859, %v858
      %v1008 = vpack.c.b16 %v861, %v860
      %v1009 = vpack.c.b16 %v863, %v862
      %v1010 = vpack.c.b16 %v865, %v864
      %v1011 = vpack.c.b16 %v867, %v866
      %v1012 = vpack.c.b16 %v869, %v868
      %v1013 = vpack.c.b16 %v871, %v870
      %v1014 = vpack.c.b16 %v873, %v872
      %v1015 = vpack.c.b16 %v875, %v874
      %v1016 = vpack.c.b16 %v877, %v876
      %v1017 = vpack.c.b16 %v879, %v878
      %v1018 = vpack.c.b16 %v881, %v880
      %v1019 = vpack.c.b16 %v883, %v882
      %v1020 = vpack.c.b16 %v885, %v884
      %v1021 = vpack.c.b16 %v887, %v886
      %v1022 = vpack.c.b16 %v889, %v888
      %v1023 = vpack.c.b16 %v891, %v890
      %v1024 = vpack.c.b16 %v893, %v892
      %v1025 = vpack.c.b16 %v895, %v894
      %v1026 = vpack.c.b16 %v897, %v896
      %v1027 = vpack.c.b16 %v899, %v898
      %v1028 = vpack.c.b16 %v901, %v900
      %v1029 = vpack.c.b16 %v903, %v902
      %v1030 = vpack.c.b16 %v905, %v904
      %v1031 = vpack.c.b16 %v907, %v906
      %v1032 = vpack.c.b16 %v909, %v908
      %v1033 = vpack.c.b16 %v911, %v910
      %v1034 = vpack.c.b16 %v913, %v912
      %v1035 = vpack.c.b16 %v915, %v914
      %v1036 = vpack.c.b16 %v917, %v916
      %v1037 = vpack.c.b16 %v919, %v918
      %v1038 = vpack.c.b16 %v921, %v920
      %v1039 = vpack.c.b16 %v923, %v922
      %v1040 = vpack.c.b16 %v925, %v924
      %v1041 = vpack.c.b16 %v927, %v926
      %v1042 = vpack.c.b16 %v929, %v928
      %v1043 = vpack.c.b16 %v931, %v930
      %v1044 = vpack.c.b16 %v933, %v932
      %v1045 = vpack.c.b16 %v935, %v934
      %v1046 = vpack.c.b16 %v937, %v936
      %v1047 = vpack.c.b16 %v939, %v938
      %v1048 = vpack.c.b16 %v941, %v940
      %v1049 = vpack.c.b16 %v943, %v942
      %v1050 = vpack.c.b16 %v945, %v944
      %v1051 = vpack.c.b16 %v947, %v946
      %v1052 = vpack.c.b16 %v949, %v948
      %v1053 = vpack.c.b16 %v951, %v950
      %v1054 = vpack.c.b16 %v953, %v952
      %v1055 = vpack.c.b16 %v955, %v954
      %v1056 = vpack.c.b16 %v957, %v956
      %v1057 = vpack.c.b16 %v959, %v958
      %vm1156 = vcmask 261120
      %v1158 = vsel %vm1156, %v555, 0
      %1160 = vmatprep.subr.bf16.mxu0 0
      %1161 = vmatpush1.bf16.msra.mxu0 %v967
      %1162 = vmatprep.subr.bf16.mxu0 0
      %1163 = vmatpush1.bf16.msra.mxu0 %v966
      %1164 = vmatprep.subr.bf16.mxu0 0
      %1165 = vmatpush1.bf16.msra.mxu0 %v965
      %1166 = vmatprep.subr.bf16.mxu0 0
      %1167 = vmatpush1.bf16.msra.mxu0 %v964
      %1168 = vmatprep.subr.bf16.mxu0 0
      %1169 = vmatpush1.bf16.msra.mxu0 %v963
      %1170 = vmatprep.subr.bf16.mxu0 0
      %1171 = vmatpush1.bf16.msra.mxu0 %v962
      %1172 = vmatprep.subr.bf16.mxu0 0
      %1173 = vmatpush1.bf16.msra.mxu0 %v961
      %1174 = vmatprep.subr.bf16.mxu0 0
      %1175 = vmatpush1.bf16.msra.mxu0 %v960
      %1176 = vmatprep.subr.bf16.mxu0 0
      %1177 = vmatpush2.bf16.msra.mxu0 %v975
      %1178 = vmatprep.subr.bf16.mxu0 0
      %1179 = vmatpush2.bf16.msra.mxu0 %v974
      %1180 = vmatprep.subr.bf16.mxu0 0
      %1181 = vmatpush2.bf16.msra.mxu0 %v973
      %1182 = vmatprep.subr.bf16.mxu0 0
      %1183 = vmatpush2.bf16.msra.mxu0 %v972
      %1184 = vmatprep.subr.bf16.mxu0 0
      %1185 = vmatpush2.bf16.msra.mxu0 %v971
      %1186 = vmatprep.subr.bf16.mxu0 0
      %1187 = vmatpush2.bf16.msra.mxu0 %v970
      %1188 = vmatprep.subr.bf16.mxu0 0
      %1189 = vmatpush2.bf16.msra.mxu0 %v969
      %1190 = vmatprep.subr.bf16.mxu0 0
      %1191 = vmatpush2.bf16.msra.mxu0 %v968
      %1192 = vmatprep.mubr.bf16.mxu0 %v544
      %1193 = vmatmul.mubr.bf16.gmra.mxu0 %v543
      %v1194 = vpop.f32.mrf.mxu0
      %v1195 = vadd.f32 %v501, %v1194
      %v1196 = vpop.f32.mrf.mxu0
      %v1197 = vpop.f32.mrf.mxu0
      %v1198 = vadd.f32 %v501, %v1197
      %v1199 = vpop.f32.mrf.mxu0
      %1200 = vdwg.mxu0
      %1201 = vmatprep.subr.bf16.mxu0 0
      %1202 = vmatpush1.bf16.msra.mxu0 %v983
      %1203 = vmatprep.subr.bf16.mxu0 0
      %1204 = vmatpush1.bf16.msra.mxu0 %v982
      %1205 = vmatprep.subr.bf16.mxu0 0
      %1206 = vmatpush1.bf16.msra.mxu0 %v981
      %1207 = vmatprep.subr.bf16.mxu0 0
      %1208 = vmatpush1.bf16.msra.mxu0 %v980
      %1209 = vmatprep.subr.bf16.mxu0 0
      %1210 = vmatpush1.bf16.msra.mxu0 %v979
      %1211 = vmatprep.subr.bf16.mxu0 0
      %1212 = vmatpush1.bf16.msra.mxu0 %v978
      %1213 = vmatprep.subr.bf16.mxu0 0
      %1214 = vmatpush1.bf16.msra.mxu0 %v977
      %1215 = vmatprep.subr.bf16.mxu0 0
      %1216 = vmatpush1.bf16.msra.mxu0 %v976
      %1217 = vmatprep.subr.bf16.mxu0 0
      %1218 = vmatpush2.bf16.msra.mxu0 %v991
      %1219 = vmatprep.subr.bf16.mxu0 0
      %1220 = vmatpush2.bf16.msra.mxu0 %v990
      %1221 = vmatprep.subr.bf16.mxu0 0
      %1222 = vmatpush2.bf16.msra.mxu0 %v989
      %1223 = vmatprep.subr.bf16.mxu0 0
      %1224 = vmatpush2.bf16.msra.mxu0 %v988
      %1225 = vmatprep.subr.bf16.mxu0 0
      %1226 = vmatpush2.bf16.msra.mxu0 %v987
      %1227 = vmatprep.subr.bf16.mxu0 0
      %1228 = vmatpush2.bf16.msra.mxu0 %v986
      %1229 = vmatprep.subr.bf16.mxu0 0
      %1230 = vmatpush2.bf16.msra.mxu0 %v985
      %1231 = vmatprep.subr.bf16.mxu0 0
      %1232 = vmatpush2.bf16.msra.mxu0 %v984
      %1233 = vmatprep.mubr.bf16.mxu0 %v546
      %1234 = vmatmul.mubr.bf16.gmra.mxu0 %v545
      %v1235 = vpop.f32.mrf.mxu0
      %v1236 = vadd.f32 %v1195, %v1235
      %v1237 = vpop.f32.mrf.mxu0
      %v1238 = vpop.f32.mrf.mxu0
      %v1239 = vadd.f32 %v1198, %v1238
      %v1240 = vpop.f32.mrf.mxu0
      %1241 = vdwg.mxu0
      %1242 = vmatprep.subr.bf16.mxu0 0
      %1243 = vmatpush1.bf16.msra.mxu0 %v999
      %1244 = vmatprep.subr.bf16.mxu0 0
      %1245 = vmatpush1.bf16.msra.mxu0 %v998
      %1246 = vmatprep.subr.bf16.mxu0 0
      %1247 = vmatpush1.bf16.msra.mxu0 %v997
      %1248 = vmatprep.subr.bf16.mxu0 0
      %1249 = vmatpush1.bf16.msra.mxu0 %v996
      %1250 = vmatprep.subr.bf16.mxu0 0
      %1251 = vmatpush1.bf16.msra.mxu0 %v995
      %1252 = vmatprep.subr.bf16.mxu0 0
      %1253 = vmatpush1.bf16.msra.mxu0 %v994
      %1254 = vmatprep.subr.bf16.mxu0 0
      %1255 = vmatpush1.bf16.msra.mxu0 %v993
      %1256 = vmatprep.subr.bf16.mxu0 0
      %1257 = vmatpush1.bf16.msra.mxu0 %v992
      %1258 = vmatprep.subr.bf16.mxu0 0
      %1259 = vmatpush2.bf16.msra.mxu0 %v1007
      %1260 = vmatprep.subr.bf16.mxu0 0
      %1261 = vmatpush2.bf16.msra.mxu0 %v1006
      %1262 = vmatprep.subr.bf16.mxu0 0
      %1263 = vmatpush2.bf16.msra.mxu0 %v1005
      %1264 = vmatprep.subr.bf16.mxu0 0
      %1265 = vmatpush2.bf16.msra.mxu0 %v1004
      %1266 = vmatprep.subr.bf16.mxu0 0
      %1267 = vmatpush2.bf16.msra.mxu0 %v1003
      %1268 = vmatprep.subr.bf16.mxu0 0
      %1269 = vmatpush2.bf16.msra.mxu0 %v1002
      %1270 = vmatprep.subr.bf16.mxu0 0
      %1271 = vmatpush2.bf16.msra.mxu0 %v1001
      %1272 = vmatprep.subr.bf16.mxu0 0
      %1273 = vmatpush2.bf16.msra.mxu0 %v1000
      %1274 = vmatprep.mubr.bf16.mxu0 %v548
      %1275 = vmatmul.mubr.bf16.gmra.mxu0 %v547
      %v1276 = vpop.f32.mrf.mxu0
      %v1277 = vadd.f32 %v1236, %v1276
      %v1278 = vpop.f32.mrf.mxu0
      %v1279 = vpop.f32.mrf.mxu0
      %v1280 = vadd.f32 %v1239, %v1279
      %v1281 = vpop.f32.mrf.mxu0
      %1282 = vdwg.mxu0
      %1283 = vmatprep.subr.bf16.mxu0 0
      %1284 = vmatpush1.bf16.msra.mxu0 %v1015
      %1285 = vmatprep.subr.bf16.mxu0 0
      %1286 = vmatpush1.bf16.msra.mxu0 %v1014
      %1287 = vmatprep.subr.bf16.mxu0 0
      %1288 = vmatpush1.bf16.msra.mxu0 %v1013
      %1289 = vmatprep.subr.bf16.mxu0 0
      %1290 = vmatpush1.bf16.msra.mxu0 %v1012
      %1291 = vmatprep.subr.bf16.mxu0 0
      %1292 = vmatpush1.bf16.msra.mxu0 %v1011
      %1293 = vmatprep.subr.bf16.mxu0 0
      %1294 = vmatpush1.bf16.msra.mxu0 %v1010
      %1295 = vmatprep.subr.bf16.mxu0 0
      %1296 = vmatpush1.bf16.msra.mxu0 %v1009
      %1297 = vmatprep.subr.bf16.mxu0 0
      %1298 = vmatpush1.bf16.msra.mxu0 %v1008
      %1299 = vmatprep.subr.bf16.mxu0 0
      %1300 = vmatpush2.bf16.msra.mxu0 %v1023
      %1301 = vmatprep.subr.bf16.mxu0 0
      %1302 = vmatpush2.bf16.msra.mxu0 %v1022
      %1303 = vmatprep.subr.bf16.mxu0 0
      %1304 = vmatpush2.bf16.msra.mxu0 %v1021
      %1305 = vmatprep.subr.bf16.mxu0 0
      %1306 = vmatpush2.bf16.msra.mxu0 %v1020
      %1307 = vmatprep.subr.bf16.mxu0 0
      %1308 = vmatpush2.bf16.msra.mxu0 %v1019
      %1309 = vmatprep.subr.bf16.mxu0 0
      %1310 = vmatpush2.bf16.msra.mxu0 %v1018
      %1311 = vmatprep.subr.bf16.mxu0 0
      %1312 = vmatpush2.bf16.msra.mxu0 %v1017
      %1313 = vmatprep.subr.bf16.mxu0 0
      %1314 = vmatpush2.bf16.msra.mxu0 %v1016
      %1315 = vmatprep.mubr.bf16.mxu0 %v550
      %1316 = vmatmul.mubr.bf16.gmra.mxu0 %v549
      %v1317 = vpop.f32.mrf.mxu0
      %v1318 = vadd.f32 %v1277, %v1317
      %v1319 = vpop.f32.mrf.mxu0
      %v1320 = vpop.f32.mrf.mxu0
      %v1321 = vadd.f32 %v1280, %v1320
      %v1322 = vpop.f32.mrf.mxu0
      %1323 = vdwg.mxu0
      %1324 = vmatprep.subr.bf16.mxu0 0
      %1325 = vmatpush1.bf16.msra.mxu0 %v1031
      %1326 = vmatprep.subr.bf16.mxu0 0
      %1327 = vmatpush1.bf16.msra.mxu0 %v1030
      %1328 = vmatprep.subr.bf16.mxu0 0
      %1329 = vmatpush1.bf16.msra.mxu0 %v1029
      %1330 = vmatprep.subr.bf16.mxu0 0
      %1331 = vmatpush1.bf16.msra.mxu0 %v1028
      %1332 = vmatprep.subr.bf16.mxu0 0
      %1333 = vmatpush1.bf16.msra.mxu0 %v1027
      %1334 = vmatprep.subr.bf16.mxu0 0
      %1335 = vmatpush1.bf16.msra.mxu0 %v1026
      %1336 = vmatprep.subr.bf16.mxu0 0
      %1337 = vmatpush1.bf16.msra.mxu0 %v1025
      %1338 = vmatprep.subr.bf16.mxu0 0
      %1339 = vmatpush1.bf16.msra.mxu0 %v1024
      %1340 = vmatprep.subr.bf16.mxu0 0
      %1341 = vmatpush2.bf16.msra.mxu0 %v1039
      %1342 = vmatprep.subr.bf16.mxu0 0
      %1343 = vmatpush2.bf16.msra.mxu0 %v1038
      %1344 = vmatprep.subr.bf16.mxu0 0
      %1345 = vmatpush2.bf16.msra.mxu0 %v1037
      %1346 = vmatprep.subr.bf16.mxu0 0
      %1347 = vmatpush2.bf16.msra.mxu0 %v1036
      %1348 = vmatprep.subr.bf16.mxu0 0
      %1349 = vmatpush2.bf16.msra.mxu0 %v1035
      %1350 = vmatprep.subr.bf16.mxu0 0
      %1351 = vmatpush2.bf16.msra.mxu0 %v1034
      %1352 = vmatprep.subr.bf16.mxu0 0
      %1353 = vmatpush2.bf16.msra.mxu0 %v1033
      %1354 = vmatprep.subr.bf16.mxu0 0
      %1355 = vmatpush2.bf16.msra.mxu0 %v1032
      %1356 = vmatprep.mubr.bf16.mxu0 %v552
      %1357 = vmatmul.mubr.bf16.gmra.mxu0 %v551
      %v1358 = vpop.f32.mrf.mxu0
      %v1359 = vadd.f32 %v1318, %v1358
      %v1360 = vpop.f32.mrf.mxu0
      %v1361 = vpop.f32.mrf.mxu0
      %v1362 = vadd.f32 %v1321, %v1361
      %v1363 = vpop.f32.mrf.mxu0
      %1364 = vdwg.mxu0
      %1365 = vmatprep.subr.bf16.mxu0 0
      %1366 = vmatpush1.bf16.msra.mxu0 %v1047
      %1367 = vmatprep.subr.bf16.mxu0 0
      %1368 = vmatpush1.bf16.msra.mxu0 %v1046
      %1369 = vmatprep.subr.bf16.mxu0 0
      %1370 = vmatpush1.bf16.msra.mxu0 %v1045
      %1371 = vmatprep.subr.bf16.mxu0 0
      %1372 = vmatpush1.bf16.msra.mxu0 %v1044
      %1373 = vmatprep.subr.bf16.mxu0 0
      %1374 = vmatpush1.bf16.msra.mxu0 %v1043
      %1375 = vmatprep.subr.bf16.mxu0 0
      %1376 = vmatpush1.bf16.msra.mxu0 %v1042
      %1377 = vmatprep.subr.bf16.mxu0 0
      %1378 = vmatpush1.bf16.msra.mxu0 %v1041
      %1379 = vmatprep.subr.bf16.mxu0 0
      %1380 = vmatpush1.bf16.msra.mxu0 %v1040
      %1381 = vmatprep.subr.bf16.mxu0 0
      %1382 = vmatpush2.bf16.msra.mxu0 %v1055
      %1383 = vmatprep.subr.bf16.mxu0 0
      %1384 = vmatpush2.bf16.msra.mxu0 %v1054
      %1385 = vmatprep.subr.bf16.mxu0 0
      %1386 = vmatpush2.bf16.msra.mxu0 %v1053
      %1387 = vmatprep.subr.bf16.mxu0 0
      %1388 = vmatpush2.bf16.msra.mxu0 %v1052
      %1389 = vmatprep.subr.bf16.mxu0 0
      %1390 = vmatpush2.bf16.msra.mxu0 %v1051
      %1391 = vmatprep.subr.bf16.mxu0 0
      %1392 = vmatpush2.bf16.msra.mxu0 %v1050
      %1393 = vmatprep.subr.bf16.mxu0 0
      %1394 = vmatpush2.bf16.msra.mxu0 %v1049
      %1395 = vmatprep.subr.bf16.mxu0 0
      %1396 = vmatpush2.bf16.msra.mxu0 %v1048
      %1397 = vmatprep.mubr.bf16.mxu0 %v554
      %1398 = vmatmul.mubr.bf16.gmra.mxu0 %v553
      %v1399 = vpop.f32.mrf.mxu0
      %v1400 = vadd.f32 %v1359, %v1399
      %v1401 = vpop.f32.mrf.mxu0
      %v1402 = vpop.f32.mrf.mxu0
      %v1403 = vadd.f32 %v1362, %v1402
      %v1404 = vpop.f32.mrf.mxu0
      %1405 = vdwg.mxu0
      %1406 = vmatprep.subr.bf16.mxu0 0
      %1407 = vmatpush1.bf16.msra.mxu0 0
      %1408 = vmatprep.subr.bf16.mxu0 0
      %1409 = vmatpush1.bf16.msra.mxu0 0
      %1410 = vmatprep.subr.bf16.mxu0 0
      %1411 = vmatpush1.bf16.msra.mxu0 0
      %1412 = vmatprep.subr.bf16.mxu0 0
      %1413 = vmatpush1.bf16.msra.mxu0 0
      %1414 = vmatprep.subr.bf16.mxu0 0
      %1415 = vmatpush1.bf16.msra.mxu0 0
      %1416 = vmatprep.subr.bf16.mxu0 0
      %1417 = vmatpush1.bf16.msra.mxu0 0
      %1418 = vmatprep.subr.bf16.mxu0 0
      %1419 = vmatpush1.bf16.msra.mxu0 %v1057
      %1420 = vmatprep.subr.bf16.mxu0 0
      %1421 = vmatpush1.bf16.msra.mxu0 %v1056
      %1422 = vmatprep.subr.bf16.mxu0 0
      %1423 = vmatpush2.bf16.msra.mxu0 0
      %1424 = vmatprep.subr.bf16.mxu0 0
      %1425 = vmatpush2.bf16.msra.mxu0 0
      %1426 = vmatprep.subr.bf16.mxu0 0
      %1427 = vmatpush2.bf16.msra.mxu0 0
      %1428 = vmatprep.subr.bf16.mxu0 0
      %1429 = vmatpush2.bf16.msra.mxu0 0
      %1430 = vmatprep.subr.bf16.mxu0 0
      %1431 = vmatpush2.bf16.msra.mxu0 0
      %1432 = vmatprep.subr.bf16.mxu0 0
      %1433 = vmatpush2.bf16.msra.mxu0 0
      %1434 = vmatprep.subr.bf16.mxu0 0
      %1435 = vmatpush2.bf16.msra.mxu0 0
      %1436 = vmatprep.subr.bf16.mxu0 0
      %1437 = vmatpush2.bf16.msra.mxu0 0
      %1438 = vmatprep.mubr.bf16.mxu0 0
      %1439 = vmatmul.mubr.bf16.gmra.mxu0 %v1158
      %v1440 = vpop.f32.mrf.mxu0
      %v1441 = vadd.f32 %v1400, %v1440
      %v1442 = vpop.f32.mrf.mxu0
      %v1443 = vpop.f32.mrf.mxu0
      %v1444 = vadd.f32 %v1403, %v1443
      %v1445 = vpop.f32.mrf.mxu0
      %1446 = vdwg.mxu0
      %v1447 = vmax.f32 %v1441, 0.0
      %v1448 = vmax.f32 %v1444, 0.0
      %v1449 = vpack.c.bf16 %v1448, %v1447
      %v1450 = vld [vmem:[%s3] sm:$0xf]
      %v1451 = vld [vmem:[%s3 + $0x4] sm:$0xf]
      %v1452 = vld [vmem:[%s3 + $0x8] sm:$0xf]
      %v1453 = vld [vmem:[%s3 + $0xc] sm:$0xf]
      %v1454 = vld [vmem:[%s3 + $0x10] sm:$0xf]
      %v1455 = vld [vmem:[%s3 + $0x14] sm:$0xf]
      %v1456 = vld [vmem:[%s3 + $0x18] sm:$0xf]
      %v1457 = vld [vmem:[%s3 + $0x1c] sm:$0xf]
      %v1458 = vld [vmem:[%s3 + $0x20] sm:$0xf]
      %v1459 = vld [vmem:[%s3 + $0x24] sm:$0xf]
      %v1460 = vld [vmem:[%s3 + $0x28] sm:$0xf]
      %v1461 = vld [vmem:[%s3 + $0x2c] sm:$0xf]
      %v1462 = vld [vmem:[%s3 + $0x30] sm:$0xf]
      %v1463 = vld [vmem:[%s3 + $0x34] sm:$0xf]
      %v1464 = vld [vmem:[%s3 + $0x38] sm:$0xf]
      %v1465 = vld [vmem:[%s3 + $0x3c] sm:$0xf]
      %v1466 = vld [vmem:[%s4] sm:$0x1]
      %v1468 = vlaneseq
      %v1469 = vshrl.u32 %v1468, 7
      %v1470 = vsub.s32 0, %v1469
      %v1471 = vrot.slane %v1466, %v1470
      %v1489 = vunpack.c.l.b16 %v1450
      %v1490 = vunpack.c.l.b16 %v1451
      %v1491 = vunpack.c.l.b16 %v1452
      %v1492 = vunpack.c.l.b16 %v1453
      %v1493 = vunpack.c.l.b16 %v1454
      %v1494 = vunpack.c.l.b16 %v1455
      %v1495 = vunpack.c.l.b16 %v1456
      %v1496 = vunpack.c.l.b16 %v1457
      %v1497 = vunpack.c.l.b16 %v1458
      %v1498 = vunpack.c.l.b16 %v1459
      %v1499 = vunpack.c.l.b16 %v1460
      %v1500 = vunpack.c.l.b16 %v1461
      %v1501 = vunpack.c.l.b16 %v1462
      %v1502 = vunpack.c.l.b16 %v1463
      %v1503 = vunpack.c.l.b16 %v1464
      %v1504 = vunpack.c.l.b16 %v1465
      %v1505 = vpack.c.b16 %v1490, %v1489
      %v1506 = vpack.c.b16 %v1492, %v1491
      %v1507 = vpack.c.b16 %v1494, %v1493
      %v1508 = vpack.c.b16 %v1496, %v1495
      %v1509 = vpack.c.b16 %v1498, %v1497
      %v1510 = vpack.c.b16 %v1500, %v1499
      %v1511 = vpack.c.b16 %v1502, %v1501
      %v1512 = vpack.c.b16 %v1504, %v1503
      %1521 = vmatprep.subr.bf16.mxu0 0
      %1522 = vmatpush1.bf16.msra.mxu0 %v1512
      %1523 = vmatprep.subr.bf16.mxu0 0
      %1524 = vmatpush1.bf16.msra.mxu0 %v1511
      %1525 = vmatprep.subr.bf16.mxu0 0
      %1526 = vmatpush1.bf16.msra.mxu0 %v1510
      %1527 = vmatprep.subr.bf16.mxu0 0
      %1528 = vmatpush1.bf16.msra.mxu0 %v1509
      %1529 = vmatprep.subr.bf16.mxu0 0
      %1530 = vmatpush1.bf16.msra.mxu0 %v1508
      %1531 = vmatprep.subr.bf16.mxu0 0
      %1532 = vmatpush1.bf16.msra.mxu0 %v1507
      %1533 = vmatprep.subr.bf16.mxu0 0
      %1534 = vmatpush1.bf16.msra.mxu0 %v1506
      %1535 = vmatprep.subr.bf16.mxu0 0
      %1536 = vmatpush1.bf16.msra.mxu0 %v1505
      %1537 = vmatprep.subr.bf16.mxu0 0
      %1538 = vmatpush2.bf16.msra.mxu0 0
      %1539 = vmatprep.subr.bf16.mxu0 0
      %1540 = vmatpush2.bf16.msra.mxu0 0
      %1541 = vmatprep.subr.bf16.mxu0 0
      %1542 = vmatpush2.bf16.msra.mxu0 0
      %1543 = vmatprep.subr.bf16.mxu0 0
      %1544 = vmatpush2.bf16.msra.mxu0 0
      %1545 = vmatprep.subr.bf16.mxu0 0
      %1546 = vmatpush2.bf16.msra.mxu0 0
      %1547 = vmatprep.subr.bf16.mxu0 0
      %1548 = vmatpush2.bf16.msra.mxu0 0
      %1549 = vmatprep.subr.bf16.mxu0 0
      %1550 = vmatpush2.bf16.msra.mxu0 0
      %1551 = vmatprep.subr.bf16.mxu0 0
      %1552 = vmatpush2.bf16.msra.mxu0 0
      %1553 = vmatprep.mubr.bf16.mxu0 0
      %1554 = vmatmul.mubr.bf16.gmra.mxu0 %v1449
      %v1555 = vpop.f32.mrf.mxu0
      %v1556 = vadd.f32 %v1471, %v1555
      %v1557 = vpop.f32.mrf.mxu0
      %v1558 = vpop.f32.mrf.mxu0
      %v1559 = vadd.f32 %v1471, %v1558
      %v1560 = vpop.f32.mrf.mxu0
      %1561 = vdwg.mxu0
      %v1562 = vmax.f32 %v1556, 0.0
      %v1563 = vmax.f32 %v1559, 0.0
      %v1564 = vpack.c.bf16 %v1563, %v1562
      %v1565 = vld [vmem:[%s5] sm:$0xf]
      %v1566 = vld [vmem:[%s5 + $0x4] sm:$0xf]
      %v1567 = vld [vmem:[%s5 + $0x8] sm:$0xf]
      %v1568 = vld [vmem:[%s5 + $0xc] sm:$0xf]
      %v1569 = vld [vmem:[%s5 + $0x10] sm:$0xf]
      %v1570 = vld [vmem:[%s5 + $0x14] sm:$0xf]
      %v1571 = vld [vmem:[%s5 + $0x18] sm:$0xf]
      %v1572 = vld [vmem:[%s5 + $0x1c] sm:$0xf]
      %v1573 = vld [vmem:[%s5 + $0x20] sm:$0xf]
      %v1574 = vld [vmem:[%s5 + $0x24] sm:$0xf]
      %v1575 = vld [vmem:[%s5 + $0x28] sm:$0xf]
      %v1576 = vld [vmem:[%s5 + $0x2c] sm:$0xf]
      %v1577 = vld [vmem:[%s5 + $0x30] sm:$0xf]
      %v1578 = vld [vmem:[%s5 + $0x34] sm:$0xf]
      %v1579 = vld [vmem:[%s5 + $0x38] sm:$0xf]
      %v1580 = vld [vmem:[%s5 + $0x3c] sm:$0xf]
      %v1581 = vld [vmem:[%s6] sm:$0x1]
      %v1583 = vlaneseq
      %v1584 = vshrl.u32 %v1583, 7
      %v1585 = vsub.s32 0, %v1584
      %v1586 = vrot.slane %v1581, %v1585
      %v1604 = vunpack.c.l.b16 %v1565
      %v1605 = vunpack.c.l.b16 %v1566
      %v1606 = vunpack.c.l.b16 %v1567
      %v1607 = vunpack.c.l.b16 %v1568
      %v1608 = vunpack.c.l.b16 %v1569
      %v1609 = vunpack.c.l.b16 %v1570
      %v1610 = vunpack.c.l.b16 %v1571
      %v1611 = vunpack.c.l.b16 %v1572
      %v1612 = vunpack.c.l.b16 %v1573
      %v1613 = vunpack.c.l.b16 %v1574
      %v1614 = vunpack.c.l.b16 %v1575
      %v1615 = vunpack.c.l.b16 %v1576
      %v1616 = vunpack.c.l.b16 %v1577
      %v1617 = vunpack.c.l.b16 %v1578
      %v1618 = vunpack.c.l.b16 %v1579
      %v1619 = vunpack.c.l.b16 %v1580
      %v1620 = vpack.c.b16 %v1605, %v1604
      %v1621 = vpack.c.b16 %v1607, %v1606
      %v1622 = vpack.c.b16 %v1609, %v1608
      %v1623 = vpack.c.b16 %v1611, %v1610
      %v1624 = vpack.c.b16 %v1613, %v1612
      %v1625 = vpack.c.b16 %v1615, %v1614
      %v1626 = vpack.c.b16 %v1617, %v1616
      %v1627 = vpack.c.b16 %v1619, %v1618
      %1636 = vmatprep.subr.bf16.mxu0 0
      %1637 = vmatpush1.bf16.msra.mxu0 %v1627
      %1638 = vmatprep.subr.bf16.mxu0 0
      %1639 = vmatpush1.bf16.msra.mxu0 %v1626
      %1640 = vmatprep.subr.bf16.mxu0 0
      %1641 = vmatpush1.bf16.msra.mxu0 %v1625
      %1642 = vmatprep.subr.bf16.mxu0 0
      %1643 = vmatpush1.bf16.msra.mxu0 %v1624
      %1644 = vmatprep.subr.bf16.mxu0 0
      %1645 = vmatpush1.bf16.msra.mxu0 %v1623
      %1646 = vmatprep.subr.bf16.mxu0 0
      %1647 = vmatpush1.bf16.msra.mxu0 %v1622
      %1648 = vmatprep.subr.bf16.mxu0 0
      %1649 = vmatpush1.bf16.msra.mxu0 %v1621
      %1650 = vmatprep.subr.bf16.mxu0 0
      %1651 = vmatpush1.bf16.msra.mxu0 %v1620
      %1652 = vmatprep.subr.bf16.mxu0 0
      %1653 = vmatpush2.bf16.msra.mxu0 0
      %1654 = vmatprep.subr.bf16.mxu0 0
      %1655 = vmatpush2.bf16.msra.mxu0 0
      %1656 = vmatprep.subr.bf16.mxu0 0
      %1657 = vmatpush2.bf16.msra.mxu0 0
      %1658 = vmatprep.subr.bf16.mxu0 0
      %1659 = vmatpush2.bf16.msra.mxu0 0
      %1660 = vmatprep.subr.bf16.mxu0 0
      %1661 = vmatpush2.bf16.msra.mxu0 0
      %1662 = vmatprep.subr.bf16.mxu0 0
      %1663 = vmatpush2.bf16.msra.mxu0 0
      %1664 = vmatprep.subr.bf16.mxu0 0
      %1665 = vmatpush2.bf16.msra.mxu0 0
      %1666 = vmatprep.subr.bf16.mxu0 0
      %1667 = vmatpush2.bf16.msra.mxu0 0
      %1668 = vmatprep.mubr.bf16.mxu0 0
      %1669 = vmatmul.mubr.bf16.gmra.mxu0 %v1564
      %v1670 = vpop.f32.mrf.mxu0
      %v1671 = vadd.f32 %v1586, %v1670
      %v1672 = vpop.f32.mrf.mxu0
      %v1673 = vpop.f32.mrf.mxu0
      %v1674 = vadd.f32 %v1586, %v1673
      %v1675 = vpop.f32.mrf.mxu0
      %1676 = vdwg.mxu0
      %1677 = vst [vmem:[%s283] sm:$0xff] %v1671
      %1678 = vst [vmem:[%s283 + $0x8] sm:$0xff] %v1674
      %s1679 = smul.u32 2, %s18
      %p1680 = scmp.lt.s32.totalorder %s1679, 3
      %s1681 = scalar_select %p1680, %s1679, 3
      %s1682 = smul.addr %s1681, 8
      %s1683 = scalar_lea.vmem %s7, %s1682
      // Predicated region
      $region49: #{generalized_rcnn_forward.16} parent=47 // pred_check
        %p1684 = pneg %p188
      $region50: #{generalized_rcnn_forward.16} parent=47 // pred_check_branch
        %1686 = sbr.rel (%p1684) target = $region52
      $region51: #{generalized_rcnn_forward.16} parent=47 // pred_region
        %s1687 = smul.u32 2, %s18
      $region52: #{generalized_rcnn_forward.16} parent=47 // pred_fallthru
        _
    $region48: #{generalized_rcnn_forward.16} parent=5 // pred_fallthru
      _
    %p1688 = scmp.le.s32.totalorder 2, %s13
    // Predicated region
    $region53: #{generalized_rcnn_forward.16} parent=5 // pred_check
      %p1689 = pneg %p1688
    $region54: #{generalized_rcnn_forward.16} parent=5 // pred_check_branch
      %1691 = sbr.rel (%p1689) target = $region56
    $region55: #{generalized_rcnn_forward.16} parent=5 // pred_region
      %s1692 = ssub.s32 %s13, 2
      // Predicated region
      $region57: #{generalized_rcnn_forward.16} parent=55 // pred_check
        %p1693 = pneg %p194
      $region58: #{generalized_rcnn_forward.16} parent=55 // pred_check_branch
        %1695 = sbr.rel (%p1693) target = $region60
      $region59: #{generalized_rcnn_forward.16} parent=55 // pred_region
        %s1696 = smul.u32 2, %s19
        %p1697 = scmp.lt.s32.totalorder %s1696, 3
        %s1698 = scalar_select %p1697, %s1696, 3
        %s1699 = smul.addr %s1698, 8
        %s1700 = scalar_lea.vmem %s7, %s1699
      $region60: #{generalized_rcnn_forward.16} parent=55 // pred_fallthru
        _
    $region56: #{generalized_rcnn_forward.16} parent=5 // pred_fallthru
      _
  $region6: #{generalized_rcnn_forward.16} parent=0 // loop_footer
    %s17 = sadd.s32 1, %s13
  $region7: #{generalized_rcnn_forward.16} parent=0 // loop_footer_branch
    %12 = sbr.rel target = $region3
  $region8: #{generalized_rcnn_forward.16} parent=0 // loop_exit
    _

// kernel: generalized_rcnn_forward.17
$region0: #{generalized_rcnn_forward.17}
  #allocation0 [shape = 'u32[]', space=smem, size = 0x4, offset = 0x4, fixed_abs, tag = 'smem constant byte address 0x4 - core index']
  #allocation1 [shape = 'u32[144,128]{1,0:T(1,128)}', space=vmem, size = 0x12000, scoped, tag = 'internal scratch']
  %s0 = inlined_call_operand.vmem [shape: bf16[6272,288], index: 0, kind: input, shape index: {}]
  %s1 = inlined_call_operand.vmem [shape: bf16[288,32], index: 1, kind: input, shape index: {}]
  %s2 = inlined_call_operand.vmem [shape: f32[1,32], index: 2, kind: input, shape index: {}]
  %s3 = inlined_call_operand.vmem [shape: bf16[6272,32], index: 3, kind: output, shape index: {}]
  %s4 = sld [smem:[#allocation0]]
  $region45: #{generalized_rcnn_forward.17} parent=0
    _
  %s6 = ssub.s32 1, %s4
  %s7 = scalar_select 0, %s6, %s4
  loop: start=0, step=1, limit=16
  $region2: #{generalized_rcnn_forward.17} parent=0 // loop_pre_header
    _
  $region3: #{generalized_rcnn_forward.17} parent=0 // loop_header
    %s9 = sphi 0, %s13
    %p10 = scmp.ge.s32.totalorder %s9, 16
    %s19 = sphi 0, %s21
    %s22 = sphi 0, %s19
    %s23 = sphi 0, %s22
    %s39 = sphi 0, %s23
    %s43 = sphi 0, %s43
    %s45 = sphi 0, %s43
    %s46 = sphi 0, %s45
    %s60 = sphi 0, %s46
    %s64 = sphi 0, %s64
    %s66 = sphi 0, %s64
    %s67 = sphi 0, %s66
    %s81 = sphi 0, %s67
    %s87 = sphi 0, %s89
    %s90 = sphi 0, %s87
    %s91 = sphi 0, %s90
    %s107 = sphi 0, %s91
  $region4: #{generalized_rcnn_forward.17} parent=0 // loop_header_branch
    %12 = sbr.rel (%p10) target = $region8
  $region5: #{generalized_rcnn_forward.17} parent=0 // loop_body
    %s14 = ssub.s32 %s9, 1
    %s15 = ssub.s32 %s9, 2
    %s16 = sadd.s32 %s9, 1
    %s17 = ssub.s32 %s9, %s16
    %p18 = scmp.eq.s32.totalorder %s17, 0
    %s20 = sadd.s32 %s19, 1
    %s21 = scalar_select %p18, %s19, %s20
    %p24 = pneg %p18
    %p25 = scmp.eq.s32.totalorder %s9, 13
    %p26 = por %p24, %p25
    %p27 = scmp.ne.s32.totalorder %s19, %s22
    %p28 = scmp.eq.s32.totalorder %s9, 0
    %p29 = por %p27, %p28
    %p30 = scmp.ne.s32.totalorder %s19, %s22
    %p31 = scmp.eq.s32.totalorder %s14, 13
    %p32 = por %p30, %p31
    %p33 = scmp.ne.s32.totalorder %s22, %s23
    %p34 = scmp.eq.s32.totalorder %s14, 0
    %p35 = por %p33, %p34
    %p36 = scmp.ne.s32.totalorder %s22, %s23
    %p37 = scmp.eq.s32.totalorder %s15, 13
    %p38 = por %p36, %p37
    %p40 = scmp.ne.s32.totalorder %s23, %s39
    %p41 = scmp.eq.s32.totalorder %s15, 0
    %p42 = por %p40, %p41
    %s44 = sadd.s32 %s43, 1
    %p47 = scmp.eq.s32.totalorder %s9, 13
    %p48 = scmp.ne.s32.totalorder %s43, %s45
    %p49 = scmp.eq.s32.totalorder %s9, 0
    %p50 = por %p48, %p49
    %p51 = scmp.ne.s32.totalorder %s43, %s45
    %p52 = scmp.eq.s32.totalorder %s14, 13
    %p53 = por %p51, %p52
    %p54 = scmp.ne.s32.totalorder %s45, %s46
    %p55 = scmp.eq.s32.totalorder %s14, 0
    %p56 = por %p54, %p55
    %p57 = scmp.ne.s32.totalorder %s45, %s46
    %p58 = scmp.eq.s32.totalorder %s15, 13
    %p59 = por %p57, %p58
    %p61 = scmp.ne.s32.totalorder %s46, %s60
    %p62 = scmp.eq.s32.totalorder %s15, 0
    %p63 = por %p61, %p62
    %s65 = sadd.s32 %s64, 1
    %p68 = scmp.eq.s32.totalorder %s9, 13
    %p69 = scmp.ne.s32.totalorder %s64, %s66
    %p70 = scmp.eq.s32.totalorder %s9, 0
    %p71 = por %p69, %p70
    %p72 = scmp.ne.s32.totalorder %s64, %s66
    %p73 = scmp.eq.s32.totalorder %s14, 13
    %p74 = por %p72, %p73
    %p75 = scmp.ne.s32.totalorder %s66, %s67
    %p76 = scmp.eq.s32.totalorder %s14, 0
    %p77 = por %p75, %p76
    %p78 = scmp.ne.s32.totalorder %s66, %s67
    %p79 = scmp.eq.s32.totalorder %s15, 13
    %p80 = por %p78, %p79
    %p82 = scmp.ne.s32.totalorder %s67, %s81
    %p83 = scmp.eq.s32.totalorder %s15, 0
    %p84 = por %p82, %p83
    %s85 = ssub.s32 %s9, %s16
    %p86 = scmp.eq.s32.totalorder %s85, 0
    %s88 = sadd.s32 %s87, 1
    %s89 = scalar_select %p86, %s87, %s88
    %p92 = pneg %p86
    %p93 = scmp.eq.s32.totalorder %s9, 13
    %p94 = por %p92, %p93
    %p95 = scmp.ne.s32.totalorder %s87, %s90
    %p96 = scmp.eq.s32.totalorder %s9, 0
    %p97 = por %p95, %p96
    %p98 = scmp.ne.s32.totalorder %s87, %s90
    %p99 = scmp.eq.s32.totalorder %s14, 13
    %p100 = por %p98, %p99
    %p101 = scmp.ne.s32.totalorder %s90, %s91
    %p102 = scmp.eq.s32.totalorder %s14, 0
    %p103 = por %p101, %p102
    %p104 = scmp.ne.s32.totalorder %s90, %s91
    %p105 = scmp.eq.s32.totalorder %s15, 13
    %p106 = por %p104, %p105
    %p108 = scmp.ne.s32.totalorder %s91, %s107
    %p109 = scmp.eq.s32.totalorder %s15, 0
    %p110 = por %p108, %p109
    %p111 = scmp.le.s32.totalorder 1, %s9
    %p112 = scmp.lt.s32.totalorder %s9, 15
    %p113 = pnand %p111, %p112
    %p114 = pneg %p113
    // Predicated region
    $region9: #{generalized_rcnn_forward.17} parent=5 // pred_check
      _
    $region10: #{generalized_rcnn_forward.17} parent=5 // pred_check_branch
      %116 = sbr.rel (%p113) target = $region12
    $region11: #{generalized_rcnn_forward.17} parent=5 // pred_region
      %s117 = ssub.s32 %s9, 1
      // Predicated region
      $region13: #{generalized_rcnn_forward.17} parent=11 // pred_check
        %p118 = pneg %p56
      $region14: #{generalized_rcnn_forward.17} parent=11 // pred_check_branch
        %120 = sbr.rel (%p118) target = $region16
      $region15: #{generalized_rcnn_forward.17} parent=11 // pred_region
        _
      $region16: #{generalized_rcnn_forward.17} parent=11 // pred_fallthru
        _
      // Predicated region
      $region17: #{generalized_rcnn_forward.17} parent=11 // pred_check
        %p121 = pneg %p77
      $region18: #{generalized_rcnn_forward.17} parent=11 // pred_check_branch
        %123 = sbr.rel (%p121) target = $region20
      $region19: #{generalized_rcnn_forward.17} parent=11 // pred_region
        _
      $region20: #{generalized_rcnn_forward.17} parent=11 // pred_fallthru
        _
    $region12: #{generalized_rcnn_forward.17} parent=5 // pred_fallthru
      _
    %p124 = scmp.lt.s32.totalorder %s9, 14
    // Predicated region
    $region21: #{generalized_rcnn_forward.17} parent=5 // pred_check
      %p125 = pneg %p124
    $region22: #{generalized_rcnn_forward.17} parent=5 // pred_check_branch
      %127 = sbr.rel (%p125) target = $region24
    $region23: #{generalized_rcnn_forward.17} parent=5 // pred_region
      // Predicated region
      $region25: #{generalized_rcnn_forward.17} parent=23 // pred_check
        %p128 = pneg %p29
      $region26: #{generalized_rcnn_forward.17} parent=23 // pred_check_branch
        %130 = sbr.rel (%p128) target = $region28
      $region27: #{generalized_rcnn_forward.17} parent=23 // pred_region
        %s131 = smul.u32 56, %s9
        %p132 = scmp.lt.s32.totalorder %s131, 783
        %s133 = scalar_select %p132, %s131, 783
        %s134 = smul.addr %s133, 3
        %s135 = smul.addr %s134, 4
        %s136 = scalar_lea.vmem %s0, %s135
        %s137 = smul.u32 56, %s9
      $region28: #{generalized_rcnn_forward.17} parent=23 // pred_fallthru
        _
    $region24: #{generalized_rcnn_forward.17} parent=5 // pred_fallthru
      _
    %p138 = scmp.le.s32.totalorder 1, %s9
    %p139 = scmp.lt.s32.totalorder %s9, 15
    %p140 = pnand %p138, %p139
    %p141 = pneg %p140
    // Predicated region
    $region29: #{generalized_rcnn_forward.17} parent=5 // pred_check
      _
    $region30: #{generalized_rcnn_forward.17} parent=5 // pred_check_branch
      %143 = sbr.rel (%p140) target = $region32
    $region31: #{generalized_rcnn_forward.17} parent=5 // pred_region
      %s144 = ssub.s32 %s9, 1
      %s145 = smul.u32 56, %s14
      %p146 = scmp.lt.s32.totalorder %s145, 783
      %s147 = scalar_select %p146, %s145, 783
      %s148 = smul.addr %s147, 3
      %s149 = smul.addr %s148, 4
      %s150 = scalar_lea.vmem %s0, %s149
      %p151 = pneg %p35
      %p152 = pneg %p32
      %p153 = pneg %p56
      %p154 = pneg %p53
      %p155 = pneg %p77
      %p156 = pneg %p74
      %p157 = pneg %p103
      %p158 = pneg %p100
      %s159 = smul.u32 56, %s14
      %p160 = scmp.lt.s32.totalorder %s159, 783
      %s161 = scalar_select %p160, %s159, 783
      %s162 = smul.addr %s161, 4
      %s163 = scalar_lea.vmem %s3, %s162
      %s164 = smul.u32 56, %s14
      %p165 = scmp.lt.s32.totalorder %s164, 783
      %s166 = scalar_select %p165, %s164, 783
      %s167 = smul.addr %s166, 3
      %s168 = smul.addr %s167, 4
      %s169 = scalar_lea.vmem %s0, %s168
      %s170 = smul.u32 56, %s14
      %s171 = smul.u32 56, %s14
      %p172 = scmp.lt.s32.totalorder %s171, 783
      %s173 = scalar_select %p172, %s171, 783
      %s174 = smul.addr %s173, 4
      %s175 = scalar_lea.vmem %s3, %s174
      %s176 = smul.u32 56, %s14
      %v178 = vld [vmem:[%s169] sm:$0xff]
      %v179 = vld [vmem:[%s169 + $0x8] sm:$0xf]
      %v180 = vld [vmem:[%s169 + $0xc] sm:$0xff]
      %v181 = vld [vmem:[%s169 + $0x14] sm:$0xf]
      %v182 = vld [vmem:[%s169 + $0x18] sm:$0xff]
      %v183 = vld [vmem:[%s169 + $0x20] sm:$0xf]
      %v184 = vld [vmem:[%s169 + $0x24] sm:$0xff]
      %v185 = vld [vmem:[%s169 + $0x2c] sm:$0xf]
      %v186 = vld [vmem:[%s169 + $0x30] sm:$0xff]
      %v187 = vld [vmem:[%s169 + $0x38] sm:$0xf]
      %v188 = vld [vmem:[%s169 + $0x3c] sm:$0xff]
      %v189 = vld [vmem:[%s169 + $0x44] sm:$0xf]
      %v190 = vld [vmem:[%s169 + $0x48] sm:$0xff]
      %v191 = vld [vmem:[%s169 + $0x50] sm:$0xf]
      %v192 = vld [vmem:[%s169 + $0x54] sm:$0xff]
      %v193 = vld [vmem:[%s169 + $0x5c] sm:$0xf]
      %v194 = vld [vmem:[%s169 + $0x60] sm:$0xff]
      %v195 = vld [vmem:[%s169 + $0x68] sm:$0xf]
      %v196 = vld [vmem:[%s169 + $0x6c] sm:$0xff]
      %v197 = vld [vmem:[%s169 + $0x74] sm:$0xf]
      %v198 = vld [vmem:[%s169 + $0x78] sm:$0xff]
      %v199 = vld [vmem:[%s169 + $0x80] sm:$0xf]
      %v200 = vld [vmem:[%s169 + $0x84] sm:$0xff]
      %v201 = vld [vmem:[%s169 + $0x8c] sm:$0xf]
      %v202 = vld [vmem:[%s169 + $0x90] sm:$0xff]
      %v203 = vld [vmem:[%s169 + $0x98] sm:$0xf]
      %v204 = vld [vmem:[%s169 + $0x9c] sm:$0xff]
      %v205 = vld [vmem:[%s169 + $0xa4] sm:$0xf]
      %v206 = vld [vmem:[%s169 + $0xa8] sm:$0xff]
      %v207 = vld [vmem:[%s169 + $0xb0] sm:$0xf]
      %v208 = vld [vmem:[%s169 + $0xb4] sm:$0xff]
      %v209 = vld [vmem:[%s169 + $0xbc] sm:$0xf]
      %v210 = vld [vmem:[%s169 + $0xc0] sm:$0xff]
      %v211 = vld [vmem:[%s169 + $0xc8] sm:$0xf]
      %v212 = vld [vmem:[%s169 + $0xcc] sm:$0xff]
      %v213 = vld [vmem:[%s169 + $0xd4] sm:$0xf]
      %v214 = vld [vmem:[%s169 + $0xd8] sm:$0xff]
      %v215 = vld [vmem:[%s169 + $0xe0] sm:$0xf]
      %v216 = vld [vmem:[%s169 + $0xe4] sm:$0xff]
      %v217 = vld [vmem:[%s169 + $0xec] sm:$0xf]
      %v218 = vld [vmem:[%s169 + $0xf0] sm:$0xff]
      %v219 = vld [vmem:[%s169 + $0xf8] sm:$0xf]
      %v220 = vld [vmem:[%s169 + $0xfc] sm:$0xff]
      %v221 = vld [vmem:[%s169 + $0x104] sm:$0xf]
      %v222 = vld [vmem:[%s169 + $0x108] sm:$0xff]
      %v223 = vld [vmem:[%s169 + $0x110] sm:$0xf]
      %v224 = vld [vmem:[%s169 + $0x114] sm:$0xff]
      %v225 = vld [vmem:[%s169 + $0x11c] sm:$0xf]
      %v226 = vld [vmem:[%s169 + $0x120] sm:$0xff]
      %v227 = vld [vmem:[%s169 + $0x128] sm:$0xf]
      %v228 = vld [vmem:[%s169 + $0x12c] sm:$0xff]
      %v229 = vld [vmem:[%s169 + $0x134] sm:$0xf]
      %v230 = vld [vmem:[%s169 + $0x138] sm:$0xff]
      %v231 = vld [vmem:[%s169 + $0x140] sm:$0xf]
      %v232 = vld [vmem:[%s169 + $0x144] sm:$0xff]
      %v233 = vld [vmem:[%s169 + $0x14c] sm:$0xf]
      %v234 = vld [vmem:[%s169 + $0x150] sm:$0xff]
      %v235 = vld [vmem:[%s169 + $0x158] sm:$0xf]
      %v236 = vld [vmem:[%s169 + $0x15c] sm:$0xff]
      %v237 = vld [vmem:[%s169 + $0x164] sm:$0xf]
      %v238 = vld [vmem:[%s169 + $0x168] sm:$0xff]
      %v239 = vld [vmem:[%s169 + $0x170] sm:$0xf]
      %v240 = vld [vmem:[%s169 + $0x174] sm:$0xff]
      %v241 = vld [vmem:[%s169 + $0x17c] sm:$0xf]
      %v242 = vld [vmem:[%s169 + $0x180] sm:$0xff]
      %v243 = vld [vmem:[%s169 + $0x188] sm:$0xf]
      %v244 = vld [vmem:[%s169 + $0x18c] sm:$0xff]
      %v245 = vld [vmem:[%s169 + $0x194] sm:$0xf]
      %v246 = vld [vmem:[%s169 + $0x198] sm:$0xff]
      %v247 = vld [vmem:[%s169 + $0x1a0] sm:$0xf]
      %v248 = vld [vmem:[%s169 + $0x1a4] sm:$0xff]
      %v249 = vld [vmem:[%s169 + $0x1ac] sm:$0xf]
      %v250 = vld [vmem:[%s169 + $0x1b0] sm:$0xff]
      %v251 = vld [vmem:[%s169 + $0x1b8] sm:$0xf]
      %v252 = vld [vmem:[%s169 + $0x1bc] sm:$0xff]
      %v253 = vld [vmem:[%s169 + $0x1c4] sm:$0xf]
      %v254 = vld [vmem:[%s169 + $0x1c8] sm:$0xff]
      %v255 = vld [vmem:[%s169 + $0x1d0] sm:$0xf]
      %v256 = vld [vmem:[%s169 + $0x1d4] sm:$0xff]
      %v257 = vld [vmem:[%s169 + $0x1dc] sm:$0xf]
      %v258 = vld [vmem:[%s169 + $0x1e0] sm:$0xff]
      %v259 = vld [vmem:[%s169 + $0x1e8] sm:$0xf]
      %v260 = vld [vmem:[%s169 + $0x1ec] sm:$0xff]
      %v261 = vld [vmem:[%s169 + $0x1f4] sm:$0xf]
      %v262 = vld [vmem:[%s169 + $0x1f8] sm:$0xff]
      %v263 = vld [vmem:[%s169 + $0x200] sm:$0xf]
      %v264 = vld [vmem:[%s169 + $0x204] sm:$0xff]
      %v265 = vld [vmem:[%s169 + $0x20c] sm:$0xf]
      %v266 = vld [vmem:[%s169 + $0x210] sm:$0xff]
      %v267 = vld [vmem:[%s169 + $0x218] sm:$0xf]
      %v268 = vld [vmem:[%s169 + $0x21c] sm:$0xff]
      %v269 = vld [vmem:[%s169 + $0x224] sm:$0xf]
      %v270 = vld [vmem:[%s169 + $0x228] sm:$0xff]
      %v271 = vld [vmem:[%s169 + $0x230] sm:$0xf]
      %v272 = vld [vmem:[%s169 + $0x234] sm:$0xff]
      %v273 = vld [vmem:[%s169 + $0x23c] sm:$0xf]
      %v274 = vld [vmem:[%s169 + $0x240] sm:$0xff]
      %v275 = vld [vmem:[%s169 + $0x248] sm:$0xf]
      %v276 = vld [vmem:[%s169 + $0x24c] sm:$0xff]
      %v277 = vld [vmem:[%s169 + $0x254] sm:$0xf]
      %v278 = vld [vmem:[%s169 + $0x258] sm:$0xff]
      %v279 = vld [vmem:[%s169 + $0x260] sm:$0xf]
      %v280 = vld [vmem:[%s169 + $0x264] sm:$0xff]
      %v281 = vld [vmem:[%s169 + $0x26c] sm:$0xf]
      %v282 = vld [vmem:[%s169 + $0x270] sm:$0xff]
      %v283 = vld [vmem:[%s169 + $0x278] sm:$0xf]
      %v284 = vld [vmem:[%s169 + $0x27c] sm:$0xff]
      %v285 = vld [vmem:[%s169 + $0x284] sm:$0xf]
      %v286 = vld [vmem:[%s169 + $0x288] sm:$0xff]
      %v287 = vld [vmem:[%s169 + $0x290] sm:$0xf]
      %v288 = vld [vmem:[%s169 + $0x294] sm:$0xff]
      %v289 = vld [vmem:[%s169 + $0x29c] sm:$0xf]
      %v290 = vld [vmem:[%s1] sm:$0xf]
      %v291 = vld [vmem:[%s1 + $0x4] sm:$0xf]
      %v292 = vld [vmem:[%s1 + $0x8] sm:$0xf]
      %v293 = vld [vmem:[%s1 + $0xc] sm:$0xf]
      %v294 = vld [vmem:[%s1 + $0x10] sm:$0xf]
      %v295 = vld [vmem:[%s1 + $0x14] sm:$0xf]
      %v296 = vld [vmem:[%s1 + $0x18] sm:$0xf]
      %v297 = vld [vmem:[%s1 + $0x1c] sm:$0xf]
      %v298 = vld [vmem:[%s1 + $0x20] sm:$0xf]
      %v299 = vld [vmem:[%s1 + $0x24] sm:$0xf]
      %v300 = vld [vmem:[%s1 + $0x28] sm:$0xf]
      %v301 = vld [vmem:[%s1 + $0x2c] sm:$0xf]
      %v302 = vld [vmem:[%s1 + $0x30] sm:$0xf]
      %v303 = vld [vmem:[%s1 + $0x34] sm:$0xf]
      %v304 = vld [vmem:[%s1 + $0x38] sm:$0xf]
      %v305 = vld [vmem:[%s1 + $0x3c] sm:$0xf]
      %v306 = vld [vmem:[%s1 + $0x40] sm:$0xf]
      %v307 = vld [vmem:[%s1 + $0x44] sm:$0xf]
      %v308 = vld [vmem:[%s1 + $0x48] sm:$0xf]
      %v309 = vld [vmem:[%s1 + $0x4c] sm:$0xf]
      %v310 = vld [vmem:[%s1 + $0x50] sm:$0xf]
      %v311 = vld [vmem:[%s1 + $0x54] sm:$0xf]
      %v312 = vld [vmem:[%s1 + $0x58] sm:$0xf]
      %v313 = vld [vmem:[%s1 + $0x5c] sm:$0xf]
      %v314 = vld [vmem:[%s1 + $0x60] sm:$0xf]
      %v315 = vld [vmem:[%s1 + $0x64] sm:$0xf]
      %v316 = vld [vmem:[%s1 + $0x68] sm:$0xf]
      %v317 = vld [vmem:[%s1 + $0x6c] sm:$0xf]
      %v318 = vld [vmem:[%s1 + $0x70] sm:$0xf]
      %v319 = vld [vmem:[%s1 + $0x74] sm:$0xf]
      %v320 = vld [vmem:[%s1 + $0x78] sm:$0xf]
      %v321 = vld [vmem:[%s1 + $0x7c] sm:$0xf]
      %v322 = vld [vmem:[%s1 + $0x80] sm:$0xf]
      %v323 = vld [vmem:[%s1 + $0x84] sm:$0xf]
      %v324 = vld [vmem:[%s1 + $0x88] sm:$0xf]
      %v325 = vld [vmem:[%s1 + $0x8c] sm:$0xf]
      %v326 = vld [vmem:[%s2] sm:$0x1]
      %v328 = vlaneseq
      %v329 = vshrl.u32 %v328, 7
      %v330 = vsub.s32 0, %v329
      %v331 = vrot.slane %v326, %v330
      %v445 = vunpack.c.l.b16 %v178
      %v446 = vunpack.c.h.b16 %v178
      %v447 = vunpack.c.l.b16 %v179
      %v448 = vunpack.c.l.b16 %v180
      %v449 = vunpack.c.h.b16 %v180
      %v450 = vunpack.c.l.b16 %v181
      %v451 = vunpack.c.l.b16 %v182
      %v452 = vunpack.c.h.b16 %v182
      %v453 = vunpack.c.l.b16 %v183
      %v454 = vunpack.c.l.b16 %v184
      %v455 = vunpack.c.h.b16 %v184
      %v456 = vunpack.c.l.b16 %v185
      %v457 = vunpack.c.l.b16 %v186
      %v458 = vunpack.c.h.b16 %v186
      %v459 = vunpack.c.l.b16 %v187
      %v460 = vunpack.c.l.b16 %v188
      %v461 = vunpack.c.h.b16 %v188
      %v462 = vunpack.c.l.b16 %v189
      %v463 = vunpack.c.l.b16 %v190
      %v464 = vunpack.c.h.b16 %v190
      %v465 = vunpack.c.l.b16 %v191
      %v466 = vunpack.c.l.b16 %v192
      %v467 = vunpack.c.h.b16 %v192
      %v468 = vunpack.c.l.b16 %v193
      %v469 = vunpack.c.l.b16 %v194
      %v470 = vunpack.c.h.b16 %v194
      %v471 = vunpack.c.l.b16 %v195
      %v472 = vunpack.c.l.b16 %v196
      %v473 = vunpack.c.h.b16 %v196
      %v474 = vunpack.c.l.b16 %v197
      %v475 = vunpack.c.l.b16 %v198
      %v476 = vunpack.c.h.b16 %v198
      %v477 = vunpack.c.l.b16 %v199
      %v478 = vunpack.c.l.b16 %v200
      %v479 = vunpack.c.h.b16 %v200
      %v480 = vunpack.c.l.b16 %v201
      %v481 = vunpack.c.l.b16 %v202
      %v482 = vunpack.c.h.b16 %v202
      %v483 = vunpack.c.l.b16 %v203
      %v484 = vunpack.c.l.b16 %v204
      %v485 = vunpack.c.h.b16 %v204
      %v486 = vunpack.c.l.b16 %v205
      %v487 = vunpack.c.l.b16 %v206
      %v488 = vunpack.c.h.b16 %v206
      %v489 = vunpack.c.l.b16 %v207
      %v490 = vunpack.c.l.b16 %v208
      %v491 = vunpack.c.h.b16 %v208
      %v492 = vunpack.c.l.b16 %v209
      %v493 = vunpack.c.l.b16 %v210
      %v494 = vunpack.c.h.b16 %v210
      %v495 = vunpack.c.l.b16 %v211
      %v496 = vunpack.c.l.b16 %v212
      %v497 = vunpack.c.h.b16 %v212
      %v498 = vunpack.c.l.b16 %v213
      %v499 = vunpack.c.l.b16 %v214
      %v500 = vunpack.c.h.b16 %v214
      %v501 = vunpack.c.l.b16 %v215
      %v502 = vunpack.c.l.b16 %v216
      %v503 = vunpack.c.h.b16 %v216
      %v504 = vunpack.c.l.b16 %v217
      %v505 = vunpack.c.l.b16 %v218
      %v506 = vunpack.c.h.b16 %v218
      %v507 = vunpack.c.l.b16 %v219
      %v508 = vunpack.c.l.b16 %v220
      %v509 = vunpack.c.h.b16 %v220
      %v510 = vunpack.c.l.b16 %v221
      %v511 = vunpack.c.l.b16 %v222
      %v512 = vunpack.c.h.b16 %v222
      %v513 = vunpack.c.l.b16 %v223
      %v514 = vunpack.c.l.b16 %v224
      %v515 = vunpack.c.h.b16 %v224
      %v516 = vunpack.c.l.b16 %v225
      %v517 = vunpack.c.l.b16 %v226
      %v518 = vunpack.c.h.b16 %v226
      %v519 = vunpack.c.l.b16 %v227
      %v520 = vunpack.c.l.b16 %v228
      %v521 = vunpack.c.h.b16 %v228
      %v522 = vunpack.c.l.b16 %v229
      %v523 = vunpack.c.l.b16 %v230
      %v524 = vunpack.c.h.b16 %v230
      %v525 = vunpack.c.l.b16 %v231
      %v526 = vunpack.c.l.b16 %v232
      %v527 = vunpack.c.h.b16 %v232
      %v528 = vunpack.c.l.b16 %v233
      %v529 = vunpack.c.l.b16 %v234
      %v530 = vunpack.c.h.b16 %v234
      %v531 = vunpack.c.l.b16 %v235
      %v532 = vunpack.c.l.b16 %v236
      %v533 = vunpack.c.h.b16 %v236
      %v534 = vunpack.c.l.b16 %v237
      %v535 = vunpack.c.l.b16 %v238
      %v536 = vunpack.c.h.b16 %v238
      %v537 = vunpack.c.l.b16 %v239
      %v538 = vunpack.c.l.b16 %v240
      %v539 = vunpack.c.h.b16 %v240
      %v540 = vunpack.c.l.b16 %v241
      %v541 = vunpack.c.l.b16 %v242
      %v542 = vunpack.c.h.b16 %v242
      %v543 = vunpack.c.l.b16 %v243
      %v544 = vunpack.c.l.b16 %v244
      %v545 = vunpack.c.h.b16 %v244
      %v546 = vunpack.c.l.b16 %v245
      %v547 = vunpack.c.l.b16 %v246
      %v548 = vunpack.c.h.b16 %v246
      %v549 = vunpack.c.l.b16 %v247
      %v550 = vunpack.c.l.b16 %v248
      %v551 = vunpack.c.h.b16 %v248
      %v552 = vunpack.c.l.b16 %v249
      %v553 = vunpack.c.l.b16 %v250
      %v554 = vunpack.c.h.b16 %v250
      %v555 = vunpack.c.l.b16 %v251
      %v556 = vunpack.c.l.b16 %v252
      %v557 = vunpack.c.h.b16 %v252
      %v558 = vunpack.c.l.b16 %v253
      %v559 = vunpack.c.l.b16 %v254
      %v560 = vunpack.c.h.b16 %v254
      %v561 = vunpack.c.l.b16 %v255
      %v562 = vunpack.c.l.b16 %v256
      %v563 = vunpack.c.h.b16 %v256
      %v564 = vunpack.c.l.b16 %v257
      %v565 = vunpack.c.l.b16 %v258
      %v566 = vunpack.c.h.b16 %v258
      %v567 = vunpack.c.l.b16 %v259
      %v568 = vunpack.c.l.b16 %v260
      %v569 = vunpack.c.h.b16 %v260
      %v570 = vunpack.c.l.b16 %v261
      %v571 = vunpack.c.l.b16 %v262
      %v572 = vunpack.c.h.b16 %v262
      %v573 = vunpack.c.l.b16 %v263
      %v574 = vunpack.c.l.b16 %v264
      %v575 = vunpack.c.h.b16 %v264
      %v576 = vunpack.c.l.b16 %v265
      %v577 = vunpack.c.l.b16 %v266
      %v578 = vunpack.c.h.b16 %v266
      %v579 = vunpack.c.l.b16 %v267
      %v580 = vunpack.c.l.b16 %v268
      %v581 = vunpack.c.h.b16 %v268
      %v582 = vunpack.c.l.b16 %v269
      %v583 = vunpack.c.l.b16 %v270
      %v584 = vunpack.c.h.b16 %v270
      %v585 = vunpack.c.l.b16 %v271
      %v586 = vunpack.c.l.b16 %v272
      %v587 = vunpack.c.h.b16 %v272
      %v588 = vunpack.c.l.b16 %v273
      %v589 = vunpack.c.l.b16 %v274
      %v590 = vunpack.c.h.b16 %v274
      %v591 = vunpack.c.l.b16 %v275
      %v592 = vunpack.c.l.b16 %v276
      %v593 = vunpack.c.h.b16 %v276
      %v594 = vunpack.c.l.b16 %v277
      %v595 = vunpack.c.l.b16 %v278
      %v596 = vunpack.c.h.b16 %v278
      %v597 = vunpack.c.l.b16 %v279
      %v598 = vunpack.c.l.b16 %v280
      %v599 = vunpack.c.h.b16 %v280
      %v600 = vunpack.c.l.b16 %v281
      %v601 = vunpack.c.l.b16 %v282
      %v602 = vunpack.c.h.b16 %v282
      %v603 = vunpack.c.l.b16 %v283
      %v604 = vunpack.c.l.b16 %v284
      %v605 = vunpack.c.h.b16 %v284
      %v606 = vunpack.c.l.b16 %v285
      %v607 = vunpack.c.l.b16 %v286
      %v608 = vunpack.c.h.b16 %v286
      %v609 = vunpack.c.l.b16 %v287
      %v610 = vunpack.c.l.b16 %v288
      %v611 = vunpack.c.h.b16 %v288
      %v612 = vunpack.c.l.b16 %v289
      %v613 = vpack.c.b16 %v448, %v445
      %v614 = vpack.c.b16 %v449, %v446
      %v615 = vpack.c.b16 %v450, %v447
      %v616 = vpack.c.b16 %v454, %v451
      %v617 = vpack.c.b16 %v455, %v452
      %v618 = vpack.c.b16 %v456, %v453
      %v619 = vpack.c.b16 %v460, %v457
      %v620 = vpack.c.b16 %v461, %v458
      %v621 = vpack.c.b16 %v462, %v459
      %v622 = vpack.c.b16 %v466, %v463
      %v623 = vpack.c.b16 %v467, %v464
      %v624 = vpack.c.b16 %v468, %v465
      %v625 = vpack.c.b16 %v472, %v469
      %v626 = vpack.c.b16 %v473, %v470
      %v627 = vpack.c.b16 %v474, %v471
      %v628 = vpack.c.b16 %v478, %v475
      %v629 = vpack.c.b16 %v479, %v476
      %v630 = vpack.c.b16 %v480, %v477
      %v631 = vpack.c.b16 %v484, %v481
      %v632 = vpack.c.b16 %v485, %v482
      %v633 = vpack.c.b16 %v486, %v483
      %v634 = vpack.c.b16 %v490, %v487
      %v635 = vpack.c.b16 %v491, %v488
      %v636 = vpack.c.b16 %v492, %v489
      %v637 = vpack.c.b16 %v496, %v493
      %v638 = vpack.c.b16 %v497, %v494
      %v639 = vpack.c.b16 %v498, %v495
      %v640 = vpack.c.b16 %v502, %v499
      %v641 = vpack.c.b16 %v503, %v500
      %v642 = vpack.c.b16 %v504, %v501
      %v643 = vpack.c.b16 %v508, %v505
      %v644 = vpack.c.b16 %v509, %v506
      %v645 = vpack.c.b16 %v510, %v507
      %v646 = vpack.c.b16 %v514, %v511
      %v647 = vpack.c.b16 %v515, %v512
      %v648 = vpack.c.b16 %v516, %v513
      %v649 = vpack.c.b16 %v520, %v517
      %v650 = vpack.c.b16 %v521, %v518
      %v651 = vpack.c.b16 %v522, %v519
      %v652 = vpack.c.b16 %v526, %v523
      %v653 = vpack.c.b16 %v527, %v524
      %v654 = vpack.c.b16 %v528, %v525
      %v655 = vpack.c.b16 %v532, %v529
      %v656 = vpack.c.b16 %v533, %v530
      %v657 = vpack.c.b16 %v534, %v531
      %v658 = vpack.c.b16 %v538, %v535
      %v659 = vpack.c.b16 %v539, %v536
      %v660 = vpack.c.b16 %v540, %v537
      %v661 = vpack.c.b16 %v544, %v541
      %v662 = vpack.c.b16 %v545, %v542
      %v663 = vpack.c.b16 %v546, %v543
      %v664 = vpack.c.b16 %v550, %v547
      %v665 = vpack.c.b16 %v551, %v548
      %v666 = vpack.c.b16 %v552, %v549
      %v667 = vpack.c.b16 %v556, %v553
      %v668 = vpack.c.b16 %v557, %v554
      %v669 = vpack.c.b16 %v558, %v555
      %v670 = vpack.c.b16 %v562, %v559
      %v671 = vpack.c.b16 %v563, %v560
      %v672 = vpack.c.b16 %v564, %v561
      %v673 = vpack.c.b16 %v568, %v565
      %v674 = vpack.c.b16 %v569, %v566
      %v675 = vpack.c.b16 %v570, %v567
      %v676 = vpack.c.b16 %v574, %v571
      %v677 = vpack.c.b16 %v575, %v572
      %v678 = vpack.c.b16 %v576, %v573
      %v679 = vpack.c.b16 %v580, %v577
      %v680 = vpack.c.b16 %v581, %v578
      %v681 = vpack.c.b16 %v582, %v579
      %v682 = vpack.c.b16 %v586, %v583
      %v683 = vpack.c.b16 %v587, %v584
      %v684 = vpack.c.b16 %v588, %v585
      %v685 = vpack.c.b16 %v592, %v589
      %v686 = vpack.c.b16 %v593, %v590
      %v687 = vpack.c.b16 %v594, %v591
      %v688 = vpack.c.b16 %v598, %v595
      %v689 = vpack.c.b16 %v599, %v596
      %v690 = vpack.c.b16 %v600, %v597
      %v691 = vpack.c.b16 %v604, %v601
      %v692 = vpack.c.b16 %v605, %v602
      %v693 = vpack.c.b16 %v606, %v603
      %v694 = vpack.c.b16 %v610, %v607
      %v695 = vpack.c.b16 %v611, %v608
      %v696 = vpack.c.b16 %v612, %v609
      %v789 = vunpack.c.l.b16 %v290
      %v790 = vunpack.c.l.b16 %v291
      %v791 = vunpack.c.l.b16 %v292
      %v792 = vunpack.c.l.b16 %v293
      %v793 = vunpack.c.l.b16 %v294
      %v794 = vunpack.c.l.b16 %v295
      %v795 = vunpack.c.l.b16 %v296
      %v796 = vunpack.c.l.b16 %v297
      %v797 = vunpack.c.l.b16 %v298
      %v798 = vunpack.c.l.b16 %v299
      %v799 = vunpack.c.l.b16 %v300
      %v800 = vunpack.c.l.b16 %v301
      %v801 = vunpack.c.l.b16 %v302
      %v802 = vunpack.c.l.b16 %v303
      %v803 = vunpack.c.l.b16 %v304
      %v804 = vunpack.c.l.b16 %v305
      %v805 = vunpack.c.l.b16 %v306
      %v806 = vunpack.c.l.b16 %v307
      %v807 = vunpack.c.l.b16 %v308
      %v808 = vunpack.c.l.b16 %v309
      %v809 = vunpack.c.l.b16 %v310
      %v810 = vunpack.c.l.b16 %v311
      %v811 = vunpack.c.l.b16 %v312
      %v812 = vunpack.c.l.b16 %v313
      %v813 = vunpack.c.l.b16 %v314
      %v814 = vunpack.c.l.b16 %v315
      %v815 = vunpack.c.l.b16 %v316
      %v816 = vunpack.c.l.b16 %v317
      %v817 = vunpack.c.l.b16 %v318
      %v818 = vunpack.c.l.b16 %v319
      %v819 = vunpack.c.l.b16 %v320
      %v820 = vunpack.c.l.b16 %v321
      %v821 = vunpack.c.l.b16 %v322
      %v822 = vunpack.c.l.b16 %v323
      %v823 = vunpack.c.l.b16 %v324
      %v824 = vunpack.c.l.b16 %v325
      %v825 = vpack.c.b16 %v790, %v789
      %v826 = vpack.c.b16 %v792, %v791
      %v827 = vpack.c.b16 %v794, %v793
      %v828 = vpack.c.b16 %v796, %v795
      %v829 = vpack.c.b16 %v798, %v797
      %v830 = vpack.c.b16 %v800, %v799
      %v831 = vpack.c.b16 %v802, %v801
      %v832 = vpack.c.b16 %v804, %v803
      %v833 = vpack.c.b16 %v806, %v805
      %v834 = vpack.c.b16 %v808, %v807
      %v835 = vpack.c.b16 %v810, %v809
      %v836 = vpack.c.b16 %v812, %v811
      %v837 = vpack.c.b16 %v814, %v813
      %v838 = vpack.c.b16 %v816, %v815
      %v839 = vpack.c.b16 %v818, %v817
      %v840 = vpack.c.b16 %v820, %v819
      %v841 = vpack.c.b16 %v822, %v821
      %v842 = vpack.c.b16 %v824, %v823
      %vm861 = vcmask 261120
      %v863 = vsel %vm861, %v615, 0
      %v866 = vsel %vm861, %v618, 0
      %v869 = vsel %vm861, %v621, 0
      %v872 = vsel %vm861, %v624, 0
      %v875 = vsel %vm861, %v627, 0
      %v878 = vsel %vm861, %v630, 0
      %v881 = vsel %vm861, %v633, 0
      %v884 = vsel %vm861, %v636, 0
      %v887 = vsel %vm861, %v639, 0
      %v890 = vsel %vm861, %v642, 0
      %v893 = vsel %vm861, %v645, 0
      %v896 = vsel %vm861, %v648, 0
      %v899 = vsel %vm861, %v651, 0
      %v902 = vsel %vm861, %v654, 0
      %v905 = vsel %vm861, %v657, 0
      %v908 = vsel %vm861, %v660, 0
      %v911 = vsel %vm861, %v663, 0
      %v914 = vsel %vm861, %v666, 0
      %v917 = vsel %vm861, %v669, 0
      %v920 = vsel %vm861, %v672, 0
      %v923 = vsel %vm861, %v675, 0
      %v926 = vsel %vm861, %v678, 0
      %v929 = vsel %vm861, %v681, 0
      %v932 = vsel %vm861, %v684, 0
      %v935 = vsel %vm861, %v687, 0
      %v938 = vsel %vm861, %v690, 0
      %v941 = vsel %vm861, %v693, 0
      %v944 = vsel %vm861, %v696, 0
      %946 = vmatprep.subr.bf16.mxu0 0
      %947 = vmatpush1.bf16.msra.mxu0 %v832
      %948 = vmatprep.subr.bf16.mxu0 0
      %949 = vmatpush1.bf16.msra.mxu0 %v831
      %950 = vmatprep.subr.bf16.mxu0 0
      %951 = vmatpush1.bf16.msra.mxu0 %v830
      %952 = vmatprep.subr.bf16.mxu0 0
      %953 = vmatpush1.bf16.msra.mxu0 %v829
      %954 = vmatprep.subr.bf16.mxu0 0
      %955 = vmatpush1.bf16.msra.mxu0 %v828
      %956 = vmatprep.subr.bf16.mxu0 0
      %957 = vmatpush1.bf16.msra.mxu0 %v827
      %958 = vmatprep.subr.bf16.mxu0 0
      %959 = vmatpush1.bf16.msra.mxu0 %v826
      %960 = vmatprep.subr.bf16.mxu0 0
      %961 = vmatpush1.bf16.msra.mxu0 %v825
      %962 = vmatprep.subr.bf16.mxu0 0
      %963 = vmatpush2.bf16.msra.mxu0 %v840
      %964 = vmatprep.subr.bf16.mxu0 0
      %965 = vmatpush2.bf16.msra.mxu0 %v839
      %966 = vmatprep.subr.bf16.mxu0 0
      %967 = vmatpush2.bf16.msra.mxu0 %v838
      %968 = vmatprep.subr.bf16.mxu0 0
      %969 = vmatpush2.bf16.msra.mxu0 %v837
      %970 = vmatprep.subr.bf16.mxu0 0
      %971 = vmatpush2.bf16.msra.mxu0 %v836
      %972 = vmatprep.subr.bf16.mxu0 0
      %973 = vmatpush2.bf16.msra.mxu0 %v835
      %974 = vmatprep.subr.bf16.mxu0 0
      %975 = vmatpush2.bf16.msra.mxu0 %v834
      %976 = vmatprep.subr.bf16.mxu0 0
      %977 = vmatpush2.bf16.msra.mxu0 %v833
      %978 = vmatprep.mubr.bf16.mxu0 %v614
      %979 = vmatmul.mubr.bf16.gmra.mxu0 %v613
      %v980 = vpop.f32.mrf.mxu0
      %v981 = vadd.f32 %v331, %v980
      %v982 = vpop.f32.mrf.mxu0
      %v983 = vpop.f32.mrf.mxu0
      %v984 = vadd.f32 %v331, %v983
      %v985 = vpop.f32.mrf.mxu0
      %986 = vmatprep.mubr.bf16.mxu0 %v617
      %987 = vmatmul.mubr.bf16.gmra.mxu0 %v616
      %v988 = vpop.f32.mrf.mxu0
      %v989 = vadd.f32 %v331, %v988
      %v990 = vpop.f32.mrf.mxu0
      %v991 = vpop.f32.mrf.mxu0
      %v992 = vadd.f32 %v331, %v991
      %v993 = vpop.f32.mrf.mxu0
      %994 = vmatprep.mubr.bf16.mxu0 %v620
      %995 = vmatmul.mubr.bf16.gmra.mxu0 %v619
      %v996 = vpop.f32.mrf.mxu0
      %v997 = vadd.f32 %v331, %v996
      %v998 = vpop.f32.mrf.mxu0
      %v999 = vpop.f32.mrf.mxu0
      %v1000 = vadd.f32 %v331, %v999
      %v1001 = vpop.f32.mrf.mxu0
      %1002 = vmatprep.mubr.bf16.mxu0 %v623
      %1003 = vmatmul.mubr.bf16.gmra.mxu0 %v622
      %v1004 = vpop.f32.mrf.mxu0
      %v1005 = vadd.f32 %v331, %v1004
      %v1006 = vpop.f32.mrf.mxu0
      %v1007 = vpop.f32.mrf.mxu0
      %v1008 = vadd.f32 %v331, %v1007
      %v1009 = vpop.f32.mrf.mxu0
      %1010 = vmatprep.mubr.bf16.mxu0 %v626
      %1011 = vmatmul.mubr.bf16.gmra.mxu0 %v625
      %v1012 = vpop.f32.mrf.mxu0
      %v1013 = vadd.f32 %v331, %v1012
      %v1014 = vpop.f32.mrf.mxu0
      %v1015 = vpop.f32.mrf.mxu0
      %v1016 = vadd.f32 %v331, %v1015
      %v1017 = vpop.f32.mrf.mxu0
      %1018 = vmatprep.mubr.bf16.mxu0 %v629
      %1019 = vmatmul.mubr.bf16.gmra.mxu0 %v628
      %v1020 = vpop.f32.mrf.mxu0
      %v1021 = vadd.f32 %v331, %v1020
      %v1022 = vpop.f32.mrf.mxu0
      %v1023 = vpop.f32.mrf.mxu0
      %v1024 = vadd.f32 %v331, %v1023
      %v1025 = vpop.f32.mrf.mxu0
      %1026 = vmatprep.mubr.bf16.mxu0 %v632
      %1027 = vmatmul.mubr.bf16.gmra.mxu0 %v631
      %v1028 = vpop.f32.mrf.mxu0
      %v1029 = vadd.f32 %v331, %v1028
      %v1030 = vpop.f32.mrf.mxu0
      %v1031 = vpop.f32.mrf.mxu0
      %v1032 = vadd.f32 %v331, %v1031
      %v1033 = vpop.f32.mrf.mxu0
      %1034 = vmatprep.mubr.bf16.mxu0 %v635
      %1035 = vmatmul.mubr.bf16.gmra.mxu0 %v634
      %v1036 = vpop.f32.mrf.mxu0
      %v1037 = vadd.f32 %v331, %v1036
      %v1038 = vpop.f32.mrf.mxu0
      %v1039 = vpop.f32.mrf.mxu0
      %v1040 = vadd.f32 %v331, %v1039
      %v1041 = vpop.f32.mrf.mxu0
      %1042 = vmatprep.mubr.bf16.mxu0 %v638
      %1043 = vmatmul.mubr.bf16.gmra.mxu0 %v637
      %v1044 = vpop.f32.mrf.mxu0
      %v1045 = vadd.f32 %v331, %v1044
      %v1046 = vpop.f32.mrf.mxu0
      %v1047 = vpop.f32.mrf.mxu0
      %v1048 = vadd.f32 %v331, %v1047
      %v1049 = vpop.f32.mrf.mxu0
      %1050 = vmatprep.mubr.bf16.mxu0 %v641
      %1051 = vmatmul.mubr.bf16.gmra.mxu0 %v640
      %v1052 = vpop.f32.mrf.mxu0
      %v1053 = vadd.f32 %v331, %v1052
      %v1054 = vpop.f32.mrf.mxu0
      %v1055 = vpop.f32.mrf.mxu0
      %v1056 = vadd.f32 %v331, %v1055
      %v1057 = vpop.f32.mrf.mxu0
      %1058 = vmatprep.mubr.bf16.mxu0 %v644
      %1059 = vmatmul.mubr.bf16.gmra.mxu0 %v643
      %v1060 = vpop.f32.mrf.mxu0
      %v1061 = vadd.f32 %v331, %v1060
      %v1062 = vpop.f32.mrf.mxu0
      %v1063 = vpop.f32.mrf.mxu0
      %v1064 = vadd.f32 %v331, %v1063
      %v1065 = vpop.f32.mrf.mxu0
      %1066 = vmatprep.mubr.bf16.mxu0 %v647
      %1067 = vmatmul.mubr.bf16.gmra.mxu0 %v646
      %v1068 = vpop.f32.mrf.mxu0
      %v1069 = vadd.f32 %v331, %v1068
      %v1070 = vpop.f32.mrf.mxu0
      %v1071 = vpop.f32.mrf.mxu0
      %v1072 = vadd.f32 %v331, %v1071
      %v1073 = vpop.f32.mrf.mxu0
      %1074 = vmatprep.mubr.bf16.mxu0 %v650
      %1075 = vmatmul.mubr.bf16.gmra.mxu0 %v649
      %v1076 = vpop.f32.mrf.mxu0
      %v1077 = vadd.f32 %v331, %v1076
      %v1078 = vpop.f32.mrf.mxu0
      %v1079 = vpop.f32.mrf.mxu0
      %v1080 = vadd.f32 %v331, %v1079
      %v1081 = vpop.f32.mrf.mxu0
      %1082 = vmatprep.mubr.bf16.mxu0 %v653
      %1083 = vmatmul.mubr.bf16.gmra.mxu0 %v652
      %v1084 = vpop.f32.mrf.mxu0
      %v1085 = vadd.f32 %v331, %v1084
      %v1086 = vpop.f32.mrf.mxu0
      %v1087 = vpop.f32.mrf.mxu0
      %v1088 = vadd.f32 %v331, %v1087
      %v1089 = vpop.f32.mrf.mxu0
      %1090 = vmatprep.mubr.bf16.mxu0 %v656
      %1091 = vmatmul.mubr.bf16.gmra.mxu0 %v655
      %v1092 = vpop.f32.mrf.mxu0
      %v1093 = vadd.f32 %v331, %v1092
      %v1094 = vpop.f32.mrf.mxu0
      %v1095 = vpop.f32.mrf.mxu0
      %v1096 = vadd.f32 %v331, %v1095
      %v1097 = vpop.f32.mrf.mxu0
      %1098 = vmatprep.mubr.bf16.mxu0 %v659
      %1099 = vmatmul.mubr.bf16.gmra.mxu0 %v658
      %v1100 = vpop.f32.mrf.mxu0
      %v1101 = vadd.f32 %v331, %v1100
      %v1102 = vpop.f32.mrf.mxu0
      %v1103 = vpop.f32.mrf.mxu0
      %v1104 = vadd.f32 %v331, %v1103
      %v1105 = vpop.f32.mrf.mxu0
      %1106 = vmatprep.mubr.bf16.mxu0 %v662
      %1107 = vmatmul.mubr.bf16.gmra.mxu0 %v661
      %v1108 = vpop.f32.mrf.mxu0
      %v1109 = vadd.f32 %v331, %v1108
      %v1110 = vpop.f32.mrf.mxu0
      %v1111 = vpop.f32.mrf.mxu0
      %v1112 = vadd.f32 %v331, %v1111
      %v1113 = vpop.f32.mrf.mxu0
      %1114 = vmatprep.mubr.bf16.mxu0 %v665
      %1115 = vmatmul.mubr.bf16.gmra.mxu0 %v664
      %v1116 = vpop.f32.mrf.mxu0
      %v1117 = vadd.f32 %v331, %v1116
      %v1118 = vpop.f32.mrf.mxu0
      %v1119 = vpop.f32.mrf.mxu0
      %v1120 = vadd.f32 %v331, %v1119
      %v1121 = vpop.f32.mrf.mxu0
      %1122 = vmatprep.mubr.bf16.mxu0 %v668
      %1123 = vmatmul.mubr.bf16.gmra.mxu0 %v667
      %v1124 = vpop.f32.mrf.mxu0
      %v1125 = vadd.f32 %v331, %v1124
      %v1126 = vpop.f32.mrf.mxu0
      %v1127 = vpop.f32.mrf.mxu0
      %v1128 = vadd.f32 %v331, %v1127
      %v1129 = vpop.f32.mrf.mxu0
      %1130 = vmatprep.mubr.bf16.mxu0 %v671
      %1131 = vmatmul.mubr.bf16.gmra.mxu0 %v670
      %v1132 = vpop.f32.mrf.mxu0
      %v1133 = vadd.f32 %v331, %v1132
      %v1134 = vpop.f32.mrf.mxu0
      %v1135 = vpop.f32.mrf.mxu0
      %v1136 = vadd.f32 %v331, %v1135
      %v1137 = vpop.f32.mrf.mxu0
      %1138 = vmatprep.mubr.bf16.mxu0 %v674
      %1139 = vmatmul.mubr.bf16.gmra.mxu0 %v673
      %v1140 = vpop.f32.mrf.mxu0
      %v1141 = vadd.f32 %v331, %v1140
      %v1142 = vpop.f32.mrf.mxu0
      %v1143 = vpop.f32.mrf.mxu0
      %v1144 = vadd.f32 %v331, %v1143
      %v1145 = vpop.f32.mrf.mxu0
      %1146 = vmatprep.mubr.bf16.mxu0 %v677
      %1147 = vmatmul.mubr.bf16.gmra.mxu0 %v676
      %v1148 = vpop.f32.mrf.mxu0
      %v1149 = vadd.f32 %v331, %v1148
      %v1150 = vpop.f32.mrf.mxu0
      %v1151 = vpop.f32.mrf.mxu0
      %v1152 = vadd.f32 %v331, %v1151
      %v1153 = vpop.f32.mrf.mxu0
      %1154 = vmatprep.mubr.bf16.mxu0 %v680
      %1155 = vmatmul.mubr.bf16.gmra.mxu0 %v679
      %v1156 = vpop.f32.mrf.mxu0
      %v1157 = vadd.f32 %v331, %v1156
      %v1158 = vpop.f32.mrf.mxu0
      %v1159 = vpop.f32.mrf.mxu0
      %v1160 = vadd.f32 %v331, %v1159
      %v1161 = vpop.f32.mrf.mxu0
      %1162 = vmatprep.mubr.bf16.mxu0 %v683
      %1163 = vmatmul.mubr.bf16.gmra.mxu0 %v682
      %v1164 = vpop.f32.mrf.mxu0
      %v1165 = vadd.f32 %v331, %v1164
      %v1166 = vpop.f32.mrf.mxu0
      %v1167 = vpop.f32.mrf.mxu0
      %v1168 = vadd.f32 %v331, %v1167
      %v1169 = vpop.f32.mrf.mxu0
      %1170 = vmatprep.mubr.bf16.mxu0 %v686
      %1171 = vmatmul.mubr.bf16.gmra.mxu0 %v685
      %v1172 = vpop.f32.mrf.mxu0
      %v1173 = vadd.f32 %v331, %v1172
      %v1174 = vpop.f32.mrf.mxu0
      %v1175 = vpop.f32.mrf.mxu0
      %v1176 = vadd.f32 %v331, %v1175
      %v1177 = vpop.f32.mrf.mxu0
      %1178 = vmatprep.mubr.bf16.mxu0 %v689
      %1179 = vmatmul.mubr.bf16.gmra.mxu0 %v688
      %v1180 = vpop.f32.mrf.mxu0
      %v1181 = vadd.f32 %v331, %v1180
      %v1182 = vpop.f32.mrf.mxu0
      %v1183 = vpop.f32.mrf.mxu0
      %v1184 = vadd.f32 %v331, %v1183
      %v1185 = vpop.f32.mrf.mxu0
      %1186 = vmatprep.mubr.bf16.mxu0 %v692
      %1187 = vmatmul.mubr.bf16.gmra.mxu0 %v691
      %v1188 = vpop.f32.mrf.mxu0
      %v1189 = vadd.f32 %v331, %v1188
      %v1190 = vpop.f32.mrf.mxu0
      %v1191 = vpop.f32.mrf.mxu0
      %v1192 = vadd.f32 %v331, %v1191
      %v1193 = vpop.f32.mrf.mxu0
      %1194 = vmatprep.mubr.bf16.mxu0 %v695
      %1195 = vmatmul.mubr.bf16.gmra.mxu0 %v694
      %v1196 = vpop.f32.mrf.mxu0
      %v1197 = vadd.f32 %v331, %v1196
      %v1198 = vpop.f32.mrf.mxu0
      %v1199 = vpop.f32.mrf.mxu0
      %v1200 = vadd.f32 %v331, %v1199
      %v1201 = vpop.f32.mrf.mxu0
      %1202 = vdwg.mxu0
      %1203 = vmatprep.subr.bf16.mxu0 0
      %1204 = vmatpush1.bf16.msra.mxu0 0
      %1205 = vmatprep.subr.bf16.mxu0 0
      %1206 = vmatpush1.bf16.msra.mxu0 0
      %1207 = vmatprep.subr.bf16.mxu0 0
      %1208 = vmatpush1.bf16.msra.mxu0 0
      %1209 = vmatprep.subr.bf16.mxu0 0
      %1210 = vmatpush1.bf16.msra.mxu0 0
      %1211 = vmatprep.subr.bf16.mxu0 0
      %1212 = vmatpush1.bf16.msra.mxu0 0
      %1213 = vmatprep.subr.bf16.mxu0 0
      %1214 = vmatpush1.bf16.msra.mxu0 0
      %1215 = vmatprep.subr.bf16.mxu0 0
      %1216 = vmatpush1.bf16.msra.mxu0 %v842
      %1217 = vmatprep.subr.bf16.mxu0 0
      %1218 = vmatpush1.bf16.msra.mxu0 %v841
      %1219 = vmatprep.subr.bf16.mxu0 0
      %1220 = vmatpush2.bf16.msra.mxu0 0
      %1221 = vmatprep.subr.bf16.mxu0 0
      %1222 = vmatpush2.bf16.msra.mxu0 0
      %1223 = vmatprep.subr.bf16.mxu0 0
      %1224 = vmatpush2.bf16.msra.mxu0 0
      %1225 = vmatprep.subr.bf16.mxu0 0
      %1226 = vmatpush2.bf16.msra.mxu0 0
      %1227 = vmatprep.subr.bf16.mxu0 0
      %1228 = vmatpush2.bf16.msra.mxu0 0
      %1229 = vmatprep.subr.bf16.mxu0 0
      %1230 = vmatpush2.bf16.msra.mxu0 0
      %1231 = vmatprep.subr.bf16.mxu0 0
      %1232 = vmatpush2.bf16.msra.mxu0 0
      %1233 = vmatprep.subr.bf16.mxu0 0
      %1234 = vmatpush2.bf16.msra.mxu0 0
      %1235 = vmatprep.mubr.bf16.mxu0 0
      %1236 = vmatmul.mubr.bf16.gmra.mxu0 %v863
      %v1237 = vpop.f32.mrf.mxu0
      %v1238 = vadd.f32 %v981, %v1237
      %v1239 = vpop.f32.mrf.mxu0
      %v1240 = vpop.f32.mrf.mxu0
      %v1241 = vadd.f32 %v984, %v1240
      %v1242 = vpop.f32.mrf.mxu0
      %1243 = vmatprep.mubr.bf16.mxu0 0
      %1244 = vmatmul.mubr.bf16.gmra.mxu0 %v866
      %v1245 = vpop.f32.mrf.mxu0
      %v1246 = vadd.f32 %v989, %v1245
      %v1247 = vpop.f32.mrf.mxu0
      %v1248 = vpop.f32.mrf.mxu0
      %v1249 = vadd.f32 %v992, %v1248
      %v1250 = vpop.f32.mrf.mxu0
      %1251 = vmatprep.mubr.bf16.mxu0 0
      %1252 = vmatmul.mubr.bf16.gmra.mxu0 %v869
      %v1253 = vpop.f32.mrf.mxu0
      %v1254 = vadd.f32 %v997, %v1253
      %v1255 = vpop.f32.mrf.mxu0
      %v1256 = vpop.f32.mrf.mxu0
      %v1257 = vadd.f32 %v1000, %v1256
      %v1258 = vpop.f32.mrf.mxu0
      %1259 = vmatprep.mubr.bf16.mxu0 0
      %1260 = vmatmul.mubr.bf16.gmra.mxu0 %v872
      %v1261 = vpop.f32.mrf.mxu0
      %v1262 = vadd.f32 %v1005, %v1261
      %v1263 = vpop.f32.mrf.mxu0
      %v1264 = vpop.f32.mrf.mxu0
      %v1265 = vadd.f32 %v1008, %v1264
      %v1266 = vpop.f32.mrf.mxu0
      %1267 = vmatprep.mubr.bf16.mxu0 0
      %1268 = vmatmul.mubr.bf16.gmra.mxu0 %v875
      %v1269 = vpop.f32.mrf.mxu0
      %v1270 = vadd.f32 %v1013, %v1269
      %v1271 = vpop.f32.mrf.mxu0
      %v1272 = vpop.f32.mrf.mxu0
      %v1273 = vadd.f32 %v1016, %v1272
      %v1274 = vpop.f32.mrf.mxu0
      %1275 = vmatprep.mubr.bf16.mxu0 0
      %1276 = vmatmul.mubr.bf16.gmra.mxu0 %v878
      %v1277 = vpop.f32.mrf.mxu0
      %v1278 = vadd.f32 %v1021, %v1277
      %v1279 = vpop.f32.mrf.mxu0
      %v1280 = vpop.f32.mrf.mxu0
      %v1281 = vadd.f32 %v1024, %v1280
      %v1282 = vpop.f32.mrf.mxu0
      %1283 = vmatprep.mubr.bf16.mxu0 0
      %1284 = vmatmul.mubr.bf16.gmra.mxu0 %v881
      %v1285 = vpop.f32.mrf.mxu0
      %v1286 = vadd.f32 %v1029, %v1285
      %v1287 = vpop.f32.mrf.mxu0
      %v1288 = vpop.f32.mrf.mxu0
      %v1289 = vadd.f32 %v1032, %v1288
      %v1290 = vpop.f32.mrf.mxu0
      %1291 = vmatprep.mubr.bf16.mxu0 0
      %1292 = vmatmul.mubr.bf16.gmra.mxu0 %v884
      %v1293 = vpop.f32.mrf.mxu0
      %v1294 = vadd.f32 %v1037, %v1293
      %v1295 = vpop.f32.mrf.mxu0
      %v1296 = vpop.f32.mrf.mxu0
      %v1297 = vadd.f32 %v1040, %v1296
      %v1298 = vpop.f32.mrf.mxu0
      %1299 = vmatprep.mubr.bf16.mxu0 0
      %1300 = vmatmul.mubr.bf16.gmra.mxu0 %v887
      %v1301 = vpop.f32.mrf.mxu0
      %v1302 = vadd.f32 %v1045, %v1301
      %v1303 = vpop.f32.mrf.mxu0
      %v1304 = vpop.f32.mrf.mxu0
      %v1305 = vadd.f32 %v1048, %v1304
      %v1306 = vpop.f32.mrf.mxu0
      %1307 = vmatprep.mubr.bf16.mxu0 0
      %1308 = vmatmul.mubr.bf16.gmra.mxu0 %v890
      %v1309 = vpop.f32.mrf.mxu0
      %v1310 = vadd.f32 %v1053, %v1309
      %v1311 = vpop.f32.mrf.mxu0
      %v1312 = vpop.f32.mrf.mxu0
      %v1313 = vadd.f32 %v1056, %v1312
      %v1314 = vpop.f32.mrf.mxu0
      %1315 = vmatprep.mubr.bf16.mxu0 0
      %1316 = vmatmul.mubr.bf16.gmra.mxu0 %v893
      %v1317 = vpop.f32.mrf.mxu0
      %v1318 = vadd.f32 %v1061, %v1317
      %v1319 = vpop.f32.mrf.mxu0
      %v1320 = vpop.f32.mrf.mxu0
      %v1321 = vadd.f32 %v1064, %v1320
      %v1322 = vpop.f32.mrf.mxu0
      %1323 = vmatprep.mubr.bf16.mxu0 0
      %1324 = vmatmul.mubr.bf16.gmra.mxu0 %v896
      %v1325 = vpop.f32.mrf.mxu0
      %v1326 = vadd.f32 %v1069, %v1325
      %v1327 = vpop.f32.mrf.mxu0
      %v1328 = vpop.f32.mrf.mxu0
      %v1329 = vadd.f32 %v1072, %v1328
      %v1330 = vpop.f32.mrf.mxu0
      %1331 = vmatprep.mubr.bf16.mxu0 0
      %1332 = vmatmul.mubr.bf16.gmra.mxu0 %v899
      %v1333 = vpop.f32.mrf.mxu0
      %v1334 = vadd.f32 %v1077, %v1333
      %v1335 = vpop.f32.mrf.mxu0
      %v1336 = vpop.f32.mrf.mxu0
      %v1337 = vadd.f32 %v1080, %v1336
      %v1338 = vpop.f32.mrf.mxu0
      %1339 = vmatprep.mubr.bf16.mxu0 0
      %1340 = vmatmul.mubr.bf16.gmra.mxu0 %v902
      %v1341 = vpop.f32.mrf.mxu0
      %v1342 = vadd.f32 %v1085, %v1341
      %v1343 = vpop.f32.mrf.mxu0
      %v1344 = vpop.f32.mrf.mxu0
      %v1345 = vadd.f32 %v1088, %v1344
      %v1346 = vpop.f32.mrf.mxu0
      %1347 = vmatprep.mubr.bf16.mxu0 0
      %1348 = vmatmul.mubr.bf16.gmra.mxu0 %v905
      %v1349 = vpop.f32.mrf.mxu0
      %v1350 = vadd.f32 %v1093, %v1349
      %v1351 = vpop.f32.mrf.mxu0
      %v1352 = vpop.f32.mrf.mxu0
      %v1353 = vadd.f32 %v1096, %v1352
      %v1354 = vpop.f32.mrf.mxu0
      %1355 = vmatprep.mubr.bf16.mxu0 0
      %1356 = vmatmul.mubr.bf16.gmra.mxu0 %v908
      %v1357 = vpop.f32.mrf.mxu0
      %v1358 = vadd.f32 %v1101, %v1357
      %v1359 = vpop.f32.mrf.mxu0
      %v1360 = vpop.f32.mrf.mxu0
      %v1361 = vadd.f32 %v1104, %v1360
      %v1362 = vpop.f32.mrf.mxu0
      %1363 = vmatprep.mubr.bf16.mxu0 0
      %1364 = vmatmul.mubr.bf16.gmra.mxu0 %v911
      %v1365 = vpop.f32.mrf.mxu0
      %v1366 = vadd.f32 %v1109, %v1365
      %v1367 = vpop.f32.mrf.mxu0
      %v1368 = vpop.f32.mrf.mxu0
      %v1369 = vadd.f32 %v1112, %v1368
      %v1370 = vpop.f32.mrf.mxu0
      %1371 = vmatprep.mubr.bf16.mxu0 0
      %1372 = vmatmul.mubr.bf16.gmra.mxu0 %v914
      %v1373 = vpop.f32.mrf.mxu0
      %v1374 = vadd.f32 %v1117, %v1373
      %v1375 = vpop.f32.mrf.mxu0
      %v1376 = vpop.f32.mrf.mxu0
      %v1377 = vadd.f32 %v1120, %v1376
      %v1378 = vpop.f32.mrf.mxu0
      %1379 = vmatprep.mubr.bf16.mxu0 0
      %1380 = vmatmul.mubr.bf16.gmra.mxu0 %v917
      %v1381 = vpop.f32.mrf.mxu0
      %v1382 = vadd.f32 %v1125, %v1381
      %v1383 = vpop.f32.mrf.mxu0
      %v1384 = vpop.f32.mrf.mxu0
      %v1385 = vadd.f32 %v1128, %v1384
      %v1386 = vpop.f32.mrf.mxu0
      %1387 = vmatprep.mubr.bf16.mxu0 0
      %1388 = vmatmul.mubr.bf16.gmra.mxu0 %v920
      %v1389 = vpop.f32.mrf.mxu0
      %v1390 = vadd.f32 %v1133, %v1389
      %v1391 = vpop.f32.mrf.mxu0
      %v1392 = vpop.f32.mrf.mxu0
      %v1393 = vadd.f32 %v1136, %v1392
      %v1394 = vpop.f32.mrf.mxu0
      %1395 = vmatprep.mubr.bf16.mxu0 0
      %1396 = vmatmul.mubr.bf16.gmra.mxu0 %v923
      %v1397 = vpop.f32.mrf.mxu0
      %v1398 = vadd.f32 %v1141, %v1397
      %v1399 = vpop.f32.mrf.mxu0
      %v1400 = vpop.f32.mrf.mxu0
      %v1401 = vadd.f32 %v1144, %v1400
      %v1402 = vpop.f32.mrf.mxu0
      %1403 = vmatprep.mubr.bf16.mxu0 0
      %1404 = vmatmul.mubr.bf16.gmra.mxu0 %v926
      %v1405 = vpop.f32.mrf.mxu0
      %v1406 = vadd.f32 %v1149, %v1405
      %v1407 = vpop.f32.mrf.mxu0
      %v1408 = vpop.f32.mrf.mxu0
      %v1409 = vadd.f32 %v1152, %v1408
      %v1410 = vpop.f32.mrf.mxu0
      %1411 = vmatprep.mubr.bf16.mxu0 0
      %1412 = vmatmul.mubr.bf16.gmra.mxu0 %v929
      %v1413 = vpop.f32.mrf.mxu0
      %v1414 = vadd.f32 %v1157, %v1413
      %v1415 = vpop.f32.mrf.mxu0
      %v1416 = vpop.f32.mrf.mxu0
      %v1417 = vadd.f32 %v1160, %v1416
      %v1418 = vpop.f32.mrf.mxu0
      %1419 = vmatprep.mubr.bf16.mxu0 0
      %1420 = vmatmul.mubr.bf16.gmra.mxu0 %v932
      %v1421 = vpop.f32.mrf.mxu0
      %v1422 = vadd.f32 %v1165, %v1421
      %v1423 = vpop.f32.mrf.mxu0
      %v1424 = vpop.f32.mrf.mxu0
      %v1425 = vadd.f32 %v1168, %v1424
      %v1426 = vpop.f32.mrf.mxu0
      %1427 = vmatprep.mubr.bf16.mxu0 0
      %1428 = vmatmul.mubr.bf16.gmra.mxu0 %v935
      %v1429 = vpop.f32.mrf.mxu0
      %v1430 = vadd.f32 %v1173, %v1429
      %v1431 = vpop.f32.mrf.mxu0
      %v1432 = vpop.f32.mrf.mxu0
      %v1433 = vadd.f32 %v1176, %v1432
      %v1434 = vpop.f32.mrf.mxu0
      %1435 = vmatprep.mubr.bf16.mxu0 0
      %1436 = vmatmul.mubr.bf16.gmra.mxu0 %v938
      %v1437 = vpop.f32.mrf.mxu0
      %v1438 = vadd.f32 %v1181, %v1437
      %v1439 = vpop.f32.mrf.mxu0
      %v1440 = vpop.f32.mrf.mxu0
      %v1441 = vadd.f32 %v1184, %v1440
      %v1442 = vpop.f32.mrf.mxu0
      %1443 = vmatprep.mubr.bf16.mxu0 0
      %1444 = vmatmul.mubr.bf16.gmra.mxu0 %v941
      %v1445 = vpop.f32.mrf.mxu0
      %v1446 = vadd.f32 %v1189, %v1445
      %v1447 = vpop.f32.mrf.mxu0
      %v1448 = vpop.f32.mrf.mxu0
      %v1449 = vadd.f32 %v1192, %v1448
      %v1450 = vpop.f32.mrf.mxu0
      %1451 = vmatprep.mubr.bf16.mxu0 0
      %1452 = vmatmul.mubr.bf16.gmra.mxu0 %v944
      %v1453 = vpop.f32.mrf.mxu0
      %v1454 = vadd.f32 %v1197, %v1453
      %v1455 = vpop.f32.mrf.mxu0
      %v1456 = vpop.f32.mrf.mxu0
      %v1457 = vadd.f32 %v1200, %v1456
      %v1458 = vpop.f32.mrf.mxu0
      %1459 = vdwg.mxu0
      %v1460 = vmax.f32 %v1238, 0.0
      %v1461 = vmax.f32 %v1241, 0.0
      %v1462 = vmax.f32 %v1246, 0.0
      %v1463 = vmax.f32 %v1249, 0.0
      %v1464 = vmax.f32 %v1254, 0.0
      %v1465 = vmax.f32 %v1257, 0.0
      %v1466 = vmax.f32 %v1262, 0.0
      %v1467 = vmax.f32 %v1265, 0.0
      %v1468 = vmax.f32 %v1270, 0.0
      %v1469 = vmax.f32 %v1273, 0.0
      %v1470 = vmax.f32 %v1278, 0.0
      %v1471 = vmax.f32 %v1281, 0.0
      %v1472 = vmax.f32 %v1286, 0.0
      %v1473 = vmax.f32 %v1289, 0.0
      %v1474 = vmax.f32 %v1294, 0.0
      %v1475 = vmax.f32 %v1297, 0.0
      %v1476 = vmax.f32 %v1302, 0.0
      %v1477 = vmax.f32 %v1305, 0.0
      %v1478 = vmax.f32 %v1310, 0.0
      %v1479 = vmax.f32 %v1313, 0.0
      %v1480 = vmax.f32 %v1318, 0.0
      %v1481 = vmax.f32 %v1321, 0.0
      %v1482 = vmax.f32 %v1326, 0.0
      %v1483 = vmax.f32 %v1329, 0.0
      %v1484 = vmax.f32 %v1334, 0.0
      %v1485 = vmax.f32 %v1337, 0.0
      %v1486 = vmax.f32 %v1342, 0.0
      %v1487 = vmax.f32 %v1345, 0.0
      %v1488 = vmax.f32 %v1350, 0.0
      %v1489 = vmax.f32 %v1353, 0.0
      %v1490 = vmax.f32 %v1358, 0.0
      %v1491 = vmax.f32 %v1361, 0.0
      %v1492 = vmax.f32 %v1366, 0.0
      %v1493 = vmax.f32 %v1369, 0.0
      %v1494 = vmax.f32 %v1374, 0.0
      %v1495 = vmax.f32 %v1377, 0.0
      %v1496 = vmax.f32 %v1382, 0.0
      %v1497 = vmax.f32 %v1385, 0.0
      %v1498 = vmax.f32 %v1390, 0.0
      %v1499 = vmax.f32 %v1393, 0.0
      %v1500 = vmax.f32 %v1398, 0.0
      %v1501 = vmax.f32 %v1401, 0.0
      %v1502 = vmax.f32 %v1406, 0.0
      %v1503 = vmax.f32 %v1409, 0.0
      %v1504 = vmax.f32 %v1414, 0.0
      %v1505 = vmax.f32 %v1417, 0.0
      %v1506 = vmax.f32 %v1422, 0.0
      %v1507 = vmax.f32 %v1425, 0.0
      %v1508 = vmax.f32 %v1430, 0.0
      %v1509 = vmax.f32 %v1433, 0.0
      %v1510 = vmax.f32 %v1438, 0.0
      %v1511 = vmax.f32 %v1441, 0.0
      %v1512 = vmax.f32 %v1446, 0.0
      %v1513 = vmax.f32 %v1449, 0.0
      %v1514 = vmax.f32 %v1454, 0.0
      %v1515 = vmax.f32 %v1457, 0.0
      %v1516 = vpack.c.bf16 %v1461, %v1460
      %v1517 = vpack.c.bf16 %v1463, %v1462
      %v1518 = vpack.c.bf16 %v1465, %v1464
      %v1519 = vpack.c.bf16 %v1467, %v1466
      %v1520 = vpack.c.bf16 %v1469, %v1468
      %v1521 = vpack.c.bf16 %v1471, %v1470
      %v1522 = vpack.c.bf16 %v1473, %v1472
      %v1523 = vpack.c.bf16 %v1475, %v1474
      %v1524 = vpack.c.bf16 %v1477, %v1476
      %v1525 = vpack.c.bf16 %v1479, %v1478
      %v1526 = vpack.c.bf16 %v1481, %v1480
      %v1527 = vpack.c.bf16 %v1483, %v1482
      %v1528 = vpack.c.bf16 %v1485, %v1484
      %v1529 = vpack.c.bf16 %v1487, %v1486
      %v1530 = vpack.c.bf16 %v1489, %v1488
      %v1531 = vpack.c.bf16 %v1491, %v1490
      %v1532 = vpack.c.bf16 %v1493, %v1492
      %v1533 = vpack.c.bf16 %v1495, %v1494
      %v1534 = vpack.c.bf16 %v1497, %v1496
      %v1535 = vpack.c.bf16 %v1499, %v1498
      %v1536 = vpack.c.bf16 %v1501, %v1500
      %v1537 = vpack.c.bf16 %v1503, %v1502
      %v1538 = vpack.c.bf16 %v1505, %v1504
      %v1539 = vpack.c.bf16 %v1507, %v1506
      %v1540 = vpack.c.bf16 %v1509, %v1508
      %v1541 = vpack.c.bf16 %v1511, %v1510
      %v1542 = vpack.c.bf16 %v1513, %v1512
      %v1543 = vpack.c.bf16 %v1515, %v1514
      %v1572 = vunpack.c.l.b16 %v1516
      %v1573 = vunpack.c.h.b16 %v1516
      %v1574 = vunpack.c.l.b16 %v1517
      %v1575 = vunpack.c.h.b16 %v1517
      %v1576 = vunpack.c.l.b16 %v1518
      %v1577 = vunpack.c.h.b16 %v1518
      %v1578 = vunpack.c.l.b16 %v1519
      %v1579 = vunpack.c.h.b16 %v1519
      %v1580 = vunpack.c.l.b16 %v1520
      %v1581 = vunpack.c.h.b16 %v1520
      %v1582 = vunpack.c.l.b16 %v1521
      %v1583 = vunpack.c.h.b16 %v1521
      %v1584 = vunpack.c.l.b16 %v1522
      %v1585 = vunpack.c.h.b16 %v1522
      %v1586 = vunpack.c.l.b16 %v1523
      %v1587 = vunpack.c.h.b16 %v1523
      %v1588 = vunpack.c.l.b16 %v1524
      %v1589 = vunpack.c.h.b16 %v1524
      %v1590 = vunpack.c.l.b16 %v1525
      %v1591 = vunpack.c.h.b16 %v1525
      %v1592 = vunpack.c.l.b16 %v1526
      %v1593 = vunpack.c.h.b16 %v1526
      %v1594 = vunpack.c.l.b16 %v1527
      %v1595 = vunpack.c.h.b16 %v1527
      %v1596 = vunpack.c.l.b16 %v1528
      %v1597 = vunpack.c.h.b16 %v1528
      %v1598 = vunpack.c.l.b16 %v1529
      %v1599 = vunpack.c.h.b16 %v1529
      %v1600 = vunpack.c.l.b16 %v1530
      %v1601 = vunpack.c.h.b16 %v1530
      %v1602 = vunpack.c.l.b16 %v1531
      %v1603 = vunpack.c.h.b16 %v1531
      %v1604 = vunpack.c.l.b16 %v1532
      %v1605 = vunpack.c.h.b16 %v1532
      %v1606 = vunpack.c.l.b16 %v1533
      %v1607 = vunpack.c.h.b16 %v1533
      %v1608 = vunpack.c.l.b16 %v1534
      %v1609 = vunpack.c.h.b16 %v1534
      %v1610 = vunpack.c.l.b16 %v1535
      %v1611 = vunpack.c.h.b16 %v1535
      %v1612 = vunpack.c.l.b16 %v1536
      %v1613 = vunpack.c.h.b16 %v1536
      %v1614 = vunpack.c.l.b16 %v1537
      %v1615 = vunpack.c.h.b16 %v1537
      %v1616 = vunpack.c.l.b16 %v1538
      %v1617 = vunpack.c.h.b16 %v1538
      %v1618 = vunpack.c.l.b16 %v1539
      %v1619 = vunpack.c.h.b16 %v1539
      %v1620 = vunpack.c.l.b16 %v1540
      %v1621 = vunpack.c.h.b16 %v1540
      %v1622 = vunpack.c.l.b16 %v1541
      %v1623 = vunpack.c.h.b16 %v1541
      %v1624 = vunpack.c.l.b16 %v1542
      %v1625 = vunpack.c.h.b16 %v1542
      %v1626 = vunpack.c.l.b16 %v1543
      %v1627 = vunpack.c.h.b16 %v1543
      %v1628 = vpack.c.b16 %v1572, %v1572
      %v1629 = vpack.c.b16 %v1573, %v1573
      %v1630 = vpack.c.b16 %v1574, %v1574
      %v1631 = vpack.c.b16 %v1575, %v1575
      %v1632 = vpack.c.b16 %v1576, %v1576
      %v1633 = vpack.c.b16 %v1577, %v1577
      %v1634 = vpack.c.b16 %v1578, %v1578
      %v1635 = vpack.c.b16 %v1579, %v1579
      %v1636 = vpack.c.b16 %v1580, %v1580
      %v1637 = vpack.c.b16 %v1581, %v1581
      %v1638 = vpack.c.b16 %v1582, %v1582
      %v1639 = vpack.c.b16 %v1583, %v1583
      %v1640 = vpack.c.b16 %v1584, %v1584
      %v1641 = vpack.c.b16 %v1585, %v1585
      %v1642 = vpack.c.b16 %v1586, %v1586
      %v1643 = vpack.c.b16 %v1587, %v1587
      %v1644 = vpack.c.b16 %v1588, %v1588
      %v1645 = vpack.c.b16 %v1589, %v1589
      %v1646 = vpack.c.b16 %v1590, %v1590
      %v1647 = vpack.c.b16 %v1591, %v1591
      %v1648 = vpack.c.b16 %v1592, %v1592
      %v1649 = vpack.c.b16 %v1593, %v1593
      %v1650 = vpack.c.b16 %v1594, %v1594
      %v1651 = vpack.c.b16 %v1595, %v1595
      %v1652 = vpack.c.b16 %v1596, %v1596
      %v1653 = vpack.c.b16 %v1597, %v1597
      %v1654 = vpack.c.b16 %v1598, %v1598
      %v1655 = vpack.c.b16 %v1599, %v1599
      %v1656 = vpack.c.b16 %v1600, %v1600
      %v1657 = vpack.c.b16 %v1601, %v1601
      %v1658 = vpack.c.b16 %v1602, %v1602
      %v1659 = vpack.c.b16 %v1603, %v1603
      %v1660 = vpack.c.b16 %v1604, %v1604
      %v1661 = vpack.c.b16 %v1605, %v1605
      %v1662 = vpack.c.b16 %v1606, %v1606
      %v1663 = vpack.c.b16 %v1607, %v1607
      %v1664 = vpack.c.b16 %v1608, %v1608
      %v1665 = vpack.c.b16 %v1609, %v1609
      %v1666 = vpack.c.b16 %v1610, %v1610
      %v1667 = vpack.c.b16 %v1611, %v1611
      %v1668 = vpack.c.b16 %v1612, %v1612
      %v1669 = vpack.c.b16 %v1613, %v1613
      %v1670 = vpack.c.b16 %v1614, %v1614
      %v1671 = vpack.c.b16 %v1615, %v1615
      %v1672 = vpack.c.b16 %v1616, %v1616
      %v1673 = vpack.c.b16 %v1617, %v1617
      %v1674 = vpack.c.b16 %v1618, %v1618
      %v1675 = vpack.c.b16 %v1619, %v1619
      %v1676 = vpack.c.b16 %v1620, %v1620
      %v1677 = vpack.c.b16 %v1621, %v1621
      %v1678 = vpack.c.b16 %v1622, %v1622
      %v1679 = vpack.c.b16 %v1623, %v1623
      %v1680 = vpack.c.b16 %v1624, %v1624
      %v1681 = vpack.c.b16 %v1625, %v1625
      %v1682 = vpack.c.b16 %v1626, %v1626
      %v1683 = vpack.c.b16 %v1627, %v1627
      %vm1740 = vcmask 257024
      %1741 = vst.msk [vmem:[%s175] sm:$0xf] %vm1740, %v1628
      %1742 = vst.msk [vmem:[%s175 + $0x4] sm:$0xf] %vm1740, %v1629
      %1743 = vst.msk [vmem:[%s175 + $0x8] sm:$0xf] %vm1740, %v1630
      %1744 = vst.msk [vmem:[%s175 + $0xc] sm:$0xf] %vm1740, %v1631
      %1745 = vst.msk [vmem:[%s175 + $0x10] sm:$0xf] %vm1740, %v1632
      %1746 = vst.msk [vmem:[%s175 + $0x14] sm:$0xf] %vm1740, %v1633
      %1747 = vst.msk [vmem:[%s175 + $0x18] sm:$0xf] %vm1740, %v1634
      %1748 = vst.msk [vmem:[%s175 + $0x1c] sm:$0xf] %vm1740, %v1635
      %1749 = vst.msk [vmem:[%s175 + $0x20] sm:$0xf] %vm1740, %v1636
      %1750 = vst.msk [vmem:[%s175 + $0x24] sm:$0xf] %vm1740, %v1637
      %1751 = vst.msk [vmem:[%s175 + $0x28] sm:$0xf] %vm1740, %v1638
      %1752 = vst.msk [vmem:[%s175 + $0x2c] sm:$0xf] %vm1740, %v1639
      %1753 = vst.msk [vmem:[%s175 + $0x30] sm:$0xf] %vm1740, %v1640
      %1754 = vst.msk [vmem:[%s175 + $0x34] sm:$0xf] %vm1740, %v1641
      %1755 = vst.msk [vmem:[%s175 + $0x38] sm:$0xf] %vm1740, %v1642
      %1756 = vst.msk [vmem:[%s175 + $0x3c] sm:$0xf] %vm1740, %v1643
      %1757 = vst.msk [vmem:[%s175 + $0x40] sm:$0xf] %vm1740, %v1644
      %1758 = vst.msk [vmem:[%s175 + $0x44] sm:$0xf] %vm1740, %v1645
      %1759 = vst.msk [vmem:[%s175 + $0x48] sm:$0xf] %vm1740, %v1646
      %1760 = vst.msk [vmem:[%s175 + $0x4c] sm:$0xf] %vm1740, %v1647
      %1761 = vst.msk [vmem:[%s175 + $0x50] sm:$0xf] %vm1740, %v1648
      %1762 = vst.msk [vmem:[%s175 + $0x54] sm:$0xf] %vm1740, %v1649
      %1763 = vst.msk [vmem:[%s175 + $0x58] sm:$0xf] %vm1740, %v1650
      %1764 = vst.msk [vmem:[%s175 + $0x5c] sm:$0xf] %vm1740, %v1651
      %1765 = vst.msk [vmem:[%s175 + $0x60] sm:$0xf] %vm1740, %v1652
      %1766 = vst.msk [vmem:[%s175 + $0x64] sm:$0xf] %vm1740, %v1653
      %1767 = vst.msk [vmem:[%s175 + $0x68] sm:$0xf] %vm1740, %v1654
      %1768 = vst.msk [vmem:[%s175 + $0x6c] sm:$0xf] %vm1740, %v1655
      %1769 = vst.msk [vmem:[%s175 + $0x70] sm:$0xf] %vm1740, %v1656
      %1770 = vst.msk [vmem:[%s175 + $0x74] sm:$0xf] %vm1740, %v1657
      %1771 = vst.msk [vmem:[%s175 + $0x78] sm:$0xf] %vm1740, %v1658
      %1772 = vst.msk [vmem:[%s175 + $0x7c] sm:$0xf] %vm1740, %v1659
      %1773 = vst.msk [vmem:[%s175 + $0x80] sm:$0xf] %vm1740, %v1660
      %1774 = vst.msk [vmem:[%s175 + $0x84] sm:$0xf] %vm1740, %v1661
      %1775 = vst.msk [vmem:[%s175 + $0x88] sm:$0xf] %vm1740, %v1662
      %1776 = vst.msk [vmem:[%s175 + $0x8c] sm:$0xf] %vm1740, %v1663
      %1777 = vst.msk [vmem:[%s175 + $0x90] sm:$0xf] %vm1740, %v1664
      %1778 = vst.msk [vmem:[%s175 + $0x94] sm:$0xf] %vm1740, %v1665
      %1779 = vst.msk [vmem:[%s175 + $0x98] sm:$0xf] %vm1740, %v1666
      %1780 = vst.msk [vmem:[%s175 + $0x9c] sm:$0xf] %vm1740, %v1667
      %1781 = vst.msk [vmem:[%s175 + $0xa0] sm:$0xf] %vm1740, %v1668
      %1782 = vst.msk [vmem:[%s175 + $0xa4] sm:$0xf] %vm1740, %v1669
      %1783 = vst.msk [vmem:[%s175 + $0xa8] sm:$0xf] %vm1740, %v1670
      %1784 = vst.msk [vmem:[%s175 + $0xac] sm:$0xf] %vm1740, %v1671
      %1785 = vst.msk [vmem:[%s175 + $0xb0] sm:$0xf] %vm1740, %v1672
      %1786 = vst.msk [vmem:[%s175 + $0xb4] sm:$0xf] %vm1740, %v1673
      %1787 = vst.msk [vmem:[%s175 + $0xb8] sm:$0xf] %vm1740, %v1674
      %1788 = vst.msk [vmem:[%s175 + $0xbc] sm:$0xf] %vm1740, %v1675
      %1789 = vst.msk [vmem:[%s175 + $0xc0] sm:$0xf] %vm1740, %v1676
      %1790 = vst.msk [vmem:[%s175 + $0xc4] sm:$0xf] %vm1740, %v1677
      %1791 = vst.msk [vmem:[%s175 + $0xc8] sm:$0xf] %vm1740, %v1678
      %1792 = vst.msk [vmem:[%s175 + $0xcc] sm:$0xf] %vm1740, %v1679
      %1793 = vst.msk [vmem:[%s175 + $0xd0] sm:$0xf] %vm1740, %v1680
      %1794 = vst.msk [vmem:[%s175 + $0xd4] sm:$0xf] %vm1740, %v1681
      %1795 = vst.msk [vmem:[%s175 + $0xd8] sm:$0xf] %vm1740, %v1682
      %1796 = vst.msk [vmem:[%s175 + $0xdc] sm:$0xf] %vm1740, %v1683
      %s1797 = smul.u32 56, %s14
      %p1798 = scmp.lt.s32.totalorder %s1797, 783
      %s1799 = scalar_select %p1798, %s1797, 783
      %s1800 = smul.addr %s1799, 4
      %s1801 = scalar_lea.vmem %s3, %s1800
      // Predicated region
      $region33: #{generalized_rcnn_forward.17} parent=31 // pred_check
        %p1802 = pneg %p100
      $region34: #{generalized_rcnn_forward.17} parent=31 // pred_check_branch
        %1804 = sbr.rel (%p1802) target = $region36
      $region35: #{generalized_rcnn_forward.17} parent=31 // pred_region
        %s1805 = smul.u32 56, %s14
      $region36: #{generalized_rcnn_forward.17} parent=31 // pred_fallthru
        _
    $region32: #{generalized_rcnn_forward.17} parent=5 // pred_fallthru
      _
    %p1806 = scmp.le.s32.totalorder 2, %s9
    // Predicated region
    $region37: #{generalized_rcnn_forward.17} parent=5 // pred_check
      %p1807 = pneg %p1806
    $region38: #{generalized_rcnn_forward.17} parent=5 // pred_check_branch
      %1809 = sbr.rel (%p1807) target = $region40
    $region39: #{generalized_rcnn_forward.17} parent=5 // pred_region
      %s1810 = ssub.s32 %s9, 2
      // Predicated region
      $region41: #{generalized_rcnn_forward.17} parent=39 // pred_check
        %p1811 = pneg %p106
      $region42: #{generalized_rcnn_forward.17} parent=39 // pred_check_branch
        %1813 = sbr.rel (%p1811) target = $region44
      $region43: #{generalized_rcnn_forward.17} parent=39 // pred_region
        %s1814 = smul.u32 56, %s15
        %p1815 = scmp.lt.s32.totalorder %s1814, 783
        %s1816 = scalar_select %p1815, %s1814, 783
        %s1817 = smul.addr %s1816, 4
        %s1818 = scalar_lea.vmem %s3, %s1817
      $region44: #{generalized_rcnn_forward.17} parent=39 // pred_fallthru
        _
    $region40: #{generalized_rcnn_forward.17} parent=5 // pred_fallthru
      _
  $region6: #{generalized_rcnn_forward.17} parent=0 // loop_footer
    %s13 = sadd.s32 1, %s9
  $region7: #{generalized_rcnn_forward.17} parent=0 // loop_footer_branch
    %8 = sbr.rel target = $region3
  $region8: #{generalized_rcnn_forward.17} parent=0 // loop_exit
    _

// kernel: generalized_rcnn_forward.21
$region0: #{generalized_rcnn_forward.21}
  #allocation0 [shape = 'u32[]', space=smem, size = 0x4, offset = 0x4, fixed_abs, tag = 'smem constant byte address 0x4 - core index']
  #allocation1 [shape = 'u32[144,128]{1,0:T(1,128)}', space=vmem, size = 0x12000, scoped, tag = 'internal scratch']
  %s0 = inlined_call_operand.vmem [shape: bf16[6272,32], index: 0, kind: input, shape index: {}]
  %s1 = inlined_call_operand.vmem [shape: bf16[32,128], index: 1, kind: input, shape index: {}]
  %s2 = inlined_call_operand.vmem [shape: f32[1,128], index: 2, kind: input, shape index: {}, may-alias: {2,4}]
  %s3 = inlined_call_operand.vmem [shape: bf16[128,128], index: 3, kind: input, shape index: {}]
  %s4 = inlined_call_operand.vmem [shape: f32[1,128], index: 4, kind: input, shape index: {}, may-alias: {2,4}]
  %s5 = inlined_call_operand.vmem [shape: bf16[6272,128], index: 5, kind: output, shape index: {}]
  %s6 = sld [smem:[#allocation0]]
  $region53: #{generalized_rcnn_forward.21} parent=0
    _
  %s8 = ssub.s32 1, %s6
  %s9 = scalar_select 0, %s8, %s6
  loop: start=0, step=1, limit=16
  $region2: #{generalized_rcnn_forward.21} parent=0 // loop_pre_header
    _
  $region3: #{generalized_rcnn_forward.21} parent=0 // loop_header
    %s11 = sphi 0, %s15
    %p12 = scmp.ge.s32.totalorder %s11, 16
    %s21 = sphi 0, %s23
    %s24 = sphi 0, %s21
    %s25 = sphi 0, %s24
    %s41 = sphi 0, %s25
    %s45 = sphi 0, %s45
    %s47 = sphi 0, %s45
    %s48 = sphi 0, %s47
    %s62 = sphi 0, %s48
    %s66 = sphi 0, %s66
    %s68 = sphi 0, %s66
    %s69 = sphi 0, %s68
    %s83 = sphi 0, %s69
    %s87 = sphi 0, %s87
    %s89 = sphi 0, %s87
    %s90 = sphi 0, %s89
    %s104 = sphi 0, %s90
    %s108 = sphi 0, %s108
    %s110 = sphi 0, %s108
    %s111 = sphi 0, %s110
    %s125 = sphi 0, %s111
    %s131 = sphi 0, %s133
    %s134 = sphi 0, %s131
    %s135 = sphi 0, %s134
    %s151 = sphi 0, %s135
  $region4: #{generalized_rcnn_forward.21} parent=0 // loop_header_branch
    %14 = sbr.rel (%p12) target = $region8
  $region5: #{generalized_rcnn_forward.21} parent=0 // loop_body
    %s16 = ssub.s32 %s11, 1
    %s17 = ssub.s32 %s11, 2
    %s18 = sadd.s32 %s11, 1
    %s19 = ssub.s32 %s11, %s18
    %p20 = scmp.eq.s32.totalorder %s19, 0
    %s22 = sadd.s32 %s21, 1
    %s23 = scalar_select %p20, %s21, %s22
    %p26 = pneg %p20
    %p27 = scmp.eq.s32.totalorder %s11, 13
    %p28 = por %p26, %p27
    %p29 = scmp.ne.s32.totalorder %s21, %s24
    %p30 = scmp.eq.s32.totalorder %s11, 0
    %p31 = por %p29, %p30
    %p32 = scmp.ne.s32.totalorder %s21, %s24
    %p33 = scmp.eq.s32.totalorder %s16, 13
    %p34 = por %p32, %p33
    %p35 = scmp.ne.s32.totalorder %s24, %s25
    %p36 = scmp.eq.s32.totalorder %s16, 0
    %p37 = por %p35, %p36
    %p38 = scmp.ne.s32.totalorder %s24, %s25
    %p39 = scmp.eq.s32.totalorder %s17, 13
    %p40 = por %p38, %p39
    %p42 = scmp.ne.s32.totalorder %s25, %s41
    %p43 = scmp.eq.s32.totalorder %s17, 0
    %p44 = por %p42, %p43
    %s46 = sadd.s32 %s45, 1
    %p49 = scmp.eq.s32.totalorder %s11, 13
    %p50 = scmp.ne.s32.totalorder %s45, %s47
    %p51 = scmp.eq.s32.totalorder %s11, 0
    %p52 = por %p50, %p51
    %p53 = scmp.ne.s32.totalorder %s45, %s47
    %p54 = scmp.eq.s32.totalorder %s16, 13
    %p55 = por %p53, %p54
    %p56 = scmp.ne.s32.totalorder %s47, %s48
    %p57 = scmp.eq.s32.totalorder %s16, 0
    %p58 = por %p56, %p57
    %p59 = scmp.ne.s32.totalorder %s47, %s48
    %p60 = scmp.eq.s32.totalorder %s17, 13
    %p61 = por %p59, %p60
    %p63 = scmp.ne.s32.totalorder %s48, %s62
    %p64 = scmp.eq.s32.totalorder %s17, 0
    %p65 = por %p63, %p64
    %s67 = sadd.s32 %s66, 1
    %p70 = scmp.eq.s32.totalorder %s11, 13
    %p71 = scmp.ne.s32.totalorder %s66, %s68
    %p72 = scmp.eq.s32.totalorder %s11, 0
    %p73 = por %p71, %p72
    %p74 = scmp.ne.s32.totalorder %s66, %s68
    %p75 = scmp.eq.s32.totalorder %s16, 13
    %p76 = por %p74, %p75
    %p77 = scmp.ne.s32.totalorder %s68, %s69
    %p78 = scmp.eq.s32.totalorder %s16, 0
    %p79 = por %p77, %p78
    %p80 = scmp.ne.s32.totalorder %s68, %s69
    %p81 = scmp.eq.s32.totalorder %s17, 13
    %p82 = por %p80, %p81
    %p84 = scmp.ne.s32.totalorder %s69, %s83
    %p85 = scmp.eq.s32.totalorder %s17, 0
    %p86 = por %p84, %p85
    %s88 = sadd.s32 %s87, 1
    %p91 = scmp.eq.s32.totalorder %s11, 13
    %p92 = scmp.ne.s32.totalorder %s87, %s89
    %p93 = scmp.eq.s32.totalorder %s11, 0
    %p94 = por %p92, %p93
    %p95 = scmp.ne.s32.totalorder %s87, %s89
    %p96 = scmp.eq.s32.totalorder %s16, 13
    %p97 = por %p95, %p96
    %p98 = scmp.ne.s32.totalorder %s89, %s90
    %p99 = scmp.eq.s32.totalorder %s16, 0
    %p100 = por %p98, %p99
    %p101 = scmp.ne.s32.totalorder %s89, %s90
    %p102 = scmp.eq.s32.totalorder %s17, 13
    %p103 = por %p101, %p102
    %p105 = scmp.ne.s32.totalorder %s90, %s104
    %p106 = scmp.eq.s32.totalorder %s17, 0
    %p107 = por %p105, %p106
    %s109 = sadd.s32 %s108, 1
    %p112 = scmp.eq.s32.totalorder %s11, 13
    %p113 = scmp.ne.s32.totalorder %s108, %s110
    %p114 = scmp.eq.s32.totalorder %s11, 0
    %p115 = por %p113, %p114
    %p116 = scmp.ne.s32.totalorder %s108, %s110
    %p117 = scmp.eq.s32.totalorder %s16, 13
    %p118 = por %p116, %p117
    %p119 = scmp.ne.s32.totalorder %s110, %s111
    %p120 = scmp.eq.s32.totalorder %s16, 0
    %p121 = por %p119, %p120
    %p122 = scmp.ne.s32.totalorder %s110, %s111
    %p123 = scmp.eq.s32.totalorder %s17, 13
    %p124 = por %p122, %p123
    %p126 = scmp.ne.s32.totalorder %s111, %s125
    %p127 = scmp.eq.s32.totalorder %s17, 0
    %p128 = por %p126, %p127
    %s129 = ssub.s32 %s11, %s18
    %p130 = scmp.eq.s32.totalorder %s129, 0
    %s132 = sadd.s32 %s131, 1
    %s133 = scalar_select %p130, %s131, %s132
    %p136 = pneg %p130
    %p137 = scmp.eq.s32.totalorder %s11, 13
    %p138 = por %p136, %p137
    %p139 = scmp.ne.s32.totalorder %s131, %s134
    %p140 = scmp.eq.s32.totalorder %s11, 0
    %p141 = por %p139, %p140
    %p142 = scmp.ne.s32.totalorder %s131, %s134
    %p143 = scmp.eq.s32.totalorder %s16, 13
    %p144 = por %p142, %p143
    %p145 = scmp.ne.s32.totalorder %s134, %s135
    %p146 = scmp.eq.s32.totalorder %s16, 0
    %p147 = por %p145, %p146
    %p148 = scmp.ne.s32.totalorder %s134, %s135
    %p149 = scmp.eq.s32.totalorder %s17, 13
    %p150 = por %p148, %p149
    %p152 = scmp.ne.s32.totalorder %s135, %s151
    %p153 = scmp.eq.s32.totalorder %s17, 0
    %p154 = por %p152, %p153
    %p155 = scmp.le.s32.totalorder 1, %s11
    %p156 = scmp.lt.s32.totalorder %s11, 15
    %p157 = pnand %p155, %p156
    %p158 = pneg %p157
    // Predicated region
    $region9: #{generalized_rcnn_forward.21} parent=5 // pred_check
      _
    $region10: #{generalized_rcnn_forward.21} parent=5 // pred_check_branch
      %160 = sbr.rel (%p157) target = $region12
    $region11: #{generalized_rcnn_forward.21} parent=5 // pred_region
      %s161 = ssub.s32 %s11, 1
      // Predicated region
      $region13: #{generalized_rcnn_forward.21} parent=11 // pred_check
        %p162 = pneg %p58
      $region14: #{generalized_rcnn_forward.21} parent=11 // pred_check_branch
        %164 = sbr.rel (%p162) target = $region16
      $region15: #{generalized_rcnn_forward.21} parent=11 // pred_region
        _
      $region16: #{generalized_rcnn_forward.21} parent=11 // pred_fallthru
        _
      // Predicated region
      $region17: #{generalized_rcnn_forward.21} parent=11 // pred_check
        %p165 = pneg %p79
      $region18: #{generalized_rcnn_forward.21} parent=11 // pred_check_branch
        %167 = sbr.rel (%p165) target = $region20
      $region19: #{generalized_rcnn_forward.21} parent=11 // pred_region
        _
      $region20: #{generalized_rcnn_forward.21} parent=11 // pred_fallthru
        _
      // Predicated region
      $region21: #{generalized_rcnn_forward.21} parent=11 // pred_check
        %p168 = pneg %p100
      $region22: #{generalized_rcnn_forward.21} parent=11 // pred_check_branch
        %170 = sbr.rel (%p168) target = $region24
      $region23: #{generalized_rcnn_forward.21} parent=11 // pred_region
        _
      $region24: #{generalized_rcnn_forward.21} parent=11 // pred_fallthru
        _
      // Predicated region
      $region25: #{generalized_rcnn_forward.21} parent=11 // pred_check
        %p171 = pneg %p121
      $region26: #{generalized_rcnn_forward.21} parent=11 // pred_check_branch
        %173 = sbr.rel (%p171) target = $region28
      $region27: #{generalized_rcnn_forward.21} parent=11 // pred_region
        _
      $region28: #{generalized_rcnn_forward.21} parent=11 // pred_fallthru
        _
    $region12: #{generalized_rcnn_forward.21} parent=5 // pred_fallthru
      _
    %p174 = scmp.lt.s32.totalorder %s11, 14
    // Predicated region
    $region29: #{generalized_rcnn_forward.21} parent=5 // pred_check
      %p175 = pneg %p174
    $region30: #{generalized_rcnn_forward.21} parent=5 // pred_check_branch
      %177 = sbr.rel (%p175) target = $region32
    $region31: #{generalized_rcnn_forward.21} parent=5 // pred_region
      // Predicated region
      $region33: #{generalized_rcnn_forward.21} parent=31 // pred_check
        %p178 = pneg %p31
      $region34: #{generalized_rcnn_forward.21} parent=31 // pred_check_branch
        %180 = sbr.rel (%p178) target = $region36
      $region35: #{generalized_rcnn_forward.21} parent=31 // pred_region
        %s181 = smul.u32 56, %s11
        %p182 = scmp.lt.s32.totalorder %s181, 783
        %s183 = scalar_select %p182, %s181, 783
        %s184 = smul.addr %s183, 4
        %s185 = scalar_lea.vmem %s0, %s184
        %s186 = smul.u32 56, %s11
      $region36: #{generalized_rcnn_forward.21} parent=31 // pred_fallthru
        _
    $region32: #{generalized_rcnn_forward.21} parent=5 // pred_fallthru
      _
    %p187 = scmp.le.s32.totalorder 1, %s11
    %p188 = scmp.lt.s32.totalorder %s11, 15
    %p189 = pnand %p187, %p188
    %p190 = pneg %p189
    // Predicated region
    $region37: #{generalized_rcnn_forward.21} parent=5 // pred_check
      _
    $region38: #{generalized_rcnn_forward.21} parent=5 // pred_check_branch
      %192 = sbr.rel (%p189) target = $region40
    $region39: #{generalized_rcnn_forward.21} parent=5 // pred_region
      %s193 = ssub.s32 %s11, 1
      %s194 = smul.u32 56, %s16
      %p195 = scmp.lt.s32.totalorder %s194, 783
      %s196 = scalar_select %p195, %s194, 783
      %s197 = smul.addr %s196, 4
      %s198 = scalar_lea.vmem %s0, %s197
      %p199 = pneg %p37
      %p200 = pneg %p34
      %p201 = pneg %p58
      %p202 = pneg %p55
      %p203 = pneg %p79
      %p204 = pneg %p76
      %p205 = pneg %p100
      %p206 = pneg %p97
      %p207 = pneg %p121
      %p208 = pneg %p118
      %p209 = pneg %p147
      %p210 = pneg %p144
      %s211 = smul.u32 56, %s16
      %p212 = scmp.lt.s32.totalorder %s211, 783
      %s213 = scalar_select %p212, %s211, 783
      %s214 = smul.addr %s213, 4
      %s215 = scalar_lea.vmem %s5, %s214
      %s216 = smul.u32 56, %s16
      %p217 = scmp.lt.s32.totalorder %s216, 783
      %s218 = scalar_select %p217, %s216, 783
      %s219 = smul.addr %s218, 4
      %s220 = scalar_lea.vmem %s0, %s219
      %s221 = smul.u32 56, %s16
      %s222 = smul.u32 56, %s16
      %p223 = scmp.lt.s32.totalorder %s222, 783
      %s224 = scalar_select %p223, %s222, 783
      %s225 = smul.addr %s224, 4
      %s226 = scalar_lea.vmem %s5, %s225
      %s227 = smul.u32 56, %s16
      %v229 = vld [vmem:[%s220] sm:$0xf]
      %v230 = vld [vmem:[%s220 + $0x4] sm:$0xf]
      %v231 = vld [vmem:[%s220 + $0x8] sm:$0xf]
      %v232 = vld [vmem:[%s220 + $0xc] sm:$0xf]
      %v233 = vld [vmem:[%s220 + $0x10] sm:$0xf]
      %v234 = vld [vmem:[%s220 + $0x14] sm:$0xf]
      %v235 = vld [vmem:[%s220 + $0x18] sm:$0xf]
      %v236 = vld [vmem:[%s220 + $0x1c] sm:$0xf]
      %v237 = vld [vmem:[%s220 + $0x20] sm:$0xf]
      %v238 = vld [vmem:[%s220 + $0x24] sm:$0xf]
      %v239 = vld [vmem:[%s220 + $0x28] sm:$0xf]
      %v240 = vld [vmem:[%s220 + $0x2c] sm:$0xf]
      %v241 = vld [vmem:[%s220 + $0x30] sm:$0xf]
      %v242 = vld [vmem:[%s220 + $0x34] sm:$0xf]
      %v243 = vld [vmem:[%s220 + $0x38] sm:$0xf]
      %v244 = vld [vmem:[%s220 + $0x3c] sm:$0xf]
      %v245 = vld [vmem:[%s220 + $0x40] sm:$0xf]
      %v246 = vld [vmem:[%s220 + $0x44] sm:$0xf]
      %v247 = vld [vmem:[%s220 + $0x48] sm:$0xf]
      %v248 = vld [vmem:[%s220 + $0x4c] sm:$0xf]
      %v249 = vld [vmem:[%s220 + $0x50] sm:$0xf]
      %v250 = vld [vmem:[%s220 + $0x54] sm:$0xf]
      %v251 = vld [vmem:[%s220 + $0x58] sm:$0xf]
      %v252 = vld [vmem:[%s220 + $0x5c] sm:$0xf]
      %v253 = vld [vmem:[%s220 + $0x60] sm:$0xf]
      %v254 = vld [vmem:[%s220 + $0x64] sm:$0xf]
      %v255 = vld [vmem:[%s220 + $0x68] sm:$0xf]
      %v256 = vld [vmem:[%s220 + $0x6c] sm:$0xf]
      %v257 = vld [vmem:[%s220 + $0x70] sm:$0xf]
      %v258 = vld [vmem:[%s220 + $0x74] sm:$0xf]
      %v259 = vld [vmem:[%s220 + $0x78] sm:$0xf]
      %v260 = vld [vmem:[%s220 + $0x7c] sm:$0xf]
      %v261 = vld [vmem:[%s220 + $0x80] sm:$0xf]
      %v262 = vld [vmem:[%s220 + $0x84] sm:$0xf]
      %v263 = vld [vmem:[%s220 + $0x88] sm:$0xf]
      %v264 = vld [vmem:[%s220 + $0x8c] sm:$0xf]
      %v265 = vld [vmem:[%s220 + $0x90] sm:$0xf]
      %v266 = vld [vmem:[%s220 + $0x94] sm:$0xf]
      %v267 = vld [vmem:[%s220 + $0x98] sm:$0xf]
      %v268 = vld [vmem:[%s220 + $0x9c] sm:$0xf]
      %v269 = vld [vmem:[%s220 + $0xa0] sm:$0xf]
      %v270 = vld [vmem:[%s220 + $0xa4] sm:$0xf]
      %v271 = vld [vmem:[%s220 + $0xa8] sm:$0xf]
      %v272 = vld [vmem:[%s220 + $0xac] sm:$0xf]
      %v273 = vld [vmem:[%s220 + $0xb0] sm:$0xf]
      %v274 = vld [vmem:[%s220 + $0xb4] sm:$0xf]
      %v275 = vld [vmem:[%s220 + $0xb8] sm:$0xf]
      %v276 = vld [vmem:[%s220 + $0xbc] sm:$0xf]
      %v277 = vld [vmem:[%s220 + $0xc0] sm:$0xf]
      %v278 = vld [vmem:[%s220 + $0xc4] sm:$0xf]
      %v279 = vld [vmem:[%s220 + $0xc8] sm:$0xf]
      %v280 = vld [vmem:[%s220 + $0xcc] sm:$0xf]
      %v281 = vld [vmem:[%s220 + $0xd0] sm:$0xf]
      %v282 = vld [vmem:[%s220 + $0xd4] sm:$0xf]
      %v283 = vld [vmem:[%s220 + $0xd8] sm:$0xf]
      %v284 = vld [vmem:[%s220 + $0xdc] sm:$0xf]
      %v285 = vld [vmem:[%s1] sm:$0xf]
      %v286 = vld [vmem:[%s1 + $0x4] sm:$0xf]
      %v287 = vld [vmem:[%s1 + $0x8] sm:$0xf]
      %v288 = vld [vmem:[%s1 + $0xc] sm:$0xf]
      %v289 = vld [vmem:[%s2] sm:$0x1]
      %v291 = vlaneseq
      %v292 = vshrl.u32 %v291, 7
      %v293 = vsub.s32 0, %v292
      %v294 = vrot.slane %v289, %v293
      %v352 = vunpack.c.l.b16 %v229
      %v353 = vunpack.c.l.b16 %v230
      %v354 = vunpack.c.l.b16 %v231
      %v355 = vunpack.c.l.b16 %v232
      %v356 = vunpack.c.l.b16 %v233
      %v357 = vunpack.c.l.b16 %v234
      %v358 = vunpack.c.l.b16 %v235
      %v359 = vunpack.c.l.b16 %v236
      %v360 = vunpack.c.l.b16 %v237
      %v361 = vunpack.c.l.b16 %v238
      %v362 = vunpack.c.l.b16 %v239
      %v363 = vunpack.c.l.b16 %v240
      %v364 = vunpack.c.l.b16 %v241
      %v365 = vunpack.c.l.b16 %v242
      %v366 = vunpack.c.l.b16 %v243
      %v367 = vunpack.c.l.b16 %v244
      %v368 = vunpack.c.l.b16 %v245
      %v369 = vunpack.c.l.b16 %v246
      %v370 = vunpack.c.l.b16 %v247
      %v371 = vunpack.c.l.b16 %v248
      %v372 = vunpack.c.l.b16 %v249
      %v373 = vunpack.c.l.b16 %v250
      %v374 = vunpack.c.l.b16 %v251
      %v375 = vunpack.c.l.b16 %v252
      %v376 = vunpack.c.l.b16 %v253
      %v377 = vunpack.c.l.b16 %v254
      %v378 = vunpack.c.l.b16 %v255
      %v379 = vunpack.c.l.b16 %v256
      %v380 = vunpack.c.l.b16 %v257
      %v381 = vunpack.c.l.b16 %v258
      %v382 = vunpack.c.l.b16 %v259
      %v383 = vunpack.c.l.b16 %v260
      %v384 = vunpack.c.l.b16 %v261
      %v385 = vunpack.c.l.b16 %v262
      %v386 = vunpack.c.l.b16 %v263
      %v387 = vunpack.c.l.b16 %v264
      %v388 = vunpack.c.l.b16 %v265
      %v389 = vunpack.c.l.b16 %v266
      %v390 = vunpack.c.l.b16 %v267
      %v391 = vunpack.c.l.b16 %v268
      %v392 = vunpack.c.l.b16 %v269
      %v393 = vunpack.c.l.b16 %v270
      %v394 = vunpack.c.l.b16 %v271
      %v395 = vunpack.c.l.b16 %v272
      %v396 = vunpack.c.l.b16 %v273
      %v397 = vunpack.c.l.b16 %v274
      %v398 = vunpack.c.l.b16 %v275
      %v399 = vunpack.c.l.b16 %v276
      %v400 = vunpack.c.l.b16 %v277
      %v401 = vunpack.c.l.b16 %v278
      %v402 = vunpack.c.l.b16 %v279
      %v403 = vunpack.c.l.b16 %v280
      %v404 = vunpack.c.l.b16 %v281
      %v405 = vunpack.c.l.b16 %v282
      %v406 = vunpack.c.l.b16 %v283
      %v407 = vunpack.c.l.b16 %v284
      %v408 = vpack.c.b16 %v353, %v352
      %v409 = vpack.c.b16 %v355, %v354
      %v410 = vpack.c.b16 %v357, %v356
      %v411 = vpack.c.b16 %v359, %v358
      %v412 = vpack.c.b16 %v361, %v360
      %v413 = vpack.c.b16 %v363, %v362
      %v414 = vpack.c.b16 %v365, %v364
      %v415 = vpack.c.b16 %v367, %v366
      %v416 = vpack.c.b16 %v369, %v368
      %v417 = vpack.c.b16 %v371, %v370
      %v418 = vpack.c.b16 %v373, %v372
      %v419 = vpack.c.b16 %v375, %v374
      %v420 = vpack.c.b16 %v377, %v376
      %v421 = vpack.c.b16 %v379, %v378
      %v422 = vpack.c.b16 %v381, %v380
      %v423 = vpack.c.b16 %v383, %v382
      %v424 = vpack.c.b16 %v385, %v384
      %v425 = vpack.c.b16 %v387, %v386
      %v426 = vpack.c.b16 %v389, %v388
      %v427 = vpack.c.b16 %v391, %v390
      %v428 = vpack.c.b16 %v393, %v392
      %v429 = vpack.c.b16 %v395, %v394
      %v430 = vpack.c.b16 %v397, %v396
      %v431 = vpack.c.b16 %v399, %v398
      %v432 = vpack.c.b16 %v401, %v400
      %v433 = vpack.c.b16 %v403, %v402
      %v434 = vpack.c.b16 %v405, %v404
      %v435 = vpack.c.b16 %v407, %v406
      %v440 = vunpack.c.l.b16 %v285
      %v441 = vunpack.c.l.b16 %v286
      %v442 = vunpack.c.l.b16 %v287
      %v443 = vunpack.c.l.b16 %v288
      %v444 = vpack.c.b16 %v441, %v440
      %v445 = vpack.c.b16 %v443, %v442
      %vm448 = vcmask 261120
      %v450 = vsel %vm448, %v408, 0
      %v453 = vsel %vm448, %v409, 0
      %v456 = vsel %vm448, %v410, 0
      %v459 = vsel %vm448, %v411, 0
      %v462 = vsel %vm448, %v412, 0
      %v465 = vsel %vm448, %v413, 0
      %v468 = vsel %vm448, %v414, 0
      %v471 = vsel %vm448, %v415, 0
      %v474 = vsel %vm448, %v416, 0
      %v477 = vsel %vm448, %v417, 0
      %v480 = vsel %vm448, %v418, 0
      %v483 = vsel %vm448, %v419, 0
      %v486 = vsel %vm448, %v420, 0
      %v489 = vsel %vm448, %v421, 0
      %v492 = vsel %vm448, %v422, 0
      %v495 = vsel %vm448, %v423, 0
      %v498 = vsel %vm448, %v424, 0
      %v501 = vsel %vm448, %v425, 0
      %v504 = vsel %vm448, %v426, 0
      %v507 = vsel %vm448, %v427, 0
      %v510 = vsel %vm448, %v428, 0
      %v513 = vsel %vm448, %v429, 0
      %v516 = vsel %vm448, %v430, 0
      %v519 = vsel %vm448, %v431, 0
      %v522 = vsel %vm448, %v432, 0
      %v525 = vsel %vm448, %v433, 0
      %v528 = vsel %vm448, %v434, 0
      %v531 = vsel %vm448, %v435, 0
      %533 = vmatprep.subr.bf16.mxu0 0
      %534 = vmatpush1.bf16.msra.mxu0 0
      %535 = vmatprep.subr.bf16.mxu0 0
      %536 = vmatpush1.bf16.msra.mxu0 0
      %537 = vmatprep.subr.bf16.mxu0 0
      %538 = vmatpush1.bf16.msra.mxu0 0
      %539 = vmatprep.subr.bf16.mxu0 0
      %540 = vmatpush1.bf16.msra.mxu0 0
      %541 = vmatprep.subr.bf16.mxu0 0
      %542 = vmatpush1.bf16.msra.mxu0 0
      %543 = vmatprep.subr.bf16.mxu0 0
      %544 = vmatpush1.bf16.msra.mxu0 0
      %545 = vmatprep.subr.bf16.mxu0 0
      %546 = vmatpush1.bf16.msra.mxu0 %v445
      %547 = vmatprep.subr.bf16.mxu0 0
      %548 = vmatpush1.bf16.msra.mxu0 %v444
      %549 = vmatprep.subr.bf16.mxu0 0
      %550 = vmatpush2.bf16.msra.mxu0 0
      %551 = vmatprep.subr.bf16.mxu0 0
      %552 = vmatpush2.bf16.msra.mxu0 0
      %553 = vmatprep.subr.bf16.mxu0 0
      %554 = vmatpush2.bf16.msra.mxu0 0
      %555 = vmatprep.subr.bf16.mxu0 0
      %556 = vmatpush2.bf16.msra.mxu0 0
      %557 = vmatprep.subr.bf16.mxu0 0
      %558 = vmatpush2.bf16.msra.mxu0 0
      %559 = vmatprep.subr.bf16.mxu0 0
      %560 = vmatpush2.bf16.msra.mxu0 0
      %561 = vmatprep.subr.bf16.mxu0 0
      %562 = vmatpush2.bf16.msra.mxu0 0
      %563 = vmatprep.subr.bf16.mxu0 0
      %564 = vmatpush2.bf16.msra.mxu0 0
      %565 = vmatprep.mubr.bf16.mxu0 0
      %566 = vmatmul.mubr.bf16.gmra.mxu0 %v450
      %v567 = vpop.f32.mrf.mxu0
      %v568 = vadd.f32 %v294, %v567
      %v569 = vpop.f32.mrf.mxu0
      %v570 = vpop.f32.mrf.mxu0
      %v571 = vadd.f32 %v294, %v570
      %v572 = vpop.f32.mrf.mxu0
      %573 = vmatprep.mubr.bf16.mxu0 0
      %574 = vmatmul.mubr.bf16.gmra.mxu0 %v453
      %v575 = vpop.f32.mrf.mxu0
      %v576 = vadd.f32 %v294, %v575
      %v577 = vpop.f32.mrf.mxu0
      %v578 = vpop.f32.mrf.mxu0
      %v579 = vadd.f32 %v294, %v578
      %v580 = vpop.f32.mrf.mxu0
      %581 = vmatprep.mubr.bf16.mxu0 0
      %582 = vmatmul.mubr.bf16.gmra.mxu0 %v456
      %v583 = vpop.f32.mrf.mxu0
      %v584 = vadd.f32 %v294, %v583
      %v585 = vpop.f32.mrf.mxu0
      %v586 = vpop.f32.mrf.mxu0
      %v587 = vadd.f32 %v294, %v586
      %v588 = vpop.f32.mrf.mxu0
      %589 = vmatprep.mubr.bf16.mxu0 0
      %590 = vmatmul.mubr.bf16.gmra.mxu0 %v459
      %v591 = vpop.f32.mrf.mxu0
      %v592 = vadd.f32 %v294, %v591
      %v593 = vpop.f32.mrf.mxu0
      %v594 = vpop.f32.mrf.mxu0
      %v595 = vadd.f32 %v294, %v594
      %v596 = vpop.f32.mrf.mxu0
      %597 = vmatprep.mubr.bf16.mxu0 0
      %598 = vmatmul.mubr.bf16.gmra.mxu0 %v462
      %v599 = vpop.f32.mrf.mxu0
      %v600 = vadd.f32 %v294, %v599
      %v601 = vpop.f32.mrf.mxu0
      %v602 = vpop.f32.mrf.mxu0
      %v603 = vadd.f32 %v294, %v602
      %v604 = vpop.f32.mrf.mxu0
      %605 = vmatprep.mubr.bf16.mxu0 0
      %606 = vmatmul.mubr.bf16.gmra.mxu0 %v465
      %v607 = vpop.f32.mrf.mxu0
      %v608 = vadd.f32 %v294, %v607
      %v609 = vpop.f32.mrf.mxu0
      %v610 = vpop.f32.mrf.mxu0
      %v611 = vadd.f32 %v294, %v610
      %v612 = vpop.f32.mrf.mxu0
      %613 = vmatprep.mubr.bf16.mxu0 0
      %614 = vmatmul.mubr.bf16.gmra.mxu0 %v468
      %v615 = vpop.f32.mrf.mxu0
      %v616 = vadd.f32 %v294, %v615
      %v617 = vpop.f32.mrf.mxu0
      %v618 = vpop.f32.mrf.mxu0
      %v619 = vadd.f32 %v294, %v618
      %v620 = vpop.f32.mrf.mxu0
      %621 = vmatprep.mubr.bf16.mxu0 0
      %622 = vmatmul.mubr.bf16.gmra.mxu0 %v471
      %v623 = vpop.f32.mrf.mxu0
      %v624 = vadd.f32 %v294, %v623
      %v625 = vpop.f32.mrf.mxu0
      %v626 = vpop.f32.mrf.mxu0
      %v627 = vadd.f32 %v294, %v626
      %v628 = vpop.f32.mrf.mxu0
      %629 = vmatprep.mubr.bf16.mxu0 0
      %630 = vmatmul.mubr.bf16.gmra.mxu0 %v474
      %v631 = vpop.f32.mrf.mxu0
      %v632 = vadd.f32 %v294, %v631
      %v633 = vpop.f32.mrf.mxu0
      %v634 = vpop.f32.mrf.mxu0
      %v635 = vadd.f32 %v294, %v634
      %v636 = vpop.f32.mrf.mxu0
      %637 = vmatprep.mubr.bf16.mxu0 0
      %638 = vmatmul.mubr.bf16.gmra.mxu0 %v477
      %v639 = vpop.f32.mrf.mxu0
      %v640 = vadd.f32 %v294, %v639
      %v641 = vpop.f32.mrf.mxu0
      %v642 = vpop.f32.mrf.mxu0
      %v643 = vadd.f32 %v294, %v642
      %v644 = vpop.f32.mrf.mxu0
      %645 = vmatprep.mubr.bf16.mxu0 0
      %646 = vmatmul.mubr.bf16.gmra.mxu0 %v480
      %v647 = vpop.f32.mrf.mxu0
      %v648 = vadd.f32 %v294, %v647
      %v649 = vpop.f32.mrf.mxu0
      %v650 = vpop.f32.mrf.mxu0
      %v651 = vadd.f32 %v294, %v650
      %v652 = vpop.f32.mrf.mxu0
      %653 = vmatprep.mubr.bf16.mxu0 0
      %654 = vmatmul.mubr.bf16.gmra.mxu0 %v483
      %v655 = vpop.f32.mrf.mxu0
      %v656 = vadd.f32 %v294, %v655
      %v657 = vpop.f32.mrf.mxu0
      %v658 = vpop.f32.mrf.mxu0
      %v659 = vadd.f32 %v294, %v658
      %v660 = vpop.f32.mrf.mxu0
      %661 = vmatprep.mubr.bf16.mxu0 0
      %662 = vmatmul.mubr.bf16.gmra.mxu0 %v486
      %v663 = vpop.f32.mrf.mxu0
      %v664 = vadd.f32 %v294, %v663
      %v665 = vpop.f32.mrf.mxu0
      %v666 = vpop.f32.mrf.mxu0
      %v667 = vadd.f32 %v294, %v666
      %v668 = vpop.f32.mrf.mxu0
      %669 = vmatprep.mubr.bf16.mxu0 0
      %670 = vmatmul.mubr.bf16.gmra.mxu0 %v489
      %v671 = vpop.f32.mrf.mxu0
      %v672 = vadd.f32 %v294, %v671
      %v673 = vpop.f32.mrf.mxu0
      %v674 = vpop.f32.mrf.mxu0
      %v675 = vadd.f32 %v294, %v674
      %v676 = vpop.f32.mrf.mxu0
      %677 = vmatprep.mubr.bf16.mxu0 0
      %678 = vmatmul.mubr.bf16.gmra.mxu0 %v492
      %v679 = vpop.f32.mrf.mxu0
      %v680 = vadd.f32 %v294, %v679
      %v681 = vpop.f32.mrf.mxu0
      %v682 = vpop.f32.mrf.mxu0
      %v683 = vadd.f32 %v294, %v682
      %v684 = vpop.f32.mrf.mxu0
      %685 = vmatprep.mubr.bf16.mxu0 0
      %686 = vmatmul.mubr.bf16.gmra.mxu0 %v495
      %v687 = vpop.f32.mrf.mxu0
      %v688 = vadd.f32 %v294, %v687
      %v689 = vpop.f32.mrf.mxu0
      %v690 = vpop.f32.mrf.mxu0
      %v691 = vadd.f32 %v294, %v690
      %v692 = vpop.f32.mrf.mxu0
      %693 = vmatprep.mubr.bf16.mxu0 0
      %694 = vmatmul.mubr.bf16.gmra.mxu0 %v498
      %v695 = vpop.f32.mrf.mxu0
      %v696 = vadd.f32 %v294, %v695
      %v697 = vpop.f32.mrf.mxu0
      %v698 = vpop.f32.mrf.mxu0
      %v699 = vadd.f32 %v294, %v698
      %v700 = vpop.f32.mrf.mxu0
      %701 = vmatprep.mubr.bf16.mxu0 0
      %702 = vmatmul.mubr.bf16.gmra.mxu0 %v501
      %v703 = vpop.f32.mrf.mxu0
      %v704 = vadd.f32 %v294, %v703
      %v705 = vpop.f32.mrf.mxu0
      %v706 = vpop.f32.mrf.mxu0
      %v707 = vadd.f32 %v294, %v706
      %v708 = vpop.f32.mrf.mxu0
      %709 = vmatprep.mubr.bf16.mxu0 0
      %710 = vmatmul.mubr.bf16.gmra.mxu0 %v504
      %v711 = vpop.f32.mrf.mxu0
      %v712 = vadd.f32 %v294, %v711
      %v713 = vpop.f32.mrf.mxu0
      %v714 = vpop.f32.mrf.mxu0
      %v715 = vadd.f32 %v294, %v714
      %v716 = vpop.f32.mrf.mxu0
      %717 = vmatprep.mubr.bf16.mxu0 0
      %718 = vmatmul.mubr.bf16.gmra.mxu0 %v507
      %v719 = vpop.f32.mrf.mxu0
      %v720 = vadd.f32 %v294, %v719
      %v721 = vpop.f32.mrf.mxu0
      %v722 = vpop.f32.mrf.mxu0
      %v723 = vadd.f32 %v294, %v722
      %v724 = vpop.f32.mrf.mxu0
      %725 = vmatprep.mubr.bf16.mxu0 0
      %726 = vmatmul.mubr.bf16.gmra.mxu0 %v510
      %v727 = vpop.f32.mrf.mxu0
      %v728 = vadd.f32 %v294, %v727
      %v729 = vpop.f32.mrf.mxu0
      %v730 = vpop.f32.mrf.mxu0
      %v731 = vadd.f32 %v294, %v730
      %v732 = vpop.f32.mrf.mxu0
      %733 = vmatprep.mubr.bf16.mxu0 0
      %734 = vmatmul.mubr.bf16.gmra.mxu0 %v513
      %v735 = vpop.f32.mrf.mxu0
      %v736 = vadd.f32 %v294, %v735
      %v737 = vpop.f32.mrf.mxu0
      %v738 = vpop.f32.mrf.mxu0
      %v739 = vadd.f32 %v294, %v738
      %v740 = vpop.f32.mrf.mxu0
      %741 = vmatprep.mubr.bf16.mxu0 0
      %742 = vmatmul.mubr.bf16.gmra.mxu0 %v516
      %v743 = vpop.f32.mrf.mxu0
      %v744 = vadd.f32 %v294, %v743
      %v745 = vpop.f32.mrf.mxu0
      %v746 = vpop.f32.mrf.mxu0
      %v747 = vadd.f32 %v294, %v746
      %v748 = vpop.f32.mrf.mxu0
      %749 = vmatprep.mubr.bf16.mxu0 0
      %750 = vmatmul.mubr.bf16.gmra.mxu0 %v519
      %v751 = vpop.f32.mrf.mxu0
      %v752 = vadd.f32 %v294, %v751
      %v753 = vpop.f32.mrf.mxu0
      %v754 = vpop.f32.mrf.mxu0
      %v755 = vadd.f32 %v294, %v754
      %v756 = vpop.f32.mrf.mxu0
      %757 = vmatprep.mubr.bf16.mxu0 0
      %758 = vmatmul.mubr.bf16.gmra.mxu0 %v522
      %v759 = vpop.f32.mrf.mxu0
      %v760 = vadd.f32 %v294, %v759
      %v761 = vpop.f32.mrf.mxu0
      %v762 = vpop.f32.mrf.mxu0
      %v763 = vadd.f32 %v294, %v762
      %v764 = vpop.f32.mrf.mxu0
      %765 = vmatprep.mubr.bf16.mxu0 0
      %766 = vmatmul.mubr.bf16.gmra.mxu0 %v525
      %v767 = vpop.f32.mrf.mxu0
      %v768 = vadd.f32 %v294, %v767
      %v769 = vpop.f32.mrf.mxu0
      %v770 = vpop.f32.mrf.mxu0
      %v771 = vadd.f32 %v294, %v770
      %v772 = vpop.f32.mrf.mxu0
      %773 = vmatprep.mubr.bf16.mxu0 0
      %774 = vmatmul.mubr.bf16.gmra.mxu0 %v528
      %v775 = vpop.f32.mrf.mxu0
      %v776 = vadd.f32 %v294, %v775
      %v777 = vpop.f32.mrf.mxu0
      %v778 = vpop.f32.mrf.mxu0
      %v779 = vadd.f32 %v294, %v778
      %v780 = vpop.f32.mrf.mxu0
      %781 = vmatprep.mubr.bf16.mxu0 0
      %782 = vmatmul.mubr.bf16.gmra.mxu0 %v531
      %v783 = vpop.f32.mrf.mxu0
      %v784 = vadd.f32 %v294, %v783
      %v785 = vpop.f32.mrf.mxu0
      %v786 = vpop.f32.mrf.mxu0
      %v787 = vadd.f32 %v294, %v786
      %v788 = vpop.f32.mrf.mxu0
      %789 = vdwg.mxu0
      %v790 = vmax.f32 %v568, 0.0
      %v791 = vmax.f32 %v571, 0.0
      %v792 = vmax.f32 %v576, 0.0
      %v793 = vmax.f32 %v579, 0.0
      %v794 = vmax.f32 %v584, 0.0
      %v795 = vmax.f32 %v587, 0.0
      %v796 = vmax.f32 %v592, 0.0
      %v797 = vmax.f32 %v595, 0.0
      %v798 = vmax.f32 %v600, 0.0
      %v799 = vmax.f32 %v603, 0.0
      %v800 = vmax.f32 %v608, 0.0
      %v801 = vmax.f32 %v611, 0.0
      %v802 = vmax.f32 %v616, 0.0
      %v803 = vmax.f32 %v619, 0.0
      %v804 = vmax.f32 %v624, 0.0
      %v805 = vmax.f32 %v627, 0.0
      %v806 = vmax.f32 %v632, 0.0
      %v807 = vmax.f32 %v635, 0.0
      %v808 = vmax.f32 %v640, 0.0
      %v809 = vmax.f32 %v643, 0.0
      %v810 = vmax.f32 %v648, 0.0
      %v811 = vmax.f32 %v651, 0.0
      %v812 = vmax.f32 %v656, 0.0
      %v813 = vmax.f32 %v659, 0.0
      %v814 = vmax.f32 %v664, 0.0
      %v815 = vmax.f32 %v667, 0.0
      %v816 = vmax.f32 %v672, 0.0
      %v817 = vmax.f32 %v675, 0.0
      %v818 = vmax.f32 %v680, 0.0
      %v819 = vmax.f32 %v683, 0.0
      %v820 = vmax.f32 %v688, 0.0
      %v821 = vmax.f32 %v691, 0.0
      %v822 = vmax.f32 %v696, 0.0
      %v823 = vmax.f32 %v699, 0.0
      %v824 = vmax.f32 %v704, 0.0
      %v825 = vmax.f32 %v707, 0.0
      %v826 = vmax.f32 %v712, 0.0
      %v827 = vmax.f32 %v715, 0.0
      %v828 = vmax.f32 %v720, 0.0
      %v829 = vmax.f32 %v723, 0.0
      %v830 = vmax.f32 %v728, 0.0
      %v831 = vmax.f32 %v731, 0.0
      %v832 = vmax.f32 %v736, 0.0
      %v833 = vmax.f32 %v739, 0.0
      %v834 = vmax.f32 %v744, 0.0
      %v835 = vmax.f32 %v747, 0.0
      %v836 = vmax.f32 %v752, 0.0
      %v837 = vmax.f32 %v755, 0.0
      %v838 = vmax.f32 %v760, 0.0
      %v839 = vmax.f32 %v763, 0.0
      %v840 = vmax.f32 %v768, 0.0
      %v841 = vmax.f32 %v771, 0.0
      %v842 = vmax.f32 %v776, 0.0
      %v843 = vmax.f32 %v779, 0.0
      %v844 = vmax.f32 %v784, 0.0
      %v845 = vmax.f32 %v787, 0.0
      %v846 = vpack.c.bf16 %v791, %v790
      %v847 = vpack.c.bf16 %v793, %v792
      %v848 = vpack.c.bf16 %v795, %v794
      %v849 = vpack.c.bf16 %v797, %v796
      %v850 = vpack.c.bf16 %v799, %v798
      %v851 = vpack.c.bf16 %v801, %v800
      %v852 = vpack.c.bf16 %v803, %v802
      %v853 = vpack.c.bf16 %v805, %v804
      %v854 = vpack.c.bf16 %v807, %v806
      %v855 = vpack.c.bf16 %v809, %v808
      %v856 = vpack.c.bf16 %v811, %v810
      %v857 = vpack.c.bf16 %v813, %v812
      %v858 = vpack.c.bf16 %v815, %v814
      %v859 = vpack.c.bf16 %v817, %v816
      %v860 = vpack.c.bf16 %v819, %v818
      %v861 = vpack.c.bf16 %v821, %v820
      %v862 = vpack.c.bf16 %v823, %v822
      %v863 = vpack.c.bf16 %v825, %v824
      %v864 = vpack.c.bf16 %v827, %v826
      %v865 = vpack.c.bf16 %v829, %v828
      %v866 = vpack.c.bf16 %v831, %v830
      %v867 = vpack.c.bf16 %v833, %v832
      %v868 = vpack.c.bf16 %v835, %v834
      %v869 = vpack.c.bf16 %v837, %v836
      %v870 = vpack.c.bf16 %v839, %v838
      %v871 = vpack.c.bf16 %v841, %v840
      %v872 = vpack.c.bf16 %v843, %v842
      %v873 = vpack.c.bf16 %v845, %v844
      %v874 = vld [vmem:[%s3] sm:$0xf]
      %v875 = vld [vmem:[%s3 + $0x4] sm:$0xf]
      %v876 = vld [vmem:[%s3 + $0x8] sm:$0xf]
      %v877 = vld [vmem:[%s3 + $0xc] sm:$0xf]
      %v878 = vld [vmem:[%s3 + $0x10] sm:$0xf]
      %v879 = vld [vmem:[%s3 + $0x14] sm:$0xf]
      %v880 = vld [vmem:[%s3 + $0x18] sm:$0xf]
      %v881 = vld [vmem:[%s3 + $0x1c] sm:$0xf]
      %v882 = vld [vmem:[%s3 + $0x20] sm:$0xf]
      %v883 = vld [vmem:[%s3 + $0x24] sm:$0xf]
      %v884 = vld [vmem:[%s3 + $0x28] sm:$0xf]
      %v885 = vld [vmem:[%s3 + $0x2c] sm:$0xf]
      %v886 = vld [vmem:[%s3 + $0x30] sm:$0xf]
      %v887 = vld [vmem:[%s3 + $0x34] sm:$0xf]
      %v888 = vld [vmem:[%s3 + $0x38] sm:$0xf]
      %v889 = vld [vmem:[%s3 + $0x3c] sm:$0xf]
      %v890 = vld [vmem:[%s4] sm:$0x1]
      %v892 = vlaneseq
      %v893 = vshrl.u32 %v892, 7
      %v894 = vsub.s32 0, %v893
      %v895 = vrot.slane %v890, %v894
      %v913 = vunpack.c.l.b16 %v874
      %v914 = vunpack.c.l.b16 %v875
      %v915 = vunpack.c.l.b16 %v876
      %v916 = vunpack.c.l.b16 %v877
      %v917 = vunpack.c.l.b16 %v878
      %v918 = vunpack.c.l.b16 %v879
      %v919 = vunpack.c.l.b16 %v880
      %v920 = vunpack.c.l.b16 %v881
      %v921 = vunpack.c.l.b16 %v882
      %v922 = vunpack.c.l.b16 %v883
      %v923 = vunpack.c.l.b16 %v884
      %v924 = vunpack.c.l.b16 %v885
      %v925 = vunpack.c.l.b16 %v886
      %v926 = vunpack.c.l.b16 %v887
      %v927 = vunpack.c.l.b16 %v888
      %v928 = vunpack.c.l.b16 %v889
      %v929 = vpack.c.b16 %v914, %v913
      %v930 = vpack.c.b16 %v916, %v915
      %v931 = vpack.c.b16 %v918, %v917
      %v932 = vpack.c.b16 %v920, %v919
      %v933 = vpack.c.b16 %v922, %v921
      %v934 = vpack.c.b16 %v924, %v923
      %v935 = vpack.c.b16 %v926, %v925
      %v936 = vpack.c.b16 %v928, %v927
      %945 = vmatprep.subr.bf16.mxu0 0
      %946 = vmatpush1.bf16.msra.mxu0 %v936
      %947 = vmatprep.subr.bf16.mxu0 0
      %948 = vmatpush1.bf16.msra.mxu0 %v935
      %949 = vmatprep.subr.bf16.mxu0 0
      %950 = vmatpush1.bf16.msra.mxu0 %v934
      %951 = vmatprep.subr.bf16.mxu0 0
      %952 = vmatpush1.bf16.msra.mxu0 %v933
      %953 = vmatprep.subr.bf16.mxu0 0
      %954 = vmatpush1.bf16.msra.mxu0 %v932
      %955 = vmatprep.subr.bf16.mxu0 0
      %956 = vmatpush1.bf16.msra.mxu0 %v931
      %957 = vmatprep.subr.bf16.mxu0 0
      %958 = vmatpush1.bf16.msra.mxu0 %v930
      %959 = vmatprep.subr.bf16.mxu0 0
      %960 = vmatpush1.bf16.msra.mxu0 %v929
      %961 = vmatprep.subr.bf16.mxu0 0
      %962 = vmatpush2.bf16.msra.mxu0 0
      %963 = vmatprep.subr.bf16.mxu0 0
      %964 = vmatpush2.bf16.msra.mxu0 0
      %965 = vmatprep.subr.bf16.mxu0 0
      %966 = vmatpush2.bf16.msra.mxu0 0
      %967 = vmatprep.subr.bf16.mxu0 0
      %968 = vmatpush2.bf16.msra.mxu0 0
      %969 = vmatprep.subr.bf16.mxu0 0
      %970 = vmatpush2.bf16.msra.mxu0 0
      %971 = vmatprep.subr.bf16.mxu0 0
      %972 = vmatpush2.bf16.msra.mxu0 0
      %973 = vmatprep.subr.bf16.mxu0 0
      %974 = vmatpush2.bf16.msra.mxu0 0
      %975 = vmatprep.subr.bf16.mxu0 0
      %976 = vmatpush2.bf16.msra.mxu0 0
      %977 = vmatprep.mubr.bf16.mxu0 0
      %978 = vmatmul.mubr.bf16.gmra.mxu0 %v846
      %v979 = vpop.f32.mrf.mxu0
      %v980 = vadd.f32 %v895, %v979
      %v981 = vpop.f32.mrf.mxu0
      %v982 = vpop.f32.mrf.mxu0
      %v983 = vadd.f32 %v895, %v982
      %v984 = vpop.f32.mrf.mxu0
      %985 = vmatprep.mubr.bf16.mxu0 0
      %986 = vmatmul.mubr.bf16.gmra.mxu0 %v847
      %v987 = vpop.f32.mrf.mxu0
      %v988 = vadd.f32 %v895, %v987
      %v989 = vpop.f32.mrf.mxu0
      %v990 = vpop.f32.mrf.mxu0
      %v991 = vadd.f32 %v895, %v990
      %v992 = vpop.f32.mrf.mxu0
      %993 = vmatprep.mubr.bf16.mxu0 0
      %994 = vmatmul.mubr.bf16.gmra.mxu0 %v848
      %v995 = vpop.f32.mrf.mxu0
      %v996 = vadd.f32 %v895, %v995
      %v997 = vpop.f32.mrf.mxu0
      %v998 = vpop.f32.mrf.mxu0
      %v999 = vadd.f32 %v895, %v998
      %v1000 = vpop.f32.mrf.mxu0
      %1001 = vmatprep.mubr.bf16.mxu0 0
      %1002 = vmatmul.mubr.bf16.gmra.mxu0 %v849
      %v1003 = vpop.f32.mrf.mxu0
      %v1004 = vadd.f32 %v895, %v1003
      %v1005 = vpop.f32.mrf.mxu0
      %v1006 = vpop.f32.mrf.mxu0
      %v1007 = vadd.f32 %v895, %v1006
      %v1008 = vpop.f32.mrf.mxu0
      %1009 = vmatprep.mubr.bf16.mxu0 0
      %1010 = vmatmul.mubr.bf16.gmra.mxu0 %v850
      %v1011 = vpop.f32.mrf.mxu0
      %v1012 = vadd.f32 %v895, %v1011
      %v1013 = vpop.f32.mrf.mxu0
      %v1014 = vpop.f32.mrf.mxu0
      %v1015 = vadd.f32 %v895, %v1014
      %v1016 = vpop.f32.mrf.mxu0
      %1017 = vmatprep.mubr.bf16.mxu0 0
      %1018 = vmatmul.mubr.bf16.gmra.mxu0 %v851
      %v1019 = vpop.f32.mrf.mxu0
      %v1020 = vadd.f32 %v895, %v1019
      %v1021 = vpop.f32.mrf.mxu0
      %v1022 = vpop.f32.mrf.mxu0
      %v1023 = vadd.f32 %v895, %v1022
      %v1024 = vpop.f32.mrf.mxu0
      %1025 = vmatprep.mubr.bf16.mxu0 0
      %1026 = vmatmul.mubr.bf16.gmra.mxu0 %v852
      %v1027 = vpop.f32.mrf.mxu0
      %v1028 = vadd.f32 %v895, %v1027
      %v1029 = vpop.f32.mrf.mxu0
      %v1030 = vpop.f32.mrf.mxu0
      %v1031 = vadd.f32 %v895, %v1030
      %v1032 = vpop.f32.mrf.mxu0
      %1033 = vmatprep.mubr.bf16.mxu0 0
      %1034 = vmatmul.mubr.bf16.gmra.mxu0 %v853
      %v1035 = vpop.f32.mrf.mxu0
      %v1036 = vadd.f32 %v895, %v1035
      %v1037 = vpop.f32.mrf.mxu0
      %v1038 = vpop.f32.mrf.mxu0
      %v1039 = vadd.f32 %v895, %v1038
      %v1040 = vpop.f32.mrf.mxu0
      %1041 = vmatprep.mubr.bf16.mxu0 0
      %1042 = vmatmul.mubr.bf16.gmra.mxu0 %v854
      %v1043 = vpop.f32.mrf.mxu0
      %v1044 = vadd.f32 %v895, %v1043
      %v1045 = vpop.f32.mrf.mxu0
      %v1046 = vpop.f32.mrf.mxu0
      %v1047 = vadd.f32 %v895, %v1046
      %v1048 = vpop.f32.mrf.mxu0
      %1049 = vmatprep.mubr.bf16.mxu0 0
      %1050 = vmatmul.mubr.bf16.gmra.mxu0 %v855
      %v1051 = vpop.f32.mrf.mxu0
      %v1052 = vadd.f32 %v895, %v1051
      %v1053 = vpop.f32.mrf.mxu0
      %v1054 = vpop.f32.mrf.mxu0
      %v1055 = vadd.f32 %v895, %v1054
      %v1056 = vpop.f32.mrf.mxu0
      %1057 = vmatprep.mubr.bf16.mxu0 0
      %1058 = vmatmul.mubr.bf16.gmra.mxu0 %v856
      %v1059 = vpop.f32.mrf.mxu0
      %v1060 = vadd.f32 %v895, %v1059
      %v1061 = vpop.f32.mrf.mxu0
      %v1062 = vpop.f32.mrf.mxu0
      %v1063 = vadd.f32 %v895, %v1062
      %v1064 = vpop.f32.mrf.mxu0
      %1065 = vmatprep.mubr.bf16.mxu0 0
      %1066 = vmatmul.mubr.bf16.gmra.mxu0 %v857
      %v1067 = vpop.f32.mrf.mxu0
      %v1068 = vadd.f32 %v895, %v1067
      %v1069 = vpop.f32.mrf.mxu0
      %v1070 = vpop.f32.mrf.mxu0
      %v1071 = vadd.f32 %v895, %v1070
      %v1072 = vpop.f32.mrf.mxu0
      %1073 = vmatprep.mubr.bf16.mxu0 0
      %1074 = vmatmul.mubr.bf16.gmra.mxu0 %v858
      %v1075 = vpop.f32.mrf.mxu0
      %v1076 = vadd.f32 %v895, %v1075
      %v1077 = vpop.f32.mrf.mxu0
      %v1078 = vpop.f32.mrf.mxu0
      %v1079 = vadd.f32 %v895, %v1078
      %v1080 = vpop.f32.mrf.mxu0
      %1081 = vmatprep.mubr.bf16.mxu0 0
      %1082 = vmatmul.mubr.bf16.gmra.mxu0 %v859
      %v1083 = vpop.f32.mrf.mxu0
      %v1084 = vadd.f32 %v895, %v1083
      %v1085 = vpop.f32.mrf.mxu0
      %v1086 = vpop.f32.mrf.mxu0
      %v1087 = vadd.f32 %v895, %v1086
      %v1088 = vpop.f32.mrf.mxu0
      %1089 = vmatprep.mubr.bf16.mxu0 0
      %1090 = vmatmul.mubr.bf16.gmra.mxu0 %v860
      %v1091 = vpop.f32.mrf.mxu0
      %v1092 = vadd.f32 %v895, %v1091
      %v1093 = vpop.f32.mrf.mxu0
      %v1094 = vpop.f32.mrf.mxu0
      %v1095 = vadd.f32 %v895, %v1094
      %v1096 = vpop.f32.mrf.mxu0
      %1097 = vmatprep.mubr.bf16.mxu0 0
      %1098 = vmatmul.mubr.bf16.gmra.mxu0 %v861
      %v1099 = vpop.f32.mrf.mxu0
      %v1100 = vadd.f32 %v895, %v1099
      %v1101 = vpop.f32.mrf.mxu0
      %v1102 = vpop.f32.mrf.mxu0
      %v1103 = vadd.f32 %v895, %v1102
      %v1104 = vpop.f32.mrf.mxu0
      %1105 = vmatprep.mubr.bf16.mxu0 0
      %1106 = vmatmul.mubr.bf16.gmra.mxu0 %v862
      %v1107 = vpop.f32.mrf.mxu0
      %v1108 = vadd.f32 %v895, %v1107
      %v1109 = vpop.f32.mrf.mxu0
      %v1110 = vpop.f32.mrf.mxu0
      %v1111 = vadd.f32 %v895, %v1110
      %v1112 = vpop.f32.mrf.mxu0
      %1113 = vmatprep.mubr.bf16.mxu0 0
      %1114 = vmatmul.mubr.bf16.gmra.mxu0 %v863
      %v1115 = vpop.f32.mrf.mxu0
      %v1116 = vadd.f32 %v895, %v1115
      %v1117 = vpop.f32.mrf.mxu0
      %v1118 = vpop.f32.mrf.mxu0
      %v1119 = vadd.f32 %v895, %v1118
      %v1120 = vpop.f32.mrf.mxu0
      %1121 = vmatprep.mubr.bf16.mxu0 0
      %1122 = vmatmul.mubr.bf16.gmra.mxu0 %v864
      %v1123 = vpop.f32.mrf.mxu0
      %v1124 = vadd.f32 %v895, %v1123
      %v1125 = vpop.f32.mrf.mxu0
      %v1126 = vpop.f32.mrf.mxu0
      %v1127 = vadd.f32 %v895, %v1126
      %v1128 = vpop.f32.mrf.mxu0
      %1129 = vmatprep.mubr.bf16.mxu0 0
      %1130 = vmatmul.mubr.bf16.gmra.mxu0 %v865
      %v1131 = vpop.f32.mrf.mxu0
      %v1132 = vadd.f32 %v895, %v1131
      %v1133 = vpop.f32.mrf.mxu0
      %v1134 = vpop.f32.mrf.mxu0
      %v1135 = vadd.f32 %v895, %v1134
      %v1136 = vpop.f32.mrf.mxu0
      %1137 = vmatprep.mubr.bf16.mxu0 0
      %1138 = vmatmul.mubr.bf16.gmra.mxu0 %v866
      %v1139 = vpop.f32.mrf.mxu0
      %v1140 = vadd.f32 %v895, %v1139
      %v1141 = vpop.f32.mrf.mxu0
      %v1142 = vpop.f32.mrf.mxu0
      %v1143 = vadd.f32 %v895, %v1142
      %v1144 = vpop.f32.mrf.mxu0
      %1145 = vmatprep.mubr.bf16.mxu0 0
      %1146 = vmatmul.mubr.bf16.gmra.mxu0 %v867
      %v1147 = vpop.f32.mrf.mxu0
      %v1148 = vadd.f32 %v895, %v1147
      %v1149 = vpop.f32.mrf.mxu0
      %v1150 = vpop.f32.mrf.mxu0
      %v1151 = vadd.f32 %v895, %v1150
      %v1152 = vpop.f32.mrf.mxu0
      %1153 = vmatprep.mubr.bf16.mxu0 0
      %1154 = vmatmul.mubr.bf16.gmra.mxu0 %v868
      %v1155 = vpop.f32.mrf.mxu0
      %v1156 = vadd.f32 %v895, %v1155
      %v1157 = vpop.f32.mrf.mxu0
      %v1158 = vpop.f32.mrf.mxu0
      %v1159 = vadd.f32 %v895, %v1158
      %v1160 = vpop.f32.mrf.mxu0
      %1161 = vmatprep.mubr.bf16.mxu0 0
      %1162 = vmatmul.mubr.bf16.gmra.mxu0 %v869
      %v1163 = vpop.f32.mrf.mxu0
      %v1164 = vadd.f32 %v895, %v1163
      %v1165 = vpop.f32.mrf.mxu0
      %v1166 = vpop.f32.mrf.mxu0
      %v1167 = vadd.f32 %v895, %v1166
      %v1168 = vpop.f32.mrf.mxu0
      %1169 = vmatprep.mubr.bf16.mxu0 0
      %1170 = vmatmul.mubr.bf16.gmra.mxu0 %v870
      %v1171 = vpop.f32.mrf.mxu0
      %v1172 = vadd.f32 %v895, %v1171
      %v1173 = vpop.f32.mrf.mxu0
      %v1174 = vpop.f32.mrf.mxu0
      %v1175 = vadd.f32 %v895, %v1174
      %v1176 = vpop.f32.mrf.mxu0
      %1177 = vmatprep.mubr.bf16.mxu0 0
      %1178 = vmatmul.mubr.bf16.gmra.mxu0 %v871
      %v1179 = vpop.f32.mrf.mxu0
      %v1180 = vadd.f32 %v895, %v1179
      %v1181 = vpop.f32.mrf.mxu0
      %v1182 = vpop.f32.mrf.mxu0
      %v1183 = vadd.f32 %v895, %v1182
      %v1184 = vpop.f32.mrf.mxu0
      %1185 = vmatprep.mubr.bf16.mxu0 0
      %1186 = vmatmul.mubr.bf16.gmra.mxu0 %v872
      %v1187 = vpop.f32.mrf.mxu0
      %v1188 = vadd.f32 %v895, %v1187
      %v1189 = vpop.f32.mrf.mxu0
      %v1190 = vpop.f32.mrf.mxu0
      %v1191 = vadd.f32 %v895, %v1190
      %v1192 = vpop.f32.mrf.mxu0
      %1193 = vmatprep.mubr.bf16.mxu0 0
      %1194 = vmatmul.mubr.bf16.gmra.mxu0 %v873
      %v1195 = vpop.f32.mrf.mxu0
      %v1196 = vadd.f32 %v895, %v1195
      %v1197 = vpop.f32.mrf.mxu0
      %v1198 = vpop.f32.mrf.mxu0
      %v1199 = vadd.f32 %v895, %v1198
      %v1200 = vpop.f32.mrf.mxu0
      %1201 = vdwg.mxu0
      %v1202 = vsub.f32 0.0, %v980
      %v1203 = vsub.f32 0.0, %v983
      %v1204 = vsub.f32 0.0, %v988
      %v1205 = vsub.f32 0.0, %v991
      %v1206 = vsub.f32 0.0, %v996
      %v1207 = vsub.f32 0.0, %v999
      %v1208 = vsub.f32 0.0, %v1004
      %v1209 = vsub.f32 0.0, %v1007
      %v1210 = vsub.f32 0.0, %v1012
      %v1211 = vsub.f32 0.0, %v1015
      %v1212 = vsub.f32 0.0, %v1020
      %v1213 = vsub.f32 0.0, %v1023
      %v1214 = vsub.f32 0.0, %v1028
      %v1215 = vsub.f32 0.0, %v1031
      %v1216 = vsub.f32 0.0, %v1036
      %v1217 = vsub.f32 0.0, %v1039
      %v1218 = vsub.f32 0.0, %v1044
      %v1219 = vsub.f32 0.0, %v1047
      %v1220 = vsub.f32 0.0, %v1052
      %v1221 = vsub.f32 0.0, %v1055
      %v1222 = vsub.f32 0.0, %v1060
      %v1223 = vsub.f32 0.0, %v1063
      %v1224 = vsub.f32 0.0, %v1068
      %v1225 = vsub.f32 0.0, %v1071
      %v1226 = vsub.f32 0.0, %v1076
      %v1227 = vsub.f32 0.0, %v1079
      %v1228 = vsub.f32 0.0, %v1084
      %v1229 = vsub.f32 0.0, %v1087
      %v1230 = vsub.f32 0.0, %v1092
      %v1231 = vsub.f32 0.0, %v1095
      %v1232 = vsub.f32 0.0, %v1100
      %v1233 = vsub.f32 0.0, %v1103
      %v1234 = vsub.f32 0.0, %v1108
      %v1235 = vsub.f32 0.0, %v1111
      %v1236 = vsub.f32 0.0, %v1116
      %v1237 = vsub.f32 0.0, %v1119
      %v1238 = vsub.f32 0.0, %v1124
      %v1239 = vsub.f32 0.0, %v1127
      %v1240 = vsub.f32 0.0, %v1132
      %v1241 = vsub.f32 0.0, %v1135
      %v1242 = vsub.f32 0.0, %v1140
      %v1243 = vsub.f32 0.0, %v1143
      %v1244 = vsub.f32 0.0, %v1148
      %v1245 = vsub.f32 0.0, %v1151
      %v1246 = vsub.f32 0.0, %v1156
      %v1247 = vsub.f32 0.0, %v1159
      %v1248 = vsub.f32 0.0, %v1164
      %v1249 = vsub.f32 0.0, %v1167
      %v1250 = vsub.f32 0.0, %v1172
      %v1251 = vsub.f32 0.0, %v1175
      %v1252 = vsub.f32 0.0, %v1180
      %v1253 = vsub.f32 0.0, %v1183
      %v1254 = vsub.f32 0.0, %v1188
      %v1255 = vsub.f32 0.0, %v1191
      %v1256 = vsub.f32 0.0, %v1196
      %v1257 = vsub.f32 0.0, %v1199
      %v1258 = vmul.f32 %v1202, 1.442695
      %v1259 = vpow.pop %v1258
      %v1260 = vmul.f32 %v1203, 1.442695
      %v1261 = vpow.pop %v1260
      %v1262 = vmul.f32 %v1204, 1.442695
      %v1263 = vpow.pop %v1262
      %v1264 = vmul.f32 %v1205, 1.442695
      %v1265 = vpow.pop %v1264
      %v1266 = vmul.f32 %v1206, 1.442695
      %v1267 = vpow.pop %v1266
      %v1268 = vmul.f32 %v1207, 1.442695
      %v1269 = vpow.pop %v1268
      %v1270 = vmul.f32 %v1208, 1.442695
      %v1271 = vpow.pop %v1270
      %v1272 = vmul.f32 %v1209, 1.442695
      %v1273 = vpow.pop %v1272
      %v1274 = vmul.f32 %v1210, 1.442695
      %v1275 = vpow.pop %v1274
      %v1276 = vmul.f32 %v1211, 1.442695
      %v1277 = vpow.pop %v1276
      %v1278 = vmul.f32 %v1212, 1.442695
      %v1279 = vpow.pop %v1278
      %v1280 = vmul.f32 %v1213, 1.442695
      %v1281 = vpow.pop %v1280
      %v1282 = vmul.f32 %v1214, 1.442695
      %v1283 = vpow.pop %v1282
      %v1284 = vmul.f32 %v1215, 1.442695
      %v1285 = vpow.pop %v1284
      %v1286 = vmul.f32 %v1216, 1.442695
      %v1287 = vpow.pop %v1286
      %v1288 = vmul.f32 %v1217, 1.442695
      %v1289 = vpow.pop %v1288
      %v1290 = vmul.f32 %v1218, 1.442695
      %v1291 = vpow.pop %v1290
      %v1292 = vmul.f32 %v1219, 1.442695
      %v1293 = vpow.pop %v1292
      %v1294 = vmul.f32 %v1220, 1.442695
      %v1295 = vpow.pop %v1294
      %v1296 = vmul.f32 %v1221, 1.442695
      %v1297 = vpow.pop %v1296
      %v1298 = vmul.f32 %v1222, 1.442695
      %v1299 = vpow.pop %v1298
      %v1300 = vmul.f32 %v1223, 1.442695
      %v1301 = vpow.pop %v1300
      %v1302 = vmul.f32 %v1224, 1.442695
      %v1303 = vpow.pop %v1302
      %v1304 = vmul.f32 %v1225, 1.442695
      %v1305 = vpow.pop %v1304
      %v1306 = vmul.f32 %v1226, 1.442695
      %v1307 = vpow.pop %v1306
      %v1308 = vmul.f32 %v1227, 1.442695
      %v1309 = vpow.pop %v1308
      %v1310 = vmul.f32 %v1228, 1.442695
      %v1311 = vpow.pop %v1310
      %v1312 = vmul.f32 %v1229, 1.442695
      %v1313 = vpow.pop %v1312
      %v1314 = vmul.f32 %v1230, 1.442695
      %v1315 = vpow.pop %v1314
      %v1316 = vmul.f32 %v1231, 1.442695
      %v1317 = vpow.pop %v1316
      %v1318 = vmul.f32 %v1232, 1.442695
      %v1319 = vpow.pop %v1318
      %v1320 = vmul.f32 %v1233, 1.442695
      %v1321 = vpow.pop %v1320
      %v1322 = vmul.f32 %v1234, 1.442695
      %v1323 = vpow.pop %v1322
      %v1324 = vmul.f32 %v1235, 1.442695
      %v1325 = vpow.pop %v1324
      %v1326 = vmul.f32 %v1236, 1.442695
      %v1327 = vpow.pop %v1326
      %v1328 = vmul.f32 %v1237, 1.442695
      %v1329 = vpow.pop %v1328
      %v1330 = vmul.f32 %v1238, 1.442695
      %v1331 = vpow.pop %v1330
      %v1332 = vmul.f32 %v1239, 1.442695
      %v1333 = vpow.pop %v1332
      %v1334 = vmul.f32 %v1240, 1.442695
      %v1335 = vpow.pop %v1334
      %v1336 = vmul.f32 %v1241, 1.442695
      %v1337 = vpow.pop %v1336
      %v1338 = vmul.f32 %v1242, 1.442695
      %v1339 = vpow.pop %v1338
      %v1340 = vmul.f32 %v1243, 1.442695
      %v1341 = vpow.pop %v1340
      %v1342 = vmul.f32 %v1244, 1.442695
      %v1343 = vpow.pop %v1342
      %v1344 = vmul.f32 %v1245, 1.442695
      %v1345 = vpow.pop %v1344
      %v1346 = vmul.f32 %v1246, 1.442695
      %v1347 = vpow.pop %v1346
      %v1348 = vmul.f32 %v1247, 1.442695
      %v1349 = vpow.pop %v1348
      %v1350 = vmul.f32 %v1248, 1.442695
      %v1351 = vpow.pop %v1350
      %v1352 = vmul.f32 %v1249, 1.442695
      %v1353 = vpow.pop %v1352
      %v1354 = vmul.f32 %v1250, 1.442695
      %v1355 = vpow.pop %v1354
      %v1356 = vmul.f32 %v1251, 1.442695
      %v1357 = vpow.pop %v1356
      %v1358 = vmul.f32 %v1252, 1.442695
      %v1359 = vpow.pop %v1358
      %v1360 = vmul.f32 %v1253, 1.442695
      %v1361 = vpow.pop %v1360
      %v1362 = vmul.f32 %v1254, 1.442695
      %v1363 = vpow.pop %v1362
      %v1364 = vmul.f32 %v1255, 1.442695
      %v1365 = vpow.pop %v1364
      %v1366 = vmul.f32 %v1256, 1.442695
      %v1367 = vpow.pop %v1366
      %v1368 = vmul.f32 %v1257, 1.442695
      %v1369 = vpow.pop %v1368
      %v1370 = vadd.f32 %v1259, 1.0
      %v1371 = vadd.f32 %v1261, 1.0
      %v1372 = vadd.f32 %v1263, 1.0
      %v1373 = vadd.f32 %v1265, 1.0
      %v1374 = vadd.f32 %v1267, 1.0
      %v1375 = vadd.f32 %v1269, 1.0
      %v1376 = vadd.f32 %v1271, 1.0
      %v1377 = vadd.f32 %v1273, 1.0
      %v1378 = vadd.f32 %v1275, 1.0
      %v1379 = vadd.f32 %v1277, 1.0
      %v1380 = vadd.f32 %v1279, 1.0
      %v1381 = vadd.f32 %v1281, 1.0
      %v1382 = vadd.f32 %v1283, 1.0
      %v1383 = vadd.f32 %v1285, 1.0
      %v1384 = vadd.f32 %v1287, 1.0
      %v1385 = vadd.f32 %v1289, 1.0
      %v1386 = vadd.f32 %v1291, 1.0
      %v1387 = vadd.f32 %v1293, 1.0
      %v1388 = vadd.f32 %v1295, 1.0
      %v1389 = vadd.f32 %v1297, 1.0
      %v1390 = vadd.f32 %v1299, 1.0
      %v1391 = vadd.f32 %v1301, 1.0
      %v1392 = vadd.f32 %v1303, 1.0
      %v1393 = vadd.f32 %v1305, 1.0
      %v1394 = vadd.f32 %v1307, 1.0
      %v1395 = vadd.f32 %v1309, 1.0
      %v1396 = vadd.f32 %v1311, 1.0
      %v1397 = vadd.f32 %v1313, 1.0
      %v1398 = vadd.f32 %v1315, 1.0
      %v1399 = vadd.f32 %v1317, 1.0
      %v1400 = vadd.f32 %v1319, 1.0
      %v1401 = vadd.f32 %v1321, 1.0
      %v1402 = vadd.f32 %v1323, 1.0
      %v1403 = vadd.f32 %v1325, 1.0
      %v1404 = vadd.f32 %v1327, 1.0
      %v1405 = vadd.f32 %v1329, 1.0
      %v1406 = vadd.f32 %v1331, 1.0
      %v1407 = vadd.f32 %v1333, 1.0
      %v1408 = vadd.f32 %v1335, 1.0
      %v1409 = vadd.f32 %v1337, 1.0
      %v1410 = vadd.f32 %v1339, 1.0
      %v1411 = vadd.f32 %v1341, 1.0
      %v1412 = vadd.f32 %v1343, 1.0
      %v1413 = vadd.f32 %v1345, 1.0
      %v1414 = vadd.f32 %v1347, 1.0
      %v1415 = vadd.f32 %v1349, 1.0
      %v1416 = vadd.f32 %v1351, 1.0
      %v1417 = vadd.f32 %v1353, 1.0
      %v1418 = vadd.f32 %v1355, 1.0
      %v1419 = vadd.f32 %v1357, 1.0
      %v1420 = vadd.f32 %v1359, 1.0
      %v1421 = vadd.f32 %v1361, 1.0
      %v1422 = vadd.f32 %v1363, 1.0
      %v1423 = vadd.f32 %v1365, 1.0
      %v1424 = vadd.f32 %v1367, 1.0
      %v1425 = vadd.f32 %v1369, 1.0
      %v1426 = vrcp.pop %v1370
      %v1427 = vrcp.pop %v1371
      %v1428 = vrcp.pop %v1372
      %v1429 = vrcp.pop %v1373
      %v1430 = vrcp.pop %v1374
      %v1431 = vrcp.pop %v1375
      %v1432 = vrcp.pop %v1376
      %v1433 = vrcp.pop %v1377
      %v1434 = vrcp.pop %v1378
      %v1435 = vrcp.pop %v1379
      %v1436 = vrcp.pop %v1380
      %v1437 = vrcp.pop %v1381
      %v1438 = vrcp.pop %v1382
      %v1439 = vrcp.pop %v1383
      %v1440 = vrcp.pop %v1384
      %v1441 = vrcp.pop %v1385
      %v1442 = vrcp.pop %v1386
      %v1443 = vrcp.pop %v1387
      %v1444 = vrcp.pop %v1388
      %v1445 = vrcp.pop %v1389
      %v1446 = vrcp.pop %v1390
      %v1447 = vrcp.pop %v1391
      %v1448 = vrcp.pop %v1392
      %v1449 = vrcp.pop %v1393
      %v1450 = vrcp.pop %v1394
      %v1451 = vrcp.pop %v1395
      %v1452 = vrcp.pop %v1396
      %v1453 = vrcp.pop %v1397
      %v1454 = vrcp.pop %v1398
      %v1455 = vrcp.pop %v1399
      %v1456 = vrcp.pop %v1400
      %v1457 = vrcp.pop %v1401
      %v1458 = vrcp.pop %v1402
      %v1459 = vrcp.pop %v1403
      %v1460 = vrcp.pop %v1404
      %v1461 = vrcp.pop %v1405
      %v1462 = vrcp.pop %v1406
      %v1463 = vrcp.pop %v1407
      %v1464 = vrcp.pop %v1408
      %v1465 = vrcp.pop %v1409
      %v1466 = vrcp.pop %v1410
      %v1467 = vrcp.pop %v1411
      %v1468 = vrcp.pop %v1412
      %v1469 = vrcp.pop %v1413
      %v1470 = vrcp.pop %v1414
      %v1471 = vrcp.pop %v1415
      %v1472 = vrcp.pop %v1416
      %v1473 = vrcp.pop %v1417
      %v1474 = vrcp.pop %v1418
      %v1475 = vrcp.pop %v1419
      %v1476 = vrcp.pop %v1420
      %v1477 = vrcp.pop %v1421
      %v1478 = vrcp.pop %v1422
      %v1479 = vrcp.pop %v1423
      %v1480 = vrcp.pop %v1424
      %v1481 = vrcp.pop %v1425
      %v1482 = vpack.c.bf16 %v1427, %v1426
      %v1483 = vpack.c.bf16 %v1429, %v1428
      %v1484 = vpack.c.bf16 %v1431, %v1430
      %v1485 = vpack.c.bf16 %v1433, %v1432
      %v1486 = vpack.c.bf16 %v1435, %v1434
      %v1487 = vpack.c.bf16 %v1437, %v1436
      %v1488 = vpack.c.bf16 %v1439, %v1438
      %v1489 = vpack.c.bf16 %v1441, %v1440
      %v1490 = vpack.c.bf16 %v1443, %v1442
      %v1491 = vpack.c.bf16 %v1445, %v1444
      %v1492 = vpack.c.bf16 %v1447, %v1446
      %v1493 = vpack.c.bf16 %v1449, %v1448
      %v1494 = vpack.c.bf16 %v1451, %v1450
      %v1495 = vpack.c.bf16 %v1453, %v1452
      %v1496 = vpack.c.bf16 %v1455, %v1454
      %v1497 = vpack.c.bf16 %v1457, %v1456
      %v1498 = vpack.c.bf16 %v1459, %v1458
      %v1499 = vpack.c.bf16 %v1461, %v1460
      %v1500 = vpack.c.bf16 %v1463, %v1462
      %v1501 = vpack.c.bf16 %v1465, %v1464
      %v1502 = vpack.c.bf16 %v1467, %v1466
      %v1503 = vpack.c.bf16 %v1469, %v1468
      %v1504 = vpack.c.bf16 %v1471, %v1470
      %v1505 = vpack.c.bf16 %v1473, %v1472
      %v1506 = vpack.c.bf16 %v1475, %v1474
      %v1507 = vpack.c.bf16 %v1477, %v1476
      %v1508 = vpack.c.bf16 %v1479, %v1478
      %v1509 = vpack.c.bf16 %v1481, %v1480
      %v1538 = vunpack.c.l.b16 %v1482
      %v1539 = vunpack.c.h.b16 %v1482
      %v1540 = vunpack.c.l.b16 %v1483
      %v1541 = vunpack.c.h.b16 %v1483
      %v1542 = vunpack.c.l.b16 %v1484
      %v1543 = vunpack.c.h.b16 %v1484
      %v1544 = vunpack.c.l.b16 %v1485
      %v1545 = vunpack.c.h.b16 %v1485
      %v1546 = vunpack.c.l.b16 %v1486
      %v1547 = vunpack.c.h.b16 %v1486
      %v1548 = vunpack.c.l.b16 %v1487
      %v1549 = vunpack.c.h.b16 %v1487
      %v1550 = vunpack.c.l.b16 %v1488
      %v1551 = vunpack.c.h.b16 %v1488
      %v1552 = vunpack.c.l.b16 %v1489
      %v1553 = vunpack.c.h.b16 %v1489
      %v1554 = vunpack.c.l.b16 %v1490
      %v1555 = vunpack.c.h.b16 %v1490
      %v1556 = vunpack.c.l.b16 %v1491
      %v1557 = vunpack.c.h.b16 %v1491
      %v1558 = vunpack.c.l.b16 %v1492
      %v1559 = vunpack.c.h.b16 %v1492
      %v1560 = vunpack.c.l.b16 %v1493
      %v1561 = vunpack.c.h.b16 %v1493
      %v1562 = vunpack.c.l.b16 %v1494
      %v1563 = vunpack.c.h.b16 %v1494
      %v1564 = vunpack.c.l.b16 %v1495
      %v1565 = vunpack.c.h.b16 %v1495
      %v1566 = vunpack.c.l.b16 %v1496
      %v1567 = vunpack.c.h.b16 %v1496
      %v1568 = vunpack.c.l.b16 %v1497
      %v1569 = vunpack.c.h.b16 %v1497
      %v1570 = vunpack.c.l.b16 %v1498
      %v1571 = vunpack.c.h.b16 %v1498
      %v1572 = vunpack.c.l.b16 %v1499
      %v1573 = vunpack.c.h.b16 %v1499
      %v1574 = vunpack.c.l.b16 %v1500
      %v1575 = vunpack.c.h.b16 %v1500
      %v1576 = vunpack.c.l.b16 %v1501
      %v1577 = vunpack.c.h.b16 %v1501
      %v1578 = vunpack.c.l.b16 %v1502
      %v1579 = vunpack.c.h.b16 %v1502
      %v1580 = vunpack.c.l.b16 %v1503
      %v1581 = vunpack.c.h.b16 %v1503
      %v1582 = vunpack.c.l.b16 %v1504
      %v1583 = vunpack.c.h.b16 %v1504
      %v1584 = vunpack.c.l.b16 %v1505
      %v1585 = vunpack.c.h.b16 %v1505
      %v1586 = vunpack.c.l.b16 %v1506
      %v1587 = vunpack.c.h.b16 %v1506
      %v1588 = vunpack.c.l.b16 %v1507
      %v1589 = vunpack.c.h.b16 %v1507
      %v1590 = vunpack.c.l.b16 %v1508
      %v1591 = vunpack.c.h.b16 %v1508
      %v1592 = vunpack.c.l.b16 %v1509
      %v1593 = vunpack.c.h.b16 %v1509
      %v1594 = vpack.c.b16 %v1538, %v1538
      %v1595 = vpack.c.b16 %v1539, %v1539
      %v1596 = vpack.c.b16 %v1540, %v1540
      %v1597 = vpack.c.b16 %v1541, %v1541
      %v1598 = vpack.c.b16 %v1542, %v1542
      %v1599 = vpack.c.b16 %v1543, %v1543
      %v1600 = vpack.c.b16 %v1544, %v1544
      %v1601 = vpack.c.b16 %v1545, %v1545
      %v1602 = vpack.c.b16 %v1546, %v1546
      %v1603 = vpack.c.b16 %v1547, %v1547
      %v1604 = vpack.c.b16 %v1548, %v1548
      %v1605 = vpack.c.b16 %v1549, %v1549
      %v1606 = vpack.c.b16 %v1550, %v1550
      %v1607 = vpack.c.b16 %v1551, %v1551
      %v1608 = vpack.c.b16 %v1552, %v1552
      %v1609 = vpack.c.b16 %v1553, %v1553
      %v1610 = vpack.c.b16 %v1554, %v1554
      %v1611 = vpack.c.b16 %v1555, %v1555
      %v1612 = vpack.c.b16 %v1556, %v1556
      %v1613 = vpack.c.b16 %v1557, %v1557
      %v1614 = vpack.c.b16 %v1558, %v1558
      %v1615 = vpack.c.b16 %v1559, %v1559
      %v1616 = vpack.c.b16 %v1560, %v1560
      %v1617 = vpack.c.b16 %v1561, %v1561
      %v1618 = vpack.c.b16 %v1562, %v1562
      %v1619 = vpack.c.b16 %v1563, %v1563
      %v1620 = vpack.c.b16 %v1564, %v1564
      %v1621 = vpack.c.b16 %v1565, %v1565
      %v1622 = vpack.c.b16 %v1566, %v1566
      %v1623 = vpack.c.b16 %v1567, %v1567
      %v1624 = vpack.c.b16 %v1568, %v1568
      %v1625 = vpack.c.b16 %v1569, %v1569
      %v1626 = vpack.c.b16 %v1570, %v1570
      %v1627 = vpack.c.b16 %v1571, %v1571
      %v1628 = vpack.c.b16 %v1572, %v1572
      %v1629 = vpack.c.b16 %v1573, %v1573
      %v1630 = vpack.c.b16 %v1574, %v1574
      %v1631 = vpack.c.b16 %v1575, %v1575
      %v1632 = vpack.c.b16 %v1576, %v1576
      %v1633 = vpack.c.b16 %v1577, %v1577
      %v1634 = vpack.c.b16 %v1578, %v1578
      %v1635 = vpack.c.b16 %v1579, %v1579
      %v1636 = vpack.c.b16 %v1580, %v1580
      %v1637 = vpack.c.b16 %v1581, %v1581
      %v1638 = vpack.c.b16 %v1582, %v1582
      %v1639 = vpack.c.b16 %v1583, %v1583
      %v1640 = vpack.c.b16 %v1584, %v1584
      %v1641 = vpack.c.b16 %v1585, %v1585
      %v1642 = vpack.c.b16 %v1586, %v1586
      %v1643 = vpack.c.b16 %v1587, %v1587
      %v1644 = vpack.c.b16 %v1588, %v1588
      %v1645 = vpack.c.b16 %v1589, %v1589
      %v1646 = vpack.c.b16 %v1590, %v1590
      %v1647 = vpack.c.b16 %v1591, %v1591
      %v1648 = vpack.c.b16 %v1592, %v1592
      %v1649 = vpack.c.b16 %v1593, %v1593
      %1706 = vst [vmem:[%s226] sm:$0xf] %v1594
      %1707 = vst [vmem:[%s226 + $0x4] sm:$0xf] %v1595
      %1708 = vst [vmem:[%s226 + $0x8] sm:$0xf] %v1596
      %1709 = vst [vmem:[%s226 + $0xc] sm:$0xf] %v1597
      %1710 = vst [vmem:[%s226 + $0x10] sm:$0xf] %v1598
      %1711 = vst [vmem:[%s226 + $0x14] sm:$0xf] %v1599
      %1712 = vst [vmem:[%s226 + $0x18] sm:$0xf] %v1600
      %1713 = vst [vmem:[%s226 + $0x1c] sm:$0xf] %v1601
      %1714 = vst [vmem:[%s226 + $0x20] sm:$0xf] %v1602
      %1715 = vst [vmem:[%s226 + $0x24] sm:$0xf] %v1603
      %1716 = vst [vmem:[%s226 + $0x28] sm:$0xf] %v1604
      %1717 = vst [vmem:[%s226 + $0x2c] sm:$0xf] %v1605
      %1718 = vst [vmem:[%s226 + $0x30] sm:$0xf] %v1606
      %1719 = vst [vmem:[%s226 + $0x34] sm:$0xf] %v1607
      %1720 = vst [vmem:[%s226 + $0x38] sm:$0xf] %v1608
      %1721 = vst [vmem:[%s226 + $0x3c] sm:$0xf] %v1609
      %1722 = vst [vmem:[%s226 + $0x40] sm:$0xf] %v1610
      %1723 = vst [vmem:[%s226 + $0x44] sm:$0xf] %v1611
      %1724 = vst [vmem:[%s226 + $0x48] sm:$0xf] %v1612
      %1725 = vst [vmem:[%s226 + $0x4c] sm:$0xf] %v1613
      %1726 = vst [vmem:[%s226 + $0x50] sm:$0xf] %v1614
      %1727 = vst [vmem:[%s226 + $0x54] sm:$0xf] %v1615
      %1728 = vst [vmem:[%s226 + $0x58] sm:$0xf] %v1616
      %1729 = vst [vmem:[%s226 + $0x5c] sm:$0xf] %v1617
      %1730 = vst [vmem:[%s226 + $0x60] sm:$0xf] %v1618
      %1731 = vst [vmem:[%s226 + $0x64] sm:$0xf] %v1619
      %1732 = vst [vmem:[%s226 + $0x68] sm:$0xf] %v1620
      %1733 = vst [vmem:[%s226 + $0x6c] sm:$0xf] %v1621
      %1734 = vst [vmem:[%s226 + $0x70] sm:$0xf] %v1622
      %1735 = vst [vmem:[%s226 + $0x74] sm:$0xf] %v1623
      %1736 = vst [vmem:[%s226 + $0x78] sm:$0xf] %v1624
      %1737 = vst [vmem:[%s226 + $0x7c] sm:$0xf] %v1625
      %1738 = vst [vmem:[%s226 + $0x80] sm:$0xf] %v1626
      %1739 = vst [vmem:[%s226 + $0x84] sm:$0xf] %v1627
      %1740 = vst [vmem:[%s226 + $0x88] sm:$0xf] %v1628
      %1741 = vst [vmem:[%s226 + $0x8c] sm:$0xf] %v1629
      %1742 = vst [vmem:[%s226 + $0x90] sm:$0xf] %v1630
      %1743 = vst [vmem:[%s226 + $0x94] sm:$0xf] %v1631
      %1744 = vst [vmem:[%s226 + $0x98] sm:$0xf] %v1632
      %1745 = vst [vmem:[%s226 + $0x9c] sm:$0xf] %v1633
      %1746 = vst [vmem:[%s226 + $0xa0] sm:$0xf] %v1634
      %1747 = vst [vmem:[%s226 + $0xa4] sm:$0xf] %v1635
      %1748 = vst [vmem:[%s226 + $0xa8] sm:$0xf] %v1636
      %1749 = vst [vmem:[%s226 + $0xac] sm:$0xf] %v1637
      %1750 = vst [vmem:[%s226 + $0xb0] sm:$0xf] %v1638
      %1751 = vst [vmem:[%s226 + $0xb4] sm:$0xf] %v1639
      %1752 = vst [vmem:[%s226 + $0xb8] sm:$0xf] %v1640
      %1753 = vst [vmem:[%s226 + $0xbc] sm:$0xf] %v1641
      %1754 = vst [vmem:[%s226 + $0xc0] sm:$0xf] %v1642
      %1755 = vst [vmem:[%s226 + $0xc4] sm:$0xf] %v1643
      %1756 = vst [vmem:[%s226 + $0xc8] sm:$0xf] %v1644
      %1757 = vst [vmem:[%s226 + $0xcc] sm:$0xf] %v1645
      %1758 = vst [vmem:[%s226 + $0xd0] sm:$0xf] %v1646
      %1759 = vst [vmem:[%s226 + $0xd4] sm:$0xf] %v1647
      %1760 = vst [vmem:[%s226 + $0xd8] sm:$0xf] %v1648
      %1761 = vst [vmem:[%s226 + $0xdc] sm:$0xf] %v1649
      %s1762 = smul.u32 56, %s16
      %p1763 = scmp.lt.s32.totalorder %s1762, 783
      %s1764 = scalar_select %p1763, %s1762, 783
      %s1765 = smul.addr %s1764, 4
      %s1766 = scalar_lea.vmem %s5, %s1765
      // Predicated region
      $region41: #{generalized_rcnn_forward.21} parent=39 // pred_check
        %p1767 = pneg %p144
      $region42: #{generalized_rcnn_forward.21} parent=39 // pred_check_branch
        %1769 = sbr.rel (%p1767) target = $region44
      $region43: #{generalized_rcnn_forward.21} parent=39 // pred_region
        %s1770 = smul.u32 56, %s16
      $region44: #{generalized_rcnn_forward.21} parent=39 // pred_fallthru
        _
    $region40: #{generalized_rcnn_forward.21} parent=5 // pred_fallthru
      _
    %p1771 = scmp.le.s32.totalorder 2, %s11
    // Predicated region
    $region45: #{generalized_rcnn_forward.21} parent=5 // pred_check
      %p1772 = pneg %p1771
    $region46: #{generalized_rcnn_forward.21} parent=5 // pred_check_branch
      %1774 = sbr.rel (%p1772) target = $region48
    $region47: #{generalized_rcnn_forward.21} parent=5 // pred_region
      %s1775 = ssub.s32 %s11, 2
      // Predicated region
      $region49: #{generalized_rcnn_forward.21} parent=47 // pred_check
        %p1776 = pneg %p150
      $region50: #{generalized_rcnn_forward.21} parent=47 // pred_check_branch
        %1778 = sbr.rel (%p1776) target = $region52
      $region51: #{generalized_rcnn_forward.21} parent=47 // pred_region
        %s1779 = smul.u32 56, %s17
        %p1780 = scmp.lt.s32.totalorder %s1779, 783
        %s1781 = scalar_select %p1780, %s1779, 783
        %s1782 = smul.addr %s1781, 4
        %s1783 = scalar_lea.vmem %s5, %s1782
      $region52: #{generalized_rcnn_forward.21} parent=47 // pred_fallthru
        _
    $region48: #{generalized_rcnn_forward.21} parent=5 // pred_fallthru
      _
  $region6: #{generalized_rcnn_forward.21} parent=0 // loop_footer
    %s15 = sadd.s32 1, %s11
  $region7: #{generalized_rcnn_forward.21} parent=0 // loop_footer_branch
    %10 = sbr.rel target = $region3
  $region8: #{generalized_rcnn_forward.21} parent=0 // loop_exit
    _

</llo_original>
